<compile_context>
chip_gen: v6e
topology: v6e:2x2x1
jax: 0.10.0
libtpu: 0.0.40
codegen_flags: <defaults>
</compile_context>

<pallas_src>
import functools

import numpy as np
import jax
import jax.numpy as jnp
from jax.experimental import pallas as pl
from jax.experimental.pallas import tpu as pltpu

_SQRT_HALF = 0.7071067811865476

# Order of conv layers inside the packed weight slab (block i = layer i).
_CONV_ORDER = ("c1_d", "c1_r", "c2_d", "c2_r", "c3_d", "c3_r", "c4", "c5",
               "e1", "ef", "e2", "emax", "e3", "e3_", "e4")


def _round_up(v, m):
    return ((v + m - 1) // m) * m


def _pad_for(offsets):
    return _round_up(max(max(abs(int(o)) for o in offsets), 1), 128)


# ----------------------------------------------------------------------------
# in-kernel math helpers
# ----------------------------------------------------------------------------
def _erf(x):
    # Abramowitz & Stegun 7.1.26 rational approximation, |err| <= 1.5e-7.
    # NOTE: the divide is an EUP approx reciprocal (documented accuracy choice).
    p = 0.3275911
    a1, a2, a3, a4, a5 = (0.254829592, -0.284496736, 1.421413741,
                          -1.453152027, 1.061405429)
    z = jnp.abs(x)
    t = pl.reciprocal(1.0 + p * z, approx=True)
    poly = ((((a5 * t + a4) * t + a3) * t + a2) * t + a1) * t
    y = 1.0 - poly * jnp.exp(-z * z)
    return jnp.where(x < 0.0, -y, y)


def _gelu(x):
    # erf-based GELU, matching torch.nn.GELU() default.
    return 0.5 * x * (1.0 + _erf(x * _SQRT_HALF))


def _sigmoid(x):
    # divide on the EUP slot instead of the VALU.
    return pl.reciprocal(1.0 + jnp.exp(-x), approx=True)


# ----------------------------------------------------------------------------
# the single fused Pallas kernel (one grid step = one batch element)
# ----------------------------------------------------------------------------
def _rfdb_kernel(x_ref, mi_ref, mpc_ref, gsel_ref, up_ref, slab_ref, o_ref, *,
                 cp, n_order, off3, off_s2, off_px, off_py, off_c,
                 widx, wcols):
    f32 = jnp.float32
    bf16 = jnp.bfloat16
    slab = slab_ref[...]                       # (n_order*cp + cp, slab_cols) f32
    brow = n_order * cp                        # bias block row offset

    def w_of(name):
        i = widx[name]
        return slab[i * cp:(i + 1) * cp, :wcols[name]].astype(bf16)

    def b_of(name):
        i = widx[name]
        return slab[brow:brow + cp, i:i + 1]   # (cp, 1) f32

    def conv1x1(a_bf, name):
        return jnp.dot(w_of(name), a_bf, preferred_element_type=f32) + b_of(name)

    def conv3x3(a_bf, name, offsets):
        # im2col: stack the 9 lane-shifted views -> one K = 9*cp matmul.
        nl = a_bf.shape[1]
        pad = _pad_for(offsets)
        z = jnp.zeros((cp, pad), bf16)
        ext = jnp.concatenate([z, a_bf, z], axis=1)
        patch = jnp.concatenate(
            [ext[:, pad + o: pad + o + nl] for o in offsets], axis=0)
        return jnp.dot(w_of(name), patch, preferred_element_type=f32) + b_of(name)

    def window_max(a, offsets):
        nl = a.shape[1]
        pad = _pad_for(offsets)
        z = jnp.zeros((cp, pad), f32)
        ext = jnp.concatenate([z, a, z], axis=1)
        acc = ext[:, pad + offsets[0]: pad + offsets[0] + nl]
        for o in offsets[1:]:
            acc = jnp.maximum(acc, ext[:, pad + o: pad + o + nl])
        return acc

    x = x_ref[...]                             # (cp, L) f32, lane-dense
    mi = mi_ref[...]                           # (1, L)  interior mask
    mpc = mpc_ref[...]                         # (1, PL) pooled-grid interior mask
    x_bf = x.astype(bf16)

    # ---------------- RFDB trunk ----------------
    d1 = _gelu(conv1x1(x_bf, "c1_d"))
    r1 = _gelu(conv3x3(x_bf, "c1_r", off3) + x) * mi
    r1_bf = r1.astype(bf16)
    d2 = _gelu(conv1x1(r1_bf, "c2_d"))
    r2 = _gelu(conv3x3(r1_bf, "c2_r", off3) + r1) * mi
    r2_bf = r2.astype(bf16)
    d3 = _gelu(conv1x1(r2_bf, "c3_d"))
    r3_bf = (_gelu(conv3x3(r2_bf, "c3_r", off3) + r2) * mi).astype(bf16)
    r4 = _gelu(conv3x3(r3_bf, "c4", off3))

    # c5 over the (virtual) concat: one K = 4*cp matmul.
    cat = jnp.concatenate([d1.astype(bf16), d2.astype(bf16),
                           d3.astype(bf16), r4.astype(bf16)], axis=0)
    c5o = jnp.dot(w_of("c5"), cat, preferred_element_type=f32) + b_of("c5")

    # ---------------- ESA ----------------
    c1_ = conv1x1(c5o.astype(bf16), "e1")                 # conv1 (1x1)
    c1_bf = c1_.astype(bf16)
    cf = conv1x1(c1_bf, "ef")                             # conv_f (1x1)
    # conv2 (3x3, stride 2, pad 0) computed densely on the flat grid; only the
    # valid stride-2 anchors feeding the max-pool are consumed downstream
    # (asserted in _build_geometry).
    c1d = conv3x3(c1_bf, "e2", off_s2)
    # separable MaxPool2d(7, stride 3) on the stride-2 anchor lattice.
    vmax = window_max(window_max(c1d, off_px), off_py)
    # gather the PH*PW pooled pixels into the 128-lane compact pooled grid.
    vmax_c = jnp.dot(vmax.astype(bf16), gsel_ref[...], preferred_element_type=f32)
    # "same"-padded 3x3 convs natively on the compact (PH+2)x(PW+2) grid;
    # mpc keeps the pooled-grid zero padding exact between convs.
    vr = _gelu(conv3x3(vmax_c.astype(bf16), "emax", off_c)) * mpc
    c3a = _gelu(conv3x3(vr.astype(bf16), "e3", off_c)) * mpc
    c3b = conv3x3(c3a.astype(bf16), "e3_", off_c)
    # bilinear upsample back to full resolution (up rows for non-pooled lanes
    # are zero, so compact halo/tail garbage never leaks).
    c3u = jnp.dot(c3b.astype(bf16), up_ref[...], preferred_element_type=f32)
    c4v = conv1x1((c3u + cf).astype(bf16), "e4")
    o_ref[...] = c5o * _sigmoid(c4v)


# ----------------------------------------------------------------------------
# host-side packing: layouts, masks, selection / interpolation matrices
# ----------------------------------------------------------------------------
def _interp_matrix(out_size, in_size):
    # PyTorch F.interpolate(mode='bilinear', align_corners=False) as a matrix.
    M = np.zeros((out_size, in_size), dtype=np.float32)
    if in_size == 1:
        M[:, 0] = 1.0
        return M
    scale = in_size / out_size
    for o in range(out_size):
        src = max((o + 0.5) * scale - 0.5, 0.0)
        i0 = min(int(np.floor(src)), in_size - 1)
        i1 = min(i0 + 1, in_size - 1)
        l1 = src - i0
        M[o, i0] += 1.0 - l1
        M[o, i1] += l1
    return M


def _build_geometry(H, W):
    """Per-batch geometry: masks, pooled-pixel gather and upsample matrices."""
    Hp, Wp = H + 2, W + 2
    Li = Hp * Wp
    L = _round_up(Li, 128)

    H2, W2 = (H - 3) // 2 + 1, (W - 3) // 2 + 1          # ESA conv2 (s=2, p=0)
    assert H2 >= 7 and W2 >= 7, "spatial size too small for ESA max-pool"
    PH, PW = (H2 - 7) // 3 + 1, (W2 - 7) // 3 + 1        # MaxPool2d(7, 3)
    # every max-pool tap must land on a valid stride-2 conv2 anchor
    # (pool anchor spacing 6 = conv2 stride 2 * pool stride 3).
    assert 3 * (PH - 1) + 6 <= H2 - 1 and 3 * (PW - 1) + 6 <= W2 - 1
    PHp, PWp = PH + 2, PW + 2
    PL = _round_up(PHp * PWp, 128)

    canvas = np.zeros((Hp, Wp), np.float32)
    canvas[1:H + 1, 1:W + 1] = 1.0
    mi = np.zeros((1, L), np.float32)
    mi[0, :Li] = canvas.reshape(-1)

    mpc = np.zeros((1, PL), np.float32)
    gsel = np.zeros((L, PL), np.float32)
    up = np.zeros((PL, L), np.float32)
    My = _interp_matrix(H, PH)
    Mx = _interp_matrix(W, PW)
    for py in range(PH):
        for px in range(PW):
            pos = (6 * py + 1) * Wp + (6 * px + 1)       # flat anchor of pooled px
            cpos = (py + 1) * PWp + (px + 1)             # compact pooled-grid lane
            mpc[0, cpos] = 1.0
            gsel[pos, cpos] = 1.0
            pat = np.zeros((Hp, Wp), np.float32)
            pat[1:H + 1, 1:W + 1] = np.outer(My[:, py], Mx[:, px])
            up[cpos, :Li] = pat.reshape(-1)
    return dict(L=L, PL=PL, PH=PH, PW=PW, PWp=PWp,
                mi=mi, mpc=mpc, gsel=gsel, up=up)


def _pack_slab(params, cp):
    """All 15 weights (tap-major for 3x3) + 15 biases into one f32 slab."""
    p, e = params, params["esa"]
    raw = {"c1_d": p["c1_d"], "c1_r": p["c1_r"], "c2_d": p["c2_d"],
           "c2_r": p["c2_r"], "c3_d": p["c3_d"], "c3_r": p["c3_r"],
           "c4": p["c4"], "c5": p["c5"],
           "e1": e["conv1"], "ef": e["conv_f"], "e2": e["conv2"],
           "emax": e["conv_max"], "e3": e["conv3"], "e3_": e["conv3_"],
           "e4": e["conv4"]}
    slab_cols = _round_up(9 * cp, 128)
    slab = np.zeros(((len(_CONV_ORDER) + 1) * cp, slab_cols), np.float32)
    wcols = {}
    for i, name in enumerate(_CONV_ORDER):
        w, b = raw[name]
        w = np.asarray(w, np.float32)
        b = np.asarray(b, np.float32)
        cout, cin, kh, _ = w.shape
        if kh == 1:
            if name == "c5":
                dc = cin // 4
                wm = np.zeros((cp, 4 * cp), np.float32)
                for g in range(4):
                    wm[:cout, g * cp:g * cp + dc] = w[:, g * dc:(g + 1) * dc, 0, 0]
                ncol = 4 * cp
            else:
                wm = np.zeros((cp, cp), np.float32)
                wm[:cout, :cin] = w[:, :, 0, 0]
                ncol = cp
        else:
            tmp = np.zeros((cp, 3, 3, cp), np.float32)
            tmp[:cout, :, :, :cin] = np.transpose(w, (0, 2, 3, 1))
            wm = tmp.reshape(cp, 9 * cp)
            ncol = 9 * cp
        slab[i * cp:(i + 1) * cp, :ncol] = wm
        slab[len(_CONV_ORDER) * cp:len(_CONV_ORDER) * cp + cout, i] = b
        wcols[name] = ncol
    return jnp.asarray(slab), wcols


def _to_flat(x_nchw, cp, L):
    B, C, H, W = x_nchw.shape
    Hp, Wp = H + 2, W + 2
    xt = jnp.transpose(x_nchw, (1, 0, 2, 3)).astype(jnp.float32)      # (C,B,H,W)
    buf = jnp.zeros((cp, B, Hp, Wp), jnp.float32).at[:C, :, 1:H + 1, 1:W + 1].set(xt)
    buf = buf.reshape(cp, B, Hp * Wp)
    buf = jnp.pad(buf, ((0, 0), (0, 0), (0, L - Hp * Wp)))
    return buf.reshape(cp, B * L)


def _from_flat(o_flat, B, C, H, W, L):
    Hp, Wp = H + 2, W + 2
    o = o_flat.reshape(-1, B, L)[:C, :, :Hp * Wp].reshape(C, B, Hp, Wp)
    o = o[:, :, 1:H + 1, 1:W + 1]
    return jnp.transpose(o, (1, 0, 2, 3))                             # NCHW


# ----------------------------------------------------------------------------
# public forward
# ----------------------------------------------------------------------------
def rfdb_forward(params, x_nchw):
    B, C, H, W = x_nchw.shape
    cp = _round_up(C, 8)
    Wp = W + 2
    geo = _build_geometry(H, W)
    L, PL, PWp = geo["L"], geo["PL"], geo["PWp"]
    N = B * L

    # static tap-offset tables (Python ints) on the flat lane layouts
    off3 = tuple((dy - 1) * Wp + (dx - 1) for dy in range(3) for dx in range(3))
    off_s2 = tuple(dy * Wp + dx for dy in range(3) for dx in range(3))
    off_px = tuple(2 * kx for kx in range(7))            # separable pool, x
    off_py = tuple(2 * ky * Wp for ky in range(7))        # separable pool, y
    off_c = tuple((dy - 1) * PWp + (dx - 1) for dy in range(3) for dx in range(3))

    x_flat = _to_flat(x_nchw, cp, L)
    slab, wcols = _pack_slab(params, cp)
    widx = {name: i for i, name in enumerate(_CONV_ORDER)}

    mi = jnp.asarray(geo["mi"])
    mpc = jnp.asarray(geo["mpc"])
    gsel = jnp.asarray(geo["gsel"], dtype=jnp.bfloat16)
    up = jnp.asarray(geo["up"], dtype=jnp.bfloat16)

    kernel = functools.partial(
        _rfdb_kernel, cp=cp, n_order=len(_CONV_ORDER),
        off3=off3, off_s2=off_s2, off_px=off_px, off_py=off_py, off_c=off_c,
        widx=widx, wcols=wcols)

    # advisory cost estimate for the XLA scheduler
    flops_full = 2 * L * cp * (5 * 9 * cp + 6 * cp + 4 * cp)   # full-res matmuls
    flops_pool = 2 * L * PL * cp * 2                            # gather + upsample
    flops_comp = 2 * PL * cp * (3 * 9 * cp)                     # compact 3x3 convs
    flops = B * (flops_full + flops_pool + flops_comp)
    transcendentals = B * L * cp * 24
    bytes_accessed = (4 * (x_flat.size + cp * N + slab.size + mi.size + mpc.size)
                      + 2 * (gsel.size + up.size))

    out = pl.pallas_call(
        kernel,
        out_shape=jax.ShapeDtypeStruct((cp, N), jnp.float32),
        grid=(B,),
        in_specs=[
            pl.BlockSpec((cp, L), lambda b: (0, b)),       # x (per-batch block)
            pl.BlockSpec((1, L), lambda b: (0, 0)),        # interior mask
            pl.BlockSpec((1, PL), lambda b: (0, 0)),       # pooled-grid mask
            pl.BlockSpec((L, PL), lambda b: (0, 0)),       # pooled gather (bf16)
            pl.BlockSpec((PL, L), lambda b: (0, 0)),       # bilinear upsample (bf16)
            pl.BlockSpec(slab.shape, lambda b: (0, 0)),    # weight+bias slab
        ],
        out_specs=pl.BlockSpec((cp, L), lambda b: (0, b)),
        compiler_params=pltpu.CompilerParams(
            dimension_semantics=("parallel",),
            vmem_limit_bytes=16 * 1024 * 1024),
        cost_estimate=pl.CostEstimate(
            flops=int(flops), transcendentals=int(transcendentals),
            bytes_accessed=int(bytes_accessed)),
    )(x_flat, mi, mpc, gsel, up, slab)
    return _from_flat(out, B, C, H, W, L)


# ----------------------------------------------------------------------------
# plain-XLA reference (same semantics; used only for a non-fatal cross-check)
# ----------------------------------------------------------------------------
def rfdb_reference(params, x_nchw):
    x = jnp.transpose(x_nchw, (0, 2, 3, 1)).astype(jnp.float32)       # NHWC

    def conv(t, wb, stride=1, padding=0):
        w, b = wb
        dn = jax.lax.conv_dimension_numbers(t.shape, w.shape,
                                            ("NHWC", "OIHW", "NHWC"))
        y = jax.lax.conv_general_dilated(
            t, w, (stride, stride),
            [(padding, padding), (padding, padding)], dimension_numbers=dn)
        return y + b.reshape(1, 1, 1, -1)

    gelu = lambda t: jax.nn.gelu(t, approximate=False)
    p, e = params, params["esa"]
    d1 = gelu(conv(x, p["c1_d"]))
    r1 = gelu(conv(x, p["c1_r"], padding=1) + x)
    d2 = gelu(conv(r1, p["c2_d"]))
    r2 = gelu(conv(r1, p["c2_r"], padding=1) + r1)
    d3 = gelu(conv(r2, p["c3_d"]))
    r3 = gelu(conv(r2, p["c3_r"], padding=1) + r2)
    r4 = gelu(conv(r3, p["c4"], padding=1))
    out = conv(jnp.concatenate([d1, d2, d3, r4], axis=-1), p["c5"])
    c1_ = conv(out, e["conv1"])
    c1 = conv(c1_, e["conv2"], stride=2, padding=0)
    v_max = jax.lax.reduce_window(c1, -jnp.inf, jax.lax.max,
                                  (1, 7, 7, 1), (1, 3, 3, 1), "VALID")
    v_range = gelu(conv(v_max, e["conv_max"], padding=1))
    c3 = gelu(conv(v_range, e["conv3"], padding=1))
    c3 = conv(c3, e["conv3_"], padding=1)
    B, H, W, _ = x.shape
    My = jnp.asarray(_interp_matrix(H, c3.shape[1]))
    Mx = jnp.asarray(_interp_matrix(W, c3.shape[2]))
    c3 = jnp.einsum("yh,bhwc->bywc", My, c3)
    c3 = jnp.einsum("xw,bywc->byxc", Mx, c3)
    cf = conv(c1_, e["conv_f"])
    c4 = conv(c3 + cf, e["conv4"])
    return jnp.transpose(out * jax.nn.sigmoid(c4), (0, 3, 1, 2))


# ----------------------------------------------------------------------------
# deterministic parameter init (synthetic; shapes follow the module __init__)
# ----------------------------------------------------------------------------
def _init_conv(key, cout, cin, k):
    kw_, kb_ = jax.random.split(key)
    w = jax.random.normal(kw_, (cout, cin, k, k), jnp.float32) * (0.3 / np.sqrt(cin * k * k))
    b = jax.random.normal(kb_, (cout,), jnp.float32) * 0.02
    return w, b


def make_params(in_channels, key):
    dc = in_channels // 2
    f = in_channels // 4
    ks = jax.random.split(key, 15)
    return {
        "c1_d": _init_conv(ks[0], dc, in_channels, 1),
        "c1_r": _init_conv(ks[1], in_channels, in_channels, 3),
        "c2_d": _init_conv(ks[2], dc, in_channels, 1),
        "c2_r": _init_conv(ks[3], in_channels, in_channels, 3),
        "c3_d": _init_conv(ks[4], dc, in_channels, 1),
        "c3_r": _init_conv(ks[5], in_channels, in_channels, 3),
        "c4": _init_conv(ks[6], dc, in_channels, 3),
        "c5": _init_conv(ks[7], in_channels, dc * 4, 1),
        "esa": {
            "conv1": _init_conv(ks[8], f, in_channels, 1),
            "conv_f": _init_conv(ks[9], f, f, 1),
            "conv_max": _init_conv(ks[10], f, f, 3),
            "conv2": _init_conv(ks[11], f, f, 3),
            "conv3": _init_conv(ks[12], f, f, 3),
            "conv3_": _init_conv(ks[13], f, f, 3),
            "conv4": _init_conv(ks[14], in_channels, f, 1),
        },
    }


if __name__ == "__main__":
    in_channels = 8
    B, H, W = 2, 32, 32
    root = jax.random.PRNGKey(0)
    pkey, xkey = jax.random.split(root)
    params = make_params(in_channels, pkey)
    x = jax.random.normal(xkey, (B, in_channels, H, W), jnp.float32)

    fwd = jax.jit(functools.partial(rfdb_forward, params))
    y = jax.block_until_ready(fwd(x))
    assert y.shape == (B, in_channels, H, W), y.shape
    assert bool(jnp.all(jnp.isfinite(y)))

    # Best-effort, non-fatal numerical cross-check against a plain-XLA reference
    # (bf16 matmul operands + approx-erf GELU -> loose tolerance).
    try:
        y_ref = jax.block_until_ready(
            jax.jit(functools.partial(rfdb_reference, params))(x))
        err = float(jnp.max(jnp.abs(y - y_ref)))
        tol = 5e-2 * (1.0 + float(jnp.max(jnp.abs(y_ref))))
        if not (err <= tol):
            print(f"WARNING: kernel vs reference max|diff|={err:.3e} (tol {tol:.3e})")
    except Exception as exc:  # pragma: no cover - check is advisory only
        print(f"WARNING: reference cross-check skipped ({type(exc).__name__})")

    print("KERNEL_OK")
</pallas_src>

<mosaic_0001>
module attributes {stable_mosaic.version = 11 : i64} {
  func.func @_rfdb_kernel(%arg0: i32, %arg1: memref<8x1280xf32, #tpu.memory_space<vmem>>, %arg2: memref<1x1280xf32, #tpu.memory_space<vmem>>, %arg3: memref<1x128xf32, #tpu.memory_space<vmem>>, %arg4: memref<1280x128xbf16, #tpu.memory_space<vmem>>, %arg5: memref<128x1280xbf16, #tpu.memory_space<vmem>>, %arg6: memref<128x128xf32, #tpu.memory_space<vmem>>, %arg7: memref<8x1280xf32, #tpu.memory_space<vmem>>) attributes {dimension_semantics = [#tpu.dimension_semantics<parallel>], iteration_bounds = array<i64: 2>, scalar_prefetch = 0 : i64, scratch_operands = 0 : i64, tpu.core_type = #tpu.core_type<tc>, window_params = [{transform_indices = @transform_0, window_bounds = array<i64: 8, 1280>}, {pipeline_mode = #tpu.pipeline_mode<synchronous>, transform_indices = @transform_1, window_bounds = array<i64: 1, 1280>}, {pipeline_mode = #tpu.pipeline_mode<synchronous>, transform_indices = @transform_2, window_bounds = array<i64: 1, 128>}, {pipeline_mode = #tpu.pipeline_mode<synchronous>, transform_indices = @transform_3, window_bounds = array<i64: 1280, 128>}, {pipeline_mode = #tpu.pipeline_mode<synchronous>, transform_indices = @transform_4, window_bounds = array<i64: 128, 1280>}, {pipeline_mode = #tpu.pipeline_mode<synchronous>, transform_indices = @transform_5, window_bounds = array<i64: 128, 128>}, {transform_indices = @transform_6, window_bounds = array<i64: 8, 1280>}]} {
    %c0 = arith.constant 0 : index
    %c0_0 = arith.constant 0 : index
    %0 = vector.load %arg6[%c0, %c0_0] : memref<128x128xf32, #tpu.memory_space<vmem>>, vector<128x128xf32>
    %c0_1 = arith.constant 0 : index
    %c0_2 = arith.constant 0 : index
    %1 = vector.load %arg1[%c0_1, %c0_2] : memref<8x1280xf32, #tpu.memory_space<vmem>>, vector<8x1280xf32>
    %c0_3 = arith.constant 0 : index
    %c0_4 = arith.constant 0 : index
    %2 = vector.load %arg2[%c0_3, %c0_4] : memref<1x1280xf32, #tpu.memory_space<vmem>>, vector<1x1280xf32>
    %c0_5 = arith.constant 0 : index
    %c0_6 = arith.constant 0 : index
    %3 = vector.load %arg3[%c0_5, %c0_6] : memref<1x128xf32, #tpu.memory_space<vmem>>, vector<1x128xf32>
    %4 = arith.truncf %1 : vector<8x1280xf32> to vector<8x1280xbf16>
    %5 = vector.extract_strided_slice %0 {offsets = [0, 0], sizes = [8, 8], strides = [1, 1]} : vector<128x128xf32> to vector<8x8xf32>
    %6 = arith.truncf %5 : vector<8x8xf32> to vector<8x8xbf16>
    %cst = arith.constant dense<0.000000e+00> : vector<8x1280xf32>
    %7 = tpu.matmul %6, %4, %cst {dimension_numbers = #tpu.dot_dimension_numbers<[1], [0], [0], [1], [0, 0, 1, 1], [], []>} : vector<8x8xbf16>, vector<8x1280xbf16>, vector<8x1280xf32> -> vector<8x1280xf32>
    %8 = vector.extract_strided_slice %0 {offsets = [120, 0], sizes = [8, 1], strides = [1, 1]} : vector<128x128xf32> to vector<8x1xf32>
    %9 = vector.broadcast %8 : vector<8x1xf32> to vector<8x1280xf32>
    %10 = arith.addf %7, %9 : vector<8x1280xf32>
    %cst_7 = arith.constant 5.000000e-01 : f32
    %11 = vector.broadcast %cst_7 : f32 to vector<8x1280xf32>
    %12 = arith.mulf %11, %10 : vector<8x1280xf32>
    %cst_8 = arith.constant 0.707106769 : f32
    %13 = vector.broadcast %cst_8 : f32 to vector<8x1280xf32>
    %14 = arith.mulf %10, %13 : vector<8x1280xf32>
    %15 = math.absf %14 : vector<8x1280xf32>
    %cst_9 = arith.constant 0.327591091 : f32
    %16 = vector.broadcast %cst_9 : f32 to vector<8x1280xf32>
    %17 = arith.mulf %16, %15 : vector<8x1280xf32>
    %cst_10 = arith.constant 1.000000e+00 : f32
    %18 = vector.broadcast %cst_10 : f32 to vector<8x1280xf32>
    %19 = arith.addf %18, %17 : vector<8x1280xf32>
    %20 = tpu.reciprocal %19 {approx = true} : vector<8x1280xf32> -> vector<8x1280xf32>
    %cst_11 = arith.constant 1.06140542 : f32
    %21 = vector.broadcast %cst_11 : f32 to vector<8x1280xf32>
    %22 = arith.mulf %21, %20 : vector<8x1280xf32>
    %cst_12 = arith.constant -1.45315206 : f32
    %23 = vector.broadcast %cst_12 : f32 to vector<8x1280xf32>
    %24 = arith.addf %22, %23 : vector<8x1280xf32>
    %25 = arith.mulf %24, %20 : vector<8x1280xf32>
    %cst_13 = arith.constant 1.42141378 : f32
    %26 = vector.broadcast %cst_13 : f32 to vector<8x1280xf32>
    %27 = arith.addf %25, %26 : vector<8x1280xf32>
    %28 = arith.mulf %27, %20 : vector<8x1280xf32>
    %cst_14 = arith.constant -0.284496725 : f32
    %29 = vector.broadcast %cst_14 : f32 to vector<8x1280xf32>
    %30 = arith.addf %28, %29 : vector<8x1280xf32>
    %31 = arith.mulf %30, %20 : vector<8x1280xf32>
    %cst_15 = arith.constant 0.254829586 : f32
    %32 = vector.broadcast %cst_15 : f32 to vector<8x1280xf32>
    %33 = arith.addf %31, %32 : vector<8x1280xf32>
    %34 = arith.mulf %33, %20 : vector<8x1280xf32>
    %cst_16 = arith.constant 0.000000e+00 : f32
    %35 = vector.broadcast %cst_16 : f32 to vector<8x1280xf32>
    %36 = arith.subf %35, %15 : vector<8x1280xf32>
    %37 = arith.mulf %36, %15 : vector<8x1280xf32>
    %38 = math.exp %37 : vector<8x1280xf32>
    %39 = arith.mulf %34, %38 : vector<8x1280xf32>
    %cst_17 = arith.constant 1.000000e+00 : f32
    %40 = vector.broadcast %cst_17 : f32 to vector<8x1280xf32>
    %41 = arith.subf %40, %39 : vector<8x1280xf32>
    %cst_18 = arith.constant 0.000000e+00 : f32
    %42 = vector.broadcast %cst_18 : f32 to vector<8x1280xf32>
    %43 = arith.cmpf olt, %14, %42 : vector<8x1280xf32>
    %cst_19 = arith.constant 0.000000e+00 : f32
    %44 = vector.broadcast %cst_19 : f32 to vector<8x1280xf32>
    %45 = arith.subf %44, %41 : vector<8x1280xf32>
    %46 = arith.select %43, %45, %41 : vector<8x1280xi1>, vector<8x1280xf32>
    %cst_20 = arith.constant 1.000000e+00 : f32
    %47 = vector.broadcast %cst_20 : f32 to vector<8x1280xf32>
    %48 = arith.addf %47, %46 : vector<8x1280xf32>
    %49 = arith.mulf %12, %48 : vector<8x1280xf32>
    %cst_21 = arith.constant 0.000000e+00 : bf16
    %50 = vector.broadcast %cst_21 : bf16 to vector<8x128xbf16>
    %51 = tpu.concatenate %50, %4, %50 in 1 : vector<8x128xbf16>, vector<8x1280xbf16>, vector<8x128xbf16> -> vector<8x1536xbf16>
    %52 = vector.extract_strided_slice %51 {offsets = [0, 93], sizes = [8, 1280], strides = [1, 1]} : vector<8x1536xbf16> to vector<8x1280xbf16>
    %53 = vector.extract_strided_slice %51 {offsets = [0, 94], sizes = [8, 1280], strides = [1, 1]} : vector<8x1536xbf16> to vector<8x1280xbf16>
    %54 = vector.extract_strided_slice %51 {offsets = [0, 95], sizes = [8, 1280], strides = [1, 1]} : vector<8x1536xbf16> to vector<8x1280xbf16>
    %55 = vector.extract_strided_slice %51 {offsets = [0, 127], sizes = [8, 1280], strides = [1, 1]} : vector<8x1536xbf16> to vector<8x1280xbf16>
    %56 = vector.extract_strided_slice %51 {offsets = [0, 128], sizes = [8, 1280], strides = [1, 1]} : vector<8x1536xbf16> to vector<8x1280xbf16>
    %57 = vector.extract_strided_slice %51 {offsets = [0, 129], sizes = [8, 1280], strides = [1, 1]} : vector<8x1536xbf16> to vector<8x1280xbf16>
    %58 = vector.extract_strided_slice %51 {offsets = [0, 161], sizes = [8, 1280], strides = [1, 1]} : vector<8x1536xbf16> to vector<8x1280xbf16>
    %59 = vector.extract_strided_slice %51 {offsets = [0, 162], sizes = [8, 1280], strides = [1, 1]} : vector<8x1536xbf16> to vector<8x1280xbf16>
    %60 = vector.extract_strided_slice %51 {offsets = [0, 163], sizes = [8, 1280], strides = [1, 1]} : vector<8x1536xbf16> to vector<8x1280xbf16>
    %61 = tpu.concatenate %52, %53, %54, %55, %56, %57, %58, %59, %60 in 0 : vector<8x1280xbf16>, vector<8x1280xbf16>, vector<8x1280xbf16>, vector<8x1280xbf16>, vector<8x1280xbf16>, vector<8x1280xbf16>, vector<8x1280xbf16>, vector<8x1280xbf16>, vector<8x1280xbf16> -> vector<72x1280xbf16>
    %62 = vector.extract_strided_slice %0 {offsets = [8, 0], sizes = [8, 72], strides = [1, 1]} : vector<128x128xf32> to vector<8x72xf32>
    %63 = arith.truncf %62 : vector<8x72xf32> to vector<8x72xbf16>
    %cst_22 = arith.constant dense<0.000000e+00> : vector<8x1280xf32>
    %64 = tpu.matmul %63, %61, %cst_22 {dimension_numbers = #tpu.dot_dimension_numbers<[1], [0], [0], [1], [0, 0, 1, 1], [], []>} : vector<8x72xbf16>, vector<72x1280xbf16>, vector<8x1280xf32> -> vector<8x1280xf32>
    %65 = vector.extract_strided_slice %0 {offsets = [120, 1], sizes = [8, 1], strides = [1, 1]} : vector<128x128xf32> to vector<8x1xf32>
    %66 = vector.broadcast %65 : vector<8x1xf32> to vector<8x1280xf32>
    %67 = arith.addf %64, %66 : vector<8x1280xf32>
    %68 = arith.addf %67, %1 : vector<8x1280xf32>
    %cst_23 = arith.constant 5.000000e-01 : f32
    %69 = vector.broadcast %cst_23 : f32 to vector<8x1280xf32>
    %70 = arith.mulf %69, %68 : vector<8x1280xf32>
    %cst_24 = arith.constant 0.707106769 : f32
    %71 = vector.broadcast %cst_24 : f32 to vector<8x1280xf32>
    %72 = arith.mulf %68, %71 : vector<8x1280xf32>
    %73 = math.absf %72 : vector<8x1280xf32>
    %cst_25 = arith.constant 0.327591091 : f32
    %74 = vector.broadcast %cst_25 : f32 to vector<8x1280xf32>
    %75 = arith.mulf %74, %73 : vector<8x1280xf32>
    %cst_26 = arith.constant 1.000000e+00 : f32
    %76 = vector.broadcast %cst_26 : f32 to vector<8x1280xf32>
    %77 = arith.addf %76, %75 : vector<8x1280xf32>
    %78 = tpu.reciprocal %77 {approx = true} : vector<8x1280xf32> -> vector<8x1280xf32>
    %cst_27 = arith.constant 1.06140542 : f32
    %79 = vector.broadcast %cst_27 : f32 to vector<8x1280xf32>
    %80 = arith.mulf %79, %78 : vector<8x1280xf32>
    %cst_28 = arith.constant -1.45315206 : f32
    %81 = vector.broadcast %cst_28 : f32 to vector<8x1280xf32>
    %82 = arith.addf %80, %81 : vector<8x1280xf32>
    %83 = arith.mulf %82, %78 : vector<8x1280xf32>
    %cst_29 = arith.constant 1.42141378 : f32
    %84 = vector.broadcast %cst_29 : f32 to vector<8x1280xf32>
    %85 = arith.addf %83, %84 : vector<8x1280xf32>
    %86 = arith.mulf %85, %78 : vector<8x1280xf32>
    %cst_30 = arith.constant -0.284496725 : f32
    %87 = vector.broadcast %cst_30 : f32 to vector<8x1280xf32>
    %88 = arith.addf %86, %87 : vector<8x1280xf32>
    %89 = arith.mulf %88, %78 : vector<8x1280xf32>
    %cst_31 = arith.constant 0.254829586 : f32
    %90 = vector.broadcast %cst_31 : f32 to vector<8x1280xf32>
    %91 = arith.addf %89, %90 : vector<8x1280xf32>
    %92 = arith.mulf %91, %78 : vector<8x1280xf32>
    %cst_32 = arith.constant 0.000000e+00 : f32
    %93 = vector.broadcast %cst_32 : f32 to vector<8x1280xf32>
    %94 = arith.subf %93, %73 : vector<8x1280xf32>
    %95 = arith.mulf %94, %73 : vector<8x1280xf32>
    %96 = math.exp %95 : vector<8x1280xf32>
    %97 = arith.mulf %92, %96 : vector<8x1280xf32>
    %cst_33 = arith.constant 1.000000e+00 : f32
    %98 = vector.broadcast %cst_33 : f32 to vector<8x1280xf32>
    %99 = arith.subf %98, %97 : vector<8x1280xf32>
    %cst_34 = arith.constant 0.000000e+00 : f32
    %100 = vector.broadcast %cst_34 : f32 to vector<8x1280xf32>
    %101 = arith.cmpf olt, %72, %100 : vector<8x1280xf32>
    %cst_35 = arith.constant 0.000000e+00 : f32
    %102 = vector.broadcast %cst_35 : f32 to vector<8x1280xf32>
    %103 = arith.subf %102, %99 : vector<8x1280xf32>
    %104 = arith.select %101, %103, %99 : vector<8x1280xi1>, vector<8x1280xf32>
    %cst_36 = arith.constant 1.000000e+00 : f32
    %105 = vector.broadcast %cst_36 : f32 to vector<8x1280xf32>
    %106 = arith.addf %105, %104 : vector<8x1280xf32>
    %107 = arith.mulf %70, %106 : vector<8x1280xf32>
    %108 = vector.broadcast %2 : vector<1x1280xf32> to vector<8x1280xf32>
    %109 = arith.mulf %107, %108 : vector<8x1280xf32>
    %110 = arith.truncf %109 : vector<8x1280xf32> to vector<8x1280xbf16>
    %111 = vector.extract_strided_slice %0 {offsets = [16, 0], sizes = [8, 8], strides = [1, 1]} : vector<128x128xf32> to vector<8x8xf32>
    %112 = arith.truncf %111 : vector<8x8xf32> to vector<8x8xbf16>
    %cst_37 = arith.constant dense<0.000000e+00> : vector<8x1280xf32>
    %113 = tpu.matmul %112, %110, %cst_37 {dimension_numbers = #tpu.dot_dimension_numbers<[1], [0], [0], [1], [0, 0, 1, 1], [], []>} : vector<8x8xbf16>, vector<8x1280xbf16>, vector<8x1280xf32> -> vector<8x1280xf32>
    %114 = vector.extract_strided_slice %0 {offsets = [120, 2], sizes = [8, 1], strides = [1, 1]} : vector<128x128xf32> to vector<8x1xf32>
    %115 = vector.broadcast %114 : vector<8x1xf32> to vector<8x1280xf32>
    %116 = arith.addf %113, %115 : vector<8x1280xf32>
    %cst_38 = arith.constant 5.000000e-01 : f32
    %117 = vector.broadcast %cst_38 : f32 to vector<8x1280xf32>
    %118 = arith.mulf %117, %116 : vector<8x1280xf32>
    %cst_39 = arith.constant 0.707106769 : f32
    %119 = vector.broadcast %cst_39 : f32 to vector<8x1280xf32>
    %120 = arith.mulf %116, %119 : vector<8x1280xf32>
    %121 = math.absf %120 : vector<8x1280xf32>
    %cst_40 = arith.constant 0.327591091 : f32
    %122 = vector.broadcast %cst_40 : f32 to vector<8x1280xf32>
    %123 = arith.mulf %122, %121 : vector<8x1280xf32>
    %cst_41 = arith.constant 1.000000e+00 : f32
    %124 = vector.broadcast %cst_41 : f32 to vector<8x1280xf32>
    %125 = arith.addf %124, %123 : vector<8x1280xf32>
    %126 = tpu.reciprocal %125 {approx = true} : vector<8x1280xf32> -> vector<8x1280xf32>
    %cst_42 = arith.constant 1.06140542 : f32
    %127 = vector.broadcast %cst_42 : f32 to vector<8x1280xf32>
    %128 = arith.mulf %127, %126 : vector<8x1280xf32>
    %cst_43 = arith.constant -1.45315206 : f32
    %129 = vector.broadcast %cst_43 : f32 to vector<8x1280xf32>
    %130 = arith.addf %128, %129 : vector<8x1280xf32>
    %131 = arith.mulf %130, %126 : vector<8x1280xf32>
    %cst_44 = arith.constant 1.42141378 : f32
    %132 = vector.broadcast %cst_44 : f32 to vector<8x1280xf32>
    %133 = arith.addf %131, %132 : vector<8x1280xf32>
    %134 = arith.mulf %133, %126 : vector<8x1280xf32>
    %cst_45 = arith.constant -0.284496725 : f32
    %135 = vector.broadcast %cst_45 : f32 to vector<8x1280xf32>
    %136 = arith.addf %134, %135 : vector<8x1280xf32>
    %137 = arith.mulf %136, %126 : vector<8x1280xf32>
    %cst_46 = arith.constant 0.254829586 : f32
    %138 = vector.broadcast %cst_46 : f32 to vector<8x1280xf32>
    %139 = arith.addf %137, %138 : vector<8x1280xf32>
    %140 = arith.mulf %139, %126 : vector<8x1280xf32>
    %cst_47 = arith.constant 0.000000e+00 : f32
    %141 = vector.broadcast %cst_47 : f32 to vector<8x1280xf32>
    %142 = arith.subf %141, %121 : vector<8x1280xf32>
    %143 = arith.mulf %142, %121 : vector<8x1280xf32>
    %144 = math.exp %143 : vector<8x1280xf32>
    %145 = arith.mulf %140, %144 : vector<8x1280xf32>
    %cst_48 = arith.constant 1.000000e+00 : f32
    %146 = vector.broadcast %cst_48 : f32 to vector<8x1280xf32>
    %147 = arith.subf %146, %145 : vector<8x1280xf32>
    %cst_49 = arith.constant 0.000000e+00 : f32
    %148 = vector.broadcast %cst_49 : f32 to vector<8x1280xf32>
    %149 = arith.cmpf olt, %120, %148 : vector<8x1280xf32>
    %cst_50 = arith.constant 0.000000e+00 : f32
    %150 = vector.broadcast %cst_50 : f32 to vector<8x1280xf32>
    %151 = arith.subf %150, %147 : vector<8x1280xf32>
    %152 = arith.select %149, %151, %147 : vector<8x1280xi1>, vector<8x1280xf32>
    %cst_51 = arith.constant 1.000000e+00 : f32
    %153 = vector.broadcast %cst_51 : f32 to vector<8x1280xf32>
    %154 = arith.addf %153, %152 : vector<8x1280xf32>
    %155 = arith.mulf %118, %154 : vector<8x1280xf32>
    %cst_52 = arith.constant 0.000000e+00 : bf16
    %156 = vector.broadcast %cst_52 : bf16 to vector<8x128xbf16>
    %157 = tpu.concatenate %156, %110, %156 in 1 : vector<8x128xbf16>, vector<8x1280xbf16>, vector<8x128xbf16> -> vector<8x1536xbf16>
    %158 = vector.extract_strided_slice %157 {offsets = [0, 93], sizes = [8, 1280], strides = [1, 1]} : vector<8x1536xbf16> to vector<8x1280xbf16>
    %159 = vector.extract_strided_slice %157 {offsets = [0, 94], sizes = [8, 1280], strides = [1, 1]} : vector<8x1536xbf16> to vector<8x1280xbf16>
    %160 = vector.extract_strided_slice %157 {offsets = [0, 95], sizes = [8, 1280], strides = [1, 1]} : vector<8x1536xbf16> to vector<8x1280xbf16>
    %161 = vector.extract_strided_slice %157 {offsets = [0, 127], sizes = [8, 1280], strides = [1, 1]} : vector<8x1536xbf16> to vector<8x1280xbf16>
    %162 = vector.extract_strided_slice %157 {offsets = [0, 128], sizes = [8, 1280], strides = [1, 1]} : vector<8x1536xbf16> to vector<8x1280xbf16>
    %163 = vector.extract_strided_slice %157 {offsets = [0, 129], sizes = [8, 1280], strides = [1, 1]} : vector<8x1536xbf16> to vector<8x1280xbf16>
    %164 = vector.extract_strided_slice %157 {offsets = [0, 161], sizes = [8, 1280], strides = [1, 1]} : vector<8x1536xbf16> to vector<8x1280xbf16>
    %165 = vector.extract_strided_slice %157 {offsets = [0, 162], sizes = [8, 1280], strides = [1, 1]} : vector<8x1536xbf16> to vector<8x1280xbf16>
    %166 = vector.extract_strided_slice %157 {offsets = [0, 163], sizes = [8, 1280], strides = [1, 1]} : vector<8x1536xbf16> to vector<8x1280xbf16>
    %167 = tpu.concatenate %158, %159, %160, %161, %162, %163, %164, %165, %166 in 0 : vector<8x1280xbf16>, vector<8x1280xbf16>, vector<8x1280xbf16>, vector<8x1280xbf16>, vector<8x1280xbf16>, vector<8x1280xbf16>, vector<8x1280xbf16>, vector<8x1280xbf16>, vector<8x1280xbf16> -> vector<72x1280xbf16>
    %168 = vector.extract_strided_slice %0 {offsets = [24, 0], sizes = [8, 72], strides = [1, 1]} : vector<128x128xf32> to vector<8x72xf32>
    %169 = arith.truncf %168 : vector<8x72xf32> to vector<8x72xbf16>
    %cst_53 = arith.constant dense<0.000000e+00> : vector<8x1280xf32>
    %170 = tpu.matmul %169, %167, %cst_53 {dimension_numbers = #tpu.dot_dimension_numbers<[1], [0], [0], [1], [0, 0, 1, 1], [], []>} : vector<8x72xbf16>, vector<72x1280xbf16>, vector<8x1280xf32> -> vector<8x1280xf32>
    %171 = vector.extract_strided_slice %0 {offsets = [120, 3], sizes = [8, 1], strides = [1, 1]} : vector<128x128xf32> to vector<8x1xf32>
    %172 = vector.broadcast %171 : vector<8x1xf32> to vector<8x1280xf32>
    %173 = arith.addf %170, %172 : vector<8x1280xf32>
    %174 = arith.addf %173, %109 : vector<8x1280xf32>
    %cst_54 = arith.constant 5.000000e-01 : f32
    %175 = vector.broadcast %cst_54 : f32 to vector<8x1280xf32>
    %176 = arith.mulf %175, %174 : vector<8x1280xf32>
    %cst_55 = arith.constant 0.707106769 : f32
    %177 = vector.broadcast %cst_55 : f32 to vector<8x1280xf32>
    %178 = arith.mulf %174, %177 : vector<8x1280xf32>
    %179 = math.absf %178 : vector<8x1280xf32>
    %cst_56 = arith.constant 0.327591091 : f32
    %180 = vector.broadcast %cst_56 : f32 to vector<8x1280xf32>
    %181 = arith.mulf %180, %179 : vector<8x1280xf32>
    %cst_57 = arith.constant 1.000000e+00 : f32
    %182 = vector.broadcast %cst_57 : f32 to vector<8x1280xf32>
    %183 = arith.addf %182, %181 : vector<8x1280xf32>
    %184 = tpu.reciprocal %183 {approx = true} : vector<8x1280xf32> -> vector<8x1280xf32>
    %cst_58 = arith.constant 1.06140542 : f32
    %185 = vector.broadcast %cst_58 : f32 to vector<8x1280xf32>
    %186 = arith.mulf %185, %184 : vector<8x1280xf32>
    %cst_59 = arith.constant -1.45315206 : f32
    %187 = vector.broadcast %cst_59 : f32 to vector<8x1280xf32>
    %188 = arith.addf %186, %187 : vector<8x1280xf32>
    %189 = arith.mulf %188, %184 : vector<8x1280xf32>
    %cst_60 = arith.constant 1.42141378 : f32
    %190 = vector.broadcast %cst_60 : f32 to vector<8x1280xf32>
    %191 = arith.addf %189, %190 : vector<8x1280xf32>
    %192 = arith.mulf %191, %184 : vector<8x1280xf32>
    %cst_61 = arith.constant -0.284496725 : f32
    %193 = vector.broadcast %cst_61 : f32 to vector<8x1280xf32>
    %194 = arith.addf %192, %193 : vector<8x1280xf32>
    %195 = arith.mulf %194, %184 : vector<8x1280xf32>
    %cst_62 = arith.constant 0.254829586 : f32
    %196 = vector.broadcast %cst_62 : f32 to vector<8x1280xf32>
    %197 = arith.addf %195, %196 : vector<8x1280xf32>
    %198 = arith.mulf %197, %184 : vector<8x1280xf32>
    %cst_63 = arith.constant 0.000000e+00 : f32
    %199 = vector.broadcast %cst_63 : f32 to vector<8x1280xf32>
    %200 = arith.subf %199, %179 : vector<8x1280xf32>
    %201 = arith.mulf %200, %179 : vector<8x1280xf32>
    %202 = math.exp %201 : vector<8x1280xf32>
    %203 = arith.mulf %198, %202 : vector<8x1280xf32>
    %cst_64 = arith.constant 1.000000e+00 : f32
    %204 = vector.broadcast %cst_64 : f32 to vector<8x1280xf32>
    %205 = arith.subf %204, %203 : vector<8x1280xf32>
    %cst_65 = arith.constant 0.000000e+00 : f32
    %206 = vector.broadcast %cst_65 : f32 to vector<8x1280xf32>
    %207 = arith.cmpf olt, %178, %206 : vector<8x1280xf32>
    %cst_66 = arith.constant 0.000000e+00 : f32
    %208 = vector.broadcast %cst_66 : f32 to vector<8x1280xf32>
    %209 = arith.subf %208, %205 : vector<8x1280xf32>
    %210 = arith.select %207, %209, %205 : vector<8x1280xi1>, vector<8x1280xf32>
    %cst_67 = arith.constant 1.000000e+00 : f32
    %211 = vector.broadcast %cst_67 : f32 to vector<8x1280xf32>
    %212 = arith.addf %211, %210 : vector<8x1280xf32>
    %213 = arith.mulf %176, %212 : vector<8x1280xf32>
    %214 = vector.broadcast %2 : vector<1x1280xf32> to vector<8x1280xf32>
    %215 = arith.mulf %213, %214 : vector<8x1280xf32>
    %216 = arith.truncf %215 : vector<8x1280xf32> to vector<8x1280xbf16>
    %217 = vector.extract_strided_slice %0 {offsets = [32, 0], sizes = [8, 8], strides = [1, 1]} : vector<128x128xf32> to vector<8x8xf32>
    %218 = arith.truncf %217 : vector<8x8xf32> to vector<8x8xbf16>
    %cst_68 = arith.constant dense<0.000000e+00> : vector<8x1280xf32>
    %219 = tpu.matmul %218, %216, %cst_68 {dimension_numbers = #tpu.dot_dimension_numbers<[1], [0], [0], [1], [0, 0, 1, 1], [], []>} : vector<8x8xbf16>, vector<8x1280xbf16>, vector<8x1280xf32> -> vector<8x1280xf32>
    %220 = vector.extract_strided_slice %0 {offsets = [120, 4], sizes = [8, 1], strides = [1, 1]} : vector<128x128xf32> to vector<8x1xf32>
    %221 = vector.broadcast %220 : vector<8x1xf32> to vector<8x1280xf32>
    %222 = arith.addf %219, %221 : vector<8x1280xf32>
    %cst_69 = arith.constant 5.000000e-01 : f32
    %223 = vector.broadcast %cst_69 : f32 to vector<8x1280xf32>
    %224 = arith.mulf %223, %222 : vector<8x1280xf32>
    %cst_70 = arith.constant 0.707106769 : f32
    %225 = vector.broadcast %cst_70 : f32 to vector<8x1280xf32>
    %226 = arith.mulf %222, %225 : vector<8x1280xf32>
    %227 = math.absf %226 : vector<8x1280xf32>
    %cst_71 = arith.constant 0.327591091 : f32
    %228 = vector.broadcast %cst_71 : f32 to vector<8x1280xf32>
    %229 = arith.mulf %228, %227 : vector<8x1280xf32>
    %cst_72 = arith.constant 1.000000e+00 : f32
    %230 = vector.broadcast %cst_72 : f32 to vector<8x1280xf32>
    %231 = arith.addf %230, %229 : vector<8x1280xf32>
    %232 = tpu.reciprocal %231 {approx = true} : vector<8x1280xf32> -> vector<8x1280xf32>
    %cst_73 = arith.constant 1.06140542 : f32
    %233 = vector.broadcast %cst_73 : f32 to vector<8x1280xf32>
    %234 = arith.mulf %233, %232 : vector<8x1280xf32>
    %cst_74 = arith.constant -1.45315206 : f32
    %235 = vector.broadcast %cst_74 : f32 to vector<8x1280xf32>
    %236 = arith.addf %234, %235 : vector<8x1280xf32>
    %237 = arith.mulf %236, %232 : vector<8x1280xf32>
    %cst_75 = arith.constant 1.42141378 : f32
    %238 = vector.broadcast %cst_75 : f32 to vector<8x1280xf32>
    %239 = arith.addf %237, %238 : vector<8x1280xf32>
    %240 = arith.mulf %239, %232 : vector<8x1280xf32>
    %cst_76 = arith.constant -0.284496725 : f32
    %241 = vector.broadcast %cst_76 : f32 to vector<8x1280xf32>
    %242 = arith.addf %240, %241 : vector<8x1280xf32>
    %243 = arith.mulf %242, %232 : vector<8x1280xf32>
    %cst_77 = arith.constant 0.254829586 : f32
    %244 = vector.broadcast %cst_77 : f32 to vector<8x1280xf32>
    %245 = arith.addf %243, %244 : vector<8x1280xf32>
    %246 = arith.mulf %245, %232 : vector<8x1280xf32>
    %cst_78 = arith.constant 0.000000e+00 : f32
    %247 = vector.broadcast %cst_78 : f32 to vector<8x1280xf32>
    %248 = arith.subf %247, %227 : vector<8x1280xf32>
    %249 = arith.mulf %248, %227 : vector<8x1280xf32>
    %250 = math.exp %249 : vector<8x1280xf32>
    %251 = arith.mulf %246, %250 : vector<8x1280xf32>
    %cst_79 = arith.constant 1.000000e+00 : f32
    %252 = vector.broadcast %cst_79 : f32 to vector<8x1280xf32>
    %253 = arith.subf %252, %251 : vector<8x1280xf32>
    %cst_80 = arith.constant 0.000000e+00 : f32
    %254 = vector.broadcast %cst_80 : f32 to vector<8x1280xf32>
    %255 = arith.cmpf olt, %226, %254 : vector<8x1280xf32>
    %cst_81 = arith.constant 0.000000e+00 : f32
    %256 = vector.broadcast %cst_81 : f32 to vector<8x1280xf32>
    %257 = arith.subf %256, %253 : vector<8x1280xf32>
    %258 = arith.select %255, %257, %253 : vector<8x1280xi1>, vector<8x1280xf32>
    %cst_82 = arith.constant 1.000000e+00 : f32
    %259 = vector.broadcast %cst_82 : f32 to vector<8x1280xf32>
    %260 = arith.addf %259, %258 : vector<8x1280xf32>
    %261 = arith.mulf %224, %260 : vector<8x1280xf32>
    %cst_83 = arith.constant 0.000000e+00 : bf16
    %262 = vector.broadcast %cst_83 : bf16 to vector<8x128xbf16>
    %263 = tpu.concatenate %262, %216, %262 in 1 : vector<8x128xbf16>, vector<8x1280xbf16>, vector<8x128xbf16> -> vector<8x1536xbf16>
    %264 = vector.extract_strided_slice %263 {offsets = [0, 93], sizes = [8, 1280], strides = [1, 1]} : vector<8x1536xbf16> to vector<8x1280xbf16>
    %265 = vector.extract_strided_slice %263 {offsets = [0, 94], sizes = [8, 1280], strides = [1, 1]} : vector<8x1536xbf16> to vector<8x1280xbf16>
    %266 = vector.extract_strided_slice %263 {offsets = [0, 95], sizes = [8, 1280], strides = [1, 1]} : vector<8x1536xbf16> to vector<8x1280xbf16>
    %267 = vector.extract_strided_slice %263 {offsets = [0, 127], sizes = [8, 1280], strides = [1, 1]} : vector<8x1536xbf16> to vector<8x1280xbf16>
    %268 = vector.extract_strided_slice %263 {offsets = [0, 128], sizes = [8, 1280], strides = [1, 1]} : vector<8x1536xbf16> to vector<8x1280xbf16>
    %269 = vector.extract_strided_slice %263 {offsets = [0, 129], sizes = [8, 1280], strides = [1, 1]} : vector<8x1536xbf16> to vector<8x1280xbf16>
    %270 = vector.extract_strided_slice %263 {offsets = [0, 161], sizes = [8, 1280], strides = [1, 1]} : vector<8x1536xbf16> to vector<8x1280xbf16>
    %271 = vector.extract_strided_slice %263 {offsets = [0, 162], sizes = [8, 1280], strides = [1, 1]} : vector<8x1536xbf16> to vector<8x1280xbf16>
    %272 = vector.extract_strided_slice %263 {offsets = [0, 163], sizes = [8, 1280], strides = [1, 1]} : vector<8x1536xbf16> to vector<8x1280xbf16>
    %273 = tpu.concatenate %264, %265, %266, %267, %268, %269, %270, %271, %272 in 0 : vector<8x1280xbf16>, vector<8x1280xbf16>, vector<8x1280xbf16>, vector<8x1280xbf16>, vector<8x1280xbf16>, vector<8x1280xbf16>, vector<8x1280xbf16>, vector<8x1280xbf16>, vector<8x1280xbf16> -> vector<72x1280xbf16>
    %274 = vector.extract_strided_slice %0 {offsets = [40, 0], sizes = [8, 72], strides = [1, 1]} : vector<128x128xf32> to vector<8x72xf32>
    %275 = arith.truncf %274 : vector<8x72xf32> to vector<8x72xbf16>
    %cst_84 = arith.constant dense<0.000000e+00> : vector<8x1280xf32>
    %276 = tpu.matmul %275, %273, %cst_84 {dimension_numbers = #tpu.dot_dimension_numbers<[1], [0], [0], [1], [0, 0, 1, 1], [], []>} : vector<8x72xbf16>, vector<72x1280xbf16>, vector<8x1280xf32> -> vector<8x1280xf32>
    %277 = vector.extract_strided_slice %0 {offsets = [120, 5], sizes = [8, 1], strides = [1, 1]} : vector<128x128xf32> to vector<8x1xf32>
    %278 = vector.broadcast %277 : vector<8x1xf32> to vector<8x1280xf32>
    %279 = arith.addf %276, %278 : vector<8x1280xf32>
    %280 = arith.addf %279, %215 : vector<8x1280xf32>
    %cst_85 = arith.constant 5.000000e-01 : f32
    %281 = vector.broadcast %cst_85 : f32 to vector<8x1280xf32>
    %282 = arith.mulf %281, %280 : vector<8x1280xf32>
    %cst_86 = arith.constant 0.707106769 : f32
    %283 = vector.broadcast %cst_86 : f32 to vector<8x1280xf32>
    %284 = arith.mulf %280, %283 : vector<8x1280xf32>
    %285 = math.absf %284 : vector<8x1280xf32>
    %cst_87 = arith.constant 0.327591091 : f32
    %286 = vector.broadcast %cst_87 : f32 to vector<8x1280xf32>
    %287 = arith.mulf %286, %285 : vector<8x1280xf32>
    %cst_88 = arith.constant 1.000000e+00 : f32
    %288 = vector.broadcast %cst_88 : f32 to vector<8x1280xf32>
    %289 = arith.addf %288, %287 : vector<8x1280xf32>
    %290 = tpu.reciprocal %289 {approx = true} : vector<8x1280xf32> -> vector<8x1280xf32>
    %cst_89 = arith.constant 1.06140542 : f32
    %291 = vector.broadcast %cst_89 : f32 to vector<8x1280xf32>
    %292 = arith.mulf %291, %290 : vector<8x1280xf32>
    %cst_90 = arith.constant -1.45315206 : f32
    %293 = vector.broadcast %cst_90 : f32 to vector<8x1280xf32>
    %294 = arith.addf %292, %293 : vector<8x1280xf32>
    %295 = arith.mulf %294, %290 : vector<8x1280xf32>
    %cst_91 = arith.constant 1.42141378 : f32
    %296 = vector.broadcast %cst_91 : f32 to vector<8x1280xf32>
    %297 = arith.addf %295, %296 : vector<8x1280xf32>
    %298 = arith.mulf %297, %290 : vector<8x1280xf32>
    %cst_92 = arith.constant -0.284496725 : f32
    %299 = vector.broadcast %cst_92 : f32 to vector<8x1280xf32>
    %300 = arith.addf %298, %299 : vector<8x1280xf32>
    %301 = arith.mulf %300, %290 : vector<8x1280xf32>
    %cst_93 = arith.constant 0.254829586 : f32
    %302 = vector.broadcast %cst_93 : f32 to vector<8x1280xf32>
    %303 = arith.addf %301, %302 : vector<8x1280xf32>
    %304 = arith.mulf %303, %290 : vector<8x1280xf32>
    %cst_94 = arith.constant 0.000000e+00 : f32
    %305 = vector.broadcast %cst_94 : f32 to vector<8x1280xf32>
    %306 = arith.subf %305, %285 : vector<8x1280xf32>
    %307 = arith.mulf %306, %285 : vector<8x1280xf32>
    %308 = math.exp %307 : vector<8x1280xf32>
    %309 = arith.mulf %304, %308 : vector<8x1280xf32>
    %cst_95 = arith.constant 1.000000e+00 : f32
    %310 = vector.broadcast %cst_95 : f32 to vector<8x1280xf32>
    %311 = arith.subf %310, %309 : vector<8x1280xf32>
    %cst_96 = arith.constant 0.000000e+00 : f32
    %312 = vector.broadcast %cst_96 : f32 to vector<8x1280xf32>
    %313 = arith.cmpf olt, %284, %312 : vector<8x1280xf32>
    %cst_97 = arith.constant 0.000000e+00 : f32
    %314 = vector.broadcast %cst_97 : f32 to vector<8x1280xf32>
    %315 = arith.subf %314, %311 : vector<8x1280xf32>
    %316 = arith.select %313, %315, %311 : vector<8x1280xi1>, vector<8x1280xf32>
    %cst_98 = arith.constant 1.000000e+00 : f32
    %317 = vector.broadcast %cst_98 : f32 to vector<8x1280xf32>
    %318 = arith.addf %317, %316 : vector<8x1280xf32>
    %319 = arith.mulf %282, %318 : vector<8x1280xf32>
    %320 = vector.broadcast %2 : vector<1x1280xf32> to vector<8x1280xf32>
    %321 = arith.mulf %319, %320 : vector<8x1280xf32>
    %322 = arith.truncf %321 : vector<8x1280xf32> to vector<8x1280xbf16>
    %cst_99 = arith.constant 0.000000e+00 : bf16
    %323 = vector.broadcast %cst_99 : bf16 to vector<8x128xbf16>
    %324 = tpu.concatenate %323, %322, %323 in 1 : vector<8x128xbf16>, vector<8x1280xbf16>, vector<8x128xbf16> -> vector<8x1536xbf16>
    %325 = vector.extract_strided_slice %324 {offsets = [0, 93], sizes = [8, 1280], strides = [1, 1]} : vector<8x1536xbf16> to vector<8x1280xbf16>
    %326 = vector.extract_strided_slice %324 {offsets = [0, 94], sizes = [8, 1280], strides = [1, 1]} : vector<8x1536xbf16> to vector<8x1280xbf16>
    %327 = vector.extract_strided_slice %324 {offsets = [0, 95], sizes = [8, 1280], strides = [1, 1]} : vector<8x1536xbf16> to vector<8x1280xbf16>
    %328 = vector.extract_strided_slice %324 {offsets = [0, 127], sizes = [8, 1280], strides = [1, 1]} : vector<8x1536xbf16> to vector<8x1280xbf16>
    %329 = vector.extract_strided_slice %324 {offsets = [0, 128], sizes = [8, 1280], strides = [1, 1]} : vector<8x1536xbf16> to vector<8x1280xbf16>
    %330 = vector.extract_strided_slice %324 {offsets = [0, 129], sizes = [8, 1280], strides = [1, 1]} : vector<8x1536xbf16> to vector<8x1280xbf16>
    %331 = vector.extract_strided_slice %324 {offsets = [0, 161], sizes = [8, 1280], strides = [1, 1]} : vector<8x1536xbf16> to vector<8x1280xbf16>
    %332 = vector.extract_strided_slice %324 {offsets = [0, 162], sizes = [8, 1280], strides = [1, 1]} : vector<8x1536xbf16> to vector<8x1280xbf16>
    %333 = vector.extract_strided_slice %324 {offsets = [0, 163], sizes = [8, 1280], strides = [1, 1]} : vector<8x1536xbf16> to vector<8x1280xbf16>
    %334 = tpu.concatenate %325, %326, %327, %328, %329, %330, %331, %332, %333 in 0 : vector<8x1280xbf16>, vector<8x1280xbf16>, vector<8x1280xbf16>, vector<8x1280xbf16>, vector<8x1280xbf16>, vector<8x1280xbf16>, vector<8x1280xbf16>, vector<8x1280xbf16>, vector<8x1280xbf16> -> vector<72x1280xbf16>
    %335 = vector.extract_strided_slice %0 {offsets = [48, 0], sizes = [8, 72], strides = [1, 1]} : vector<128x128xf32> to vector<8x72xf32>
    %336 = arith.truncf %335 : vector<8x72xf32> to vector<8x72xbf16>
    %cst_100 = arith.constant dense<0.000000e+00> : vector<8x1280xf32>
    %337 = tpu.matmul %336, %334, %cst_100 {dimension_numbers = #tpu.dot_dimension_numbers<[1], [0], [0], [1], [0, 0, 1, 1], [], []>} : vector<8x72xbf16>, vector<72x1280xbf16>, vector<8x1280xf32> -> vector<8x1280xf32>
    %338 = vector.extract_strided_slice %0 {offsets = [120, 6], sizes = [8, 1], strides = [1, 1]} : vector<128x128xf32> to vector<8x1xf32>
    %339 = vector.broadcast %338 : vector<8x1xf32> to vector<8x1280xf32>
    %340 = arith.addf %337, %339 : vector<8x1280xf32>
    %cst_101 = arith.constant 5.000000e-01 : f32
    %341 = vector.broadcast %cst_101 : f32 to vector<8x1280xf32>
    %342 = arith.mulf %341, %340 : vector<8x1280xf32>
    %cst_102 = arith.constant 0.707106769 : f32
    %343 = vector.broadcast %cst_102 : f32 to vector<8x1280xf32>
    %344 = arith.mulf %340, %343 : vector<8x1280xf32>
    %345 = math.absf %344 : vector<8x1280xf32>
    %cst_103 = arith.constant 0.327591091 : f32
    %346 = vector.broadcast %cst_103 : f32 to vector<8x1280xf32>
    %347 = arith.mulf %346, %345 : vector<8x1280xf32>
    %cst_104 = arith.constant 1.000000e+00 : f32
    %348 = vector.broadcast %cst_104 : f32 to vector<8x1280xf32>
    %349 = arith.addf %348, %347 : vector<8x1280xf32>
    %350 = tpu.reciprocal %349 {approx = true} : vector<8x1280xf32> -> vector<8x1280xf32>
    %cst_105 = arith.constant 1.06140542 : f32
    %351 = vector.broadcast %cst_105 : f32 to vector<8x1280xf32>
    %352 = arith.mulf %351, %350 : vector<8x1280xf32>
    %cst_106 = arith.constant -1.45315206 : f32
    %353 = vector.broadcast %cst_106 : f32 to vector<8x1280xf32>
    %354 = arith.addf %352, %353 : vector<8x1280xf32>
    %355 = arith.mulf %354, %350 : vector<8x1280xf32>
    %cst_107 = arith.constant 1.42141378 : f32
    %356 = vector.broadcast %cst_107 : f32 to vector<8x1280xf32>
    %357 = arith.addf %355, %356 : vector<8x1280xf32>
    %358 = arith.mulf %357, %350 : vector<8x1280xf32>
    %cst_108 = arith.constant -0.284496725 : f32
    %359 = vector.broadcast %cst_108 : f32 to vector<8x1280xf32>
    %360 = arith.addf %358, %359 : vector<8x1280xf32>
    %361 = arith.mulf %360, %350 : vector<8x1280xf32>
    %cst_109 = arith.constant 0.254829586 : f32
    %362 = vector.broadcast %cst_109 : f32 to vector<8x1280xf32>
    %363 = arith.addf %361, %362 : vector<8x1280xf32>
    %364 = arith.mulf %363, %350 : vector<8x1280xf32>
    %cst_110 = arith.constant 0.000000e+00 : f32
    %365 = vector.broadcast %cst_110 : f32 to vector<8x1280xf32>
    %366 = arith.subf %365, %345 : vector<8x1280xf32>
    %367 = arith.mulf %366, %345 : vector<8x1280xf32>
    %368 = math.exp %367 : vector<8x1280xf32>
    %369 = arith.mulf %364, %368 : vector<8x1280xf32>
    %cst_111 = arith.constant 1.000000e+00 : f32
    %370 = vector.broadcast %cst_111 : f32 to vector<8x1280xf32>
    %371 = arith.subf %370, %369 : vector<8x1280xf32>
    %cst_112 = arith.constant 0.000000e+00 : f32
    %372 = vector.broadcast %cst_112 : f32 to vector<8x1280xf32>
    %373 = arith.cmpf olt, %344, %372 : vector<8x1280xf32>
    %cst_113 = arith.constant 0.000000e+00 : f32
    %374 = vector.broadcast %cst_113 : f32 to vector<8x1280xf32>
    %375 = arith.subf %374, %371 : vector<8x1280xf32>
    %376 = arith.select %373, %375, %371 : vector<8x1280xi1>, vector<8x1280xf32>
    %cst_114 = arith.constant 1.000000e+00 : f32
    %377 = vector.broadcast %cst_114 : f32 to vector<8x1280xf32>
    %378 = arith.addf %377, %376 : vector<8x1280xf32>
    %379 = arith.mulf %342, %378 : vector<8x1280xf32>
    %380 = arith.truncf %49 : vector<8x1280xf32> to vector<8x1280xbf16>
    %381 = arith.truncf %155 : vector<8x1280xf32> to vector<8x1280xbf16>
    %382 = arith.truncf %261 : vector<8x1280xf32> to vector<8x1280xbf16>
    %383 = arith.truncf %379 : vector<8x1280xf32> to vector<8x1280xbf16>
    %384 = tpu.concatenate %380, %381, %382, %383 in 0 : vector<8x1280xbf16>, vector<8x1280xbf16>, vector<8x1280xbf16>, vector<8x1280xbf16> -> vector<32x1280xbf16>
    %385 = vector.extract_strided_slice %0 {offsets = [56, 0], sizes = [8, 32], strides = [1, 1]} : vector<128x128xf32> to vector<8x32xf32>
    %386 = arith.truncf %385 : vector<8x32xf32> to vector<8x32xbf16>
    %cst_115 = arith.constant dense<0.000000e+00> : vector<8x1280xf32>
    %387 = tpu.matmul %386, %384, %cst_115 {dimension_numbers = #tpu.dot_dimension_numbers<[1], [0], [0], [1], [0, 0, 1, 1], [], []>} : vector<8x32xbf16>, vector<32x1280xbf16>, vector<8x1280xf32> -> vector<8x1280xf32>
    %388 = vector.extract_strided_slice %0 {offsets = [120, 7], sizes = [8, 1], strides = [1, 1]} : vector<128x128xf32> to vector<8x1xf32>
    %389 = vector.broadcast %388 : vector<8x1xf32> to vector<8x1280xf32>
    %390 = arith.addf %387, %389 : vector<8x1280xf32>
    %391 = arith.truncf %390 : vector<8x1280xf32> to vector<8x1280xbf16>
    %392 = vector.extract_strided_slice %0 {offsets = [64, 0], sizes = [8, 8], strides = [1, 1]} : vector<128x128xf32> to vector<8x8xf32>
    %393 = arith.truncf %392 : vector<8x8xf32> to vector<8x8xbf16>
    %cst_116 = arith.constant dense<0.000000e+00> : vector<8x1280xf32>
    %394 = tpu.matmul %393, %391, %cst_116 {dimension_numbers = #tpu.dot_dimension_numbers<[1], [0], [0], [1], [0, 0, 1, 1], [], []>} : vector<8x8xbf16>, vector<8x1280xbf16>, vector<8x1280xf32> -> vector<8x1280xf32>
    %395 = vector.extract_strided_slice %0 {offsets = [120, 8], sizes = [8, 1], strides = [1, 1]} : vector<128x128xf32> to vector<8x1xf32>
    %396 = vector.broadcast %395 : vector<8x1xf32> to vector<8x1280xf32>
    %397 = arith.addf %394, %396 : vector<8x1280xf32>
    %398 = arith.truncf %397 : vector<8x1280xf32> to vector<8x1280xbf16>
    %399 = vector.extract_strided_slice %0 {offsets = [72, 0], sizes = [8, 8], strides = [1, 1]} : vector<128x128xf32> to vector<8x8xf32>
    %400 = arith.truncf %399 : vector<8x8xf32> to vector<8x8xbf16>
    %cst_117 = arith.constant dense<0.000000e+00> : vector<8x1280xf32>
    %401 = tpu.matmul %400, %398, %cst_117 {dimension_numbers = #tpu.dot_dimension_numbers<[1], [0], [0], [1], [0, 0, 1, 1], [], []>} : vector<8x8xbf16>, vector<8x1280xbf16>, vector<8x1280xf32> -> vector<8x1280xf32>
    %402 = vector.extract_strided_slice %0 {offsets = [120, 9], sizes = [8, 1], strides = [1, 1]} : vector<128x128xf32> to vector<8x1xf32>
    %403 = vector.broadcast %402 : vector<8x1xf32> to vector<8x1280xf32>
    %404 = arith.addf %401, %403 : vector<8x1280xf32>
    %cst_118 = arith.constant 0.000000e+00 : bf16
    %405 = vector.broadcast %cst_118 : bf16 to vector<8x128xbf16>
    %406 = tpu.concatenate %405, %398, %405 in 1 : vector<8x128xbf16>, vector<8x1280xbf16>, vector<8x128xbf16> -> vector<8x1536xbf16>
    %407 = vector.extract_strided_slice %406 {offsets = [0, 128], sizes = [8, 1280], strides = [1, 1]} : vector<8x1536xbf16> to vector<8x1280xbf16>
    %408 = vector.extract_strided_slice %406 {offsets = [0, 129], sizes = [8, 1280], strides = [1, 1]} : vector<8x1536xbf16> to vector<8x1280xbf16>
    %409 = vector.extract_strided_slice %406 {offsets = [0, 130], sizes = [8, 1280], strides = [1, 1]} : vector<8x1536xbf16> to vector<8x1280xbf16>
    %410 = vector.extract_strided_slice %406 {offsets = [0, 162], sizes = [8, 1280], strides = [1, 1]} : vector<8x1536xbf16> to vector<8x1280xbf16>
    %411 = vector.extract_strided_slice %406 {offsets = [0, 163], sizes = [8, 1280], strides = [1, 1]} : vector<8x1536xbf16> to vector<8x1280xbf16>
    %412 = vector.extract_strided_slice %406 {offsets = [0, 164], sizes = [8, 1280], strides = [1, 1]} : vector<8x1536xbf16> to vector<8x1280xbf16>
    %413 = vector.extract_strided_slice %406 {offsets = [0, 196], sizes = [8, 1280], strides = [1, 1]} : vector<8x1536xbf16> to vector<8x1280xbf16>
    %414 = vector.extract_strided_slice %406 {offsets = [0, 197], sizes = [8, 1280], strides = [1, 1]} : vector<8x1536xbf16> to vector<8x1280xbf16>
    %415 = vector.extract_strided_slice %406 {offsets = [0, 198], sizes = [8, 1280], strides = [1, 1]} : vector<8x1536xbf16> to vector<8x1280xbf16>
    %416 = tpu.concatenate %407, %408, %409, %410, %411, %412, %413, %414, %415 in 0 : vector<8x1280xbf16>, vector<8x1280xbf16>, vector<8x1280xbf16>, vector<8x1280xbf16>, vector<8x1280xbf16>, vector<8x1280xbf16>, vector<8x1280xbf16>, vector<8x1280xbf16>, vector<8x1280xbf16> -> vector<72x1280xbf16>
    %417 = vector.extract_strided_slice %0 {offsets = [80, 0], sizes = [8, 72], strides = [1, 1]} : vector<128x128xf32> to vector<8x72xf32>
    %418 = arith.truncf %417 : vector<8x72xf32> to vector<8x72xbf16>
    %cst_119 = arith.constant dense<0.000000e+00> : vector<8x1280xf32>
    %419 = tpu.matmul %418, %416, %cst_119 {dimension_numbers = #tpu.dot_dimension_numbers<[1], [0], [0], [1], [0, 0, 1, 1], [], []>} : vector<8x72xbf16>, vector<72x1280xbf16>, vector<8x1280xf32> -> vector<8x1280xf32>
    %420 = vector.extract_strided_slice %0 {offsets = [120, 10], sizes = [8, 1], strides = [1, 1]} : vector<128x128xf32> to vector<8x1xf32>
    %421 = vector.broadcast %420 : vector<8x1xf32> to vector<8x1280xf32>
    %422 = arith.addf %419, %421 : vector<8x1280xf32>
    %cst_120 = arith.constant 0.000000e+00 : f32
    %423 = vector.broadcast %cst_120 : f32 to vector<8x128xf32>
    %424 = tpu.concatenate %423, %422, %423 in 1 : vector<8x128xf32>, vector<8x1280xf32>, vector<8x128xf32> -> vector<8x1536xf32>
    %425 = vector.extract_strided_slice %424 {offsets = [0, 128], sizes = [8, 1280], strides = [1, 1]} : vector<8x1536xf32> to vector<8x1280xf32>
    %426 = vector.extract_strided_slice %424 {offsets = [0, 130], sizes = [8, 1280], strides = [1, 1]} : vector<8x1536xf32> to vector<8x1280xf32>
    %427 = arith.maximumf %425, %426 : vector<8x1280xf32>
    %428 = vector.extract_strided_slice %424 {offsets = [0, 132], sizes = [8, 1280], strides = [1, 1]} : vector<8x1536xf32> to vector<8x1280xf32>
    %429 = arith.maximumf %427, %428 : vector<8x1280xf32>
    %430 = vector.extract_strided_slice %424 {offsets = [0, 134], sizes = [8, 1280], strides = [1, 1]} : vector<8x1536xf32> to vector<8x1280xf32>
    %431 = arith.maximumf %429, %430 : vector<8x1280xf32>
    %432 = vector.extract_strided_slice %424 {offsets = [0, 136], sizes = [8, 1280], strides = [1, 1]} : vector<8x1536xf32> to vector<8x1280xf32>
    %433 = arith.maximumf %431, %432 : vector<8x1280xf32>
    %434 = vector.extract_strided_slice %424 {offsets = [0, 138], sizes = [8, 1280], strides = [1, 1]} : vector<8x1536xf32> to vector<8x1280xf32>
    %435 = arith.maximumf %433, %434 : vector<8x1280xf32>
    %436 = vector.extract_strided_slice %424 {offsets = [0, 140], sizes = [8, 1280], strides = [1, 1]} : vector<8x1536xf32> to vector<8x1280xf32>
    %437 = arith.maximumf %435, %436 : vector<8x1280xf32>
    %cst_121 = arith.constant 0.000000e+00 : f32
    %438 = vector.broadcast %cst_121 : f32 to vector<8x512xf32>
    %439 = tpu.concatenate %438, %437, %438 in 1 : vector<8x512xf32>, vector<8x1280xf32>, vector<8x512xf32> -> vector<8x2304xf32>
    %440 = vector.extract_strided_slice %439 {offsets = [0, 512], sizes = [8, 1280], strides = [1, 1]} : vector<8x2304xf32> to vector<8x1280xf32>
    %441 = vector.extract_strided_slice %439 {offsets = [0, 580], sizes = [8, 1280], strides = [1, 1]} : vector<8x2304xf32> to vector<8x1280xf32>
    %442 = arith.maximumf %440, %441 : vector<8x1280xf32>
    %443 = vector.extract_strided_slice %439 {offsets = [0, 648], sizes = [8, 1280], strides = [1, 1]} : vector<8x2304xf32> to vector<8x1280xf32>
    %444 = arith.maximumf %442, %443 : vector<8x1280xf32>
    %445 = vector.extract_strided_slice %439 {offsets = [0, 716], sizes = [8, 1280], strides = [1, 1]} : vector<8x2304xf32> to vector<8x1280xf32>
    %446 = arith.maximumf %444, %445 : vector<8x1280xf32>
    %447 = vector.extract_strided_slice %439 {offsets = [0, 784], sizes = [8, 1280], strides = [1, 1]} : vector<8x2304xf32> to vector<8x1280xf32>
    %448 = arith.maximumf %446, %447 : vector<8x1280xf32>
    %449 = vector.extract_strided_slice %439 {offsets = [0, 852], sizes = [8, 1280], strides = [1, 1]} : vector<8x2304xf32> to vector<8x1280xf32>
    %450 = arith.maximumf %448, %449 : vector<8x1280xf32>
    %451 = vector.extract_strided_slice %439 {offsets = [0, 920], sizes = [8, 1280], strides = [1, 1]} : vector<8x2304xf32> to vector<8x1280xf32>
    %452 = arith.maximumf %450, %451 : vector<8x1280xf32>
    %453 = arith.truncf %452 : vector<8x1280xf32> to vector<8x1280xbf16>
    %c0_122 = arith.constant 0 : index
    %c0_123 = arith.constant 0 : index
    %454 = vector.load %arg4[%c0_122, %c0_123] : memref<1280x128xbf16, #tpu.memory_space<vmem>>, vector<1280x128xbf16>
    %cst_124 = arith.constant dense<0.000000e+00> : vector<8x128xf32>
    %455 = tpu.matmul %453, %454, %cst_124 {dimension_numbers = #tpu.dot_dimension_numbers<[1], [0], [0], [1], [0, 0, 1, 1], [], []>} : vector<8x1280xbf16>, vector<1280x128xbf16>, vector<8x128xf32> -> vector<8x128xf32>
    %456 = arith.truncf %455 : vector<8x128xf32> to vector<8x128xbf16>
    %cst_125 = arith.constant 0.000000e+00 : bf16
    %457 = vector.broadcast %cst_125 : bf16 to vector<8x128xbf16>
    %458 = tpu.concatenate %457, %456, %457 in 1 : vector<8x128xbf16>, vector<8x128xbf16>, vector<8x128xbf16> -> vector<8x384xbf16>
    %459 = vector.extract_strided_slice %458 {offsets = [0, 122], sizes = [8, 128], strides = [1, 1]} : vector<8x384xbf16> to vector<8x128xbf16>
    %460 = vector.extract_strided_slice %458 {offsets = [0, 123], sizes = [8, 128], strides = [1, 1]} : vector<8x384xbf16> to vector<8x128xbf16>
    %461 = vector.extract_strided_slice %458 {offsets = [0, 124], sizes = [8, 128], strides = [1, 1]} : vector<8x384xbf16> to vector<8x128xbf16>
    %462 = vector.extract_strided_slice %458 {offsets = [0, 127], sizes = [8, 128], strides = [1, 1]} : vector<8x384xbf16> to vector<8x128xbf16>
    %463 = vector.extract_strided_slice %458 {offsets = [0, 128], sizes = [8, 128], strides = [1, 1]} : vector<8x384xbf16> to vector<8x128xbf16>
    %464 = vector.extract_strided_slice %458 {offsets = [0, 129], sizes = [8, 128], strides = [1, 1]} : vector<8x384xbf16> to vector<8x128xbf16>
    %465 = vector.extract_strided_slice %458 {offsets = [0, 132], sizes = [8, 128], strides = [1, 1]} : vector<8x384xbf16> to vector<8x128xbf16>
    %466 = vector.extract_strided_slice %458 {offsets = [0, 133], sizes = [8, 128], strides = [1, 1]} : vector<8x384xbf16> to vector<8x128xbf16>
    %467 = vector.extract_strided_slice %458 {offsets = [0, 134], sizes = [8, 128], strides = [1, 1]} : vector<8x384xbf16> to vector<8x128xbf16>
    %468 = tpu.concatenate %459, %460, %461, %462, %463, %464, %465, %466, %467 in 0 : vector<8x128xbf16>, vector<8x128xbf16>, vector<8x128xbf16>, vector<8x128xbf16>, vector<8x128xbf16>, vector<8x128xbf16>, vector<8x128xbf16>, vector<8x128xbf16>, vector<8x128xbf16> -> vector<72x128xbf16>
    %469 = vector.extract_strided_slice %0 {offsets = [88, 0], sizes = [8, 72], strides = [1, 1]} : vector<128x128xf32> to vector<8x72xf32>
    %470 = arith.truncf %469 : vector<8x72xf32> to vector<8x72xbf16>
    %cst_126 = arith.constant dense<0.000000e+00> : vector<8x128xf32>
    %471 = tpu.matmul %470, %468, %cst_126 {dimension_numbers = #tpu.dot_dimension_numbers<[1], [0], [0], [1], [0, 0, 1, 1], [], []>} : vector<8x72xbf16>, vector<72x128xbf16>, vector<8x128xf32> -> vector<8x128xf32>
    %472 = vector.extract_strided_slice %0 {offsets = [120, 11], sizes = [8, 1], strides = [1, 1]} : vector<128x128xf32> to vector<8x1xf32>
    %473 = vector.broadcast %472 : vector<8x1xf32> to vector<8x128xf32>
    %474 = arith.addf %471, %473 : vector<8x128xf32>
    %cst_127 = arith.constant 5.000000e-01 : f32
    %475 = vector.broadcast %cst_127 : f32 to vector<8x128xf32>
    %476 = arith.mulf %475, %474 : vector<8x128xf32>
    %cst_128 = arith.constant 0.707106769 : f32
    %477 = vector.broadcast %cst_128 : f32 to vector<8x128xf32>
    %478 = arith.mulf %474, %477 : vector<8x128xf32>
    %479 = math.absf %478 : vector<8x128xf32>
    %cst_129 = arith.constant 0.327591091 : f32
    %480 = vector.broadcast %cst_129 : f32 to vector<8x128xf32>
    %481 = arith.mulf %480, %479 : vector<8x128xf32>
    %cst_130 = arith.constant 1.000000e+00 : f32
    %482 = vector.broadcast %cst_130 : f32 to vector<8x128xf32>
    %483 = arith.addf %482, %481 : vector<8x128xf32>
    %484 = tpu.reciprocal %483 {approx = true} : vector<8x128xf32> -> vector<8x128xf32>
    %cst_131 = arith.constant 1.06140542 : f32
    %485 = vector.broadcast %cst_131 : f32 to vector<8x128xf32>
    %486 = arith.mulf %485, %484 : vector<8x128xf32>
    %cst_132 = arith.constant -1.45315206 : f32
    %487 = vector.broadcast %cst_132 : f32 to vector<8x128xf32>
    %488 = arith.addf %486, %487 : vector<8x128xf32>
    %489 = arith.mulf %488, %484 : vector<8x128xf32>
    %cst_133 = arith.constant 1.42141378 : f32
    %490 = vector.broadcast %cst_133 : f32 to vector<8x128xf32>
    %491 = arith.addf %489, %490 : vector<8x128xf32>
    %492 = arith.mulf %491, %484 : vector<8x128xf32>
    %cst_134 = arith.constant -0.284496725 : f32
    %493 = vector.broadcast %cst_134 : f32 to vector<8x128xf32>
    %494 = arith.addf %492, %493 : vector<8x128xf32>
    %495 = arith.mulf %494, %484 : vector<8x128xf32>
    %cst_135 = arith.constant 0.254829586 : f32
    %496 = vector.broadcast %cst_135 : f32 to vector<8x128xf32>
    %497 = arith.addf %495, %496 : vector<8x128xf32>
    %498 = arith.mulf %497, %484 : vector<8x128xf32>
    %cst_136 = arith.constant 0.000000e+00 : f32
    %499 = vector.broadcast %cst_136 : f32 to vector<8x128xf32>
    %500 = arith.subf %499, %479 : vector<8x128xf32>
    %501 = arith.mulf %500, %479 : vector<8x128xf32>
    %502 = math.exp %501 : vector<8x128xf32>
    %503 = arith.mulf %498, %502 : vector<8x128xf32>
    %cst_137 = arith.constant 1.000000e+00 : f32
    %504 = vector.broadcast %cst_137 : f32 to vector<8x128xf32>
    %505 = arith.subf %504, %503 : vector<8x128xf32>
    %cst_138 = arith.constant 0.000000e+00 : f32
    %506 = vector.broadcast %cst_138 : f32 to vector<8x128xf32>
    %507 = arith.cmpf olt, %478, %506 : vector<8x128xf32>
    %cst_139 = arith.constant 0.000000e+00 : f32
    %508 = vector.broadcast %cst_139 : f32 to vector<8x128xf32>
    %509 = arith.subf %508, %505 : vector<8x128xf32>
    %510 = arith.select %507, %509, %505 : vector<8x128xi1>, vector<8x128xf32>
    %cst_140 = arith.constant 1.000000e+00 : f32
    %511 = vector.broadcast %cst_140 : f32 to vector<8x128xf32>
    %512 = arith.addf %511, %510 : vector<8x128xf32>
    %513 = arith.mulf %476, %512 : vector<8x128xf32>
    %514 = vector.broadcast %3 : vector<1x128xf32> to vector<8x128xf32>
    %515 = arith.mulf %513, %514 : vector<8x128xf32>
    %516 = arith.truncf %515 : vector<8x128xf32> to vector<8x128xbf16>
    %cst_141 = arith.constant 0.000000e+00 : bf16
    %517 = vector.broadcast %cst_141 : bf16 to vector<8x128xbf16>
    %518 = tpu.concatenate %517, %516, %517 in 1 : vector<8x128xbf16>, vector<8x128xbf16>, vector<8x128xbf16> -> vector<8x384xbf16>
    %519 = vector.extract_strided_slice %518 {offsets = [0, 122], sizes = [8, 128], strides = [1, 1]} : vector<8x384xbf16> to vector<8x128xbf16>
    %520 = vector.extract_strided_slice %518 {offsets = [0, 123], sizes = [8, 128], strides = [1, 1]} : vector<8x384xbf16> to vector<8x128xbf16>
    %521 = vector.extract_strided_slice %518 {offsets = [0, 124], sizes = [8, 128], strides = [1, 1]} : vector<8x384xbf16> to vector<8x128xbf16>
    %522 = vector.extract_strided_slice %518 {offsets = [0, 127], sizes = [8, 128], strides = [1, 1]} : vector<8x384xbf16> to vector<8x128xbf16>
    %523 = vector.extract_strided_slice %518 {offsets = [0, 128], sizes = [8, 128], strides = [1, 1]} : vector<8x384xbf16> to vector<8x128xbf16>
    %524 = vector.extract_strided_slice %518 {offsets = [0, 129], sizes = [8, 128], strides = [1, 1]} : vector<8x384xbf16> to vector<8x128xbf16>
    %525 = vector.extract_strided_slice %518 {offsets = [0, 132], sizes = [8, 128], strides = [1, 1]} : vector<8x384xbf16> to vector<8x128xbf16>
    %526 = vector.extract_strided_slice %518 {offsets = [0, 133], sizes = [8, 128], strides = [1, 1]} : vector<8x384xbf16> to vector<8x128xbf16>
    %527 = vector.extract_strided_slice %518 {offsets = [0, 134], sizes = [8, 128], strides = [1, 1]} : vector<8x384xbf16> to vector<8x128xbf16>
    %528 = tpu.concatenate %519, %520, %521, %522, %523, %524, %525, %526, %527 in 0 : vector<8x128xbf16>, vector<8x128xbf16>, vector<8x128xbf16>, vector<8x128xbf16>, vector<8x128xbf16>, vector<8x128xbf16>, vector<8x128xbf16>, vector<8x128xbf16>, vector<8x128xbf16> -> vector<72x128xbf16>
    %529 = vector.extract_strided_slice %0 {offsets = [96, 0], sizes = [8, 72], strides = [1, 1]} : vector<128x128xf32> to vector<8x72xf32>
    %530 = arith.truncf %529 : vector<8x72xf32> to vector<8x72xbf16>
    %cst_142 = arith.constant dense<0.000000e+00> : vector<8x128xf32>
    %531 = tpu.matmul %530, %528, %cst_142 {dimension_numbers = #tpu.dot_dimension_numbers<[1], [0], [0], [1], [0, 0, 1, 1], [], []>} : vector<8x72xbf16>, vector<72x128xbf16>, vector<8x128xf32> -> vector<8x128xf32>
    %532 = vector.extract_strided_slice %0 {offsets = [120, 12], sizes = [8, 1], strides = [1, 1]} : vector<128x128xf32> to vector<8x1xf32>
    %533 = vector.broadcast %532 : vector<8x1xf32> to vector<8x128xf32>
    %534 = arith.addf %531, %533 : vector<8x128xf32>
    %cst_143 = arith.constant 5.000000e-01 : f32
    %535 = vector.broadcast %cst_143 : f32 to vector<8x128xf32>
    %536 = arith.mulf %535, %534 : vector<8x128xf32>
    %cst_144 = arith.constant 0.707106769 : f32
    %537 = vector.broadcast %cst_144 : f32 to vector<8x128xf32>
    %538 = arith.mulf %534, %537 : vector<8x128xf32>
    %539 = math.absf %538 : vector<8x128xf32>
    %cst_145 = arith.constant 0.327591091 : f32
    %540 = vector.broadcast %cst_145 : f32 to vector<8x128xf32>
    %541 = arith.mulf %540, %539 : vector<8x128xf32>
    %cst_146 = arith.constant 1.000000e+00 : f32
    %542 = vector.broadcast %cst_146 : f32 to vector<8x128xf32>
    %543 = arith.addf %542, %541 : vector<8x128xf32>
    %544 = tpu.reciprocal %543 {approx = true} : vector<8x128xf32> -> vector<8x128xf32>
    %cst_147 = arith.constant 1.06140542 : f32
    %545 = vector.broadcast %cst_147 : f32 to vector<8x128xf32>
    %546 = arith.mulf %545, %544 : vector<8x128xf32>
    %cst_148 = arith.constant -1.45315206 : f32
    %547 = vector.broadcast %cst_148 : f32 to vector<8x128xf32>
    %548 = arith.addf %546, %547 : vector<8x128xf32>
    %549 = arith.mulf %548, %544 : vector<8x128xf32>
    %cst_149 = arith.constant 1.42141378 : f32
    %550 = vector.broadcast %cst_149 : f32 to vector<8x128xf32>
    %551 = arith.addf %549, %550 : vector<8x128xf32>
    %552 = arith.mulf %551, %544 : vector<8x128xf32>
    %cst_150 = arith.constant -0.284496725 : f32
    %553 = vector.broadcast %cst_150 : f32 to vector<8x128xf32>
    %554 = arith.addf %552, %553 : vector<8x128xf32>
    %555 = arith.mulf %554, %544 : vector<8x128xf32>
    %cst_151 = arith.constant 0.254829586 : f32
    %556 = vector.broadcast %cst_151 : f32 to vector<8x128xf32>
    %557 = arith.addf %555, %556 : vector<8x128xf32>
    %558 = arith.mulf %557, %544 : vector<8x128xf32>
    %cst_152 = arith.constant 0.000000e+00 : f32
    %559 = vector.broadcast %cst_152 : f32 to vector<8x128xf32>
    %560 = arith.subf %559, %539 : vector<8x128xf32>
    %561 = arith.mulf %560, %539 : vector<8x128xf32>
    %562 = math.exp %561 : vector<8x128xf32>
    %563 = arith.mulf %558, %562 : vector<8x128xf32>
    %cst_153 = arith.constant 1.000000e+00 : f32
    %564 = vector.broadcast %cst_153 : f32 to vector<8x128xf32>
    %565 = arith.subf %564, %563 : vector<8x128xf32>
    %cst_154 = arith.constant 0.000000e+00 : f32
    %566 = vector.broadcast %cst_154 : f32 to vector<8x128xf32>
    %567 = arith.cmpf olt, %538, %566 : vector<8x128xf32>
    %cst_155 = arith.constant 0.000000e+00 : f32
    %568 = vector.broadcast %cst_155 : f32 to vector<8x128xf32>
    %569 = arith.subf %568, %565 : vector<8x128xf32>
    %570 = arith.select %567, %569, %565 : vector<8x128xi1>, vector<8x128xf32>
    %cst_156 = arith.constant 1.000000e+00 : f32
    %571 = vector.broadcast %cst_156 : f32 to vector<8x128xf32>
    %572 = arith.addf %571, %570 : vector<8x128xf32>
    %573 = arith.mulf %536, %572 : vector<8x128xf32>
    %574 = vector.broadcast %3 : vector<1x128xf32> to vector<8x128xf32>
    %575 = arith.mulf %573, %574 : vector<8x128xf32>
    %576 = arith.truncf %575 : vector<8x128xf32> to vector<8x128xbf16>
    %cst_157 = arith.constant 0.000000e+00 : bf16
    %577 = vector.broadcast %cst_157 : bf16 to vector<8x128xbf16>
    %578 = tpu.concatenate %577, %576, %577 in 1 : vector<8x128xbf16>, vector<8x128xbf16>, vector<8x128xbf16> -> vector<8x384xbf16>
    %579 = vector.extract_strided_slice %578 {offsets = [0, 122], sizes = [8, 128], strides = [1, 1]} : vector<8x384xbf16> to vector<8x128xbf16>
    %580 = vector.extract_strided_slice %578 {offsets = [0, 123], sizes = [8, 128], strides = [1, 1]} : vector<8x384xbf16> to vector<8x128xbf16>
    %581 = vector.extract_strided_slice %578 {offsets = [0, 124], sizes = [8, 128], strides = [1, 1]} : vector<8x384xbf16> to vector<8x128xbf16>
    %582 = vector.extract_strided_slice %578 {offsets = [0, 127], sizes = [8, 128], strides = [1, 1]} : vector<8x384xbf16> to vector<8x128xbf16>
    %583 = vector.extract_strided_slice %578 {offsets = [0, 128], sizes = [8, 128], strides = [1, 1]} : vector<8x384xbf16> to vector<8x128xbf16>
    %584 = vector.extract_strided_slice %578 {offsets = [0, 129], sizes = [8, 128], strides = [1, 1]} : vector<8x384xbf16> to vector<8x128xbf16>
    %585 = vector.extract_strided_slice %578 {offsets = [0, 132], sizes = [8, 128], strides = [1, 1]} : vector<8x384xbf16> to vector<8x128xbf16>
    %586 = vector.extract_strided_slice %578 {offsets = [0, 133], sizes = [8, 128], strides = [1, 1]} : vector<8x384xbf16> to vector<8x128xbf16>
    %587 = vector.extract_strided_slice %578 {offsets = [0, 134], sizes = [8, 128], strides = [1, 1]} : vector<8x384xbf16> to vector<8x128xbf16>
    %588 = tpu.concatenate %579, %580, %581, %582, %583, %584, %585, %586, %587 in 0 : vector<8x128xbf16>, vector<8x128xbf16>, vector<8x128xbf16>, vector<8x128xbf16>, vector<8x128xbf16>, vector<8x128xbf16>, vector<8x128xbf16>, vector<8x128xbf16>, vector<8x128xbf16> -> vector<72x128xbf16>
    %589 = vector.extract_strided_slice %0 {offsets = [104, 0], sizes = [8, 72], strides = [1, 1]} : vector<128x128xf32> to vector<8x72xf32>
    %590 = arith.truncf %589 : vector<8x72xf32> to vector<8x72xbf16>
    %cst_158 = arith.constant dense<0.000000e+00> : vector<8x128xf32>
    %591 = tpu.matmul %590, %588, %cst_158 {dimension_numbers = #tpu.dot_dimension_numbers<[1], [0], [0], [1], [0, 0, 1, 1], [], []>} : vector<8x72xbf16>, vector<72x128xbf16>, vector<8x128xf32> -> vector<8x128xf32>
    %592 = vector.extract_strided_slice %0 {offsets = [120, 13], sizes = [8, 1], strides = [1, 1]} : vector<128x128xf32> to vector<8x1xf32>
    %593 = vector.broadcast %592 : vector<8x1xf32> to vector<8x128xf32>
    %594 = arith.addf %591, %593 : vector<8x128xf32>
    %595 = arith.truncf %594 : vector<8x128xf32> to vector<8x128xbf16>
    %c0_159 = arith.constant 0 : index
    %c0_160 = arith.constant 0 : index
    %596 = vector.load %arg5[%c0_159, %c0_160] : memref<128x1280xbf16, #tpu.memory_space<vmem>>, vector<128x1280xbf16>
    %cst_161 = arith.constant dense<0.000000e+00> : vector<8x1280xf32>
    %597 = tpu.matmul %595, %596, %cst_161 {dimension_numbers = #tpu.dot_dimension_numbers<[1], [0], [0], [1], [0, 0, 1, 1], [], []>} : vector<8x128xbf16>, vector<128x1280xbf16>, vector<8x1280xf32> -> vector<8x1280xf32>
    %598 = arith.addf %597, %404 : vector<8x1280xf32>
    %599 = arith.truncf %598 : vector<8x1280xf32> to vector<8x1280xbf16>
    %600 = vector.extract_strided_slice %0 {offsets = [112, 0], sizes = [8, 8], strides = [1, 1]} : vector<128x128xf32> to vector<8x8xf32>
    %601 = arith.truncf %600 : vector<8x8xf32> to vector<8x8xbf16>
    %cst_162 = arith.constant dense<0.000000e+00> : vector<8x1280xf32>
    %602 = tpu.matmul %601, %599, %cst_162 {dimension_numbers = #tpu.dot_dimension_numbers<[1], [0], [0], [1], [0, 0, 1, 1], [], []>} : vector<8x8xbf16>, vector<8x1280xbf16>, vector<8x1280xf32> -> vector<8x1280xf32>
    %603 = vector.extract_strided_slice %0 {offsets = [120, 14], sizes = [8, 1], strides = [1, 1]} : vector<128x128xf32> to vector<8x1xf32>
    %604 = vector.broadcast %603 : vector<8x1xf32> to vector<8x1280xf32>
    %605 = arith.addf %602, %604 : vector<8x1280xf32>
    %cst_163 = arith.constant 0.000000e+00 : f32
    %606 = vector.broadcast %cst_163 : f32 to vector<8x1280xf32>
    %607 = arith.subf %606, %605 : vector<8x1280xf32>
    %608 = math.exp %607 : vector<8x1280xf32>
    %cst_164 = arith.constant 1.000000e+00 : f32
    %609 = vector.broadcast %cst_164 : f32 to vector<8x1280xf32>
    %610 = arith.addf %609, %608 : vector<8x1280xf32>
    %611 = tpu.reciprocal %610 {approx = true} : vector<8x1280xf32> -> vector<8x1280xf32>
    %612 = arith.mulf %390, %611 : vector<8x1280xf32>
    %c0_165 = arith.constant 0 : index
    %c0_166 = arith.constant 0 : index
    %613 = vector.load %arg7[%c0_165, %c0_166] : memref<8x1280xf32, #tpu.memory_space<vmem>>, vector<8x1280xf32>
    tpu.vector_store %arg7[%c0_165, %c0_166], %612 {strides = array<i32>} : memref<8x1280xf32, #tpu.memory_space<vmem>>, vector<8x1280xf32>,
    return
  }
  func.func @transform_0(%arg0: i32) -> (i32, i32) {
    %c0_i32 = arith.constant 0 : i32
    %c0_i32_0 = arith.constant 0 : i32
    return %c0_i32, %arg0 : i32, i32
  }
  func.func @transform_1(%arg0: i32) -> (i32, i32) {
    %c0_i32 = arith.constant 0 : i32
    %c0_i32_0 = arith.constant 0 : i32
    %c0_i32_1 = arith.constant 0 : i32
    return %c0_i32, %c0_i32_0 : i32, i32
  }
  func.func @transform_2(%arg0: i32) -> (i32, i32) {
    %c0_i32 = arith.constant 0 : i32
    %c0_i32_0 = arith.constant 0 : i32
    %c0_i32_1 = arith.constant 0 : i32
    return %c0_i32, %c0_i32_0 : i32, i32
  }
  func.func @transform_3(%arg0: i32) -> (i32, i32) {
    %c0_i32 = arith.constant 0 : i32
    %c0_i32_0 = arith.constant 0 : i32
    %c0_i32_1 = arith.constant 0 : i32
    return %c0_i32, %c0_i32_0 : i32, i32
  }
  func.func @transform_4(%arg0: i32) -> (i32, i32) {
    %c0_i32 = arith.constant 0 : i32
    %c0_i32_0 = arith.constant 0 : i32
    %c0_i32_1 = arith.constant 0 : i32
    return %c0_i32, %c0_i32_0 : i32, i32
  }
  func.func @transform_5(%arg0: i32) -> (i32, i32) {
    %c0_i32 = arith.constant 0 : i32
    %c0_i32_0 = arith.constant 0 : i32
    %c0_i32_1 = arith.constant 0 : i32
    return %c0_i32, %c0_i32_0 : i32, i32
  }
  func.func @transform_6(%arg0: i32) -> (i32, i32) {
    %c0_i32 = arith.constant 0 : i32
    %c0_i32_0 = arith.constant 0 : i32
    return %c0_i32, %arg0 : i32, i32
  }
}

</mosaic_0001>

<llo_original>
// kernel: rfdb_forward.1
$region0: #{rfdb_forward.1}
  #allocation0 [shape = 'u32[]', space=smem, size = 0x4, offset = 0x4, fixed_abs, tag = 'smem constant byte address 0x4 - core index']
  #allocation1 [shape = 'u32[144,128]{1,0:T(1,128)}', space=vmem, size = 0x12000, scoped, tag = 'internal scratch']
  %s0 = inlined_call_operand.vmem [shape: f32[8,2560], index: 0, kind: input, shape index: {}]
  %s1 = inlined_call_operand.vmem [shape: f32[1,1280], index: 1, kind: input, shape index: {}]
  %s2 = inlined_call_operand.vmem [shape: f32[1,128], index: 2, kind: input, shape index: {}]
  %s3 = inlined_call_operand.vmem [shape: bf16[1280,128], index: 3, kind: input, shape index: {}]
  %s4 = inlined_call_operand.vmem [shape: bf16[128,1280], index: 4, kind: input, shape index: {}]
  %s5 = inlined_call_operand.vmem [shape: f32[128,128], index: 5, kind: input, shape index: {}]
  %s6 = inlined_call_operand.vmem [shape: f32[8,2560], index: 6, kind: output, shape index: {}]
  %s7 = sld [smem:[#allocation0]]
  $region57: #{rfdb_forward.1} parent=0
    _
  %s9 = ssub.s32 1, %s7
  %s10 = scalar_select 0, %s9, %s7
  loop: start=0, step=1, limit=4
  $region2: #{rfdb_forward.1} parent=0 // loop_pre_header
    _
  $region3: #{rfdb_forward.1} parent=0 // loop_header
    %s12 = sphi 0, %s16
    %p13 = scmp.ge.s32.totalorder %s12, 4
    %s22 = sphi 0, %s24
    %s25 = sphi 0, %s22
    %s26 = sphi 0, %s25
    %s42 = sphi 0, %s26
    %s46 = sphi 0, %s46
    %s48 = sphi 0, %s46
    %s49 = sphi 0, %s48
    %s63 = sphi 0, %s49
    %s67 = sphi 0, %s67
    %s69 = sphi 0, %s67
    %s70 = sphi 0, %s69
    %s84 = sphi 0, %s70
    %s88 = sphi 0, %s88
    %s90 = sphi 0, %s88
    %s91 = sphi 0, %s90
    %s105 = sphi 0, %s91
    %s109 = sphi 0, %s109
    %s111 = sphi 0, %s109
    %s112 = sphi 0, %s111
    %s126 = sphi 0, %s112
    %s130 = sphi 0, %s130
    %s132 = sphi 0, %s130
    %s133 = sphi 0, %s132
    %s147 = sphi 0, %s133
    %s153 = sphi 0, %s155
    %s156 = sphi 0, %s153
    %s157 = sphi 0, %s156
    %s173 = sphi 0, %s157
  $region4: #{rfdb_forward.1} parent=0 // loop_header_branch
    %15 = sbr.rel (%p13) target = $region8
  $region5: #{rfdb_forward.1} parent=0 // loop_body
    %s17 = ssub.s32 %s12, 1
    %s18 = ssub.s32 %s12, 2
    %s19 = sadd.s32 %s12, 1
    %s20 = ssub.s32 %s12, %s19
    %p21 = scmp.eq.s32.totalorder %s20, 0
    %s23 = sadd.s32 %s22, 1
    %s24 = scalar_select %p21, %s22, %s23
    %p27 = pneg %p21
    %p28 = scmp.eq.s32.totalorder %s12, 1
    %p29 = por %p27, %p28
    %p30 = scmp.ne.s32.totalorder %s22, %s25
    %p31 = scmp.eq.s32.totalorder %s12, 0
    %p32 = por %p30, %p31
    %p33 = scmp.ne.s32.totalorder %s22, %s25
    %p34 = scmp.eq.s32.totalorder %s17, 1
    %p35 = por %p33, %p34
    %p36 = scmp.ne.s32.totalorder %s25, %s26
    %p37 = scmp.eq.s32.totalorder %s17, 0
    %p38 = por %p36, %p37
    %p39 = scmp.ne.s32.totalorder %s25, %s26
    %p40 = scmp.eq.s32.totalorder %s18, 1
    %p41 = por %p39, %p40
    %p43 = scmp.ne.s32.totalorder %s26, %s42
    %p44 = scmp.eq.s32.totalorder %s18, 0
    %p45 = por %p43, %p44
    %s47 = sadd.s32 %s46, 1
    %p50 = scmp.eq.s32.totalorder %s12, 1
    %p51 = scmp.ne.s32.totalorder %s46, %s48
    %p52 = scmp.eq.s32.totalorder %s12, 0
    %p53 = por %p51, %p52
    %p54 = scmp.ne.s32.totalorder %s46, %s48
    %p55 = scmp.eq.s32.totalorder %s17, 1
    %p56 = por %p54, %p55
    %p57 = scmp.ne.s32.totalorder %s48, %s49
    %p58 = scmp.eq.s32.totalorder %s17, 0
    %p59 = por %p57, %p58
    %p60 = scmp.ne.s32.totalorder %s48, %s49
    %p61 = scmp.eq.s32.totalorder %s18, 1
    %p62 = por %p60, %p61
    %p64 = scmp.ne.s32.totalorder %s49, %s63
    %p65 = scmp.eq.s32.totalorder %s18, 0
    %p66 = por %p64, %p65
    %s68 = sadd.s32 %s67, 1
    %p71 = scmp.eq.s32.totalorder %s12, 1
    %p72 = scmp.ne.s32.totalorder %s67, %s69
    %p73 = scmp.eq.s32.totalorder %s12, 0
    %p74 = por %p72, %p73
    %p75 = scmp.ne.s32.totalorder %s67, %s69
    %p76 = scmp.eq.s32.totalorder %s17, 1
    %p77 = por %p75, %p76
    %p78 = scmp.ne.s32.totalorder %s69, %s70
    %p79 = scmp.eq.s32.totalorder %s17, 0
    %p80 = por %p78, %p79
    %p81 = scmp.ne.s32.totalorder %s69, %s70
    %p82 = scmp.eq.s32.totalorder %s18, 1
    %p83 = por %p81, %p82
    %p85 = scmp.ne.s32.totalorder %s70, %s84
    %p86 = scmp.eq.s32.totalorder %s18, 0
    %p87 = por %p85, %p86
    %s89 = sadd.s32 %s88, 1
    %p92 = scmp.eq.s32.totalorder %s12, 1
    %p93 = scmp.ne.s32.totalorder %s88, %s90
    %p94 = scmp.eq.s32.totalorder %s12, 0
    %p95 = por %p93, %p94
    %p96 = scmp.ne.s32.totalorder %s88, %s90
    %p97 = scmp.eq.s32.totalorder %s17, 1
    %p98 = por %p96, %p97
    %p99 = scmp.ne.s32.totalorder %s90, %s91
    %p100 = scmp.eq.s32.totalorder %s17, 0
    %p101 = por %p99, %p100
    %p102 = scmp.ne.s32.totalorder %s90, %s91
    %p103 = scmp.eq.s32.totalorder %s18, 1
    %p104 = por %p102, %p103
    %p106 = scmp.ne.s32.totalorder %s91, %s105
    %p107 = scmp.eq.s32.totalorder %s18, 0
    %p108 = por %p106, %p107
    %s110 = sadd.s32 %s109, 1
    %p113 = scmp.eq.s32.totalorder %s12, 1
    %p114 = scmp.ne.s32.totalorder %s109, %s111
    %p115 = scmp.eq.s32.totalorder %s12, 0
    %p116 = por %p114, %p115
    %p117 = scmp.ne.s32.totalorder %s109, %s111
    %p118 = scmp.eq.s32.totalorder %s17, 1
    %p119 = por %p117, %p118
    %p120 = scmp.ne.s32.totalorder %s111, %s112
    %p121 = scmp.eq.s32.totalorder %s17, 0
    %p122 = por %p120, %p121
    %p123 = scmp.ne.s32.totalorder %s111, %s112
    %p124 = scmp.eq.s32.totalorder %s18, 1
    %p125 = por %p123, %p124
    %p127 = scmp.ne.s32.totalorder %s112, %s126
    %p128 = scmp.eq.s32.totalorder %s18, 0
    %p129 = por %p127, %p128
    %s131 = sadd.s32 %s130, 1
    %p134 = scmp.eq.s32.totalorder %s12, 1
    %p135 = scmp.ne.s32.totalorder %s130, %s132
    %p136 = scmp.eq.s32.totalorder %s12, 0
    %p137 = por %p135, %p136
    %p138 = scmp.ne.s32.totalorder %s130, %s132
    %p139 = scmp.eq.s32.totalorder %s17, 1
    %p140 = por %p138, %p139
    %p141 = scmp.ne.s32.totalorder %s132, %s133
    %p142 = scmp.eq.s32.totalorder %s17, 0
    %p143 = por %p141, %p142
    %p144 = scmp.ne.s32.totalorder %s132, %s133
    %p145 = scmp.eq.s32.totalorder %s18, 1
    %p146 = por %p144, %p145
    %p148 = scmp.ne.s32.totalorder %s133, %s147
    %p149 = scmp.eq.s32.totalorder %s18, 0
    %p150 = por %p148, %p149
    %s151 = ssub.s32 %s12, %s19
    %p152 = scmp.eq.s32.totalorder %s151, 0
    %s154 = sadd.s32 %s153, 1
    %s155 = scalar_select %p152, %s153, %s154
    %p158 = pneg %p152
    %p159 = scmp.eq.s32.totalorder %s12, 1
    %p160 = por %p158, %p159
    %p161 = scmp.ne.s32.totalorder %s153, %s156
    %p162 = scmp.eq.s32.totalorder %s12, 0
    %p163 = por %p161, %p162
    %p164 = scmp.ne.s32.totalorder %s153, %s156
    %p165 = scmp.eq.s32.totalorder %s17, 1
    %p166 = por %p164, %p165
    %p167 = scmp.ne.s32.totalorder %s156, %s157
    %p168 = scmp.eq.s32.totalorder %s17, 0
    %p169 = por %p167, %p168
    %p170 = scmp.ne.s32.totalorder %s156, %s157
    %p171 = scmp.eq.s32.totalorder %s18, 1
    %p172 = por %p170, %p171
    %p174 = scmp.ne.s32.totalorder %s157, %s173
    %p175 = scmp.eq.s32.totalorder %s18, 0
    %p176 = por %p174, %p175
    %p177 = scmp.le.s32.totalorder 1, %s12
    %p178 = scmp.lt.s32.totalorder %s12, 3
    %p179 = pnand %p177, %p178
    %p180 = pneg %p179
    // Predicated region
    $region9: #{rfdb_forward.1} parent=5 // pred_check
      _
    $region10: #{rfdb_forward.1} parent=5 // pred_check_branch
      %182 = sbr.rel (%p179) target = $region12
    $region11: #{rfdb_forward.1} parent=5 // pred_region
      %s183 = ssub.s32 %s12, 1
      // Predicated region
      $region13: #{rfdb_forward.1} parent=11 // pred_check
        %p184 = pneg %p59
      $region14: #{rfdb_forward.1} parent=11 // pred_check_branch
        %186 = sbr.rel (%p184) target = $region16
      $region15: #{rfdb_forward.1} parent=11 // pred_region
        _
      $region16: #{rfdb_forward.1} parent=11 // pred_fallthru
        _
      // Predicated region
      $region17: #{rfdb_forward.1} parent=11 // pred_check
        %p187 = pneg %p80
      $region18: #{rfdb_forward.1} parent=11 // pred_check_branch
        %189 = sbr.rel (%p187) target = $region20
      $region19: #{rfdb_forward.1} parent=11 // pred_region
        _
      $region20: #{rfdb_forward.1} parent=11 // pred_fallthru
        _
      // Predicated region
      $region21: #{rfdb_forward.1} parent=11 // pred_check
        %p190 = pneg %p101
      $region22: #{rfdb_forward.1} parent=11 // pred_check_branch
        %192 = sbr.rel (%p190) target = $region24
      $region23: #{rfdb_forward.1} parent=11 // pred_region
        _
      $region24: #{rfdb_forward.1} parent=11 // pred_fallthru
        _
      // Predicated region
      $region25: #{rfdb_forward.1} parent=11 // pred_check
        %p193 = pneg %p122
      $region26: #{rfdb_forward.1} parent=11 // pred_check_branch
        %195 = sbr.rel (%p193) target = $region28
      $region27: #{rfdb_forward.1} parent=11 // pred_region
        _
      $region28: #{rfdb_forward.1} parent=11 // pred_fallthru
        _
      // Predicated region
      $region29: #{rfdb_forward.1} parent=11 // pred_check
        %p196 = pneg %p143
      $region30: #{rfdb_forward.1} parent=11 // pred_check_branch
        %198 = sbr.rel (%p196) target = $region32
      $region31: #{rfdb_forward.1} parent=11 // pred_region
        _
      $region32: #{rfdb_forward.1} parent=11 // pred_fallthru
        _
    $region12: #{rfdb_forward.1} parent=5 // pred_fallthru
      _
    %p199 = scmp.lt.s32.totalorder %s12, 2
    // Predicated region
    $region33: #{rfdb_forward.1} parent=5 // pred_check
      %p200 = pneg %p199
    $region34: #{rfdb_forward.1} parent=5 // pred_check_branch
      %202 = sbr.rel (%p200) target = $region36
    $region35: #{rfdb_forward.1} parent=5 // pred_region
      // Predicated region
      $region37: #{rfdb_forward.1} parent=35 // pred_check
        %p203 = pneg %p32
      $region38: #{rfdb_forward.1} parent=35 // pred_check_branch
        %205 = sbr.rel (%p203) target = $region40
      $region39: #{rfdb_forward.1} parent=35 // pred_region
        %s206 = smul.u32 10, %s12
        %p207 = scmp.lt.s32.totalorder %s206, 19
        %s208 = scalar_select %p207, %s206, 19
        %s209 = smul.addr %s208, 8
        %s210 = scalar_lea.vmem %s0, %s209
        %s211 = smul.u32 10, %s12
      $region40: #{rfdb_forward.1} parent=35 // pred_fallthru
        _
    $region36: #{rfdb_forward.1} parent=5 // pred_fallthru
      _
    %p212 = scmp.le.s32.totalorder 1, %s12
    %p213 = scmp.lt.s32.totalorder %s12, 3
    %p214 = pnand %p212, %p213
    %p215 = pneg %p214
    // Predicated region
    $region41: #{rfdb_forward.1} parent=5 // pred_check
      _
    $region42: #{rfdb_forward.1} parent=5 // pred_check_branch
      %217 = sbr.rel (%p214) target = $region44
    $region43: #{rfdb_forward.1} parent=5 // pred_region
      %s218 = ssub.s32 %s12, 1
      %s219 = smul.u32 10, %s17
      %p220 = scmp.lt.s32.totalorder %s219, 19
      %s221 = scalar_select %p220, %s219, 19
      %s222 = smul.addr %s221, 8
      %s223 = scalar_lea.vmem %s0, %s222
      %p224 = pneg %p38
      %p225 = pneg %p35
      %p226 = pneg %p59
      %p227 = pneg %p56
      %p228 = pneg %p80
      %p229 = pneg %p77
      %p230 = pneg %p101
      %p231 = pneg %p98
      %p232 = pneg %p122
      %p233 = pneg %p119
      %p234 = pneg %p143
      %p235 = pneg %p140
      %p236 = pneg %p169
      %p237 = pneg %p166
      %s238 = smul.u32 10, %s17
      %p239 = scmp.lt.s32.totalorder %s238, 19
      %s240 = scalar_select %p239, %s238, 19
      %s241 = smul.addr %s240, 8
      %s242 = scalar_lea.vmem %s6, %s241
      %s243 = smul.u32 10, %s17
      %p244 = scmp.lt.s32.totalorder %s243, 19
      %s245 = scalar_select %p244, %s243, 19
      %s246 = smul.addr %s245, 8
      %s247 = scalar_lea.vmem %s0, %s246
      %s248 = smul.u32 10, %s17
      %s249 = smul.u32 10, %s17
      %p250 = scmp.lt.s32.totalorder %s249, 19
      %s251 = scalar_select %p250, %s249, 19
      %s252 = smul.addr %s251, 8
      %s253 = scalar_lea.vmem %s6, %s252
      %s254 = smul.u32 10, %s17
      %v256 = vld [vmem:[%s5] sm:$0xff]
      %v257 = vld [vmem:[%s5 + $0x8] sm:$0xff]
      %v258 = vld [vmem:[%s5 + $0x10] sm:$0xff]
      %v259 = vld [vmem:[%s5 + $0x18] sm:$0xff]
      %v260 = vld [vmem:[%s5 + $0x20] sm:$0xff]
      %v261 = vld [vmem:[%s5 + $0x28] sm:$0xff]
      %v262 = vld [vmem:[%s5 + $0x30] sm:$0xff]
      %v263 = vld [vmem:[%s5 + $0x38] sm:$0xff]
      %v264 = vld [vmem:[%s5 + $0x40] sm:$0xff]
      %v265 = vld [vmem:[%s5 + $0x48] sm:$0xff]
      %v266 = vld [vmem:[%s5 + $0x50] sm:$0xff]
      %v267 = vld [vmem:[%s5 + $0x58] sm:$0xff]
      %v268 = vld [vmem:[%s5 + $0x60] sm:$0xff]
      %v269 = vld [vmem:[%s5 + $0x68] sm:$0xff]
      %v270 = vld [vmem:[%s5 + $0x70] sm:$0xff]
      %v271 = vld [vmem:[%s5 + $0x78] sm:$0xff]
      %v272 = vld [vmem:[%s247] sm:$0xff]
      %v273 = vld [vmem:[%s247 + $0x8] sm:$0xff]
      %v274 = vld [vmem:[%s247 + $0x10] sm:$0xff]
      %v275 = vld [vmem:[%s247 + $0x18] sm:$0xff]
      %v276 = vld [vmem:[%s247 + $0x20] sm:$0xff]
      %v277 = vld [vmem:[%s247 + $0x28] sm:$0xff]
      %v278 = vld [vmem:[%s247 + $0x30] sm:$0xff]
      %v279 = vld [vmem:[%s247 + $0x38] sm:$0xff]
      %v280 = vld [vmem:[%s247 + $0x40] sm:$0xff]
      %v281 = vld [vmem:[%s247 + $0x48] sm:$0xff]
      %v282 = vld [vmem:[%s1] sm:$0xff]
      %v283 = vld [vmem:[%s1 + $0x8] sm:$0x3]
      %v284 = vld [vmem:[%s2] sm:$0x1]
      %v285 = vpack.c.bf16 %v272, %v272
      %v286 = vpack.c.bf16 %v273, %v273
      %v287 = vpack.c.bf16 %v274, %v274
      %v288 = vpack.c.bf16 %v275, %v275
      %v289 = vpack.c.bf16 %v276, %v276
      %v290 = vpack.c.bf16 %v277, %v277
      %v291 = vpack.c.bf16 %v278, %v278
      %v292 = vpack.c.bf16 %v279, %v279
      %v293 = vpack.c.bf16 %v280, %v280
      %v294 = vpack.c.bf16 %v281, %v281
      %v295 = vpack.c.bf16 %v256, %v256
      %297 = vset.pattern.permute.xlu0 0
      %298 = vperm.xlu0 %297, %v271
      %v299 = vpop.permute.xlu0 %298
      %vm301 = vcmask 64512
      %v303 = vsel %vm301, %v295, 0
      %vm305 = vcmask 1043456
      %v307 = vsel %vm305, %v285, 0
      %v310 = vsel %vm305, %v286, 0
      %v313 = vsel %vm305, %v287, 0
      %v316 = vsel %vm305, %v288, 0
      %v319 = vsel %vm305, %v289, 0
      %v322 = vsel %vm305, %v290, 0
      %v325 = vsel %vm305, %v291, 0
      %v328 = vsel %vm305, %v292, 0
      %v331 = vsel %vm305, %v293, 0
      %v334 = vsel %vm305, %v294, 0
      %336 = vmatprep.subr.bf16.mxu0 0
      %337 = vmatpush1.bf16.msra.mxu0 0
      %338 = vmatprep.subr.bf16.mxu0 0
      %339 = vmatpush1.bf16.msra.mxu0 0
      %340 = vmatprep.subr.bf16.mxu0 0
      %341 = vmatpush1.bf16.msra.mxu0 0
      %342 = vmatprep.subr.bf16.mxu0 0
      %343 = vmatpush1.bf16.msra.mxu0 0
      %344 = vmatprep.subr.bf16.mxu0 0
      %345 = vmatpush1.bf16.msra.mxu0 0
      %346 = vmatprep.subr.bf16.mxu0 0
      %347 = vmatpush1.bf16.msra.mxu0 0
      %348 = vmatprep.subr.bf16.mxu0 0
      %349 = vmatpush1.bf16.msra.mxu0 0
      %350 = vmatprep.subr.bf16.mxu0 %v310
      %351 = vmatpush1.bf16.msra.mxu0 %v307
      %352 = vmatprep.subr.bf16.mxu0 0
      %353 = vmatpush2.bf16.msra.mxu0 0
      %354 = vmatprep.subr.bf16.mxu0 0
      %355 = vmatpush2.bf16.msra.mxu0 0
      %356 = vmatprep.subr.bf16.mxu0 0
      %357 = vmatpush2.bf16.msra.mxu0 0
      %358 = vmatprep.subr.bf16.mxu0 0
      %359 = vmatpush2.bf16.msra.mxu0 0
      %360 = vmatprep.subr.bf16.mxu0 0
      %361 = vmatpush2.bf16.msra.mxu0 0
      %362 = vmatprep.subr.bf16.mxu0 0
      %363 = vmatpush2.bf16.msra.mxu0 0
      %364 = vmatprep.subr.bf16.mxu0 0
      %365 = vmatpush2.bf16.msra.mxu0 0
      %366 = vmatprep.subr.bf16.mxu0 0
      %367 = vmatpush2.bf16.msra.mxu0 0
      %368 = vmatprep.mubr.bf16.mxu0 0
      %369 = vmatmul.mubr.bf16.gmra.mxu0 %v303
      %v370 = vpop.f32.mrf.mxu0
      %v371 = vadd.f32 %v299, %v370
      %v372 = vpop.f32.mrf.mxu0
      %v373 = vadd.f32 %v299, %v372
      %v374 = vpop.f32.mrf.mxu0
      %v375 = vpop.f32.mrf.mxu0
      %376 = vdwg.mxu0
      %377 = vmatprep.subr.bf16.mxu0 0
      %378 = vmatpush1.bf16.msra.mxu0 0
      %379 = vmatprep.subr.bf16.mxu0 0
      %380 = vmatpush1.bf16.msra.mxu0 0
      %381 = vmatprep.subr.bf16.mxu0 0
      %382 = vmatpush1.bf16.msra.mxu0 0
      %383 = vmatprep.subr.bf16.mxu0 0
      %384 = vmatpush1.bf16.msra.mxu0 0
      %385 = vmatprep.subr.bf16.mxu0 0
      %386 = vmatpush1.bf16.msra.mxu0 0
      %387 = vmatprep.subr.bf16.mxu0 0
      %388 = vmatpush1.bf16.msra.mxu0 0
      %389 = vmatprep.subr.bf16.mxu0 0
      %390 = vmatpush1.bf16.msra.mxu0 0
      %391 = vmatprep.subr.bf16.mxu0 %v316
      %392 = vmatpush1.bf16.msra.mxu0 %v313
      %393 = vmatprep.subr.bf16.mxu0 0
      %394 = vmatpush2.bf16.msra.mxu0 0
      %395 = vmatprep.subr.bf16.mxu0 0
      %396 = vmatpush2.bf16.msra.mxu0 0
      %397 = vmatprep.subr.bf16.mxu0 0
      %398 = vmatpush2.bf16.msra.mxu0 0
      %399 = vmatprep.subr.bf16.mxu0 0
      %400 = vmatpush2.bf16.msra.mxu0 0
      %401 = vmatprep.subr.bf16.mxu0 0
      %402 = vmatpush2.bf16.msra.mxu0 0
      %403 = vmatprep.subr.bf16.mxu0 0
      %404 = vmatpush2.bf16.msra.mxu0 0
      %405 = vmatprep.subr.bf16.mxu0 0
      %406 = vmatpush2.bf16.msra.mxu0 0
      %407 = vmatprep.subr.bf16.mxu0 0
      %408 = vmatpush2.bf16.msra.mxu0 0
      %409 = vmatprep.mubr.bf16.mxu0 0
      %410 = vmatmul.mubr.bf16.gmra.mxu0 %v303
      %v411 = vpop.f32.mrf.mxu0
      %v412 = vadd.f32 %v299, %v411
      %v413 = vpop.f32.mrf.mxu0
      %v414 = vadd.f32 %v299, %v413
      %v415 = vpop.f32.mrf.mxu0
      %v416 = vpop.f32.mrf.mxu0
      %417 = vdwg.mxu0
      %418 = vmatprep.subr.bf16.mxu0 0
      %419 = vmatpush1.bf16.msra.mxu0 0
      %420 = vmatprep.subr.bf16.mxu0 0
      %421 = vmatpush1.bf16.msra.mxu0 0
      %422 = vmatprep.subr.bf16.mxu0 0
      %423 = vmatpush1.bf16.msra.mxu0 0
      %424 = vmatprep.subr.bf16.mxu0 0
      %425 = vmatpush1.bf16.msra.mxu0 0
      %426 = vmatprep.subr.bf16.mxu0 0
      %427 = vmatpush1.bf16.msra.mxu0 0
      %428 = vmatprep.subr.bf16.mxu0 0
      %429 = vmatpush1.bf16.msra.mxu0 0
      %430 = vmatprep.subr.bf16.mxu0 0
      %431 = vmatpush1.bf16.msra.mxu0 0
      %432 = vmatprep.subr.bf16.mxu0 %v322
      %433 = vmatpush1.bf16.msra.mxu0 %v319
      %434 = vmatprep.subr.bf16.mxu0 0
      %435 = vmatpush2.bf16.msra.mxu0 0
      %436 = vmatprep.subr.bf16.mxu0 0
      %437 = vmatpush2.bf16.msra.mxu0 0
      %438 = vmatprep.subr.bf16.mxu0 0
      %439 = vmatpush2.bf16.msra.mxu0 0
      %440 = vmatprep.subr.bf16.mxu0 0
      %441 = vmatpush2.bf16.msra.mxu0 0
      %442 = vmatprep.subr.bf16.mxu0 0
      %443 = vmatpush2.bf16.msra.mxu0 0
      %444 = vmatprep.subr.bf16.mxu0 0
      %445 = vmatpush2.bf16.msra.mxu0 0
      %446 = vmatprep.subr.bf16.mxu0 0
      %447 = vmatpush2.bf16.msra.mxu0 0
      %448 = vmatprep.subr.bf16.mxu0 0
      %449 = vmatpush2.bf16.msra.mxu0 0
      %450 = vmatprep.mubr.bf16.mxu0 0
      %451 = vmatmul.mubr.bf16.gmra.mxu0 %v303
      %v452 = vpop.f32.mrf.mxu0
      %v453 = vadd.f32 %v299, %v452
      %v454 = vpop.f32.mrf.mxu0
      %v455 = vadd.f32 %v299, %v454
      %v456 = vpop.f32.mrf.mxu0
      %v457 = vpop.f32.mrf.mxu0
      %458 = vdwg.mxu0
      %459 = vmatprep.subr.bf16.mxu0 0
      %460 = vmatpush1.bf16.msra.mxu0 0
      %461 = vmatprep.subr.bf16.mxu0 0
      %462 = vmatpush1.bf16.msra.mxu0 0
      %463 = vmatprep.subr.bf16.mxu0 0
      %464 = vmatpush1.bf16.msra.mxu0 0
      %465 = vmatprep.subr.bf16.mxu0 0
      %466 = vmatpush1.bf16.msra.mxu0 0
      %467 = vmatprep.subr.bf16.mxu0 0
      %468 = vmatpush1.bf16.msra.mxu0 0
      %469 = vmatprep.subr.bf16.mxu0 0
      %470 = vmatpush1.bf16.msra.mxu0 0
      %471 = vmatprep.subr.bf16.mxu0 0
      %472 = vmatpush1.bf16.msra.mxu0 0
      %473 = vmatprep.subr.bf16.mxu0 %v328
      %474 = vmatpush1.bf16.msra.mxu0 %v325
      %475 = vmatprep.subr.bf16.mxu0 0
      %476 = vmatpush2.bf16.msra.mxu0 0
      %477 = vmatprep.subr.bf16.mxu0 0
      %478 = vmatpush2.bf16.msra.mxu0 0
      %479 = vmatprep.subr.bf16.mxu0 0
      %480 = vmatpush2.bf16.msra.mxu0 0
      %481 = vmatprep.subr.bf16.mxu0 0
      %482 = vmatpush2.bf16.msra.mxu0 0
      %483 = vmatprep.subr.bf16.mxu0 0
      %484 = vmatpush2.bf16.msra.mxu0 0
      %485 = vmatprep.subr.bf16.mxu0 0
      %486 = vmatpush2.bf16.msra.mxu0 0
      %487 = vmatprep.subr.bf16.mxu0 0
      %488 = vmatpush2.bf16.msra.mxu0 0
      %489 = vmatprep.subr.bf16.mxu0 0
      %490 = vmatpush2.bf16.msra.mxu0 0
      %491 = vmatprep.mubr.bf16.mxu0 0
      %492 = vmatmul.mubr.bf16.gmra.mxu0 %v303
      %v493 = vpop.f32.mrf.mxu0
      %v494 = vadd.f32 %v299, %v493
      %v495 = vpop.f32.mrf.mxu0
      %v496 = vadd.f32 %v299, %v495
      %v497 = vpop.f32.mrf.mxu0
      %v498 = vpop.f32.mrf.mxu0
      %499 = vdwg.mxu0
      %500 = vmatprep.subr.bf16.mxu0 0
      %501 = vmatpush1.bf16.msra.mxu0 0
      %502 = vmatprep.subr.bf16.mxu0 0
      %503 = vmatpush1.bf16.msra.mxu0 0
      %504 = vmatprep.subr.bf16.mxu0 0
      %505 = vmatpush1.bf16.msra.mxu0 0
      %506 = vmatprep.subr.bf16.mxu0 0
      %507 = vmatpush1.bf16.msra.mxu0 0
      %508 = vmatprep.subr.bf16.mxu0 0
      %509 = vmatpush1.bf16.msra.mxu0 0
      %510 = vmatprep.subr.bf16.mxu0 0
      %511 = vmatpush1.bf16.msra.mxu0 0
      %512 = vmatprep.subr.bf16.mxu0 0
      %513 = vmatpush1.bf16.msra.mxu0 0
      %514 = vmatprep.subr.bf16.mxu0 %v334
      %515 = vmatpush1.bf16.msra.mxu0 %v331
      %516 = vmatprep.subr.bf16.mxu0 0
      %517 = vmatpush2.bf16.msra.mxu0 0
      %518 = vmatprep.subr.bf16.mxu0 0
      %519 = vmatpush2.bf16.msra.mxu0 0
      %520 = vmatprep.subr.bf16.mxu0 0
      %521 = vmatpush2.bf16.msra.mxu0 0
      %522 = vmatprep.subr.bf16.mxu0 0
      %523 = vmatpush2.bf16.msra.mxu0 0
      %524 = vmatprep.subr.bf16.mxu0 0
      %525 = vmatpush2.bf16.msra.mxu0 0
      %526 = vmatprep.subr.bf16.mxu0 0
      %527 = vmatpush2.bf16.msra.mxu0 0
      %528 = vmatprep.subr.bf16.mxu0 0
      %529 = vmatpush2.bf16.msra.mxu0 0
      %530 = vmatprep.subr.bf16.mxu0 0
      %531 = vmatpush2.bf16.msra.mxu0 0
      %532 = vmatprep.mubr.bf16.mxu0 0
      %533 = vmatmul.mubr.bf16.gmra.mxu0 %v303
      %v534 = vpop.f32.mrf.mxu0
      %v535 = vadd.f32 %v299, %v534
      %v536 = vpop.f32.mrf.mxu0
      %v537 = vadd.f32 %v299, %v536
      %v538 = vpop.f32.mrf.mxu0
      %v539 = vpop.f32.mrf.mxu0
      %540 = vdwg.mxu0
      %v541 = vmul.f32 %v371, 0.5
      %v542 = vmul.f32 %v373, 0.5
      %v543 = vmul.f32 %v412, 0.5
      %v544 = vmul.f32 %v414, 0.5
      %v545 = vmul.f32 %v453, 0.5
      %v546 = vmul.f32 %v455, 0.5
      %v547 = vmul.f32 %v494, 0.5
      %v548 = vmul.f32 %v496, 0.5
      %v549 = vmul.f32 %v535, 0.5
      %v550 = vmul.f32 %v537, 0.5
      %v551 = vmul.f32 %v371, 0.70710677
      %v552 = vmul.f32 %v373, 0.70710677
      %v553 = vmul.f32 %v412, 0.70710677
      %v554 = vmul.f32 %v414, 0.70710677
      %v555 = vmul.f32 %v453, 0.70710677
      %v556 = vmul.f32 %v455, 0.70710677
      %v557 = vmul.f32 %v494, 0.70710677
      %v558 = vmul.f32 %v496, 0.70710677
      %v559 = vmul.f32 %v535, 0.70710677
      %v560 = vmul.f32 %v537, 0.70710677
      %v561 = vand.u32 2147483647, %v551
      %v562 = vand.u32 2147483647, %v552
      %v563 = vand.u32 2147483647, %v553
      %v564 = vand.u32 2147483647, %v554
      %v565 = vand.u32 2147483647, %v555
      %v566 = vand.u32 2147483647, %v556
      %v567 = vand.u32 2147483647, %v557
      %v568 = vand.u32 2147483647, %v558
      %v569 = vand.u32 2147483647, %v559
      %v570 = vand.u32 2147483647, %v560
      %v571 = vmul.f32 %v561, 0.3275911
      %v572 = vmul.f32 %v562, 0.3275911
      %v573 = vmul.f32 %v563, 0.3275911
      %v574 = vmul.f32 %v564, 0.3275911
      %v575 = vmul.f32 %v565, 0.3275911
      %v576 = vmul.f32 %v566, 0.3275911
      %v577 = vmul.f32 %v567, 0.3275911
      %v578 = vmul.f32 %v568, 0.3275911
      %v579 = vmul.f32 %v569, 0.3275911
      %v580 = vmul.f32 %v570, 0.3275911
      %v581 = vadd.f32 %v571, 1.0
      %v582 = vadd.f32 %v572, 1.0
      %v583 = vadd.f32 %v573, 1.0
      %v584 = vadd.f32 %v574, 1.0
      %v585 = vadd.f32 %v575, 1.0
      %v586 = vadd.f32 %v576, 1.0
      %v587 = vadd.f32 %v577, 1.0
      %v588 = vadd.f32 %v578, 1.0
      %v589 = vadd.f32 %v579, 1.0
      %v590 = vadd.f32 %v580, 1.0
      %v591 = vrcp.pop %v581
      %v592 = vrcp.pop %v582
      %v593 = vrcp.pop %v583
      %v594 = vrcp.pop %v584
      %v595 = vrcp.pop %v585
      %v596 = vrcp.pop %v586
      %v597 = vrcp.pop %v587
      %v598 = vrcp.pop %v588
      %v599 = vrcp.pop %v589
      %v600 = vrcp.pop %v590
      %v601 = vmul.f32 %v591, 1.0614054
      %v602 = vmul.f32 %v592, 1.0614054
      %v603 = vmul.f32 %v593, 1.0614054
      %v604 = vmul.f32 %v594, 1.0614054
      %v605 = vmul.f32 %v595, 1.0614054
      %v606 = vmul.f32 %v596, 1.0614054
      %v607 = vmul.f32 %v597, 1.0614054
      %v608 = vmul.f32 %v598, 1.0614054
      %v609 = vmul.f32 %v599, 1.0614054
      %v610 = vmul.f32 %v600, 1.0614054
      %v611 = vadd.f32 %v601, -1.4531521
      %v612 = vadd.f32 %v602, -1.4531521
      %v613 = vadd.f32 %v603, -1.4531521
      %v614 = vadd.f32 %v604, -1.4531521
      %v615 = vadd.f32 %v605, -1.4531521
      %v616 = vadd.f32 %v606, -1.4531521
      %v617 = vadd.f32 %v607, -1.4531521
      %v618 = vadd.f32 %v608, -1.4531521
      %v619 = vadd.f32 %v609, -1.4531521
      %v620 = vadd.f32 %v610, -1.4531521
      %v621 = vmul.f32 %v611, %v591
      %v622 = vmul.f32 %v612, %v592
      %v623 = vmul.f32 %v613, %v593
      %v624 = vmul.f32 %v614, %v594
      %v625 = vmul.f32 %v615, %v595
      %v626 = vmul.f32 %v616, %v596
      %v627 = vmul.f32 %v617, %v597
      %v628 = vmul.f32 %v618, %v598
      %v629 = vmul.f32 %v619, %v599
      %v630 = vmul.f32 %v620, %v600
      %v631 = vadd.f32 %v621, 1.4214138
      %v632 = vadd.f32 %v622, 1.4214138
      %v633 = vadd.f32 %v623, 1.4214138
      %v634 = vadd.f32 %v624, 1.4214138
      %v635 = vadd.f32 %v625, 1.4214138
      %v636 = vadd.f32 %v626, 1.4214138
      %v637 = vadd.f32 %v627, 1.4214138
      %v638 = vadd.f32 %v628, 1.4214138
      %v639 = vadd.f32 %v629, 1.4214138
      %v640 = vadd.f32 %v630, 1.4214138
      %v641 = vmul.f32 %v631, %v591
      %v642 = vmul.f32 %v632, %v592
      %v643 = vmul.f32 %v633, %v593
      %v644 = vmul.f32 %v634, %v594
      %v645 = vmul.f32 %v635, %v595
      %v646 = vmul.f32 %v636, %v596
      %v647 = vmul.f32 %v637, %v597
      %v648 = vmul.f32 %v638, %v598
      %v649 = vmul.f32 %v639, %v599
      %v650 = vmul.f32 %v640, %v600
      %v651 = vadd.f32 %v641, -0.28449672
      %v652 = vadd.f32 %v642, -0.28449672
      %v653 = vadd.f32 %v643, -0.28449672
      %v654 = vadd.f32 %v644, -0.28449672
      %v655 = vadd.f32 %v645, -0.28449672
      %v656 = vadd.f32 %v646, -0.28449672
      %v657 = vadd.f32 %v647, -0.28449672
      %v658 = vadd.f32 %v648, -0.28449672
      %v659 = vadd.f32 %v649, -0.28449672
      %v660 = vadd.f32 %v650, -0.28449672
      %v661 = vmul.f32 %v651, %v591
      %v662 = vmul.f32 %v652, %v592
      %v663 = vmul.f32 %v653, %v593
      %v664 = vmul.f32 %v654, %v594
      %v665 = vmul.f32 %v655, %v595
      %v666 = vmul.f32 %v656, %v596
      %v667 = vmul.f32 %v657, %v597
      %v668 = vmul.f32 %v658, %v598
      %v669 = vmul.f32 %v659, %v599
      %v670 = vmul.f32 %v660, %v600
      %v671 = vadd.f32 %v661, 0.2548296
      %v672 = vadd.f32 %v662, 0.2548296
      %v673 = vadd.f32 %v663, 0.2548296
      %v674 = vadd.f32 %v664, 0.2548296
      %v675 = vadd.f32 %v665, 0.2548296
      %v676 = vadd.f32 %v666, 0.2548296
      %v677 = vadd.f32 %v667, 0.2548296
      %v678 = vadd.f32 %v668, 0.2548296
      %v679 = vadd.f32 %v669, 0.2548296
      %v680 = vadd.f32 %v670, 0.2548296
      %v681 = vmul.f32 %v671, %v591
      %v682 = vmul.f32 %v672, %v592
      %v683 = vmul.f32 %v673, %v593
      %v684 = vmul.f32 %v674, %v594
      %v685 = vmul.f32 %v675, %v595
      %v686 = vmul.f32 %v676, %v596
      %v687 = vmul.f32 %v677, %v597
      %v688 = vmul.f32 %v678, %v598
      %v689 = vmul.f32 %v679, %v599
      %v690 = vmul.f32 %v680, %v600
      %v691 = vsub.f32 0.0, %v561
      %v692 = vsub.f32 0.0, %v562
      %v693 = vsub.f32 0.0, %v563
      %v694 = vsub.f32 0.0, %v564
      %v695 = vsub.f32 0.0, %v565
      %v696 = vsub.f32 0.0, %v566
      %v697 = vsub.f32 0.0, %v567
      %v698 = vsub.f32 0.0, %v568
      %v699 = vsub.f32 0.0, %v569
      %v700 = vsub.f32 0.0, %v570
      %v701 = vmul.f32 %v691, %v561
      %v702 = vmul.f32 %v692, %v562
      %v703 = vmul.f32 %v693, %v563
      %v704 = vmul.f32 %v694, %v564
      %v705 = vmul.f32 %v695, %v565
      %v706 = vmul.f32 %v696, %v566
      %v707 = vmul.f32 %v697, %v567
      %v708 = vmul.f32 %v698, %v568
      %v709 = vmul.f32 %v699, %v569
      %v710 = vmul.f32 %v700, %v570
      %v711 = vmul.f32 %v701, 1.442695
      %v712 = vpow.pop %v711
      %v713 = vmul.f32 %v702, 1.442695
      %v714 = vpow.pop %v713
      %v715 = vmul.f32 %v703, 1.442695
      %v716 = vpow.pop %v715
      %v717 = vmul.f32 %v704, 1.442695
      %v718 = vpow.pop %v717
      %v719 = vmul.f32 %v705, 1.442695
      %v720 = vpow.pop %v719
      %v721 = vmul.f32 %v706, 1.442695
      %v722 = vpow.pop %v721
      %v723 = vmul.f32 %v707, 1.442695
      %v724 = vpow.pop %v723
      %v725 = vmul.f32 %v708, 1.442695
      %v726 = vpow.pop %v725
      %v727 = vmul.f32 %v709, 1.442695
      %v728 = vpow.pop %v727
      %v729 = vmul.f32 %v710, 1.442695
      %v730 = vpow.pop %v729
      %v731 = vmul.f32 %v681, %v712
      %v732 = vmul.f32 %v682, %v714
      %v733 = vmul.f32 %v683, %v716
      %v734 = vmul.f32 %v684, %v718
      %v735 = vmul.f32 %v685, %v720
      %v736 = vmul.f32 %v686, %v722
      %v737 = vmul.f32 %v687, %v724
      %v738 = vmul.f32 %v688, %v726
      %v739 = vmul.f32 %v689, %v728
      %v740 = vmul.f32 %v690, %v730
      %v741 = vsub.f32 1.0, %v731
      %v742 = vsub.f32 1.0, %v732
      %v743 = vsub.f32 1.0, %v733
      %v744 = vsub.f32 1.0, %v734
      %v745 = vsub.f32 1.0, %v735
      %v746 = vsub.f32 1.0, %v736
      %v747 = vsub.f32 1.0, %v737
      %v748 = vsub.f32 1.0, %v738
      %v749 = vsub.f32 1.0, %v739
      %v750 = vsub.f32 1.0, %v740
      %vm751 = vcmp.lt.f32.partialorder %v551, 0.0
      %vm752 = vcmp.lt.f32.partialorder %v552, 0.0
      %vm753 = vcmp.lt.f32.partialorder %v553, 0.0
      %vm754 = vcmp.lt.f32.partialorder %v554, 0.0
      %vm755 = vcmp.lt.f32.partialorder %v555, 0.0
      %vm756 = vcmp.lt.f32.partialorder %v556, 0.0
      %vm757 = vcmp.lt.f32.partialorder %v557, 0.0
      %vm758 = vcmp.lt.f32.partialorder %v558, 0.0
      %vm759 = vcmp.lt.f32.partialorder %v559, 0.0
      %vm760 = vcmp.lt.f32.partialorder %v560, 0.0
      %v761 = vsub.f32 0.0, %v741
      %v762 = vsub.f32 0.0, %v742
      %v763 = vsub.f32 0.0, %v743
      %v764 = vsub.f32 0.0, %v744
      %v765 = vsub.f32 0.0, %v745
      %v766 = vsub.f32 0.0, %v746
      %v767 = vsub.f32 0.0, %v747
      %v768 = vsub.f32 0.0, %v748
      %v769 = vsub.f32 0.0, %v749
      %v770 = vsub.f32 0.0, %v750
      %v771 = vsel %vm751, %v761, %v741
      %v772 = vsel %vm752, %v762, %v742
      %v773 = vsel %vm753, %v763, %v743
      %v774 = vsel %vm754, %v764, %v744
      %v775 = vsel %vm755, %v765, %v745
      %v776 = vsel %vm756, %v766, %v746
      %v777 = vsel %vm757, %v767, %v747
      %v778 = vsel %vm758, %v768, %v748
      %v779 = vsel %vm759, %v769, %v749
      %v780 = vsel %vm760, %v770, %v750
      %v781 = vadd.f32 %v771, 1.0
      %v782 = vadd.f32 %v772, 1.0
      %v783 = vadd.f32 %v773, 1.0
      %v784 = vadd.f32 %v774, 1.0
      %v785 = vadd.f32 %v775, 1.0
      %v786 = vadd.f32 %v776, 1.0
      %v787 = vadd.f32 %v777, 1.0
      %v788 = vadd.f32 %v778, 1.0
      %v789 = vadd.f32 %v779, 1.0
      %v790 = vadd.f32 %v780, 1.0
      %v791 = vmul.f32 %v541, %v781
      %v792 = vmul.f32 %v542, %v782
      %v793 = vmul.f32 %v543, %v783
      %v794 = vmul.f32 %v544, %v784
      %v795 = vmul.f32 %v545, %v785
      %v796 = vmul.f32 %v546, %v786
      %v797 = vmul.f32 %v547, %v787
      %v798 = vmul.f32 %v548, %v788
      %v799 = vmul.f32 %v549, %v789
      %v800 = vmul.f32 %v550, %v790
      %v812 = vrot.slane 0, 4
      %v813 = vrot.slane %v285, 4
      %v814 = vrot.slane %v286, 4
      %v815 = vrot.slane %v287, 4
      %v816 = vrot.slane %v288, 4
      %v817 = vrot.slane %v289, 4
      %v818 = vrot.slane %v290, 4
      %v819 = vrot.slane %v291, 4
      %v820 = vrot.slane %v292, 4
      %v821 = vrot.slane %v293, 4
      %v822 = vrot.slane %v294, 4
      %823 = vrot.lane.b32.xlu0 %v812, 127
      %v824 = vpop.permute.xlu0 %823
      %825 = vrot.lane.b32.xlu0 %v813, 127
      %v826 = vpop.permute.xlu0 %825
      %827 = vrot.lane.b32.xlu0 %v814, 127
      %v828 = vpop.permute.xlu0 %827
      %829 = vrot.lane.b32.xlu0 %v815, 127
      %v830 = vpop.permute.xlu0 %829
      %831 = vrot.lane.b32.xlu0 %v816, 127
      %v832 = vpop.permute.xlu0 %831
      %833 = vrot.lane.b32.xlu0 %v817, 127
      %v834 = vpop.permute.xlu0 %833
      %835 = vrot.lane.b32.xlu0 %v818, 127
      %v836 = vpop.permute.xlu0 %835
      %837 = vrot.lane.b32.xlu0 %v819, 127
      %v838 = vpop.permute.xlu0 %837
      %839 = vrot.lane.b32.xlu0 %v820, 127
      %v840 = vpop.permute.xlu0 %839
      %841 = vrot.lane.b32.xlu0 %v821, 127
      %v842 = vpop.permute.xlu0 %841
      %843 = vrot.lane.b32.xlu0 %v822, 127
      %v844 = vpop.permute.xlu0 %843
      %vm845 = vcmask 1039360
      %v846 = vsel %vm845, %v824, %v826
      %v847 = vsel %vm845, %v826, %v828
      %v848 = vsel %vm845, %v828, %v830
      %v849 = vsel %vm845, %v830, %v832
      %v850 = vsel %vm845, %v832, %v834
      %v851 = vsel %vm845, %v834, %v836
      %v852 = vsel %vm845, %v836, %v838
      %v853 = vsel %vm845, %v838, %v840
      %v854 = vsel %vm845, %v840, %v842
      %v855 = vsel %vm845, %v842, %v844
      %856 = vrot.lane.b32.xlu0 0, 126
      %v857 = vpop.permute.xlu0 %856
      %858 = vrot.lane.b32.xlu0 %v285, 126
      %v859 = vpop.permute.xlu0 %858
      %860 = vrot.lane.b32.xlu0 %v286, 126
      %v861 = vpop.permute.xlu0 %860
      %862 = vrot.lane.b32.xlu0 %v287, 126
      %v863 = vpop.permute.xlu0 %862
      %864 = vrot.lane.b32.xlu0 %v288, 126
      %v865 = vpop.permute.xlu0 %864
      %866 = vrot.lane.b32.xlu0 %v289, 126
      %v867 = vpop.permute.xlu0 %866
      %868 = vrot.lane.b32.xlu0 %v290, 126
      %v869 = vpop.permute.xlu0 %868
      %870 = vrot.lane.b32.xlu0 %v291, 126
      %v871 = vpop.permute.xlu0 %870
      %872 = vrot.lane.b32.xlu0 %v292, 126
      %v873 = vpop.permute.xlu0 %872
      %874 = vrot.lane.b32.xlu0 %v293, 126
      %v875 = vpop.permute.xlu0 %874
      %876 = vrot.lane.b32.xlu0 %v294, 126
      %v877 = vpop.permute.xlu0 %876
      %vm878 = vcmask 1031168
      %v879 = vsel %vm878, %v857, %v859
      %v880 = vsel %vm878, %v859, %v861
      %v881 = vsel %vm878, %v861, %v863
      %v882 = vsel %vm878, %v863, %v865
      %v883 = vsel %vm878, %v865, %v867
      %v884 = vsel %vm878, %v867, %v869
      %v885 = vsel %vm878, %v869, %v871
      %v886 = vsel %vm878, %v871, %v873
      %v887 = vsel %vm878, %v873, %v875
      %v888 = vsel %vm878, %v875, %v877
      %889 = vrot.lane.b32.xlu0 %v812, 94
      %v890 = vpop.permute.xlu0 %889
      %891 = vrot.lane.b32.xlu0 %v813, 94
      %v892 = vpop.permute.xlu0 %891
      %893 = vrot.lane.b32.xlu0 %v814, 94
      %v894 = vpop.permute.xlu0 %893
      %895 = vrot.lane.b32.xlu0 %v815, 94
      %v896 = vpop.permute.xlu0 %895
      %897 = vrot.lane.b32.xlu0 %v816, 94
      %v898 = vpop.permute.xlu0 %897
      %899 = vrot.lane.b32.xlu0 %v817, 94
      %v900 = vpop.permute.xlu0 %899
      %901 = vrot.lane.b32.xlu0 %v818, 94
      %v902 = vpop.permute.xlu0 %901
      %903 = vrot.lane.b32.xlu0 %v819, 94
      %v904 = vpop.permute.xlu0 %903
      %905 = vrot.lane.b32.xlu0 %v820, 94
      %v906 = vpop.permute.xlu0 %905
      %907 = vrot.lane.b32.xlu0 %v821, 94
      %v908 = vpop.permute.xlu0 %907
      %909 = vrot.lane.b32.xlu0 %v822, 94
      %v910 = vpop.permute.xlu0 %909
      %vm911 = vcmask 769024
      %v912 = vsel %vm911, %v890, %v892
      %v913 = vsel %vm911, %v892, %v894
      %v914 = vsel %vm911, %v894, %v896
      %v915 = vsel %vm911, %v896, %v898
      %v916 = vsel %vm911, %v898, %v900
      %v917 = vsel %vm911, %v900, %v902
      %v918 = vsel %vm911, %v902, %v904
      %v919 = vsel %vm911, %v904, %v906
      %v920 = vsel %vm911, %v906, %v908
      %v921 = vsel %vm911, %v908, %v910
      %922 = vrot.lane.b32.xlu0 %v285, 93
      %v923 = vpop.permute.xlu0 %922
      %924 = vrot.lane.b32.xlu0 %v286, 93
      %v925 = vpop.permute.xlu0 %924
      %926 = vrot.lane.b32.xlu0 %v287, 93
      %v927 = vpop.permute.xlu0 %926
      %928 = vrot.lane.b32.xlu0 %v288, 93
      %v929 = vpop.permute.xlu0 %928
      %930 = vrot.lane.b32.xlu0 %v289, 93
      %v931 = vpop.permute.xlu0 %930
      %932 = vrot.lane.b32.xlu0 %v290, 93
      %v933 = vpop.permute.xlu0 %932
      %934 = vrot.lane.b32.xlu0 %v291, 93
      %v935 = vpop.permute.xlu0 %934
      %936 = vrot.lane.b32.xlu0 %v292, 93
      %v937 = vpop.permute.xlu0 %936
      %938 = vrot.lane.b32.xlu0 %v293, 93
      %v939 = vpop.permute.xlu0 %938
      %940 = vrot.lane.b32.xlu0 %v294, 93
      %v941 = vpop.permute.xlu0 %940
      %vm942 = vcmask 760832
      %v943 = vsel %vm942, %v923, %v925
      %v944 = vsel %vm942, %v925, %v927
      %v945 = vsel %vm942, %v927, %v929
      %v946 = vsel %vm942, %v929, %v931
      %v947 = vsel %vm942, %v931, %v933
      %v948 = vsel %vm942, %v933, %v935
      %v949 = vsel %vm942, %v935, %v937
      %v950 = vsel %vm942, %v937, %v939
      %v951 = vsel %vm942, %v939, %v941
      %952 = vrot.lane.b32.xlu0 %v813, 92
      %v953 = vpop.permute.xlu0 %952
      %954 = vrot.lane.b32.xlu0 %v814, 92
      %v955 = vpop.permute.xlu0 %954
      %956 = vrot.lane.b32.xlu0 %v815, 92
      %v957 = vpop.permute.xlu0 %956
      %958 = vrot.lane.b32.xlu0 %v816, 92
      %v959 = vpop.permute.xlu0 %958
      %960 = vrot.lane.b32.xlu0 %v817, 92
      %v961 = vpop.permute.xlu0 %960
      %962 = vrot.lane.b32.xlu0 %v818, 92
      %v963 = vpop.permute.xlu0 %962
      %964 = vrot.lane.b32.xlu0 %v819, 92
      %v965 = vpop.permute.xlu0 %964
      %966 = vrot.lane.b32.xlu0 %v820, 92
      %v967 = vpop.permute.xlu0 %966
      %968 = vrot.lane.b32.xlu0 %v821, 92
      %v969 = vpop.permute.xlu0 %968
      %970 = vrot.lane.b32.xlu0 %v822, 92
      %v971 = vpop.permute.xlu0 %970
      %972 = vrot.lane.b32.xlu0 %v812, 92
      %v973 = vpop.permute.xlu0 %972
      %vm974 = vcmask 752640
      %v975 = vsel %vm974, %v953, %v955
      %v976 = vsel %vm974, %v955, %v957
      %v977 = vsel %vm974, %v957, %v959
      %v978 = vsel %vm974, %v959, %v961
      %v979 = vsel %vm974, %v961, %v963
      %v980 = vsel %vm974, %v963, %v965
      %v981 = vsel %vm974, %v965, %v967
      %v982 = vsel %vm974, %v967, %v969
      %v983 = vsel %vm974, %v969, %v971
      %v984 = vsel %vm974, %v971, %v973
      %985 = vrot.lane.b32.xlu0 %v285, 60
      %v986 = vpop.permute.xlu0 %985
      %987 = vrot.lane.b32.xlu0 %v286, 60
      %v988 = vpop.permute.xlu0 %987
      %989 = vrot.lane.b32.xlu0 %v287, 60
      %v990 = vpop.permute.xlu0 %989
      %991 = vrot.lane.b32.xlu0 %v288, 60
      %v992 = vpop.permute.xlu0 %991
      %993 = vrot.lane.b32.xlu0 %v289, 60
      %v994 = vpop.permute.xlu0 %993
      %995 = vrot.lane.b32.xlu0 %v290, 60
      %v996 = vpop.permute.xlu0 %995
      %997 = vrot.lane.b32.xlu0 %v291, 60
      %v998 = vpop.permute.xlu0 %997
      %999 = vrot.lane.b32.xlu0 %v292, 60
      %v1000 = vpop.permute.xlu0 %999
      %1001 = vrot.lane.b32.xlu0 %v293, 60
      %v1002 = vpop.permute.xlu0 %1001
      %1003 = vrot.lane.b32.xlu0 %v294, 60
      %v1004 = vpop.permute.xlu0 %1003
      %1005 = vrot.lane.b32.xlu0 0, 60
      %v1006 = vpop.permute.xlu0 %1005
      %vm1007 = vcmask 490496
      %v1008 = vsel %vm1007, %v986, %v988
      %v1009 = vsel %vm1007, %v988, %v990
      %v1010 = vsel %vm1007, %v990, %v992
      %v1011 = vsel %vm1007, %v992, %v994
      %v1012 = vsel %vm1007, %v994, %v996
      %v1013 = vsel %vm1007, %v996, %v998
      %v1014 = vsel %vm1007, %v998, %v1000
      %v1015 = vsel %vm1007, %v1000, %v1002
      %v1016 = vsel %vm1007, %v1002, %v1004
      %v1017 = vsel %vm1007, %v1004, %v1006
      %1018 = vrot.lane.b32.xlu0 %v813, 59
      %v1019 = vpop.permute.xlu0 %1018
      %1020 = vrot.lane.b32.xlu0 %v814, 59
      %v1021 = vpop.permute.xlu0 %1020
      %1022 = vrot.lane.b32.xlu0 %v815, 59
      %v1023 = vpop.permute.xlu0 %1022
      %1024 = vrot.lane.b32.xlu0 %v816, 59
      %v1025 = vpop.permute.xlu0 %1024
      %1026 = vrot.lane.b32.xlu0 %v817, 59
      %v1027 = vpop.permute.xlu0 %1026
      %1028 = vrot.lane.b32.xlu0 %v818, 59
      %v1029 = vpop.permute.xlu0 %1028
      %1030 = vrot.lane.b32.xlu0 %v819, 59
      %v1031 = vpop.permute.xlu0 %1030
      %1032 = vrot.lane.b32.xlu0 %v820, 59
      %v1033 = vpop.permute.xlu0 %1032
      %1034 = vrot.lane.b32.xlu0 %v821, 59
      %v1035 = vpop.permute.xlu0 %1034
      %1036 = vrot.lane.b32.xlu0 %v822, 59
      %v1037 = vpop.permute.xlu0 %1036
      %1038 = vrot.lane.b32.xlu0 %v812, 59
      %v1039 = vpop.permute.xlu0 %1038
      %vm1040 = vcmask 482304
      %v1041 = vsel %vm1040, %v1019, %v1021
      %v1042 = vsel %vm1040, %v1021, %v1023
      %v1043 = vsel %vm1040, %v1023, %v1025
      %v1044 = vsel %vm1040, %v1025, %v1027
      %v1045 = vsel %vm1040, %v1027, %v1029
      %v1046 = vsel %vm1040, %v1029, %v1031
      %v1047 = vsel %vm1040, %v1031, %v1033
      %v1048 = vsel %vm1040, %v1033, %v1035
      %v1049 = vsel %vm1040, %v1035, %v1037
      %v1050 = vsel %vm1040, %v1037, %v1039
      %1051 = vrot.lane.b32.xlu0 %v285, 58
      %v1052 = vpop.permute.xlu0 %1051
      %1053 = vrot.lane.b32.xlu0 %v286, 58
      %v1054 = vpop.permute.xlu0 %1053
      %1055 = vrot.lane.b32.xlu0 %v287, 58
      %v1056 = vpop.permute.xlu0 %1055
      %1057 = vrot.lane.b32.xlu0 %v288, 58
      %v1058 = vpop.permute.xlu0 %1057
      %1059 = vrot.lane.b32.xlu0 %v289, 58
      %v1060 = vpop.permute.xlu0 %1059
      %1061 = vrot.lane.b32.xlu0 %v290, 58
      %v1062 = vpop.permute.xlu0 %1061
      %1063 = vrot.lane.b32.xlu0 %v291, 58
      %v1064 = vpop.permute.xlu0 %1063
      %1065 = vrot.lane.b32.xlu0 %v292, 58
      %v1066 = vpop.permute.xlu0 %1065
      %1067 = vrot.lane.b32.xlu0 %v293, 58
      %v1068 = vpop.permute.xlu0 %1067
      %1069 = vrot.lane.b32.xlu0 %v294, 58
      %v1070 = vpop.permute.xlu0 %1069
      %1071 = vrot.lane.b32.xlu0 0, 58
      %v1072 = vpop.permute.xlu0 %1071
      %vm1073 = vcmask 474112
      %v1074 = vsel %vm1073, %v1052, %v1054
      %v1075 = vsel %vm1073, %v1054, %v1056
      %v1076 = vsel %vm1073, %v1056, %v1058
      %v1077 = vsel %vm1073, %v1058, %v1060
      %v1078 = vsel %vm1073, %v1060, %v1062
      %v1079 = vsel %vm1073, %v1062, %v1064
      %v1080 = vsel %vm1073, %v1064, %v1066
      %v1081 = vsel %vm1073, %v1066, %v1068
      %v1082 = vsel %vm1073, %v1068, %v1070
      %v1083 = vsel %vm1073, %v1070, %v1072
      %v1086 = vsel %vm305, 0, %v846
      %v1088 = vsel %vm305, %v285, %v847
      %v1090 = vsel %vm305, %v286, %v848
      %v1092 = vsel %vm305, %v287, %v849
      %v1094 = vsel %vm305, %v288, %v850
      %v1096 = vsel %vm305, %v289, %v851
      %v1098 = vsel %vm305, %v290, %v852
      %v1100 = vsel %vm305, %v291, %v853
      %v1102 = vsel %vm305, %v292, %v854
      %v1104 = vsel %vm305, %v293, %v855
      %v1106 = vsel %vm305, %v294, %v844
      %v1109 = vsel %vm305, %v879, %v912
      %v1112 = vsel %vm305, %v880, %v913
      %v1115 = vsel %vm305, %v881, %v914
      %v1118 = vsel %vm305, %v882, %v915
      %v1121 = vsel %vm305, %v883, %v916
      %v1124 = vsel %vm305, %v884, %v917
      %v1127 = vsel %vm305, %v885, %v918
      %v1130 = vsel %vm305, %v886, %v919
      %v1133 = vsel %vm305, %v887, %v920
      %v1136 = vsel %vm305, %v888, %v921
      %v1139 = vsel %vm305, %v877, %v910
      %v1142 = vsel %vm305, %v923, %v953
      %v1145 = vsel %vm305, %v943, %v975
      %v1148 = vsel %vm305, %v944, %v976
      %v1151 = vsel %vm305, %v945, %v977
      %v1154 = vsel %vm305, %v946, %v978
      %v1157 = vsel %vm305, %v947, %v979
      %v1160 = vsel %vm305, %v948, %v980
      %v1163 = vsel %vm305, %v949, %v981
      %v1166 = vsel %vm305, %v950, %v982
      %v1169 = vsel %vm305, %v951, %v983
      %v1172 = vsel %vm305, %v941, %v984
      %v1175 = vsel %vm305, %v986, %v1019
      %v1178 = vsel %vm305, %v1008, %v1041
      %v1181 = vsel %vm305, %v1009, %v1042
      %v1184 = vsel %vm305, %v1010, %v1043
      %v1187 = vsel %vm305, %v1011, %v1044
      %v1190 = vsel %vm305, %v1012, %v1045
      %v1193 = vsel %vm305, %v1013, %v1046
      %v1196 = vsel %vm305, %v1014, %v1047
      %v1199 = vsel %vm305, %v1015, %v1048
      %v1202 = vsel %vm305, %v1016, %v1049
      %v1205 = vsel %vm305, %v1017, %v1050
      %v1206 = vpack.c.bf16 %v257, %v257
      %1207 = vset.pattern.permute.xlu0 1
      %1208 = vperm.xlu0 %1207, %v271
      %v1209 = vpop.permute.xlu0 %1208
      %1255 = vrot.lane.b32.xlu0 %v1086, 35
      %v1256 = vpop.permute.xlu0 %1255
      %1257 = vrot.lane.b32.xlu0 %v1088, 35
      %v1258 = vpop.permute.xlu0 %1257
      %1259 = vrot.lane.b32.xlu0 %v1090, 35
      %v1260 = vpop.permute.xlu0 %1259
      %1261 = vrot.lane.b32.xlu0 %v1092, 35
      %v1262 = vpop.permute.xlu0 %1261
      %1263 = vrot.lane.b32.xlu0 %v1094, 35
      %v1264 = vpop.permute.xlu0 %1263
      %1265 = vrot.lane.b32.xlu0 %v1096, 35
      %v1266 = vpop.permute.xlu0 %1265
      %1267 = vrot.lane.b32.xlu0 %v1098, 35
      %v1268 = vpop.permute.xlu0 %1267
      %1269 = vrot.lane.b32.xlu0 %v1100, 35
      %v1270 = vpop.permute.xlu0 %1269
      %1271 = vrot.lane.b32.xlu0 %v1102, 35
      %v1272 = vpop.permute.xlu0 %1271
      %1273 = vrot.lane.b32.xlu0 %v1104, 35
      %v1274 = vpop.permute.xlu0 %1273
      %1275 = vrot.lane.b32.xlu0 %v1106, 35
      %v1276 = vpop.permute.xlu0 %1275
      %1277 = vrot.lane.b32.xlu0 %v1109, 35
      %v1278 = vpop.permute.xlu0 %1277
      %1279 = vrot.lane.b32.xlu0 %v1112, 35
      %v1280 = vpop.permute.xlu0 %1279
      %1281 = vrot.lane.b32.xlu0 %v1115, 35
      %v1282 = vpop.permute.xlu0 %1281
      %1283 = vrot.lane.b32.xlu0 %v1118, 35
      %v1284 = vpop.permute.xlu0 %1283
      %1285 = vrot.lane.b32.xlu0 %v1121, 35
      %v1286 = vpop.permute.xlu0 %1285
      %1287 = vrot.lane.b32.xlu0 %v1124, 35
      %v1288 = vpop.permute.xlu0 %1287
      %1289 = vrot.lane.b32.xlu0 %v1127, 35
      %v1290 = vpop.permute.xlu0 %1289
      %1291 = vrot.lane.b32.xlu0 %v1130, 35
      %v1292 = vpop.permute.xlu0 %1291
      %1293 = vrot.lane.b32.xlu0 %v1133, 35
      %v1294 = vpop.permute.xlu0 %1293
      %1295 = vrot.lane.b32.xlu0 %v1136, 35
      %v1296 = vpop.permute.xlu0 %1295
      %1297 = vrot.lane.b32.xlu0 %v1139, 35
      %v1298 = vpop.permute.xlu0 %1297
      %1299 = vrot.lane.b32.xlu0 %v1142, 35
      %v1300 = vpop.permute.xlu0 %1299
      %1301 = vrot.lane.b32.xlu0 %v1145, 35
      %v1302 = vpop.permute.xlu0 %1301
      %1303 = vrot.lane.b32.xlu0 %v1148, 35
      %v1304 = vpop.permute.xlu0 %1303
      %1305 = vrot.lane.b32.xlu0 %v1151, 35
      %v1306 = vpop.permute.xlu0 %1305
      %1307 = vrot.lane.b32.xlu0 %v1154, 35
      %v1308 = vpop.permute.xlu0 %1307
      %1309 = vrot.lane.b32.xlu0 %v1157, 35
      %v1310 = vpop.permute.xlu0 %1309
      %1311 = vrot.lane.b32.xlu0 %v1160, 35
      %v1312 = vpop.permute.xlu0 %1311
      %1313 = vrot.lane.b32.xlu0 %v1163, 35
      %v1314 = vpop.permute.xlu0 %1313
      %1315 = vrot.lane.b32.xlu0 %v1166, 35
      %v1316 = vpop.permute.xlu0 %1315
      %1317 = vrot.lane.b32.xlu0 %v1169, 35
      %v1318 = vpop.permute.xlu0 %1317
      %1319 = vrot.lane.b32.xlu0 %v1172, 35
      %v1320 = vpop.permute.xlu0 %1319
      %1321 = vrot.lane.b32.xlu0 %v1175, 35
      %v1322 = vpop.permute.xlu0 %1321
      %1323 = vrot.lane.b32.xlu0 %v1178, 35
      %v1324 = vpop.permute.xlu0 %1323
      %1325 = vrot.lane.b32.xlu0 %v1181, 35
      %v1326 = vpop.permute.xlu0 %1325
      %1327 = vrot.lane.b32.xlu0 %v1184, 35
      %v1328 = vpop.permute.xlu0 %1327
      %1329 = vrot.lane.b32.xlu0 %v1187, 35
      %v1330 = vpop.permute.xlu0 %1329
      %1331 = vrot.lane.b32.xlu0 %v1190, 35
      %v1332 = vpop.permute.xlu0 %1331
      %1333 = vrot.lane.b32.xlu0 %v1193, 35
      %v1334 = vpop.permute.xlu0 %1333
      %1335 = vrot.lane.b32.xlu0 %v1196, 35
      %v1336 = vpop.permute.xlu0 %1335
      %1337 = vrot.lane.b32.xlu0 %v1199, 35
      %v1338 = vpop.permute.xlu0 %1337
      %1339 = vrot.lane.b32.xlu0 %v1202, 35
      %v1340 = vpop.permute.xlu0 %1339
      %1341 = vrot.lane.b32.xlu0 %v1205, 35
      %v1342 = vpop.permute.xlu0 %1341
      %1343 = vrot.lane.b32.xlu0 %v1052, 35
      %v1344 = vpop.permute.xlu0 %1343
      %1345 = vrot.lane.b32.xlu0 %v1074, 35
      %v1346 = vpop.permute.xlu0 %1345
      %1347 = vrot.lane.b32.xlu0 %v1075, 35
      %v1348 = vpop.permute.xlu0 %1347
      %1349 = vrot.lane.b32.xlu0 %v1076, 35
      %v1350 = vpop.permute.xlu0 %1349
      %1351 = vrot.lane.b32.xlu0 %v1077, 35
      %v1352 = vpop.permute.xlu0 %1351
      %1353 = vrot.lane.b32.xlu0 %v1078, 35
      %v1354 = vpop.permute.xlu0 %1353
      %1355 = vrot.lane.b32.xlu0 %v1079, 35
      %v1356 = vpop.permute.xlu0 %1355
      %1357 = vrot.lane.b32.xlu0 %v1080, 35
      %v1358 = vpop.permute.xlu0 %1357
      %1359 = vrot.lane.b32.xlu0 %v1081, 35
      %v1360 = vpop.permute.xlu0 %1359
      %1361 = vrot.lane.b32.xlu0 %v1082, 35
      %v1362 = vpop.permute.xlu0 %1361
      %1363 = vrot.lane.b32.xlu0 %v1083, 35
      %v1364 = vpop.permute.xlu0 %1363
      %vm1365 = vcmask 285696
      %v1366 = vsel %vm1365, %v1256, %v1258
      %v1367 = vsel %vm1365, %v1258, %v1260
      %v1368 = vsel %vm1365, %v1260, %v1262
      %v1369 = vsel %vm1365, %v1262, %v1264
      %v1370 = vsel %vm1365, %v1264, %v1266
      %v1371 = vsel %vm1365, %v1266, %v1268
      %v1372 = vsel %vm1365, %v1268, %v1270
      %v1373 = vsel %vm1365, %v1270, %v1272
      %v1374 = vsel %vm1365, %v1272, %v1274
      %v1375 = vsel %vm1365, %v1274, %v1276
      %v1376 = vsel %vm1365, %v1278, %v1280
      %v1377 = vsel %vm1365, %v1280, %v1282
      %v1378 = vsel %vm1365, %v1282, %v1284
      %v1379 = vsel %vm1365, %v1284, %v1286
      %v1380 = vsel %vm1365, %v1286, %v1288
      %v1381 = vsel %vm1365, %v1288, %v1290
      %v1382 = vsel %vm1365, %v1290, %v1292
      %v1383 = vsel %vm1365, %v1292, %v1294
      %v1384 = vsel %vm1365, %v1294, %v1296
      %v1385 = vsel %vm1365, %v1296, %v1298
      %v1386 = vsel %vm1365, %v1300, %v1302
      %v1387 = vsel %vm1365, %v1302, %v1304
      %v1388 = vsel %vm1365, %v1304, %v1306
      %v1389 = vsel %vm1365, %v1306, %v1308
      %v1390 = vsel %vm1365, %v1308, %v1310
      %v1391 = vsel %vm1365, %v1310, %v1312
      %v1392 = vsel %vm1365, %v1312, %v1314
      %v1393 = vsel %vm1365, %v1314, %v1316
      %v1394 = vsel %vm1365, %v1316, %v1318
      %v1395 = vsel %vm1365, %v1318, %v1320
      %v1396 = vsel %vm1365, %v1322, %v1324
      %v1397 = vsel %vm1365, %v1324, %v1326
      %v1398 = vsel %vm1365, %v1326, %v1328
      %v1399 = vsel %vm1365, %v1328, %v1330
      %v1400 = vsel %vm1365, %v1330, %v1332
      %v1401 = vsel %vm1365, %v1332, %v1334
      %v1402 = vsel %vm1365, %v1334, %v1336
      %v1403 = vsel %vm1365, %v1336, %v1338
      %v1404 = vsel %vm1365, %v1338, %v1340
      %v1405 = vsel %vm1365, %v1340, %v1342
      %v1406 = vsel %vm1365, %v1344, %v1346
      %v1407 = vsel %vm1365, %v1346, %v1348
      %v1408 = vsel %vm1365, %v1348, %v1350
      %v1409 = vsel %vm1365, %v1350, %v1352
      %v1410 = vsel %vm1365, %v1352, %v1354
      %v1411 = vsel %vm1365, %v1354, %v1356
      %v1412 = vsel %vm1365, %v1356, %v1358
      %v1413 = vsel %vm1365, %v1358, %v1360
      %v1414 = vsel %vm1365, %v1360, %v1362
      %v1415 = vsel %vm1365, %v1362, %v1364
      %vm1456 = vcmask 588800
      %v1458 = vsel %vm1456, %v1206, 0
      %v1461 = vsel %vm305, %v1406, 0
      %v1464 = vsel %vm305, %v1407, 0
      %v1467 = vsel %vm305, %v1408, 0
      %v1470 = vsel %vm305, %v1409, 0
      %v1473 = vsel %vm305, %v1410, 0
      %v1476 = vsel %vm305, %v1411, 0
      %v1479 = vsel %vm305, %v1412, 0
      %v1482 = vsel %vm305, %v1413, 0
      %v1485 = vsel %vm305, %v1414, 0
      %v1488 = vsel %vm305, %v1415, 0
      %1490 = vmatprep.subr.bf16.mxu0 0
      %1491 = vmatpush1.bf16.msra.mxu0 0
      %1492 = vmatprep.subr.bf16.mxu0 0
      %1493 = vmatpush1.bf16.msra.mxu0 0
      %1494 = vmatprep.subr.bf16.mxu0 0
      %1495 = vmatpush1.bf16.msra.mxu0 0
      %1496 = vmatprep.subr.bf16.mxu0 %v1464
      %1497 = vmatpush1.bf16.msra.mxu0 %v1461
      %1498 = vmatprep.subr.bf16.mxu0 %v1397
      %1499 = vmatpush1.bf16.msra.mxu0 %v1396
      %1500 = vmatprep.subr.bf16.mxu0 %v1387
      %1501 = vmatpush1.bf16.msra.mxu0 %v1386
      %1502 = vmatprep.subr.bf16.mxu0 %v1377
      %1503 = vmatpush1.bf16.msra.mxu0 %v1376
      %1504 = vmatprep.subr.bf16.mxu0 %v1367
      %1505 = vmatpush1.bf16.msra.mxu0 %v1366
      %1506 = vmatprep.subr.bf16.mxu0 0
      %1507 = vmatpush2.bf16.msra.mxu0 0
      %1508 = vmatprep.subr.bf16.mxu0 0
      %1509 = vmatpush2.bf16.msra.mxu0 0
      %1510 = vmatprep.subr.bf16.mxu0 0
      %1511 = vmatpush2.bf16.msra.mxu0 0
      %1512 = vmatprep.subr.bf16.mxu0 0
      %1513 = vmatpush2.bf16.msra.mxu0 0
      %1514 = vmatprep.subr.bf16.mxu0 0
      %1515 = vmatpush2.bf16.msra.mxu0 0
      %1516 = vmatprep.subr.bf16.mxu0 0
      %1517 = vmatpush2.bf16.msra.mxu0 0
      %1518 = vmatprep.subr.bf16.mxu0 0
      %1519 = vmatpush2.bf16.msra.mxu0 0
      %1520 = vmatprep.subr.bf16.mxu0 0
      %1521 = vmatpush2.bf16.msra.mxu0 0
      %1522 = vmatprep.mubr.bf16.mxu0 0
      %1523 = vmatmul.mubr.bf16.gmra.mxu0 %v1458
      %v1524 = vpop.f32.mrf.mxu0
      %v1525 = vadd.f32 %v1209, %v1524
      %v1526 = vpop.f32.mrf.mxu0
      %v1527 = vadd.f32 %v1209, %v1526
      %v1528 = vpop.f32.mrf.mxu0
      %v1529 = vpop.f32.mrf.mxu0
      %1530 = vdwg.mxu0
      %1531 = vmatprep.subr.bf16.mxu0 0
      %1532 = vmatpush1.bf16.msra.mxu0 0
      %1533 = vmatprep.subr.bf16.mxu0 0
      %1534 = vmatpush1.bf16.msra.mxu0 0
      %1535 = vmatprep.subr.bf16.mxu0 0
      %1536 = vmatpush1.bf16.msra.mxu0 0
      %1537 = vmatprep.subr.bf16.mxu0 %v1470
      %1538 = vmatpush1.bf16.msra.mxu0 %v1467
      %1539 = vmatprep.subr.bf16.mxu0 %v1399
      %1540 = vmatpush1.bf16.msra.mxu0 %v1398
      %1541 = vmatprep.subr.bf16.mxu0 %v1389
      %1542 = vmatpush1.bf16.msra.mxu0 %v1388
      %1543 = vmatprep.subr.bf16.mxu0 %v1379
      %1544 = vmatpush1.bf16.msra.mxu0 %v1378
      %1545 = vmatprep.subr.bf16.mxu0 %v1369
      %1546 = vmatpush1.bf16.msra.mxu0 %v1368
      %1547 = vmatprep.subr.bf16.mxu0 0
      %1548 = vmatpush2.bf16.msra.mxu0 0
      %1549 = vmatprep.subr.bf16.mxu0 0
      %1550 = vmatpush2.bf16.msra.mxu0 0
      %1551 = vmatprep.subr.bf16.mxu0 0
      %1552 = vmatpush2.bf16.msra.mxu0 0
      %1553 = vmatprep.subr.bf16.mxu0 0
      %1554 = vmatpush2.bf16.msra.mxu0 0
      %1555 = vmatprep.subr.bf16.mxu0 0
      %1556 = vmatpush2.bf16.msra.mxu0 0
      %1557 = vmatprep.subr.bf16.mxu0 0
      %1558 = vmatpush2.bf16.msra.mxu0 0
      %1559 = vmatprep.subr.bf16.mxu0 0
      %1560 = vmatpush2.bf16.msra.mxu0 0
      %1561 = vmatprep.subr.bf16.mxu0 0
      %1562 = vmatpush2.bf16.msra.mxu0 0
      %1563 = vmatprep.mubr.bf16.mxu0 0
      %1564 = vmatmul.mubr.bf16.gmra.mxu0 %v1458
      %v1565 = vpop.f32.mrf.mxu0
      %v1566 = vadd.f32 %v1209, %v1565
      %v1567 = vpop.f32.mrf.mxu0
      %v1568 = vadd.f32 %v1209, %v1567
      %v1569 = vpop.f32.mrf.mxu0
      %v1570 = vpop.f32.mrf.mxu0
      %1571 = vdwg.mxu0
      %1572 = vmatprep.subr.bf16.mxu0 0
      %1573 = vmatpush1.bf16.msra.mxu0 0
      %1574 = vmatprep.subr.bf16.mxu0 0
      %1575 = vmatpush1.bf16.msra.mxu0 0
      %1576 = vmatprep.subr.bf16.mxu0 0
      %1577 = vmatpush1.bf16.msra.mxu0 0
      %1578 = vmatprep.subr.bf16.mxu0 %v1476
      %1579 = vmatpush1.bf16.msra.mxu0 %v1473
      %1580 = vmatprep.subr.bf16.mxu0 %v1401
      %1581 = vmatpush1.bf16.msra.mxu0 %v1400
      %1582 = vmatprep.subr.bf16.mxu0 %v1391
      %1583 = vmatpush1.bf16.msra.mxu0 %v1390
      %1584 = vmatprep.subr.bf16.mxu0 %v1381
      %1585 = vmatpush1.bf16.msra.mxu0 %v1380
      %1586 = vmatprep.subr.bf16.mxu0 %v1371
      %1587 = vmatpush1.bf16.msra.mxu0 %v1370
      %1588 = vmatprep.subr.bf16.mxu0 0
      %1589 = vmatpush2.bf16.msra.mxu0 0
      %1590 = vmatprep.subr.bf16.mxu0 0
      %1591 = vmatpush2.bf16.msra.mxu0 0
      %1592 = vmatprep.subr.bf16.mxu0 0
      %1593 = vmatpush2.bf16.msra.mxu0 0
      %1594 = vmatprep.subr.bf16.mxu0 0
      %1595 = vmatpush2.bf16.msra.mxu0 0
      %1596 = vmatprep.subr.bf16.mxu0 0
      %1597 = vmatpush2.bf16.msra.mxu0 0
      %1598 = vmatprep.subr.bf16.mxu0 0
      %1599 = vmatpush2.bf16.msra.mxu0 0
      %1600 = vmatprep.subr.bf16.mxu0 0
      %1601 = vmatpush2.bf16.msra.mxu0 0
      %1602 = vmatprep.subr.bf16.mxu0 0
      %1603 = vmatpush2.bf16.msra.mxu0 0
      %1604 = vmatprep.mubr.bf16.mxu0 0
      %1605 = vmatmul.mubr.bf16.gmra.mxu0 %v1458
      %v1606 = vpop.f32.mrf.mxu0
      %v1607 = vadd.f32 %v1209, %v1606
      %v1608 = vpop.f32.mrf.mxu0
      %v1609 = vadd.f32 %v1209, %v1608
      %v1610 = vpop.f32.mrf.mxu0
      %v1611 = vpop.f32.mrf.mxu0
      %1612 = vdwg.mxu0
      %1613 = vmatprep.subr.bf16.mxu0 0
      %1614 = vmatpush1.bf16.msra.mxu0 0
      %1615 = vmatprep.subr.bf16.mxu0 0
      %1616 = vmatpush1.bf16.msra.mxu0 0
      %1617 = vmatprep.subr.bf16.mxu0 0
      %1618 = vmatpush1.bf16.msra.mxu0 0
      %1619 = vmatprep.subr.bf16.mxu0 %v1482
      %1620 = vmatpush1.bf16.msra.mxu0 %v1479
      %1621 = vmatprep.subr.bf16.mxu0 %v1403
      %1622 = vmatpush1.bf16.msra.mxu0 %v1402
      %1623 = vmatprep.subr.bf16.mxu0 %v1393
      %1624 = vmatpush1.bf16.msra.mxu0 %v1392
      %1625 = vmatprep.subr.bf16.mxu0 %v1383
      %1626 = vmatpush1.bf16.msra.mxu0 %v1382
      %1627 = vmatprep.subr.bf16.mxu0 %v1373
      %1628 = vmatpush1.bf16.msra.mxu0 %v1372
      %1629 = vmatprep.subr.bf16.mxu0 0
      %1630 = vmatpush2.bf16.msra.mxu0 0
      %1631 = vmatprep.subr.bf16.mxu0 0
      %1632 = vmatpush2.bf16.msra.mxu0 0
      %1633 = vmatprep.subr.bf16.mxu0 0
      %1634 = vmatpush2.bf16.msra.mxu0 0
      %1635 = vmatprep.subr.bf16.mxu0 0
      %1636 = vmatpush2.bf16.msra.mxu0 0
      %1637 = vmatprep.subr.bf16.mxu0 0
      %1638 = vmatpush2.bf16.msra.mxu0 0
      %1639 = vmatprep.subr.bf16.mxu0 0
      %1640 = vmatpush2.bf16.msra.mxu0 0
      %1641 = vmatprep.subr.bf16.mxu0 0
      %1642 = vmatpush2.bf16.msra.mxu0 0
      %1643 = vmatprep.subr.bf16.mxu0 0
      %1644 = vmatpush2.bf16.msra.mxu0 0
      %1645 = vmatprep.mubr.bf16.mxu0 0
      %1646 = vmatmul.mubr.bf16.gmra.mxu0 %v1458
      %v1647 = vpop.f32.mrf.mxu0
      %v1648 = vadd.f32 %v1209, %v1647
      %v1649 = vpop.f32.mrf.mxu0
      %v1650 = vadd.f32 %v1209, %v1649
      %v1651 = vpop.f32.mrf.mxu0
      %v1652 = vpop.f32.mrf.mxu0
      %1653 = vdwg.mxu0
      %1654 = vmatprep.subr.bf16.mxu0 0
      %1655 = vmatpush1.bf16.msra.mxu0 0
      %1656 = vmatprep.subr.bf16.mxu0 0
      %1657 = vmatpush1.bf16.msra.mxu0 0
      %1658 = vmatprep.subr.bf16.mxu0 0
      %1659 = vmatpush1.bf16.msra.mxu0 0
      %1660 = vmatprep.subr.bf16.mxu0 %v1488
      %1661 = vmatpush1.bf16.msra.mxu0 %v1485
      %1662 = vmatprep.subr.bf16.mxu0 %v1405
      %1663 = vmatpush1.bf16.msra.mxu0 %v1404
      %1664 = vmatprep.subr.bf16.mxu0 %v1395
      %1665 = vmatpush1.bf16.msra.mxu0 %v1394
      %1666 = vmatprep.subr.bf16.mxu0 %v1385
      %1667 = vmatpush1.bf16.msra.mxu0 %v1384
      %1668 = vmatprep.subr.bf16.mxu0 %v1375
      %1669 = vmatpush1.bf16.msra.mxu0 %v1374
      %1670 = vmatprep.subr.bf16.mxu0 0
      %1671 = vmatpush2.bf16.msra.mxu0 0
      %1672 = vmatprep.subr.bf16.mxu0 0
      %1673 = vmatpush2.bf16.msra.mxu0 0
      %1674 = vmatprep.subr.bf16.mxu0 0
      %1675 = vmatpush2.bf16.msra.mxu0 0
      %1676 = vmatprep.subr.bf16.mxu0 0
      %1677 = vmatpush2.bf16.msra.mxu0 0
      %1678 = vmatprep.subr.bf16.mxu0 0
      %1679 = vmatpush2.bf16.msra.mxu0 0
      %1680 = vmatprep.subr.bf16.mxu0 0
      %1681 = vmatpush2.bf16.msra.mxu0 0
      %1682 = vmatprep.subr.bf16.mxu0 0
      %1683 = vmatpush2.bf16.msra.mxu0 0
      %1684 = vmatprep.subr.bf16.mxu0 0
      %1685 = vmatpush2.bf16.msra.mxu0 0
      %1686 = vmatprep.mubr.bf16.mxu0 0
      %1687 = vmatmul.mubr.bf16.gmra.mxu0 %v1458
      %v1688 = vpop.f32.mrf.mxu0
      %v1689 = vadd.f32 %v1209, %v1688
      %v1690 = vpop.f32.mrf.mxu0
      %v1691 = vadd.f32 %v1209, %v1690
      %v1692 = vpop.f32.mrf.mxu0
      %v1693 = vpop.f32.mrf.mxu0
      %1694 = vdwg.mxu0
      %v1695 = vadd.f32 %v1525, %v272
      %v1696 = vadd.f32 %v1527, %v273
      %v1697 = vadd.f32 %v1566, %v274
      %v1698 = vadd.f32 %v1568, %v275
      %v1699 = vadd.f32 %v1607, %v276
      %v1700 = vadd.f32 %v1609, %v277
      %v1701 = vadd.f32 %v1648, %v278
      %v1702 = vadd.f32 %v1650, %v279
      %v1703 = vadd.f32 %v1689, %v280
      %v1704 = vadd.f32 %v1691, %v281
      %v1705 = vmul.f32 %v1695, 0.5
      %v1706 = vmul.f32 %v1696, 0.5
      %v1707 = vmul.f32 %v1697, 0.5
      %v1708 = vmul.f32 %v1698, 0.5
      %v1709 = vmul.f32 %v1699, 0.5
      %v1710 = vmul.f32 %v1700, 0.5
      %v1711 = vmul.f32 %v1701, 0.5
      %v1712 = vmul.f32 %v1702, 0.5
      %v1713 = vmul.f32 %v1703, 0.5
      %v1714 = vmul.f32 %v1704, 0.5
      %v1715 = vmul.f32 %v1695, 0.70710677
      %v1716 = vmul.f32 %v1696, 0.70710677
      %v1717 = vmul.f32 %v1697, 0.70710677
      %v1718 = vmul.f32 %v1698, 0.70710677
      %v1719 = vmul.f32 %v1699, 0.70710677
      %v1720 = vmul.f32 %v1700, 0.70710677
      %v1721 = vmul.f32 %v1701, 0.70710677
      %v1722 = vmul.f32 %v1702, 0.70710677
      %v1723 = vmul.f32 %v1703, 0.70710677
      %v1724 = vmul.f32 %v1704, 0.70710677
      %v1725 = vand.u32 2147483647, %v1715
      %v1726 = vand.u32 2147483647, %v1716
      %v1727 = vand.u32 2147483647, %v1717
      %v1728 = vand.u32 2147483647, %v1718
      %v1729 = vand.u32 2147483647, %v1719
      %v1730 = vand.u32 2147483647, %v1720
      %v1731 = vand.u32 2147483647, %v1721
      %v1732 = vand.u32 2147483647, %v1722
      %v1733 = vand.u32 2147483647, %v1723
      %v1734 = vand.u32 2147483647, %v1724
      %v1735 = vmul.f32 %v1725, 0.3275911
      %v1736 = vmul.f32 %v1726, 0.3275911
      %v1737 = vmul.f32 %v1727, 0.3275911
      %v1738 = vmul.f32 %v1728, 0.3275911
      %v1739 = vmul.f32 %v1729, 0.3275911
      %v1740 = vmul.f32 %v1730, 0.3275911
      %v1741 = vmul.f32 %v1731, 0.3275911
      %v1742 = vmul.f32 %v1732, 0.3275911
      %v1743 = vmul.f32 %v1733, 0.3275911
      %v1744 = vmul.f32 %v1734, 0.3275911
      %v1745 = vadd.f32 %v1735, 1.0
      %v1746 = vadd.f32 %v1736, 1.0
      %v1747 = vadd.f32 %v1737, 1.0
      %v1748 = vadd.f32 %v1738, 1.0
      %v1749 = vadd.f32 %v1739, 1.0
      %v1750 = vadd.f32 %v1740, 1.0
      %v1751 = vadd.f32 %v1741, 1.0
      %v1752 = vadd.f32 %v1742, 1.0
      %v1753 = vadd.f32 %v1743, 1.0
      %v1754 = vadd.f32 %v1744, 1.0
      %v1755 = vrcp.pop %v1745
      %v1756 = vrcp.pop %v1746
      %v1757 = vrcp.pop %v1747
      %v1758 = vrcp.pop %v1748
      %v1759 = vrcp.pop %v1749
      %v1760 = vrcp.pop %v1750
      %v1761 = vrcp.pop %v1751
      %v1762 = vrcp.pop %v1752
      %v1763 = vrcp.pop %v1753
      %v1764 = vrcp.pop %v1754
      %v1765 = vmul.f32 %v1755, 1.0614054
      %v1766 = vmul.f32 %v1756, 1.0614054
      %v1767 = vmul.f32 %v1757, 1.0614054
      %v1768 = vmul.f32 %v1758, 1.0614054
      %v1769 = vmul.f32 %v1759, 1.0614054
      %v1770 = vmul.f32 %v1760, 1.0614054
      %v1771 = vmul.f32 %v1761, 1.0614054
      %v1772 = vmul.f32 %v1762, 1.0614054
      %v1773 = vmul.f32 %v1763, 1.0614054
      %v1774 = vmul.f32 %v1764, 1.0614054
      %v1775 = vadd.f32 %v1765, -1.4531521
      %v1776 = vadd.f32 %v1766, -1.4531521
      %v1777 = vadd.f32 %v1767, -1.4531521
      %v1778 = vadd.f32 %v1768, -1.4531521
      %v1779 = vadd.f32 %v1769, -1.4531521
      %v1780 = vadd.f32 %v1770, -1.4531521
      %v1781 = vadd.f32 %v1771, -1.4531521
      %v1782 = vadd.f32 %v1772, -1.4531521
      %v1783 = vadd.f32 %v1773, -1.4531521
      %v1784 = vadd.f32 %v1774, -1.4531521
      %v1785 = vmul.f32 %v1775, %v1755
      %v1786 = vmul.f32 %v1776, %v1756
      %v1787 = vmul.f32 %v1777, %v1757
      %v1788 = vmul.f32 %v1778, %v1758
      %v1789 = vmul.f32 %v1779, %v1759
      %v1790 = vmul.f32 %v1780, %v1760
      %v1791 = vmul.f32 %v1781, %v1761
      %v1792 = vmul.f32 %v1782, %v1762
      %v1793 = vmul.f32 %v1783, %v1763
      %v1794 = vmul.f32 %v1784, %v1764
      %v1795 = vadd.f32 %v1785, 1.4214138
      %v1796 = vadd.f32 %v1786, 1.4214138
      %v1797 = vadd.f32 %v1787, 1.4214138
      %v1798 = vadd.f32 %v1788, 1.4214138
      %v1799 = vadd.f32 %v1789, 1.4214138
      %v1800 = vadd.f32 %v1790, 1.4214138
      %v1801 = vadd.f32 %v1791, 1.4214138
      %v1802 = vadd.f32 %v1792, 1.4214138
      %v1803 = vadd.f32 %v1793, 1.4214138
      %v1804 = vadd.f32 %v1794, 1.4214138
      %v1805 = vmul.f32 %v1795, %v1755
      %v1806 = vmul.f32 %v1796, %v1756
      %v1807 = vmul.f32 %v1797, %v1757
      %v1808 = vmul.f32 %v1798, %v1758
      %v1809 = vmul.f32 %v1799, %v1759
      %v1810 = vmul.f32 %v1800, %v1760
      %v1811 = vmul.f32 %v1801, %v1761
      %v1812 = vmul.f32 %v1802, %v1762
      %v1813 = vmul.f32 %v1803, %v1763
      %v1814 = vmul.f32 %v1804, %v1764
      %v1815 = vadd.f32 %v1805, -0.28449672
      %v1816 = vadd.f32 %v1806, -0.28449672
      %v1817 = vadd.f32 %v1807, -0.28449672
      %v1818 = vadd.f32 %v1808, -0.28449672
      %v1819 = vadd.f32 %v1809, -0.28449672
      %v1820 = vadd.f32 %v1810, -0.28449672
      %v1821 = vadd.f32 %v1811, -0.28449672
      %v1822 = vadd.f32 %v1812, -0.28449672
      %v1823 = vadd.f32 %v1813, -0.28449672
      %v1824 = vadd.f32 %v1814, -0.28449672
      %v1825 = vmul.f32 %v1815, %v1755
      %v1826 = vmul.f32 %v1816, %v1756
      %v1827 = vmul.f32 %v1817, %v1757
      %v1828 = vmul.f32 %v1818, %v1758
      %v1829 = vmul.f32 %v1819, %v1759
      %v1830 = vmul.f32 %v1820, %v1760
      %v1831 = vmul.f32 %v1821, %v1761
      %v1832 = vmul.f32 %v1822, %v1762
      %v1833 = vmul.f32 %v1823, %v1763
      %v1834 = vmul.f32 %v1824, %v1764
      %v1835 = vadd.f32 %v1825, 0.2548296
      %v1836 = vadd.f32 %v1826, 0.2548296
      %v1837 = vadd.f32 %v1827, 0.2548296
      %v1838 = vadd.f32 %v1828, 0.2548296
      %v1839 = vadd.f32 %v1829, 0.2548296
      %v1840 = vadd.f32 %v1830, 0.2548296
      %v1841 = vadd.f32 %v1831, 0.2548296
      %v1842 = vadd.f32 %v1832, 0.2548296
      %v1843 = vadd.f32 %v1833, 0.2548296
      %v1844 = vadd.f32 %v1834, 0.2548296
      %v1845 = vmul.f32 %v1835, %v1755
      %v1846 = vmul.f32 %v1836, %v1756
      %v1847 = vmul.f32 %v1837, %v1757
      %v1848 = vmul.f32 %v1838, %v1758
      %v1849 = vmul.f32 %v1839, %v1759
      %v1850 = vmul.f32 %v1840, %v1760
      %v1851 = vmul.f32 %v1841, %v1761
      %v1852 = vmul.f32 %v1842, %v1762
      %v1853 = vmul.f32 %v1843, %v1763
      %v1854 = vmul.f32 %v1844, %v1764
      %v1855 = vsub.f32 0.0, %v1725
      %v1856 = vsub.f32 0.0, %v1726
      %v1857 = vsub.f32 0.0, %v1727
      %v1858 = vsub.f32 0.0, %v1728
      %v1859 = vsub.f32 0.0, %v1729
      %v1860 = vsub.f32 0.0, %v1730
      %v1861 = vsub.f32 0.0, %v1731
      %v1862 = vsub.f32 0.0, %v1732
      %v1863 = vsub.f32 0.0, %v1733
      %v1864 = vsub.f32 0.0, %v1734
      %v1865 = vmul.f32 %v1855, %v1725
      %v1866 = vmul.f32 %v1856, %v1726
      %v1867 = vmul.f32 %v1857, %v1727
      %v1868 = vmul.f32 %v1858, %v1728
      %v1869 = vmul.f32 %v1859, %v1729
      %v1870 = vmul.f32 %v1860, %v1730
      %v1871 = vmul.f32 %v1861, %v1731
      %v1872 = vmul.f32 %v1862, %v1732
      %v1873 = vmul.f32 %v1863, %v1733
      %v1874 = vmul.f32 %v1864, %v1734
      %v1875 = vmul.f32 %v1865, 1.442695
      %v1876 = vpow.pop %v1875
      %v1877 = vmul.f32 %v1866, 1.442695
      %v1878 = vpow.pop %v1877
      %v1879 = vmul.f32 %v1867, 1.442695
      %v1880 = vpow.pop %v1879
      %v1881 = vmul.f32 %v1868, 1.442695
      %v1882 = vpow.pop %v1881
      %v1883 = vmul.f32 %v1869, 1.442695
      %v1884 = vpow.pop %v1883
      %v1885 = vmul.f32 %v1870, 1.442695
      %v1886 = vpow.pop %v1885
      %v1887 = vmul.f32 %v1871, 1.442695
      %v1888 = vpow.pop %v1887
      %v1889 = vmul.f32 %v1872, 1.442695
      %v1890 = vpow.pop %v1889
      %v1891 = vmul.f32 %v1873, 1.442695
      %v1892 = vpow.pop %v1891
      %v1893 = vmul.f32 %v1874, 1.442695
      %v1894 = vpow.pop %v1893
      %v1895 = vmul.f32 %v1845, %v1876
      %v1896 = vmul.f32 %v1846, %v1878
      %v1897 = vmul.f32 %v1847, %v1880
      %v1898 = vmul.f32 %v1848, %v1882
      %v1899 = vmul.f32 %v1849, %v1884
      %v1900 = vmul.f32 %v1850, %v1886
      %v1901 = vmul.f32 %v1851, %v1888
      %v1902 = vmul.f32 %v1852, %v1890
      %v1903 = vmul.f32 %v1853, %v1892
      %v1904 = vmul.f32 %v1854, %v1894
      %v1905 = vsub.f32 1.0, %v1895
      %v1906 = vsub.f32 1.0, %v1896
      %v1907 = vsub.f32 1.0, %v1897
      %v1908 = vsub.f32 1.0, %v1898
      %v1909 = vsub.f32 1.0, %v1899
      %v1910 = vsub.f32 1.0, %v1900
      %v1911 = vsub.f32 1.0, %v1901
      %v1912 = vsub.f32 1.0, %v1902
      %v1913 = vsub.f32 1.0, %v1903
      %v1914 = vsub.f32 1.0, %v1904
      %vm1915 = vcmp.lt.f32.partialorder %v1715, 0.0
      %vm1916 = vcmp.lt.f32.partialorder %v1716, 0.0
      %vm1917 = vcmp.lt.f32.partialorder %v1717, 0.0
      %vm1918 = vcmp.lt.f32.partialorder %v1718, 0.0
      %vm1919 = vcmp.lt.f32.partialorder %v1719, 0.0
      %vm1920 = vcmp.lt.f32.partialorder %v1720, 0.0
      %vm1921 = vcmp.lt.f32.partialorder %v1721, 0.0
      %vm1922 = vcmp.lt.f32.partialorder %v1722, 0.0
      %vm1923 = vcmp.lt.f32.partialorder %v1723, 0.0
      %vm1924 = vcmp.lt.f32.partialorder %v1724, 0.0
      %v1925 = vsub.f32 0.0, %v1905
      %v1926 = vsub.f32 0.0, %v1906
      %v1927 = vsub.f32 0.0, %v1907
      %v1928 = vsub.f32 0.0, %v1908
      %v1929 = vsub.f32 0.0, %v1909
      %v1930 = vsub.f32 0.0, %v1910
      %v1931 = vsub.f32 0.0, %v1911
      %v1932 = vsub.f32 0.0, %v1912
      %v1933 = vsub.f32 0.0, %v1913
      %v1934 = vsub.f32 0.0, %v1914
      %v1935 = vsel %vm1915, %v1925, %v1905
      %v1936 = vsel %vm1916, %v1926, %v1906
      %v1937 = vsel %vm1917, %v1927, %v1907
      %v1938 = vsel %vm1918, %v1928, %v1908
      %v1939 = vsel %vm1919, %v1929, %v1909
      %v1940 = vsel %vm1920, %v1930, %v1910
      %v1941 = vsel %vm1921, %v1931, %v1911
      %v1942 = vsel %vm1922, %v1932, %v1912
      %v1943 = vsel %vm1923, %v1933, %v1913
      %v1944 = vsel %vm1924, %v1934, %v1914
      %v1945 = vadd.f32 %v1935, 1.0
      %v1946 = vadd.f32 %v1936, 1.0
      %v1947 = vadd.f32 %v1937, 1.0
      %v1948 = vadd.f32 %v1938, 1.0
      %v1949 = vadd.f32 %v1939, 1.0
      %v1950 = vadd.f32 %v1940, 1.0
      %v1951 = vadd.f32 %v1941, 1.0
      %v1952 = vadd.f32 %v1942, 1.0
      %v1953 = vadd.f32 %v1943, 1.0
      %v1954 = vadd.f32 %v1944, 1.0
      %v1955 = vmul.f32 %v1705, %v1945
      %v1956 = vmul.f32 %v1706, %v1946
      %v1957 = vmul.f32 %v1707, %v1947
      %v1958 = vmul.f32 %v1708, %v1948
      %v1959 = vmul.f32 %v1709, %v1949
      %v1960 = vmul.f32 %v1710, %v1950
      %v1961 = vmul.f32 %v1711, %v1951
      %v1962 = vmul.f32 %v1712, %v1952
      %v1963 = vmul.f32 %v1713, %v1953
      %v1964 = vmul.f32 %v1714, %v1954
      %v1967 = vlaneseq
      %v1968 = vshrl.u32 %v1967, 7
      %v1969 = vsub.s32 0, %v1968
      %v1970 = vrot.slane %v282, %v1969
      %v1971 = vlaneseq
      %v1972 = vshrl.u32 %v1971, 7
      %v1973 = vsub.s32 1, %v1972
      %v1974 = vrot.slane %v282, %v1973
      %v1975 = vlaneseq
      %v1976 = vshrl.u32 %v1975, 7
      %v1977 = vsub.s32 2, %v1976
      %v1978 = vrot.slane %v282, %v1977
      %v1979 = vlaneseq
      %v1980 = vshrl.u32 %v1979, 7
      %v1981 = vsub.s32 3, %v1980
      %v1982 = vrot.slane %v282, %v1981
      %v1983 = vlaneseq
      %v1984 = vshrl.u32 %v1983, 7
      %v1985 = vsub.s32 4, %v1984
      %v1986 = vrot.slane %v282, %v1985
      %v1987 = vlaneseq
      %v1988 = vshrl.u32 %v1987, 7
      %v1989 = vsub.s32 5, %v1988
      %v1990 = vrot.slane %v282, %v1989
      %v1991 = vlaneseq
      %v1992 = vshrl.u32 %v1991, 7
      %v1993 = vsub.s32 6, %v1992
      %v1994 = vrot.slane %v282, %v1993
      %v1995 = vlaneseq
      %v1996 = vshrl.u32 %v1995, 7
      %v1997 = vsub.s32 7, %v1996
      %v1998 = vrot.slane %v282, %v1997
      %v1999 = vlaneseq
      %v2000 = vshrl.u32 %v1999, 7
      %v2001 = vsub.s32 0, %v2000
      %v2002 = vrot.slane %v283, %v2001
      %v2003 = vlaneseq
      %v2004 = vshrl.u32 %v2003, 7
      %v2005 = vsub.s32 1, %v2004
      %v2006 = vrot.slane %v283, %v2005
      %v2017 = vmul.f32 %v1955, %v1970
      %v2018 = vmul.f32 %v1956, %v1974
      %v2019 = vmul.f32 %v1957, %v1978
      %v2020 = vmul.f32 %v1958, %v1982
      %v2021 = vmul.f32 %v1959, %v1986
      %v2022 = vmul.f32 %v1960, %v1990
      %v2023 = vmul.f32 %v1961, %v1994
      %v2024 = vmul.f32 %v1962, %v1998
      %v2025 = vmul.f32 %v1963, %v2002
      %v2026 = vmul.f32 %v1964, %v2006
      %v2027 = vpack.c.bf16 %v2017, %v2017
      %v2028 = vpack.c.bf16 %v2018, %v2018
      %v2029 = vpack.c.bf16 %v2019, %v2019
      %v2030 = vpack.c.bf16 %v2020, %v2020
      %v2031 = vpack.c.bf16 %v2021, %v2021
      %v2032 = vpack.c.bf16 %v2022, %v2022
      %v2033 = vpack.c.bf16 %v2023, %v2023
      %v2034 = vpack.c.bf16 %v2024, %v2024
      %v2035 = vpack.c.bf16 %v2025, %v2025
      %v2036 = vpack.c.bf16 %v2026, %v2026
      %v2037 = vpack.c.bf16 %v258, %v258
      %2038 = vset.pattern.permute.xlu0 2
      %2039 = vperm.xlu0 %2038, %v271
      %v2040 = vpop.permute.xlu0 %2039
      %v2043 = vsel %vm301, %v2037, 0
      %v2046 = vsel %vm305, %v2027, 0
      %v2049 = vsel %vm305, %v2028, 0
      %v2052 = vsel %vm305, %v2029, 0
      %v2055 = vsel %vm305, %v2030, 0
      %v2058 = vsel %vm305, %v2031, 0
      %v2061 = vsel %vm305, %v2032, 0
      %v2064 = vsel %vm305, %v2033, 0
      %v2067 = vsel %vm305, %v2034, 0
      %v2070 = vsel %vm305, %v2035, 0
      %v2073 = vsel %vm305, %v2036, 0
      %2075 = vmatprep.subr.bf16.mxu0 0
      %2076 = vmatpush1.bf16.msra.mxu0 0
      %2077 = vmatprep.subr.bf16.mxu0 0
      %2078 = vmatpush1.bf16.msra.mxu0 0
      %2079 = vmatprep.subr.bf16.mxu0 0
      %2080 = vmatpush1.bf16.msra.mxu0 0
      %2081 = vmatprep.subr.bf16.mxu0 0
      %2082 = vmatpush1.bf16.msra.mxu0 0
      %2083 = vmatprep.subr.bf16.mxu0 0
      %2084 = vmatpush1.bf16.msra.mxu0 0
      %2085 = vmatprep.subr.bf16.mxu0 0
      %2086 = vmatpush1.bf16.msra.mxu0 0
      %2087 = vmatprep.subr.bf16.mxu0 0
      %2088 = vmatpush1.bf16.msra.mxu0 0
      %2089 = vmatprep.subr.bf16.mxu0 %v2049
      %2090 = vmatpush1.bf16.msra.mxu0 %v2046
      %2091 = vmatprep.subr.bf16.mxu0 0
      %2092 = vmatpush2.bf16.msra.mxu0 0
      %2093 = vmatprep.subr.bf16.mxu0 0
      %2094 = vmatpush2.bf16.msra.mxu0 0
      %2095 = vmatprep.subr.bf16.mxu0 0
      %2096 = vmatpush2.bf16.msra.mxu0 0
      %2097 = vmatprep.subr.bf16.mxu0 0
      %2098 = vmatpush2.bf16.msra.mxu0 0
      %2099 = vmatprep.subr.bf16.mxu0 0
      %2100 = vmatpush2.bf16.msra.mxu0 0
      %2101 = vmatprep.subr.bf16.mxu0 0
      %2102 = vmatpush2.bf16.msra.mxu0 0
      %2103 = vmatprep.subr.bf16.mxu0 0
      %2104 = vmatpush2.bf16.msra.mxu0 0
      %2105 = vmatprep.subr.bf16.mxu0 0
      %2106 = vmatpush2.bf16.msra.mxu0 0
      %2107 = vmatprep.mubr.bf16.mxu0 0
      %2108 = vmatmul.mubr.bf16.gmra.mxu0 %v2043
      %v2109 = vpop.f32.mrf.mxu0
      %v2110 = vadd.f32 %v2040, %v2109
      %v2111 = vpop.f32.mrf.mxu0
      %v2112 = vadd.f32 %v2040, %v2111
      %v2113 = vpop.f32.mrf.mxu0
      %v2114 = vpop.f32.mrf.mxu0
      %2115 = vdwg.mxu0
      %2116 = vmatprep.subr.bf16.mxu0 0
      %2117 = vmatpush1.bf16.msra.mxu0 0
      %2118 = vmatprep.subr.bf16.mxu0 0
      %2119 = vmatpush1.bf16.msra.mxu0 0
      %2120 = vmatprep.subr.bf16.mxu0 0
      %2121 = vmatpush1.bf16.msra.mxu0 0
      %2122 = vmatprep.subr.bf16.mxu0 0
      %2123 = vmatpush1.bf16.msra.mxu0 0
      %2124 = vmatprep.subr.bf16.mxu0 0
      %2125 = vmatpush1.bf16.msra.mxu0 0
      %2126 = vmatprep.subr.bf16.mxu0 0
      %2127 = vmatpush1.bf16.msra.mxu0 0
      %2128 = vmatprep.subr.bf16.mxu0 0
      %2129 = vmatpush1.bf16.msra.mxu0 0
      %2130 = vmatprep.subr.bf16.mxu0 %v2055
      %2131 = vmatpush1.bf16.msra.mxu0 %v2052
      %2132 = vmatprep.subr.bf16.mxu0 0
      %2133 = vmatpush2.bf16.msra.mxu0 0
      %2134 = vmatprep.subr.bf16.mxu0 0
      %2135 = vmatpush2.bf16.msra.mxu0 0
      %2136 = vmatprep.subr.bf16.mxu0 0
      %2137 = vmatpush2.bf16.msra.mxu0 0
      %2138 = vmatprep.subr.bf16.mxu0 0
      %2139 = vmatpush2.bf16.msra.mxu0 0
      %2140 = vmatprep.subr.bf16.mxu0 0
      %2141 = vmatpush2.bf16.msra.mxu0 0
      %2142 = vmatprep.subr.bf16.mxu0 0
      %2143 = vmatpush2.bf16.msra.mxu0 0
      %2144 = vmatprep.subr.bf16.mxu0 0
      %2145 = vmatpush2.bf16.msra.mxu0 0
      %2146 = vmatprep.subr.bf16.mxu0 0
      %2147 = vmatpush2.bf16.msra.mxu0 0
      %2148 = vmatprep.mubr.bf16.mxu0 0
      %2149 = vmatmul.mubr.bf16.gmra.mxu0 %v2043
      %v2150 = vpop.f32.mrf.mxu0
      %v2151 = vadd.f32 %v2040, %v2150
      %v2152 = vpop.f32.mrf.mxu0
      %v2153 = vadd.f32 %v2040, %v2152
      %v2154 = vpop.f32.mrf.mxu0
      %v2155 = vpop.f32.mrf.mxu0
      %2156 = vdwg.mxu0
      %2157 = vmatprep.subr.bf16.mxu0 0
      %2158 = vmatpush1.bf16.msra.mxu0 0
      %2159 = vmatprep.subr.bf16.mxu0 0
      %2160 = vmatpush1.bf16.msra.mxu0 0
      %2161 = vmatprep.subr.bf16.mxu0 0
      %2162 = vmatpush1.bf16.msra.mxu0 0
      %2163 = vmatprep.subr.bf16.mxu0 0
      %2164 = vmatpush1.bf16.msra.mxu0 0
      %2165 = vmatprep.subr.bf16.mxu0 0
      %2166 = vmatpush1.bf16.msra.mxu0 0
      %2167 = vmatprep.subr.bf16.mxu0 0
      %2168 = vmatpush1.bf16.msra.mxu0 0
      %2169 = vmatprep.subr.bf16.mxu0 0
      %2170 = vmatpush1.bf16.msra.mxu0 0
      %2171 = vmatprep.subr.bf16.mxu0 %v2061
      %2172 = vmatpush1.bf16.msra.mxu0 %v2058
      %2173 = vmatprep.subr.bf16.mxu0 0
      %2174 = vmatpush2.bf16.msra.mxu0 0
      %2175 = vmatprep.subr.bf16.mxu0 0
      %2176 = vmatpush2.bf16.msra.mxu0 0
      %2177 = vmatprep.subr.bf16.mxu0 0
      %2178 = vmatpush2.bf16.msra.mxu0 0
      %2179 = vmatprep.subr.bf16.mxu0 0
      %2180 = vmatpush2.bf16.msra.mxu0 0
      %2181 = vmatprep.subr.bf16.mxu0 0
      %2182 = vmatpush2.bf16.msra.mxu0 0
      %2183 = vmatprep.subr.bf16.mxu0 0
      %2184 = vmatpush2.bf16.msra.mxu0 0
      %2185 = vmatprep.subr.bf16.mxu0 0
      %2186 = vmatpush2.bf16.msra.mxu0 0
      %2187 = vmatprep.subr.bf16.mxu0 0
      %2188 = vmatpush2.bf16.msra.mxu0 0
      %2189 = vmatprep.mubr.bf16.mxu0 0
      %2190 = vmatmul.mubr.bf16.gmra.mxu0 %v2043
      %v2191 = vpop.f32.mrf.mxu0
      %v2192 = vadd.f32 %v2040, %v2191
      %v2193 = vpop.f32.mrf.mxu0
      %v2194 = vadd.f32 %v2040, %v2193
      %v2195 = vpop.f32.mrf.mxu0
      %v2196 = vpop.f32.mrf.mxu0
      %2197 = vdwg.mxu0
      %2198 = vmatprep.subr.bf16.mxu0 0
      %2199 = vmatpush1.bf16.msra.mxu0 0
      %2200 = vmatprep.subr.bf16.mxu0 0
      %2201 = vmatpush1.bf16.msra.mxu0 0
      %2202 = vmatprep.subr.bf16.mxu0 0
      %2203 = vmatpush1.bf16.msra.mxu0 0
      %2204 = vmatprep.subr.bf16.mxu0 0
      %2205 = vmatpush1.bf16.msra.mxu0 0
      %2206 = vmatprep.subr.bf16.mxu0 0
      %2207 = vmatpush1.bf16.msra.mxu0 0
      %2208 = vmatprep.subr.bf16.mxu0 0
      %2209 = vmatpush1.bf16.msra.mxu0 0
      %2210 = vmatprep.subr.bf16.mxu0 0
      %2211 = vmatpush1.bf16.msra.mxu0 0
      %2212 = vmatprep.subr.bf16.mxu0 %v2067
      %2213 = vmatpush1.bf16.msra.mxu0 %v2064
      %2214 = vmatprep.subr.bf16.mxu0 0
      %2215 = vmatpush2.bf16.msra.mxu0 0
      %2216 = vmatprep.subr.bf16.mxu0 0
      %2217 = vmatpush2.bf16.msra.mxu0 0
      %2218 = vmatprep.subr.bf16.mxu0 0
      %2219 = vmatpush2.bf16.msra.mxu0 0
      %2220 = vmatprep.subr.bf16.mxu0 0
      %2221 = vmatpush2.bf16.msra.mxu0 0
      %2222 = vmatprep.subr.bf16.mxu0 0
      %2223 = vmatpush2.bf16.msra.mxu0 0
      %2224 = vmatprep.subr.bf16.mxu0 0
      %2225 = vmatpush2.bf16.msra.mxu0 0
      %2226 = vmatprep.subr.bf16.mxu0 0
      %2227 = vmatpush2.bf16.msra.mxu0 0
      %2228 = vmatprep.subr.bf16.mxu0 0
      %2229 = vmatpush2.bf16.msra.mxu0 0
      %2230 = vmatprep.mubr.bf16.mxu0 0
      %2231 = vmatmul.mubr.bf16.gmra.mxu0 %v2043
      %v2232 = vpop.f32.mrf.mxu0
      %v2233 = vadd.f32 %v2040, %v2232
      %v2234 = vpop.f32.mrf.mxu0
      %v2235 = vadd.f32 %v2040, %v2234
      %v2236 = vpop.f32.mrf.mxu0
      %v2237 = vpop.f32.mrf.mxu0
      %2238 = vdwg.mxu0
      %2239 = vmatprep.subr.bf16.mxu0 0
      %2240 = vmatpush1.bf16.msra.mxu0 0
      %2241 = vmatprep.subr.bf16.mxu0 0
      %2242 = vmatpush1.bf16.msra.mxu0 0
      %2243 = vmatprep.subr.bf16.mxu0 0
      %2244 = vmatpush1.bf16.msra.mxu0 0
      %2245 = vmatprep.subr.bf16.mxu0 0
      %2246 = vmatpush1.bf16.msra.mxu0 0
      %2247 = vmatprep.subr.bf16.mxu0 0
      %2248 = vmatpush1.bf16.msra.mxu0 0
      %2249 = vmatprep.subr.bf16.mxu0 0
      %2250 = vmatpush1.bf16.msra.mxu0 0
      %2251 = vmatprep.subr.bf16.mxu0 0
      %2252 = vmatpush1.bf16.msra.mxu0 0
      %2253 = vmatprep.subr.bf16.mxu0 %v2073
      %2254 = vmatpush1.bf16.msra.mxu0 %v2070
      %2255 = vmatprep.subr.bf16.mxu0 0
      %2256 = vmatpush2.bf16.msra.mxu0 0
      %2257 = vmatprep.subr.bf16.mxu0 0
      %2258 = vmatpush2.bf16.msra.mxu0 0
      %2259 = vmatprep.subr.bf16.mxu0 0
      %2260 = vmatpush2.bf16.msra.mxu0 0
      %2261 = vmatprep.subr.bf16.mxu0 0
      %2262 = vmatpush2.bf16.msra.mxu0 0
      %2263 = vmatprep.subr.bf16.mxu0 0
      %2264 = vmatpush2.bf16.msra.mxu0 0
      %2265 = vmatprep.subr.bf16.mxu0 0
      %2266 = vmatpush2.bf16.msra.mxu0 0
      %2267 = vmatprep.subr.bf16.mxu0 0
      %2268 = vmatpush2.bf16.msra.mxu0 0
      %2269 = vmatprep.subr.bf16.mxu0 0
      %2270 = vmatpush2.bf16.msra.mxu0 0
      %2271 = vmatprep.mubr.bf16.mxu0 0
      %2272 = vmatmul.mubr.bf16.gmra.mxu0 %v2043
      %v2273 = vpop.f32.mrf.mxu0
      %v2274 = vadd.f32 %v2040, %v2273
      %v2275 = vpop.f32.mrf.mxu0
      %v2276 = vadd.f32 %v2040, %v2275
      %v2277 = vpop.f32.mrf.mxu0
      %v2278 = vpop.f32.mrf.mxu0
      %2279 = vdwg.mxu0
      %v2280 = vmul.f32 %v2110, 0.5
      %v2281 = vmul.f32 %v2112, 0.5
      %v2282 = vmul.f32 %v2151, 0.5
      %v2283 = vmul.f32 %v2153, 0.5
      %v2284 = vmul.f32 %v2192, 0.5
      %v2285 = vmul.f32 %v2194, 0.5
      %v2286 = vmul.f32 %v2233, 0.5
      %v2287 = vmul.f32 %v2235, 0.5
      %v2288 = vmul.f32 %v2274, 0.5
      %v2289 = vmul.f32 %v2276, 0.5
      %v2290 = vmul.f32 %v2110, 0.70710677
      %v2291 = vmul.f32 %v2112, 0.70710677
      %v2292 = vmul.f32 %v2151, 0.70710677
      %v2293 = vmul.f32 %v2153, 0.70710677
      %v2294 = vmul.f32 %v2192, 0.70710677
      %v2295 = vmul.f32 %v2194, 0.70710677
      %v2296 = vmul.f32 %v2233, 0.70710677
      %v2297 = vmul.f32 %v2235, 0.70710677
      %v2298 = vmul.f32 %v2274, 0.70710677
      %v2299 = vmul.f32 %v2276, 0.70710677
      %v2300 = vand.u32 2147483647, %v2290
      %v2301 = vand.u32 2147483647, %v2291
      %v2302 = vand.u32 2147483647, %v2292
      %v2303 = vand.u32 2147483647, %v2293
      %v2304 = vand.u32 2147483647, %v2294
      %v2305 = vand.u32 2147483647, %v2295
      %v2306 = vand.u32 2147483647, %v2296
      %v2307 = vand.u32 2147483647, %v2297
      %v2308 = vand.u32 2147483647, %v2298
      %v2309 = vand.u32 2147483647, %v2299
      %v2310 = vmul.f32 %v2300, 0.3275911
      %v2311 = vmul.f32 %v2301, 0.3275911
      %v2312 = vmul.f32 %v2302, 0.3275911
      %v2313 = vmul.f32 %v2303, 0.3275911
      %v2314 = vmul.f32 %v2304, 0.3275911
      %v2315 = vmul.f32 %v2305, 0.3275911
      %v2316 = vmul.f32 %v2306, 0.3275911
      %v2317 = vmul.f32 %v2307, 0.3275911
      %v2318 = vmul.f32 %v2308, 0.3275911
      %v2319 = vmul.f32 %v2309, 0.3275911
      %v2320 = vadd.f32 %v2310, 1.0
      %v2321 = vadd.f32 %v2311, 1.0
      %v2322 = vadd.f32 %v2312, 1.0
      %v2323 = vadd.f32 %v2313, 1.0
      %v2324 = vadd.f32 %v2314, 1.0
      %v2325 = vadd.f32 %v2315, 1.0
      %v2326 = vadd.f32 %v2316, 1.0
      %v2327 = vadd.f32 %v2317, 1.0
      %v2328 = vadd.f32 %v2318, 1.0
      %v2329 = vadd.f32 %v2319, 1.0
      %v2330 = vrcp.pop %v2320
      %v2331 = vrcp.pop %v2321
      %v2332 = vrcp.pop %v2322
      %v2333 = vrcp.pop %v2323
      %v2334 = vrcp.pop %v2324
      %v2335 = vrcp.pop %v2325
      %v2336 = vrcp.pop %v2326
      %v2337 = vrcp.pop %v2327
      %v2338 = vrcp.pop %v2328
      %v2339 = vrcp.pop %v2329
      %v2340 = vmul.f32 %v2330, 1.0614054
      %v2341 = vmul.f32 %v2331, 1.0614054
      %v2342 = vmul.f32 %v2332, 1.0614054
      %v2343 = vmul.f32 %v2333, 1.0614054
      %v2344 = vmul.f32 %v2334, 1.0614054
      %v2345 = vmul.f32 %v2335, 1.0614054
      %v2346 = vmul.f32 %v2336, 1.0614054
      %v2347 = vmul.f32 %v2337, 1.0614054
      %v2348 = vmul.f32 %v2338, 1.0614054
      %v2349 = vmul.f32 %v2339, 1.0614054
      %v2350 = vadd.f32 %v2340, -1.4531521
      %v2351 = vadd.f32 %v2341, -1.4531521
      %v2352 = vadd.f32 %v2342, -1.4531521
      %v2353 = vadd.f32 %v2343, -1.4531521
      %v2354 = vadd.f32 %v2344, -1.4531521
      %v2355 = vadd.f32 %v2345, -1.4531521
      %v2356 = vadd.f32 %v2346, -1.4531521
      %v2357 = vadd.f32 %v2347, -1.4531521
      %v2358 = vadd.f32 %v2348, -1.4531521
      %v2359 = vadd.f32 %v2349, -1.4531521
      %v2360 = vmul.f32 %v2350, %v2330
      %v2361 = vmul.f32 %v2351, %v2331
      %v2362 = vmul.f32 %v2352, %v2332
      %v2363 = vmul.f32 %v2353, %v2333
      %v2364 = vmul.f32 %v2354, %v2334
      %v2365 = vmul.f32 %v2355, %v2335
      %v2366 = vmul.f32 %v2356, %v2336
      %v2367 = vmul.f32 %v2357, %v2337
      %v2368 = vmul.f32 %v2358, %v2338
      %v2369 = vmul.f32 %v2359, %v2339
      %v2370 = vadd.f32 %v2360, 1.4214138
      %v2371 = vadd.f32 %v2361, 1.4214138
      %v2372 = vadd.f32 %v2362, 1.4214138
      %v2373 = vadd.f32 %v2363, 1.4214138
      %v2374 = vadd.f32 %v2364, 1.4214138
      %v2375 = vadd.f32 %v2365, 1.4214138
      %v2376 = vadd.f32 %v2366, 1.4214138
      %v2377 = vadd.f32 %v2367, 1.4214138
      %v2378 = vadd.f32 %v2368, 1.4214138
      %v2379 = vadd.f32 %v2369, 1.4214138
      %v2380 = vmul.f32 %v2370, %v2330
      %v2381 = vmul.f32 %v2371, %v2331
      %v2382 = vmul.f32 %v2372, %v2332
      %v2383 = vmul.f32 %v2373, %v2333
      %v2384 = vmul.f32 %v2374, %v2334
      %v2385 = vmul.f32 %v2375, %v2335
      %v2386 = vmul.f32 %v2376, %v2336
      %v2387 = vmul.f32 %v2377, %v2337
      %v2388 = vmul.f32 %v2378, %v2338
      %v2389 = vmul.f32 %v2379, %v2339
      %v2390 = vadd.f32 %v2380, -0.28449672
      %v2391 = vadd.f32 %v2381, -0.28449672
      %v2392 = vadd.f32 %v2382, -0.28449672
      %v2393 = vadd.f32 %v2383, -0.28449672
      %v2394 = vadd.f32 %v2384, -0.28449672
      %v2395 = vadd.f32 %v2385, -0.28449672
      %v2396 = vadd.f32 %v2386, -0.28449672
      %v2397 = vadd.f32 %v2387, -0.28449672
      %v2398 = vadd.f32 %v2388, -0.28449672
      %v2399 = vadd.f32 %v2389, -0.28449672
      %v2400 = vmul.f32 %v2390, %v2330
      %v2401 = vmul.f32 %v2391, %v2331
      %v2402 = vmul.f32 %v2392, %v2332
      %v2403 = vmul.f32 %v2393, %v2333
      %v2404 = vmul.f32 %v2394, %v2334
      %v2405 = vmul.f32 %v2395, %v2335
      %v2406 = vmul.f32 %v2396, %v2336
      %v2407 = vmul.f32 %v2397, %v2337
      %v2408 = vmul.f32 %v2398, %v2338
      %v2409 = vmul.f32 %v2399, %v2339
      %v2410 = vadd.f32 %v2400, 0.2548296
      %v2411 = vadd.f32 %v2401, 0.2548296
      %v2412 = vadd.f32 %v2402, 0.2548296
      %v2413 = vadd.f32 %v2403, 0.2548296
      %v2414 = vadd.f32 %v2404, 0.2548296
      %v2415 = vadd.f32 %v2405, 0.2548296
      %v2416 = vadd.f32 %v2406, 0.2548296
      %v2417 = vadd.f32 %v2407, 0.2548296
      %v2418 = vadd.f32 %v2408, 0.2548296
      %v2419 = vadd.f32 %v2409, 0.2548296
      %v2420 = vmul.f32 %v2410, %v2330
      %v2421 = vmul.f32 %v2411, %v2331
      %v2422 = vmul.f32 %v2412, %v2332
      %v2423 = vmul.f32 %v2413, %v2333
      %v2424 = vmul.f32 %v2414, %v2334
      %v2425 = vmul.f32 %v2415, %v2335
      %v2426 = vmul.f32 %v2416, %v2336
      %v2427 = vmul.f32 %v2417, %v2337
      %v2428 = vmul.f32 %v2418, %v2338
      %v2429 = vmul.f32 %v2419, %v2339
      %v2430 = vsub.f32 0.0, %v2300
      %v2431 = vsub.f32 0.0, %v2301
      %v2432 = vsub.f32 0.0, %v2302
      %v2433 = vsub.f32 0.0, %v2303
      %v2434 = vsub.f32 0.0, %v2304
      %v2435 = vsub.f32 0.0, %v2305
      %v2436 = vsub.f32 0.0, %v2306
      %v2437 = vsub.f32 0.0, %v2307
      %v2438 = vsub.f32 0.0, %v2308
      %v2439 = vsub.f32 0.0, %v2309
      %v2440 = vmul.f32 %v2430, %v2300
      %v2441 = vmul.f32 %v2431, %v2301
      %v2442 = vmul.f32 %v2432, %v2302
      %v2443 = vmul.f32 %v2433, %v2303
      %v2444 = vmul.f32 %v2434, %v2304
      %v2445 = vmul.f32 %v2435, %v2305
      %v2446 = vmul.f32 %v2436, %v2306
      %v2447 = vmul.f32 %v2437, %v2307
      %v2448 = vmul.f32 %v2438, %v2308
      %v2449 = vmul.f32 %v2439, %v2309
      %v2450 = vmul.f32 %v2440, 1.442695
      %v2451 = vpow.pop %v2450
      %v2452 = vmul.f32 %v2441, 1.442695
      %v2453 = vpow.pop %v2452
      %v2454 = vmul.f32 %v2442, 1.442695
      %v2455 = vpow.pop %v2454
      %v2456 = vmul.f32 %v2443, 1.442695
      %v2457 = vpow.pop %v2456
      %v2458 = vmul.f32 %v2444, 1.442695
      %v2459 = vpow.pop %v2458
      %v2460 = vmul.f32 %v2445, 1.442695
      %v2461 = vpow.pop %v2460
      %v2462 = vmul.f32 %v2446, 1.442695
      %v2463 = vpow.pop %v2462
      %v2464 = vmul.f32 %v2447, 1.442695
      %v2465 = vpow.pop %v2464
      %v2466 = vmul.f32 %v2448, 1.442695
      %v2467 = vpow.pop %v2466
      %v2468 = vmul.f32 %v2449, 1.442695
      %v2469 = vpow.pop %v2468
      %v2470 = vmul.f32 %v2420, %v2451
      %v2471 = vmul.f32 %v2421, %v2453
      %v2472 = vmul.f32 %v2422, %v2455
      %v2473 = vmul.f32 %v2423, %v2457
      %v2474 = vmul.f32 %v2424, %v2459
      %v2475 = vmul.f32 %v2425, %v2461
      %v2476 = vmul.f32 %v2426, %v2463
      %v2477 = vmul.f32 %v2427, %v2465
      %v2478 = vmul.f32 %v2428, %v2467
      %v2479 = vmul.f32 %v2429, %v2469
      %v2480 = vsub.f32 1.0, %v2470
      %v2481 = vsub.f32 1.0, %v2471
      %v2482 = vsub.f32 1.0, %v2472
      %v2483 = vsub.f32 1.0, %v2473
      %v2484 = vsub.f32 1.0, %v2474
      %v2485 = vsub.f32 1.0, %v2475
      %v2486 = vsub.f32 1.0, %v2476
      %v2487 = vsub.f32 1.0, %v2477
      %v2488 = vsub.f32 1.0, %v2478
      %v2489 = vsub.f32 1.0, %v2479
      %vm2490 = vcmp.lt.f32.partialorder %v2290, 0.0
      %vm2491 = vcmp.lt.f32.partialorder %v2291, 0.0
      %vm2492 = vcmp.lt.f32.partialorder %v2292, 0.0
      %vm2493 = vcmp.lt.f32.partialorder %v2293, 0.0
      %vm2494 = vcmp.lt.f32.partialorder %v2294, 0.0
      %vm2495 = vcmp.lt.f32.partialorder %v2295, 0.0
      %vm2496 = vcmp.lt.f32.partialorder %v2296, 0.0
      %vm2497 = vcmp.lt.f32.partialorder %v2297, 0.0
      %vm2498 = vcmp.lt.f32.partialorder %v2298, 0.0
      %vm2499 = vcmp.lt.f32.partialorder %v2299, 0.0
      %v2500 = vsub.f32 0.0, %v2480
      %v2501 = vsub.f32 0.0, %v2481
      %v2502 = vsub.f32 0.0, %v2482
      %v2503 = vsub.f32 0.0, %v2483
      %v2504 = vsub.f32 0.0, %v2484
      %v2505 = vsub.f32 0.0, %v2485
      %v2506 = vsub.f32 0.0, %v2486
      %v2507 = vsub.f32 0.0, %v2487
      %v2508 = vsub.f32 0.0, %v2488
      %v2509 = vsub.f32 0.0, %v2489
      %v2510 = vsel %vm2490, %v2500, %v2480
      %v2511 = vsel %vm2491, %v2501, %v2481
      %v2512 = vsel %vm2492, %v2502, %v2482
      %v2513 = vsel %vm2493, %v2503, %v2483
      %v2514 = vsel %vm2494, %v2504, %v2484
      %v2515 = vsel %vm2495, %v2505, %v2485
      %v2516 = vsel %vm2496, %v2506, %v2486
      %v2517 = vsel %vm2497, %v2507, %v2487
      %v2518 = vsel %vm2498, %v2508, %v2488
      %v2519 = vsel %vm2499, %v2509, %v2489
      %v2520 = vadd.f32 %v2510, 1.0
      %v2521 = vadd.f32 %v2511, 1.0
      %v2522 = vadd.f32 %v2512, 1.0
      %v2523 = vadd.f32 %v2513, 1.0
      %v2524 = vadd.f32 %v2514, 1.0
      %v2525 = vadd.f32 %v2515, 1.0
      %v2526 = vadd.f32 %v2516, 1.0
      %v2527 = vadd.f32 %v2517, 1.0
      %v2528 = vadd.f32 %v2518, 1.0
      %v2529 = vadd.f32 %v2519, 1.0
      %v2530 = vmul.f32 %v2280, %v2520
      %v2531 = vmul.f32 %v2281, %v2521
      %v2532 = vmul.f32 %v2282, %v2522
      %v2533 = vmul.f32 %v2283, %v2523
      %v2534 = vmul.f32 %v2284, %v2524
      %v2535 = vmul.f32 %v2285, %v2525
      %v2536 = vmul.f32 %v2286, %v2526
      %v2537 = vmul.f32 %v2287, %v2527
      %v2538 = vmul.f32 %v2288, %v2528
      %v2539 = vmul.f32 %v2289, %v2529
      %v2550 = vrot.slane %v2027, 4
      %v2551 = vrot.slane %v2028, 4
      %v2552 = vrot.slane %v2029, 4
      %v2553 = vrot.slane %v2030, 4
      %v2554 = vrot.slane %v2031, 4
      %v2555 = vrot.slane %v2032, 4
      %v2556 = vrot.slane %v2033, 4
      %v2557 = vrot.slane %v2034, 4
      %v2558 = vrot.slane %v2035, 4
      %v2559 = vrot.slane %v2036, 4
      %2560 = vrot.lane.b32.xlu0 %v2550, 127
      %v2561 = vpop.permute.xlu0 %2560
      %2562 = vrot.lane.b32.xlu0 %v2551, 127
      %v2563 = vpop.permute.xlu0 %2562
      %2564 = vrot.lane.b32.xlu0 %v2552, 127
      %v2565 = vpop.permute.xlu0 %2564
      %2566 = vrot.lane.b32.xlu0 %v2553, 127
      %v2567 = vpop.permute.xlu0 %2566
      %2568 = vrot.lane.b32.xlu0 %v2554, 127
      %v2569 = vpop.permute.xlu0 %2568
      %2570 = vrot.lane.b32.xlu0 %v2555, 127
      %v2571 = vpop.permute.xlu0 %2570
      %2572 = vrot.lane.b32.xlu0 %v2556, 127
      %v2573 = vpop.permute.xlu0 %2572
      %2574 = vrot.lane.b32.xlu0 %v2557, 127
      %v2575 = vpop.permute.xlu0 %2574
      %2576 = vrot.lane.b32.xlu0 %v2558, 127
      %v2577 = vpop.permute.xlu0 %2576
      %2578 = vrot.lane.b32.xlu0 %v2559, 127
      %v2579 = vpop.permute.xlu0 %2578
      %v2580 = vsel %vm845, %v824, %v2561
      %v2581 = vsel %vm845, %v2561, %v2563
      %v2582 = vsel %vm845, %v2563, %v2565
      %v2583 = vsel %vm845, %v2565, %v2567
      %v2584 = vsel %vm845, %v2567, %v2569
      %v2585 = vsel %vm845, %v2569, %v2571
      %v2586 = vsel %vm845, %v2571, %v2573
      %v2587 = vsel %vm845, %v2573, %v2575
      %v2588 = vsel %vm845, %v2575, %v2577
      %v2589 = vsel %vm845, %v2577, %v2579
      %2590 = vrot.lane.b32.xlu0 %v2027, 126
      %v2591 = vpop.permute.xlu0 %2590
      %2592 = vrot.lane.b32.xlu0 %v2028, 126
      %v2593 = vpop.permute.xlu0 %2592
      %2594 = vrot.lane.b32.xlu0 %v2029, 126
      %v2595 = vpop.permute.xlu0 %2594
      %2596 = vrot.lane.b32.xlu0 %v2030, 126
      %v2597 = vpop.permute.xlu0 %2596
      %2598 = vrot.lane.b32.xlu0 %v2031, 126
      %v2599 = vpop.permute.xlu0 %2598
      %2600 = vrot.lane.b32.xlu0 %v2032, 126
      %v2601 = vpop.permute.xlu0 %2600
      %2602 = vrot.lane.b32.xlu0 %v2033, 126
      %v2603 = vpop.permute.xlu0 %2602
      %2604 = vrot.lane.b32.xlu0 %v2034, 126
      %v2605 = vpop.permute.xlu0 %2604
      %2606 = vrot.lane.b32.xlu0 %v2035, 126
      %v2607 = vpop.permute.xlu0 %2606
      %2608 = vrot.lane.b32.xlu0 %v2036, 126
      %v2609 = vpop.permute.xlu0 %2608
      %v2610 = vsel %vm878, %v857, %v2591
      %v2611 = vsel %vm878, %v2591, %v2593
      %v2612 = vsel %vm878, %v2593, %v2595
      %v2613 = vsel %vm878, %v2595, %v2597
      %v2614 = vsel %vm878, %v2597, %v2599
      %v2615 = vsel %vm878, %v2599, %v2601
      %v2616 = vsel %vm878, %v2601, %v2603
      %v2617 = vsel %vm878, %v2603, %v2605
      %v2618 = vsel %vm878, %v2605, %v2607
      %v2619 = vsel %vm878, %v2607, %v2609
      %2620 = vrot.lane.b32.xlu0 %v2550, 94
      %v2621 = vpop.permute.xlu0 %2620
      %2622 = vrot.lane.b32.xlu0 %v2551, 94
      %v2623 = vpop.permute.xlu0 %2622
      %2624 = vrot.lane.b32.xlu0 %v2552, 94
      %v2625 = vpop.permute.xlu0 %2624
      %2626 = vrot.lane.b32.xlu0 %v2553, 94
      %v2627 = vpop.permute.xlu0 %2626
      %2628 = vrot.lane.b32.xlu0 %v2554, 94
      %v2629 = vpop.permute.xlu0 %2628
      %2630 = vrot.lane.b32.xlu0 %v2555, 94
      %v2631 = vpop.permute.xlu0 %2630
      %2632 = vrot.lane.b32.xlu0 %v2556, 94
      %v2633 = vpop.permute.xlu0 %2632
      %2634 = vrot.lane.b32.xlu0 %v2557, 94
      %v2635 = vpop.permute.xlu0 %2634
      %2636 = vrot.lane.b32.xlu0 %v2558, 94
      %v2637 = vpop.permute.xlu0 %2636
      %2638 = vrot.lane.b32.xlu0 %v2559, 94
      %v2639 = vpop.permute.xlu0 %2638
      %v2640 = vsel %vm911, %v890, %v2621
      %v2641 = vsel %vm911, %v2621, %v2623
      %v2642 = vsel %vm911, %v2623, %v2625
      %v2643 = vsel %vm911, %v2625, %v2627
      %v2644 = vsel %vm911, %v2627, %v2629
      %v2645 = vsel %vm911, %v2629, %v2631
      %v2646 = vsel %vm911, %v2631, %v2633
      %v2647 = vsel %vm911, %v2633, %v2635
      %v2648 = vsel %vm911, %v2635, %v2637
      %v2649 = vsel %vm911, %v2637, %v2639
      %2650 = vrot.lane.b32.xlu0 %v2027, 93
      %v2651 = vpop.permute.xlu0 %2650
      %2652 = vrot.lane.b32.xlu0 %v2028, 93
      %v2653 = vpop.permute.xlu0 %2652
      %2654 = vrot.lane.b32.xlu0 %v2029, 93
      %v2655 = vpop.permute.xlu0 %2654
      %2656 = vrot.lane.b32.xlu0 %v2030, 93
      %v2657 = vpop.permute.xlu0 %2656
      %2658 = vrot.lane.b32.xlu0 %v2031, 93
      %v2659 = vpop.permute.xlu0 %2658
      %2660 = vrot.lane.b32.xlu0 %v2032, 93
      %v2661 = vpop.permute.xlu0 %2660
      %2662 = vrot.lane.b32.xlu0 %v2033, 93
      %v2663 = vpop.permute.xlu0 %2662
      %2664 = vrot.lane.b32.xlu0 %v2034, 93
      %v2665 = vpop.permute.xlu0 %2664
      %2666 = vrot.lane.b32.xlu0 %v2035, 93
      %v2667 = vpop.permute.xlu0 %2666
      %2668 = vrot.lane.b32.xlu0 %v2036, 93
      %v2669 = vpop.permute.xlu0 %2668
      %v2670 = vsel %vm942, %v2651, %v2653
      %v2671 = vsel %vm942, %v2653, %v2655
      %v2672 = vsel %vm942, %v2655, %v2657
      %v2673 = vsel %vm942, %v2657, %v2659
      %v2674 = vsel %vm942, %v2659, %v2661
      %v2675 = vsel %vm942, %v2661, %v2663
      %v2676 = vsel %vm942, %v2663, %v2665
      %v2677 = vsel %vm942, %v2665, %v2667
      %v2678 = vsel %vm942, %v2667, %v2669
      %2679 = vrot.lane.b32.xlu0 %v2550, 92
      %v2680 = vpop.permute.xlu0 %2679
      %2681 = vrot.lane.b32.xlu0 %v2551, 92
      %v2682 = vpop.permute.xlu0 %2681
      %2683 = vrot.lane.b32.xlu0 %v2552, 92
      %v2684 = vpop.permute.xlu0 %2683
      %2685 = vrot.lane.b32.xlu0 %v2553, 92
      %v2686 = vpop.permute.xlu0 %2685
      %2687 = vrot.lane.b32.xlu0 %v2554, 92
      %v2688 = vpop.permute.xlu0 %2687
      %2689 = vrot.lane.b32.xlu0 %v2555, 92
      %v2690 = vpop.permute.xlu0 %2689
      %2691 = vrot.lane.b32.xlu0 %v2556, 92
      %v2692 = vpop.permute.xlu0 %2691
      %2693 = vrot.lane.b32.xlu0 %v2557, 92
      %v2694 = vpop.permute.xlu0 %2693
      %2695 = vrot.lane.b32.xlu0 %v2558, 92
      %v2696 = vpop.permute.xlu0 %2695
      %2697 = vrot.lane.b32.xlu0 %v2559, 92
      %v2698 = vpop.permute.xlu0 %2697
      %v2699 = vsel %vm974, %v2680, %v2682
      %v2700 = vsel %vm974, %v2682, %v2684
      %v2701 = vsel %vm974, %v2684, %v2686
      %v2702 = vsel %vm974, %v2686, %v2688
      %v2703 = vsel %vm974, %v2688, %v2690
      %v2704 = vsel %vm974, %v2690, %v2692
      %v2705 = vsel %vm974, %v2692, %v2694
      %v2706 = vsel %vm974, %v2694, %v2696
      %v2707 = vsel %vm974, %v2696, %v2698
      %v2708 = vsel %vm974, %v2698, %v973
      %2709 = vrot.lane.b32.xlu0 %v2027, 60
      %v2710 = vpop.permute.xlu0 %2709
      %2711 = vrot.lane.b32.xlu0 %v2028, 60
      %v2712 = vpop.permute.xlu0 %2711
      %2713 = vrot.lane.b32.xlu0 %v2029, 60
      %v2714 = vpop.permute.xlu0 %2713
      %2715 = vrot.lane.b32.xlu0 %v2030, 60
      %v2716 = vpop.permute.xlu0 %2715
      %2717 = vrot.lane.b32.xlu0 %v2031, 60
      %v2718 = vpop.permute.xlu0 %2717
      %2719 = vrot.lane.b32.xlu0 %v2032, 60
      %v2720 = vpop.permute.xlu0 %2719
      %2721 = vrot.lane.b32.xlu0 %v2033, 60
      %v2722 = vpop.permute.xlu0 %2721
      %2723 = vrot.lane.b32.xlu0 %v2034, 60
      %v2724 = vpop.permute.xlu0 %2723
      %2725 = vrot.lane.b32.xlu0 %v2035, 60
      %v2726 = vpop.permute.xlu0 %2725
      %2727 = vrot.lane.b32.xlu0 %v2036, 60
      %v2728 = vpop.permute.xlu0 %2727
      %v2729 = vsel %vm1007, %v2710, %v2712
      %v2730 = vsel %vm1007, %v2712, %v2714
      %v2731 = vsel %vm1007, %v2714, %v2716
      %v2732 = vsel %vm1007, %v2716, %v2718
      %v2733 = vsel %vm1007, %v2718, %v2720
      %v2734 = vsel %vm1007, %v2720, %v2722
      %v2735 = vsel %vm1007, %v2722, %v2724
      %v2736 = vsel %vm1007, %v2724, %v2726
      %v2737 = vsel %vm1007, %v2726, %v2728
      %v2738 = vsel %vm1007, %v2728, %v1006
      %2739 = vrot.lane.b32.xlu0 %v2550, 59
      %v2740 = vpop.permute.xlu0 %2739
      %2741 = vrot.lane.b32.xlu0 %v2551, 59
      %v2742 = vpop.permute.xlu0 %2741
      %2743 = vrot.lane.b32.xlu0 %v2552, 59
      %v2744 = vpop.permute.xlu0 %2743
      %2745 = vrot.lane.b32.xlu0 %v2553, 59
      %v2746 = vpop.permute.xlu0 %2745
      %2747 = vrot.lane.b32.xlu0 %v2554, 59
      %v2748 = vpop.permute.xlu0 %2747
      %2749 = vrot.lane.b32.xlu0 %v2555, 59
      %v2750 = vpop.permute.xlu0 %2749
      %2751 = vrot.lane.b32.xlu0 %v2556, 59
      %v2752 = vpop.permute.xlu0 %2751
      %2753 = vrot.lane.b32.xlu0 %v2557, 59
      %v2754 = vpop.permute.xlu0 %2753
      %2755 = vrot.lane.b32.xlu0 %v2558, 59
      %v2756 = vpop.permute.xlu0 %2755
      %2757 = vrot.lane.b32.xlu0 %v2559, 59
      %v2758 = vpop.permute.xlu0 %2757
      %v2759 = vsel %vm1040, %v2740, %v2742
      %v2760 = vsel %vm1040, %v2742, %v2744
      %v2761 = vsel %vm1040, %v2744, %v2746
      %v2762 = vsel %vm1040, %v2746, %v2748
      %v2763 = vsel %vm1040, %v2748, %v2750
      %v2764 = vsel %vm1040, %v2750, %v2752
      %v2765 = vsel %vm1040, %v2752, %v2754
      %v2766 = vsel %vm1040, %v2754, %v2756
      %v2767 = vsel %vm1040, %v2756, %v2758
      %v2768 = vsel %vm1040, %v2758, %v1039
      %2769 = vrot.lane.b32.xlu0 %v2027, 58
      %v2770 = vpop.permute.xlu0 %2769
      %2771 = vrot.lane.b32.xlu0 %v2028, 58
      %v2772 = vpop.permute.xlu0 %2771
      %2773 = vrot.lane.b32.xlu0 %v2029, 58
      %v2774 = vpop.permute.xlu0 %2773
      %2775 = vrot.lane.b32.xlu0 %v2030, 58
      %v2776 = vpop.permute.xlu0 %2775
      %2777 = vrot.lane.b32.xlu0 %v2031, 58
      %v2778 = vpop.permute.xlu0 %2777
      %2779 = vrot.lane.b32.xlu0 %v2032, 58
      %v2780 = vpop.permute.xlu0 %2779
      %2781 = vrot.lane.b32.xlu0 %v2033, 58
      %v2782 = vpop.permute.xlu0 %2781
      %2783 = vrot.lane.b32.xlu0 %v2034, 58
      %v2784 = vpop.permute.xlu0 %2783
      %2785 = vrot.lane.b32.xlu0 %v2035, 58
      %v2786 = vpop.permute.xlu0 %2785
      %2787 = vrot.lane.b32.xlu0 %v2036, 58
      %v2788 = vpop.permute.xlu0 %2787
      %v2789 = vsel %vm1073, %v2770, %v2772
      %v2790 = vsel %vm1073, %v2772, %v2774
      %v2791 = vsel %vm1073, %v2774, %v2776
      %v2792 = vsel %vm1073, %v2776, %v2778
      %v2793 = vsel %vm1073, %v2778, %v2780
      %v2794 = vsel %vm1073, %v2780, %v2782
      %v2795 = vsel %vm1073, %v2782, %v2784
      %v2796 = vsel %vm1073, %v2784, %v2786
      %v2797 = vsel %vm1073, %v2786, %v2788
      %v2798 = vsel %vm1073, %v2788, %v1072
      %v2800 = vsel %vm305, 0, %v2580
      %v2802 = vsel %vm305, %v2027, %v2581
      %v2804 = vsel %vm305, %v2028, %v2582
      %v2806 = vsel %vm305, %v2029, %v2583
      %v2808 = vsel %vm305, %v2030, %v2584
      %v2810 = vsel %vm305, %v2031, %v2585
      %v2812 = vsel %vm305, %v2032, %v2586
      %v2814 = vsel %vm305, %v2033, %v2587
      %v2816 = vsel %vm305, %v2034, %v2588
      %v2818 = vsel %vm305, %v2035, %v2589
      %v2820 = vsel %vm305, %v2036, %v2579
      %v2823 = vsel %vm305, %v2610, %v2640
      %v2826 = vsel %vm305, %v2611, %v2641
      %v2829 = vsel %vm305, %v2612, %v2642
      %v2832 = vsel %vm305, %v2613, %v2643
      %v2835 = vsel %vm305, %v2614, %v2644
      %v2838 = vsel %vm305, %v2615, %v2645
      %v2841 = vsel %vm305, %v2616, %v2646
      %v2844 = vsel %vm305, %v2617, %v2647
      %v2847 = vsel %vm305, %v2618, %v2648
      %v2850 = vsel %vm305, %v2619, %v2649
      %v2853 = vsel %vm305, %v2609, %v2639
      %v2856 = vsel %vm305, %v2651, %v2680
      %v2859 = vsel %vm305, %v2670, %v2699
      %v2862 = vsel %vm305, %v2671, %v2700
      %v2865 = vsel %vm305, %v2672, %v2701
      %v2868 = vsel %vm305, %v2673, %v2702
      %v2871 = vsel %vm305, %v2674, %v2703
      %v2874 = vsel %vm305, %v2675, %v2704
      %v2877 = vsel %vm305, %v2676, %v2705
      %v2880 = vsel %vm305, %v2677, %v2706
      %v2883 = vsel %vm305, %v2678, %v2707
      %v2886 = vsel %vm305, %v2669, %v2708
      %v2889 = vsel %vm305, %v2710, %v2740
      %v2892 = vsel %vm305, %v2729, %v2759
      %v2895 = vsel %vm305, %v2730, %v2760
      %v2898 = vsel %vm305, %v2731, %v2761
      %v2901 = vsel %vm305, %v2732, %v2762
      %v2904 = vsel %vm305, %v2733, %v2763
      %v2907 = vsel %vm305, %v2734, %v2764
      %v2910 = vsel %vm305, %v2735, %v2765
      %v2913 = vsel %vm305, %v2736, %v2766
      %v2916 = vsel %vm305, %v2737, %v2767
      %v2919 = vsel %vm305, %v2738, %v2768
      %v2920 = vpack.c.bf16 %v259, %v259
      %2921 = vset.pattern.permute.xlu0 3
      %2922 = vperm.xlu0 %2921, %v271
      %v2923 = vpop.permute.xlu0 %2922
      %2969 = vrot.lane.b32.xlu0 %v2800, 35
      %v2970 = vpop.permute.xlu0 %2969
      %2971 = vrot.lane.b32.xlu0 %v2802, 35
      %v2972 = vpop.permute.xlu0 %2971
      %2973 = vrot.lane.b32.xlu0 %v2804, 35
      %v2974 = vpop.permute.xlu0 %2973
      %2975 = vrot.lane.b32.xlu0 %v2806, 35
      %v2976 = vpop.permute.xlu0 %2975
      %2977 = vrot.lane.b32.xlu0 %v2808, 35
      %v2978 = vpop.permute.xlu0 %2977
      %2979 = vrot.lane.b32.xlu0 %v2810, 35
      %v2980 = vpop.permute.xlu0 %2979
      %2981 = vrot.lane.b32.xlu0 %v2812, 35
      %v2982 = vpop.permute.xlu0 %2981
      %2983 = vrot.lane.b32.xlu0 %v2814, 35
      %v2984 = vpop.permute.xlu0 %2983
      %2985 = vrot.lane.b32.xlu0 %v2816, 35
      %v2986 = vpop.permute.xlu0 %2985
      %2987 = vrot.lane.b32.xlu0 %v2818, 35
      %v2988 = vpop.permute.xlu0 %2987
      %2989 = vrot.lane.b32.xlu0 %v2820, 35
      %v2990 = vpop.permute.xlu0 %2989
      %2991 = vrot.lane.b32.xlu0 %v2823, 35
      %v2992 = vpop.permute.xlu0 %2991
      %2993 = vrot.lane.b32.xlu0 %v2826, 35
      %v2994 = vpop.permute.xlu0 %2993
      %2995 = vrot.lane.b32.xlu0 %v2829, 35
      %v2996 = vpop.permute.xlu0 %2995
      %2997 = vrot.lane.b32.xlu0 %v2832, 35
      %v2998 = vpop.permute.xlu0 %2997
      %2999 = vrot.lane.b32.xlu0 %v2835, 35
      %v3000 = vpop.permute.xlu0 %2999
      %3001 = vrot.lane.b32.xlu0 %v2838, 35
      %v3002 = vpop.permute.xlu0 %3001
      %3003 = vrot.lane.b32.xlu0 %v2841, 35
      %v3004 = vpop.permute.xlu0 %3003
      %3005 = vrot.lane.b32.xlu0 %v2844, 35
      %v3006 = vpop.permute.xlu0 %3005
      %3007 = vrot.lane.b32.xlu0 %v2847, 35
      %v3008 = vpop.permute.xlu0 %3007
      %3009 = vrot.lane.b32.xlu0 %v2850, 35
      %v3010 = vpop.permute.xlu0 %3009
      %3011 = vrot.lane.b32.xlu0 %v2853, 35
      %v3012 = vpop.permute.xlu0 %3011
      %3013 = vrot.lane.b32.xlu0 %v2856, 35
      %v3014 = vpop.permute.xlu0 %3013
      %3015 = vrot.lane.b32.xlu0 %v2859, 35
      %v3016 = vpop.permute.xlu0 %3015
      %3017 = vrot.lane.b32.xlu0 %v2862, 35
      %v3018 = vpop.permute.xlu0 %3017
      %3019 = vrot.lane.b32.xlu0 %v2865, 35
      %v3020 = vpop.permute.xlu0 %3019
      %3021 = vrot.lane.b32.xlu0 %v2868, 35
      %v3022 = vpop.permute.xlu0 %3021
      %3023 = vrot.lane.b32.xlu0 %v2871, 35
      %v3024 = vpop.permute.xlu0 %3023
      %3025 = vrot.lane.b32.xlu0 %v2874, 35
      %v3026 = vpop.permute.xlu0 %3025
      %3027 = vrot.lane.b32.xlu0 %v2877, 35
      %v3028 = vpop.permute.xlu0 %3027
      %3029 = vrot.lane.b32.xlu0 %v2880, 35
      %v3030 = vpop.permute.xlu0 %3029
      %3031 = vrot.lane.b32.xlu0 %v2883, 35
      %v3032 = vpop.permute.xlu0 %3031
      %3033 = vrot.lane.b32.xlu0 %v2886, 35
      %v3034 = vpop.permute.xlu0 %3033
      %3035 = vrot.lane.b32.xlu0 %v2889, 35
      %v3036 = vpop.permute.xlu0 %3035
      %3037 = vrot.lane.b32.xlu0 %v2892, 35
      %v3038 = vpop.permute.xlu0 %3037
      %3039 = vrot.lane.b32.xlu0 %v2895, 35
      %v3040 = vpop.permute.xlu0 %3039
      %3041 = vrot.lane.b32.xlu0 %v2898, 35
      %v3042 = vpop.permute.xlu0 %3041
      %3043 = vrot.lane.b32.xlu0 %v2901, 35
      %v3044 = vpop.permute.xlu0 %3043
      %3045 = vrot.lane.b32.xlu0 %v2904, 35
      %v3046 = vpop.permute.xlu0 %3045
      %3047 = vrot.lane.b32.xlu0 %v2907, 35
      %v3048 = vpop.permute.xlu0 %3047
      %3049 = vrot.lane.b32.xlu0 %v2910, 35
      %v3050 = vpop.permute.xlu0 %3049
      %3051 = vrot.lane.b32.xlu0 %v2913, 35
      %v3052 = vpop.permute.xlu0 %3051
      %3053 = vrot.lane.b32.xlu0 %v2916, 35
      %v3054 = vpop.permute.xlu0 %3053
      %3055 = vrot.lane.b32.xlu0 %v2919, 35
      %v3056 = vpop.permute.xlu0 %3055
      %3057 = vrot.lane.b32.xlu0 %v2770, 35
      %v3058 = vpop.permute.xlu0 %3057
      %3059 = vrot.lane.b32.xlu0 %v2789, 35
      %v3060 = vpop.permute.xlu0 %3059
      %3061 = vrot.lane.b32.xlu0 %v2790, 35
      %v3062 = vpop.permute.xlu0 %3061
      %3063 = vrot.lane.b32.xlu0 %v2791, 35
      %v3064 = vpop.permute.xlu0 %3063
      %3065 = vrot.lane.b32.xlu0 %v2792, 35
      %v3066 = vpop.permute.xlu0 %3065
      %3067 = vrot.lane.b32.xlu0 %v2793, 35
      %v3068 = vpop.permute.xlu0 %3067
      %3069 = vrot.lane.b32.xlu0 %v2794, 35
      %v3070 = vpop.permute.xlu0 %3069
      %3071 = vrot.lane.b32.xlu0 %v2795, 35
      %v3072 = vpop.permute.xlu0 %3071
      %3073 = vrot.lane.b32.xlu0 %v2796, 35
      %v3074 = vpop.permute.xlu0 %3073
      %3075 = vrot.lane.b32.xlu0 %v2797, 35
      %v3076 = vpop.permute.xlu0 %3075
      %3077 = vrot.lane.b32.xlu0 %v2798, 35
      %v3078 = vpop.permute.xlu0 %3077
      %v3079 = vsel %vm1365, %v2970, %v2972
      %v3080 = vsel %vm1365, %v2972, %v2974
      %v3081 = vsel %vm1365, %v2974, %v2976
      %v3082 = vsel %vm1365, %v2976, %v2978
      %v3083 = vsel %vm1365, %v2978, %v2980
      %v3084 = vsel %vm1365, %v2980, %v2982
      %v3085 = vsel %vm1365, %v2982, %v2984
      %v3086 = vsel %vm1365, %v2984, %v2986
      %v3087 = vsel %vm1365, %v2986, %v2988
      %v3088 = vsel %vm1365, %v2988, %v2990
      %v3089 = vsel %vm1365, %v2992, %v2994
      %v3090 = vsel %vm1365, %v2994, %v2996
      %v3091 = vsel %vm1365, %v2996, %v2998
      %v3092 = vsel %vm1365, %v2998, %v3000
      %v3093 = vsel %vm1365, %v3000, %v3002
      %v3094 = vsel %vm1365, %v3002, %v3004
      %v3095 = vsel %vm1365, %v3004, %v3006
      %v3096 = vsel %vm1365, %v3006, %v3008
      %v3097 = vsel %vm1365, %v3008, %v3010
      %v3098 = vsel %vm1365, %v3010, %v3012
      %v3099 = vsel %vm1365, %v3014, %v3016
      %v3100 = vsel %vm1365, %v3016, %v3018
      %v3101 = vsel %vm1365, %v3018, %v3020
      %v3102 = vsel %vm1365, %v3020, %v3022
      %v3103 = vsel %vm1365, %v3022, %v3024
      %v3104 = vsel %vm1365, %v3024, %v3026
      %v3105 = vsel %vm1365, %v3026, %v3028
      %v3106 = vsel %vm1365, %v3028, %v3030
      %v3107 = vsel %vm1365, %v3030, %v3032
      %v3108 = vsel %vm1365, %v3032, %v3034
      %v3109 = vsel %vm1365, %v3036, %v3038
      %v3110 = vsel %vm1365, %v3038, %v3040
      %v3111 = vsel %vm1365, %v3040, %v3042
      %v3112 = vsel %vm1365, %v3042, %v3044
      %v3113 = vsel %vm1365, %v3044, %v3046
      %v3114 = vsel %vm1365, %v3046, %v3048
      %v3115 = vsel %vm1365, %v3048, %v3050
      %v3116 = vsel %vm1365, %v3050, %v3052
      %v3117 = vsel %vm1365, %v3052, %v3054
      %v3118 = vsel %vm1365, %v3054, %v3056
      %v3119 = vsel %vm1365, %v3058, %v3060
      %v3120 = vsel %vm1365, %v3060, %v3062
      %v3121 = vsel %vm1365, %v3062, %v3064
      %v3122 = vsel %vm1365, %v3064, %v3066
      %v3123 = vsel %vm1365, %v3066, %v3068
      %v3124 = vsel %vm1365, %v3068, %v3070
      %v3125 = vsel %vm1365, %v3070, %v3072
      %v3126 = vsel %vm1365, %v3072, %v3074
      %v3127 = vsel %vm1365, %v3074, %v3076
      %v3128 = vsel %vm1365, %v3076, %v3078
      %v3170 = vsel %vm1456, %v2920, 0
      %v3173 = vsel %vm305, %v3119, 0
      %v3176 = vsel %vm305, %v3120, 0
      %v3179 = vsel %vm305, %v3121, 0
      %v3182 = vsel %vm305, %v3122, 0
      %v3185 = vsel %vm305, %v3123, 0
      %v3188 = vsel %vm305, %v3124, 0
      %v3191 = vsel %vm305, %v3125, 0
      %v3194 = vsel %vm305, %v3126, 0
      %v3197 = vsel %vm305, %v3127, 0
      %v3200 = vsel %vm305, %v3128, 0
      %3202 = vmatprep.subr.bf16.mxu0 0
      %3203 = vmatpush1.bf16.msra.mxu0 0
      %3204 = vmatprep.subr.bf16.mxu0 0
      %3205 = vmatpush1.bf16.msra.mxu0 0
      %3206 = vmatprep.subr.bf16.mxu0 0
      %3207 = vmatpush1.bf16.msra.mxu0 0
      %3208 = vmatprep.subr.bf16.mxu0 %v3176
      %3209 = vmatpush1.bf16.msra.mxu0 %v3173
      %3210 = vmatprep.subr.bf16.mxu0 %v3110
      %3211 = vmatpush1.bf16.msra.mxu0 %v3109
      %3212 = vmatprep.subr.bf16.mxu0 %v3100
      %3213 = vmatpush1.bf16.msra.mxu0 %v3099
      %3214 = vmatprep.subr.bf16.mxu0 %v3090
      %3215 = vmatpush1.bf16.msra.mxu0 %v3089
      %3216 = vmatprep.subr.bf16.mxu0 %v3080
      %3217 = vmatpush1.bf16.msra.mxu0 %v3079
      %3218 = vmatprep.subr.bf16.mxu0 0
      %3219 = vmatpush2.bf16.msra.mxu0 0
      %3220 = vmatprep.subr.bf16.mxu0 0
      %3221 = vmatpush2.bf16.msra.mxu0 0
      %3222 = vmatprep.subr.bf16.mxu0 0
      %3223 = vmatpush2.bf16.msra.mxu0 0
      %3224 = vmatprep.subr.bf16.mxu0 0
      %3225 = vmatpush2.bf16.msra.mxu0 0
      %3226 = vmatprep.subr.bf16.mxu0 0
      %3227 = vmatpush2.bf16.msra.mxu0 0
      %3228 = vmatprep.subr.bf16.mxu0 0
      %3229 = vmatpush2.bf16.msra.mxu0 0
      %3230 = vmatprep.subr.bf16.mxu0 0
      %3231 = vmatpush2.bf16.msra.mxu0 0
      %3232 = vmatprep.subr.bf16.mxu0 0
      %3233 = vmatpush2.bf16.msra.mxu0 0
      %3234 = vmatprep.mubr.bf16.mxu0 0
      %3235 = vmatmul.mubr.bf16.gmra.mxu0 %v3170
      %v3236 = vpop.f32.mrf.mxu0
      %v3237 = vadd.f32 %v2923, %v3236
      %v3238 = vpop.f32.mrf.mxu0
      %v3239 = vadd.f32 %v2923, %v3238
      %v3240 = vpop.f32.mrf.mxu0
      %v3241 = vpop.f32.mrf.mxu0
      %3242 = vdwg.mxu0
      %3243 = vmatprep.subr.bf16.mxu0 0
      %3244 = vmatpush1.bf16.msra.mxu0 0
      %3245 = vmatprep.subr.bf16.mxu0 0
      %3246 = vmatpush1.bf16.msra.mxu0 0
      %3247 = vmatprep.subr.bf16.mxu0 0
      %3248 = vmatpush1.bf16.msra.mxu0 0
      %3249 = vmatprep.subr.bf16.mxu0 %v3182
      %3250 = vmatpush1.bf16.msra.mxu0 %v3179
      %3251 = vmatprep.subr.bf16.mxu0 %v3112
      %3252 = vmatpush1.bf16.msra.mxu0 %v3111
      %3253 = vmatprep.subr.bf16.mxu0 %v3102
      %3254 = vmatpush1.bf16.msra.mxu0 %v3101
      %3255 = vmatprep.subr.bf16.mxu0 %v3092
      %3256 = vmatpush1.bf16.msra.mxu0 %v3091
      %3257 = vmatprep.subr.bf16.mxu0 %v3082
      %3258 = vmatpush1.bf16.msra.mxu0 %v3081
      %3259 = vmatprep.subr.bf16.mxu0 0
      %3260 = vmatpush2.bf16.msra.mxu0 0
      %3261 = vmatprep.subr.bf16.mxu0 0
      %3262 = vmatpush2.bf16.msra.mxu0 0
      %3263 = vmatprep.subr.bf16.mxu0 0
      %3264 = vmatpush2.bf16.msra.mxu0 0
      %3265 = vmatprep.subr.bf16.mxu0 0
      %3266 = vmatpush2.bf16.msra.mxu0 0
      %3267 = vmatprep.subr.bf16.mxu0 0
      %3268 = vmatpush2.bf16.msra.mxu0 0
      %3269 = vmatprep.subr.bf16.mxu0 0
      %3270 = vmatpush2.bf16.msra.mxu0 0
      %3271 = vmatprep.subr.bf16.mxu0 0
      %3272 = vmatpush2.bf16.msra.mxu0 0
      %3273 = vmatprep.subr.bf16.mxu0 0
      %3274 = vmatpush2.bf16.msra.mxu0 0
      %3275 = vmatprep.mubr.bf16.mxu0 0
      %3276 = vmatmul.mubr.bf16.gmra.mxu0 %v3170
      %v3277 = vpop.f32.mrf.mxu0
      %v3278 = vadd.f32 %v2923, %v3277
      %v3279 = vpop.f32.mrf.mxu0
      %v3280 = vadd.f32 %v2923, %v3279
      %v3281 = vpop.f32.mrf.mxu0
      %v3282 = vpop.f32.mrf.mxu0
      %3283 = vdwg.mxu0
      %3284 = vmatprep.subr.bf16.mxu0 0
      %3285 = vmatpush1.bf16.msra.mxu0 0
      %3286 = vmatprep.subr.bf16.mxu0 0
      %3287 = vmatpush1.bf16.msra.mxu0 0
      %3288 = vmatprep.subr.bf16.mxu0 0
      %3289 = vmatpush1.bf16.msra.mxu0 0
      %3290 = vmatprep.subr.bf16.mxu0 %v3188
      %3291 = vmatpush1.bf16.msra.mxu0 %v3185
      %3292 = vmatprep.subr.bf16.mxu0 %v3114
      %3293 = vmatpush1.bf16.msra.mxu0 %v3113
      %3294 = vmatprep.subr.bf16.mxu0 %v3104
      %3295 = vmatpush1.bf16.msra.mxu0 %v3103
      %3296 = vmatprep.subr.bf16.mxu0 %v3094
      %3297 = vmatpush1.bf16.msra.mxu0 %v3093
      %3298 = vmatprep.subr.bf16.mxu0 %v3084
      %3299 = vmatpush1.bf16.msra.mxu0 %v3083
      %3300 = vmatprep.subr.bf16.mxu0 0
      %3301 = vmatpush2.bf16.msra.mxu0 0
      %3302 = vmatprep.subr.bf16.mxu0 0
      %3303 = vmatpush2.bf16.msra.mxu0 0
      %3304 = vmatprep.subr.bf16.mxu0 0
      %3305 = vmatpush2.bf16.msra.mxu0 0
      %3306 = vmatprep.subr.bf16.mxu0 0
      %3307 = vmatpush2.bf16.msra.mxu0 0
      %3308 = vmatprep.subr.bf16.mxu0 0
      %3309 = vmatpush2.bf16.msra.mxu0 0
      %3310 = vmatprep.subr.bf16.mxu0 0
      %3311 = vmatpush2.bf16.msra.mxu0 0
      %3312 = vmatprep.subr.bf16.mxu0 0
      %3313 = vmatpush2.bf16.msra.mxu0 0
      %3314 = vmatprep.subr.bf16.mxu0 0
      %3315 = vmatpush2.bf16.msra.mxu0 0
      %3316 = vmatprep.mubr.bf16.mxu0 0
      %3317 = vmatmul.mubr.bf16.gmra.mxu0 %v3170
      %v3318 = vpop.f32.mrf.mxu0
      %v3319 = vadd.f32 %v2923, %v3318
      %v3320 = vpop.f32.mrf.mxu0
      %v3321 = vadd.f32 %v2923, %v3320
      %v3322 = vpop.f32.mrf.mxu0
      %v3323 = vpop.f32.mrf.mxu0
      %3324 = vdwg.mxu0
      %3325 = vmatprep.subr.bf16.mxu0 0
      %3326 = vmatpush1.bf16.msra.mxu0 0
      %3327 = vmatprep.subr.bf16.mxu0 0
      %3328 = vmatpush1.bf16.msra.mxu0 0
      %3329 = vmatprep.subr.bf16.mxu0 0
      %3330 = vmatpush1.bf16.msra.mxu0 0
      %3331 = vmatprep.subr.bf16.mxu0 %v3194
      %3332 = vmatpush1.bf16.msra.mxu0 %v3191
      %3333 = vmatprep.subr.bf16.mxu0 %v3116
      %3334 = vmatpush1.bf16.msra.mxu0 %v3115
      %3335 = vmatprep.subr.bf16.mxu0 %v3106
      %3336 = vmatpush1.bf16.msra.mxu0 %v3105
      %3337 = vmatprep.subr.bf16.mxu0 %v3096
      %3338 = vmatpush1.bf16.msra.mxu0 %v3095
      %3339 = vmatprep.subr.bf16.mxu0 %v3086
      %3340 = vmatpush1.bf16.msra.mxu0 %v3085
      %3341 = vmatprep.subr.bf16.mxu0 0
      %3342 = vmatpush2.bf16.msra.mxu0 0
      %3343 = vmatprep.subr.bf16.mxu0 0
      %3344 = vmatpush2.bf16.msra.mxu0 0
      %3345 = vmatprep.subr.bf16.mxu0 0
      %3346 = vmatpush2.bf16.msra.mxu0 0
      %3347 = vmatprep.subr.bf16.mxu0 0
      %3348 = vmatpush2.bf16.msra.mxu0 0
      %3349 = vmatprep.subr.bf16.mxu0 0
      %3350 = vmatpush2.bf16.msra.mxu0 0
      %3351 = vmatprep.subr.bf16.mxu0 0
      %3352 = vmatpush2.bf16.msra.mxu0 0
      %3353 = vmatprep.subr.bf16.mxu0 0
      %3354 = vmatpush2.bf16.msra.mxu0 0
      %3355 = vmatprep.subr.bf16.mxu0 0
      %3356 = vmatpush2.bf16.msra.mxu0 0
      %3357 = vmatprep.mubr.bf16.mxu0 0
      %3358 = vmatmul.mubr.bf16.gmra.mxu0 %v3170
      %v3359 = vpop.f32.mrf.mxu0
      %v3360 = vadd.f32 %v2923, %v3359
      %v3361 = vpop.f32.mrf.mxu0
      %v3362 = vadd.f32 %v2923, %v3361
      %v3363 = vpop.f32.mrf.mxu0
      %v3364 = vpop.f32.mrf.mxu0
      %3365 = vdwg.mxu0
      %3366 = vmatprep.subr.bf16.mxu0 0
      %3367 = vmatpush1.bf16.msra.mxu0 0
      %3368 = vmatprep.subr.bf16.mxu0 0
      %3369 = vmatpush1.bf16.msra.mxu0 0
      %3370 = vmatprep.subr.bf16.mxu0 0
      %3371 = vmatpush1.bf16.msra.mxu0 0
      %3372 = vmatprep.subr.bf16.mxu0 %v3200
      %3373 = vmatpush1.bf16.msra.mxu0 %v3197
      %3374 = vmatprep.subr.bf16.mxu0 %v3118
      %3375 = vmatpush1.bf16.msra.mxu0 %v3117
      %3376 = vmatprep.subr.bf16.mxu0 %v3108
      %3377 = vmatpush1.bf16.msra.mxu0 %v3107
      %3378 = vmatprep.subr.bf16.mxu0 %v3098
      %3379 = vmatpush1.bf16.msra.mxu0 %v3097
      %3380 = vmatprep.subr.bf16.mxu0 %v3088
      %3381 = vmatpush1.bf16.msra.mxu0 %v3087
      %3382 = vmatprep.subr.bf16.mxu0 0
      %3383 = vmatpush2.bf16.msra.mxu0 0
      %3384 = vmatprep.subr.bf16.mxu0 0
      %3385 = vmatpush2.bf16.msra.mxu0 0
      %3386 = vmatprep.subr.bf16.mxu0 0
      %3387 = vmatpush2.bf16.msra.mxu0 0
      %3388 = vmatprep.subr.bf16.mxu0 0
      %3389 = vmatpush2.bf16.msra.mxu0 0
      %3390 = vmatprep.subr.bf16.mxu0 0
      %3391 = vmatpush2.bf16.msra.mxu0 0
      %3392 = vmatprep.subr.bf16.mxu0 0
      %3393 = vmatpush2.bf16.msra.mxu0 0
      %3394 = vmatprep.subr.bf16.mxu0 0
      %3395 = vmatpush2.bf16.msra.mxu0 0
      %3396 = vmatprep.subr.bf16.mxu0 0
      %3397 = vmatpush2.bf16.msra.mxu0 0
      %3398 = vmatprep.mubr.bf16.mxu0 0
      %3399 = vmatmul.mubr.bf16.gmra.mxu0 %v3170
      %v3400 = vpop.f32.mrf.mxu0
      %v3401 = vadd.f32 %v2923, %v3400
      %v3402 = vpop.f32.mrf.mxu0
      %v3403 = vadd.f32 %v2923, %v3402
      %v3404 = vpop.f32.mrf.mxu0
      %v3405 = vpop.f32.mrf.mxu0
      %3406 = vdwg.mxu0
      %v3407 = vadd.f32 %v3237, %v2017
      %v3408 = vadd.f32 %v3239, %v2018
      %v3409 = vadd.f32 %v3278, %v2019
      %v3410 = vadd.f32 %v3280, %v2020
      %v3411 = vadd.f32 %v3319, %v2021
      %v3412 = vadd.f32 %v3321, %v2022
      %v3413 = vadd.f32 %v3360, %v2023
      %v3414 = vadd.f32 %v3362, %v2024
      %v3415 = vadd.f32 %v3401, %v2025
      %v3416 = vadd.f32 %v3403, %v2026
      %v3417 = vmul.f32 %v3407, 0.5
      %v3418 = vmul.f32 %v3408, 0.5
      %v3419 = vmul.f32 %v3409, 0.5
      %v3420 = vmul.f32 %v3410, 0.5
      %v3421 = vmul.f32 %v3411, 0.5
      %v3422 = vmul.f32 %v3412, 0.5
      %v3423 = vmul.f32 %v3413, 0.5
      %v3424 = vmul.f32 %v3414, 0.5
      %v3425 = vmul.f32 %v3415, 0.5
      %v3426 = vmul.f32 %v3416, 0.5
      %v3427 = vmul.f32 %v3407, 0.70710677
      %v3428 = vmul.f32 %v3408, 0.70710677
      %v3429 = vmul.f32 %v3409, 0.70710677
      %v3430 = vmul.f32 %v3410, 0.70710677
      %v3431 = vmul.f32 %v3411, 0.70710677
      %v3432 = vmul.f32 %v3412, 0.70710677
      %v3433 = vmul.f32 %v3413, 0.70710677
      %v3434 = vmul.f32 %v3414, 0.70710677
      %v3435 = vmul.f32 %v3415, 0.70710677
      %v3436 = vmul.f32 %v3416, 0.70710677
      %v3437 = vand.u32 2147483647, %v3427
      %v3438 = vand.u32 2147483647, %v3428
      %v3439 = vand.u32 2147483647, %v3429
      %v3440 = vand.u32 2147483647, %v3430
      %v3441 = vand.u32 2147483647, %v3431
      %v3442 = vand.u32 2147483647, %v3432
      %v3443 = vand.u32 2147483647, %v3433
      %v3444 = vand.u32 2147483647, %v3434
      %v3445 = vand.u32 2147483647, %v3435
      %v3446 = vand.u32 2147483647, %v3436
      %v3447 = vmul.f32 %v3437, 0.3275911
      %v3448 = vmul.f32 %v3438, 0.3275911
      %v3449 = vmul.f32 %v3439, 0.3275911
      %v3450 = vmul.f32 %v3440, 0.3275911
      %v3451 = vmul.f32 %v3441, 0.3275911
      %v3452 = vmul.f32 %v3442, 0.3275911
      %v3453 = vmul.f32 %v3443, 0.3275911
      %v3454 = vmul.f32 %v3444, 0.3275911
      %v3455 = vmul.f32 %v3445, 0.3275911
      %v3456 = vmul.f32 %v3446, 0.3275911
      %v3457 = vadd.f32 %v3447, 1.0
      %v3458 = vadd.f32 %v3448, 1.0
      %v3459 = vadd.f32 %v3449, 1.0
      %v3460 = vadd.f32 %v3450, 1.0
      %v3461 = vadd.f32 %v3451, 1.0
      %v3462 = vadd.f32 %v3452, 1.0
      %v3463 = vadd.f32 %v3453, 1.0
      %v3464 = vadd.f32 %v3454, 1.0
      %v3465 = vadd.f32 %v3455, 1.0
      %v3466 = vadd.f32 %v3456, 1.0
      %v3467 = vrcp.pop %v3457
      %v3468 = vrcp.pop %v3458
      %v3469 = vrcp.pop %v3459
      %v3470 = vrcp.pop %v3460
      %v3471 = vrcp.pop %v3461
      %v3472 = vrcp.pop %v3462
      %v3473 = vrcp.pop %v3463
      %v3474 = vrcp.pop %v3464
      %v3475 = vrcp.pop %v3465
      %v3476 = vrcp.pop %v3466
      %v3477 = vmul.f32 %v3467, 1.0614054
      %v3478 = vmul.f32 %v3468, 1.0614054
      %v3479 = vmul.f32 %v3469, 1.0614054
      %v3480 = vmul.f32 %v3470, 1.0614054
      %v3481 = vmul.f32 %v3471, 1.0614054
      %v3482 = vmul.f32 %v3472, 1.0614054
      %v3483 = vmul.f32 %v3473, 1.0614054
      %v3484 = vmul.f32 %v3474, 1.0614054
      %v3485 = vmul.f32 %v3475, 1.0614054
      %v3486 = vmul.f32 %v3476, 1.0614054
      %v3487 = vadd.f32 %v3477, -1.4531521
      %v3488 = vadd.f32 %v3478, -1.4531521
      %v3489 = vadd.f32 %v3479, -1.4531521
      %v3490 = vadd.f32 %v3480, -1.4531521
      %v3491 = vadd.f32 %v3481, -1.4531521
      %v3492 = vadd.f32 %v3482, -1.4531521
      %v3493 = vadd.f32 %v3483, -1.4531521
      %v3494 = vadd.f32 %v3484, -1.4531521
      %v3495 = vadd.f32 %v3485, -1.4531521
      %v3496 = vadd.f32 %v3486, -1.4531521
      %v3497 = vmul.f32 %v3487, %v3467
      %v3498 = vmul.f32 %v3488, %v3468
      %v3499 = vmul.f32 %v3489, %v3469
      %v3500 = vmul.f32 %v3490, %v3470
      %v3501 = vmul.f32 %v3491, %v3471
      %v3502 = vmul.f32 %v3492, %v3472
      %v3503 = vmul.f32 %v3493, %v3473
      %v3504 = vmul.f32 %v3494, %v3474
      %v3505 = vmul.f32 %v3495, %v3475
      %v3506 = vmul.f32 %v3496, %v3476
      %v3507 = vadd.f32 %v3497, 1.4214138
      %v3508 = vadd.f32 %v3498, 1.4214138
      %v3509 = vadd.f32 %v3499, 1.4214138
      %v3510 = vadd.f32 %v3500, 1.4214138
      %v3511 = vadd.f32 %v3501, 1.4214138
      %v3512 = vadd.f32 %v3502, 1.4214138
      %v3513 = vadd.f32 %v3503, 1.4214138
      %v3514 = vadd.f32 %v3504, 1.4214138
      %v3515 = vadd.f32 %v3505, 1.4214138
      %v3516 = vadd.f32 %v3506, 1.4214138
      %v3517 = vmul.f32 %v3507, %v3467
      %v3518 = vmul.f32 %v3508, %v3468
      %v3519 = vmul.f32 %v3509, %v3469
      %v3520 = vmul.f32 %v3510, %v3470
      %v3521 = vmul.f32 %v3511, %v3471
      %v3522 = vmul.f32 %v3512, %v3472
      %v3523 = vmul.f32 %v3513, %v3473
      %v3524 = vmul.f32 %v3514, %v3474
      %v3525 = vmul.f32 %v3515, %v3475
      %v3526 = vmul.f32 %v3516, %v3476
      %v3527 = vadd.f32 %v3517, -0.28449672
      %v3528 = vadd.f32 %v3518, -0.28449672
      %v3529 = vadd.f32 %v3519, -0.28449672
      %v3530 = vadd.f32 %v3520, -0.28449672
      %v3531 = vadd.f32 %v3521, -0.28449672
      %v3532 = vadd.f32 %v3522, -0.28449672
      %v3533 = vadd.f32 %v3523, -0.28449672
      %v3534 = vadd.f32 %v3524, -0.28449672
      %v3535 = vadd.f32 %v3525, -0.28449672
      %v3536 = vadd.f32 %v3526, -0.28449672
      %v3537 = vmul.f32 %v3527, %v3467
      %v3538 = vmul.f32 %v3528, %v3468
      %v3539 = vmul.f32 %v3529, %v3469
      %v3540 = vmul.f32 %v3530, %v3470
      %v3541 = vmul.f32 %v3531, %v3471
      %v3542 = vmul.f32 %v3532, %v3472
      %v3543 = vmul.f32 %v3533, %v3473
      %v3544 = vmul.f32 %v3534, %v3474
      %v3545 = vmul.f32 %v3535, %v3475
      %v3546 = vmul.f32 %v3536, %v3476
      %v3547 = vadd.f32 %v3537, 0.2548296
      %v3548 = vadd.f32 %v3538, 0.2548296
      %v3549 = vadd.f32 %v3539, 0.2548296
      %v3550 = vadd.f32 %v3540, 0.2548296
      %v3551 = vadd.f32 %v3541, 0.2548296
      %v3552 = vadd.f32 %v3542, 0.2548296
      %v3553 = vadd.f32 %v3543, 0.2548296
      %v3554 = vadd.f32 %v3544, 0.2548296
      %v3555 = vadd.f32 %v3545, 0.2548296
      %v3556 = vadd.f32 %v3546, 0.2548296
      %v3557 = vmul.f32 %v3547, %v3467
      %v3558 = vmul.f32 %v3548, %v3468
      %v3559 = vmul.f32 %v3549, %v3469
      %v3560 = vmul.f32 %v3550, %v3470
      %v3561 = vmul.f32 %v3551, %v3471
      %v3562 = vmul.f32 %v3552, %v3472
      %v3563 = vmul.f32 %v3553, %v3473
      %v3564 = vmul.f32 %v3554, %v3474
      %v3565 = vmul.f32 %v3555, %v3475
      %v3566 = vmul.f32 %v3556, %v3476
      %v3567 = vsub.f32 0.0, %v3437
      %v3568 = vsub.f32 0.0, %v3438
      %v3569 = vsub.f32 0.0, %v3439
      %v3570 = vsub.f32 0.0, %v3440
      %v3571 = vsub.f32 0.0, %v3441
      %v3572 = vsub.f32 0.0, %v3442
      %v3573 = vsub.f32 0.0, %v3443
      %v3574 = vsub.f32 0.0, %v3444
      %v3575 = vsub.f32 0.0, %v3445
      %v3576 = vsub.f32 0.0, %v3446
      %v3577 = vmul.f32 %v3567, %v3437
      %v3578 = vmul.f32 %v3568, %v3438
      %v3579 = vmul.f32 %v3569, %v3439
      %v3580 = vmul.f32 %v3570, %v3440
      %v3581 = vmul.f32 %v3571, %v3441
      %v3582 = vmul.f32 %v3572, %v3442
      %v3583 = vmul.f32 %v3573, %v3443
      %v3584 = vmul.f32 %v3574, %v3444
      %v3585 = vmul.f32 %v3575, %v3445
      %v3586 = vmul.f32 %v3576, %v3446
      %v3587 = vmul.f32 %v3577, 1.442695
      %v3588 = vpow.pop %v3587
      %v3589 = vmul.f32 %v3578, 1.442695
      %v3590 = vpow.pop %v3589
      %v3591 = vmul.f32 %v3579, 1.442695
      %v3592 = vpow.pop %v3591
      %v3593 = vmul.f32 %v3580, 1.442695
      %v3594 = vpow.pop %v3593
      %v3595 = vmul.f32 %v3581, 1.442695
      %v3596 = vpow.pop %v3595
      %v3597 = vmul.f32 %v3582, 1.442695
      %v3598 = vpow.pop %v3597
      %v3599 = vmul.f32 %v3583, 1.442695
      %v3600 = vpow.pop %v3599
      %v3601 = vmul.f32 %v3584, 1.442695
      %v3602 = vpow.pop %v3601
      %v3603 = vmul.f32 %v3585, 1.442695
      %v3604 = vpow.pop %v3603
      %v3605 = vmul.f32 %v3586, 1.442695
      %v3606 = vpow.pop %v3605
      %v3607 = vmul.f32 %v3557, %v3588
      %v3608 = vmul.f32 %v3558, %v3590
      %v3609 = vmul.f32 %v3559, %v3592
      %v3610 = vmul.f32 %v3560, %v3594
      %v3611 = vmul.f32 %v3561, %v3596
      %v3612 = vmul.f32 %v3562, %v3598
      %v3613 = vmul.f32 %v3563, %v3600
      %v3614 = vmul.f32 %v3564, %v3602
      %v3615 = vmul.f32 %v3565, %v3604
      %v3616 = vmul.f32 %v3566, %v3606
      %v3617 = vsub.f32 1.0, %v3607
      %v3618 = vsub.f32 1.0, %v3608
      %v3619 = vsub.f32 1.0, %v3609
      %v3620 = vsub.f32 1.0, %v3610
      %v3621 = vsub.f32 1.0, %v3611
      %v3622 = vsub.f32 1.0, %v3612
      %v3623 = vsub.f32 1.0, %v3613
      %v3624 = vsub.f32 1.0, %v3614
      %v3625 = vsub.f32 1.0, %v3615
      %v3626 = vsub.f32 1.0, %v3616
      %vm3627 = vcmp.lt.f32.partialorder %v3427, 0.0
      %vm3628 = vcmp.lt.f32.partialorder %v3428, 0.0
      %vm3629 = vcmp.lt.f32.partialorder %v3429, 0.0
      %vm3630 = vcmp.lt.f32.partialorder %v3430, 0.0
      %vm3631 = vcmp.lt.f32.partialorder %v3431, 0.0
      %vm3632 = vcmp.lt.f32.partialorder %v3432, 0.0
      %vm3633 = vcmp.lt.f32.partialorder %v3433, 0.0
      %vm3634 = vcmp.lt.f32.partialorder %v3434, 0.0
      %vm3635 = vcmp.lt.f32.partialorder %v3435, 0.0
      %vm3636 = vcmp.lt.f32.partialorder %v3436, 0.0
      %v3637 = vsub.f32 0.0, %v3617
      %v3638 = vsub.f32 0.0, %v3618
      %v3639 = vsub.f32 0.0, %v3619
      %v3640 = vsub.f32 0.0, %v3620
      %v3641 = vsub.f32 0.0, %v3621
      %v3642 = vsub.f32 0.0, %v3622
      %v3643 = vsub.f32 0.0, %v3623
      %v3644 = vsub.f32 0.0, %v3624
      %v3645 = vsub.f32 0.0, %v3625
      %v3646 = vsub.f32 0.0, %v3626
      %v3647 = vsel %vm3627, %v3637, %v3617
      %v3648 = vsel %vm3628, %v3638, %v3618
      %v3649 = vsel %vm3629, %v3639, %v3619
      %v3650 = vsel %vm3630, %v3640, %v3620
      %v3651 = vsel %vm3631, %v3641, %v3621
      %v3652 = vsel %vm3632, %v3642, %v3622
      %v3653 = vsel %vm3633, %v3643, %v3623
      %v3654 = vsel %vm3634, %v3644, %v3624
      %v3655 = vsel %vm3635, %v3645, %v3625
      %v3656 = vsel %vm3636, %v3646, %v3626
      %v3657 = vadd.f32 %v3647, 1.0
      %v3658 = vadd.f32 %v3648, 1.0
      %v3659 = vadd.f32 %v3649, 1.0
      %v3660 = vadd.f32 %v3650, 1.0
      %v3661 = vadd.f32 %v3651, 1.0
      %v3662 = vadd.f32 %v3652, 1.0
      %v3663 = vadd.f32 %v3653, 1.0
      %v3664 = vadd.f32 %v3654, 1.0
      %v3665 = vadd.f32 %v3655, 1.0
      %v3666 = vadd.f32 %v3656, 1.0
      %v3667 = vmul.f32 %v3417, %v3657
      %v3668 = vmul.f32 %v3418, %v3658
      %v3669 = vmul.f32 %v3419, %v3659
      %v3670 = vmul.f32 %v3420, %v3660
      %v3671 = vmul.f32 %v3421, %v3661
      %v3672 = vmul.f32 %v3422, %v3662
      %v3673 = vmul.f32 %v3423, %v3663
      %v3674 = vmul.f32 %v3424, %v3664
      %v3675 = vmul.f32 %v3425, %v3665
      %v3676 = vmul.f32 %v3426, %v3666
      %v3677 = vmul.f32 %v3667, %v1970
      %v3678 = vmul.f32 %v3668, %v1974
      %v3679 = vmul.f32 %v3669, %v1978
      %v3680 = vmul.f32 %v3670, %v1982
      %v3681 = vmul.f32 %v3671, %v1986
      %v3682 = vmul.f32 %v3672, %v1990
      %v3683 = vmul.f32 %v3673, %v1994
      %v3684 = vmul.f32 %v3674, %v1998
      %v3685 = vmul.f32 %v3675, %v2002
      %v3686 = vmul.f32 %v3676, %v2006
      %v3687 = vpack.c.bf16 %v3677, %v3677
      %v3688 = vpack.c.bf16 %v3678, %v3678
      %v3689 = vpack.c.bf16 %v3679, %v3679
      %v3690 = vpack.c.bf16 %v3680, %v3680
      %v3691 = vpack.c.bf16 %v3681, %v3681
      %v3692 = vpack.c.bf16 %v3682, %v3682
      %v3693 = vpack.c.bf16 %v3683, %v3683
      %v3694 = vpack.c.bf16 %v3684, %v3684
      %v3695 = vpack.c.bf16 %v3685, %v3685
      %v3696 = vpack.c.bf16 %v3686, %v3686
      %v3697 = vpack.c.bf16 %v260, %v260
      %3698 = vset.pattern.permute.xlu0 4
      %3699 = vperm.xlu0 %3698, %v271
      %v3700 = vpop.permute.xlu0 %3699
      %v3703 = vsel %vm301, %v3697, 0
      %v3706 = vsel %vm305, %v3687, 0
      %v3709 = vsel %vm305, %v3688, 0
      %v3712 = vsel %vm305, %v3689, 0
      %v3715 = vsel %vm305, %v3690, 0
      %v3718 = vsel %vm305, %v3691, 0
      %v3721 = vsel %vm305, %v3692, 0
      %v3724 = vsel %vm305, %v3693, 0
      %v3727 = vsel %vm305, %v3694, 0
      %v3730 = vsel %vm305, %v3695, 0
      %v3733 = vsel %vm305, %v3696, 0
      %3735 = vmatprep.subr.bf16.mxu0 0
      %3736 = vmatpush1.bf16.msra.mxu0 0
      %3737 = vmatprep.subr.bf16.mxu0 0
      %3738 = vmatpush1.bf16.msra.mxu0 0
      %3739 = vmatprep.subr.bf16.mxu0 0
      %3740 = vmatpush1.bf16.msra.mxu0 0
      %3741 = vmatprep.subr.bf16.mxu0 0
      %3742 = vmatpush1.bf16.msra.mxu0 0
      %3743 = vmatprep.subr.bf16.mxu0 0
      %3744 = vmatpush1.bf16.msra.mxu0 0
      %3745 = vmatprep.subr.bf16.mxu0 0
      %3746 = vmatpush1.bf16.msra.mxu0 0
      %3747 = vmatprep.subr.bf16.mxu0 0
      %3748 = vmatpush1.bf16.msra.mxu0 0
      %3749 = vmatprep.subr.bf16.mxu0 %v3709
      %3750 = vmatpush1.bf16.msra.mxu0 %v3706
      %3751 = vmatprep.subr.bf16.mxu0 0
      %3752 = vmatpush2.bf16.msra.mxu0 0
      %3753 = vmatprep.subr.bf16.mxu0 0
      %3754 = vmatpush2.bf16.msra.mxu0 0
      %3755 = vmatprep.subr.bf16.mxu0 0
      %3756 = vmatpush2.bf16.msra.mxu0 0
      %3757 = vmatprep.subr.bf16.mxu0 0
      %3758 = vmatpush2.bf16.msra.mxu0 0
      %3759 = vmatprep.subr.bf16.mxu0 0
      %3760 = vmatpush2.bf16.msra.mxu0 0
      %3761 = vmatprep.subr.bf16.mxu0 0
      %3762 = vmatpush2.bf16.msra.mxu0 0
      %3763 = vmatprep.subr.bf16.mxu0 0
      %3764 = vmatpush2.bf16.msra.mxu0 0
      %3765 = vmatprep.subr.bf16.mxu0 0
      %3766 = vmatpush2.bf16.msra.mxu0 0
      %3767 = vmatprep.mubr.bf16.mxu0 0
      %3768 = vmatmul.mubr.bf16.gmra.mxu0 %v3703
      %v3769 = vpop.f32.mrf.mxu0
      %v3770 = vadd.f32 %v3700, %v3769
      %v3771 = vpop.f32.mrf.mxu0
      %v3772 = vadd.f32 %v3700, %v3771
      %v3773 = vpop.f32.mrf.mxu0
      %v3774 = vpop.f32.mrf.mxu0
      %3775 = vdwg.mxu0
      %3776 = vmatprep.subr.bf16.mxu0 0
      %3777 = vmatpush1.bf16.msra.mxu0 0
      %3778 = vmatprep.subr.bf16.mxu0 0
      %3779 = vmatpush1.bf16.msra.mxu0 0
      %3780 = vmatprep.subr.bf16.mxu0 0
      %3781 = vmatpush1.bf16.msra.mxu0 0
      %3782 = vmatprep.subr.bf16.mxu0 0
      %3783 = vmatpush1.bf16.msra.mxu0 0
      %3784 = vmatprep.subr.bf16.mxu0 0
      %3785 = vmatpush1.bf16.msra.mxu0 0
      %3786 = vmatprep.subr.bf16.mxu0 0
      %3787 = vmatpush1.bf16.msra.mxu0 0
      %3788 = vmatprep.subr.bf16.mxu0 0
      %3789 = vmatpush1.bf16.msra.mxu0 0
      %3790 = vmatprep.subr.bf16.mxu0 %v3715
      %3791 = vmatpush1.bf16.msra.mxu0 %v3712
      %3792 = vmatprep.subr.bf16.mxu0 0
      %3793 = vmatpush2.bf16.msra.mxu0 0
      %3794 = vmatprep.subr.bf16.mxu0 0
      %3795 = vmatpush2.bf16.msra.mxu0 0
      %3796 = vmatprep.subr.bf16.mxu0 0
      %3797 = vmatpush2.bf16.msra.mxu0 0
      %3798 = vmatprep.subr.bf16.mxu0 0
      %3799 = vmatpush2.bf16.msra.mxu0 0
      %3800 = vmatprep.subr.bf16.mxu0 0
      %3801 = vmatpush2.bf16.msra.mxu0 0
      %3802 = vmatprep.subr.bf16.mxu0 0
      %3803 = vmatpush2.bf16.msra.mxu0 0
      %3804 = vmatprep.subr.bf16.mxu0 0
      %3805 = vmatpush2.bf16.msra.mxu0 0
      %3806 = vmatprep.subr.bf16.mxu0 0
      %3807 = vmatpush2.bf16.msra.mxu0 0
      %3808 = vmatprep.mubr.bf16.mxu0 0
      %3809 = vmatmul.mubr.bf16.gmra.mxu0 %v3703
      %v3810 = vpop.f32.mrf.mxu0
      %v3811 = vadd.f32 %v3700, %v3810
      %v3812 = vpop.f32.mrf.mxu0
      %v3813 = vadd.f32 %v3700, %v3812
      %v3814 = vpop.f32.mrf.mxu0
      %v3815 = vpop.f32.mrf.mxu0
      %3816 = vdwg.mxu0
      %3817 = vmatprep.subr.bf16.mxu0 0
      %3818 = vmatpush1.bf16.msra.mxu0 0
      %3819 = vmatprep.subr.bf16.mxu0 0
      %3820 = vmatpush1.bf16.msra.mxu0 0
      %3821 = vmatprep.subr.bf16.mxu0 0
      %3822 = vmatpush1.bf16.msra.mxu0 0
      %3823 = vmatprep.subr.bf16.mxu0 0
      %3824 = vmatpush1.bf16.msra.mxu0 0
      %3825 = vmatprep.subr.bf16.mxu0 0
      %3826 = vmatpush1.bf16.msra.mxu0 0
      %3827 = vmatprep.subr.bf16.mxu0 0
      %3828 = vmatpush1.bf16.msra.mxu0 0
      %3829 = vmatprep.subr.bf16.mxu0 0
      %3830 = vmatpush1.bf16.msra.mxu0 0
      %3831 = vmatprep.subr.bf16.mxu0 %v3721
      %3832 = vmatpush1.bf16.msra.mxu0 %v3718
      %3833 = vmatprep.subr.bf16.mxu0 0
      %3834 = vmatpush2.bf16.msra.mxu0 0
      %3835 = vmatprep.subr.bf16.mxu0 0
      %3836 = vmatpush2.bf16.msra.mxu0 0
      %3837 = vmatprep.subr.bf16.mxu0 0
      %3838 = vmatpush2.bf16.msra.mxu0 0
      %3839 = vmatprep.subr.bf16.mxu0 0
      %3840 = vmatpush2.bf16.msra.mxu0 0
      %3841 = vmatprep.subr.bf16.mxu0 0
      %3842 = vmatpush2.bf16.msra.mxu0 0
      %3843 = vmatprep.subr.bf16.mxu0 0
      %3844 = vmatpush2.bf16.msra.mxu0 0
      %3845 = vmatprep.subr.bf16.mxu0 0
      %3846 = vmatpush2.bf16.msra.mxu0 0
      %3847 = vmatprep.subr.bf16.mxu0 0
      %3848 = vmatpush2.bf16.msra.mxu0 0
      %3849 = vmatprep.mubr.bf16.mxu0 0
      %3850 = vmatmul.mubr.bf16.gmra.mxu0 %v3703
      %v3851 = vpop.f32.mrf.mxu0
      %v3852 = vadd.f32 %v3700, %v3851
      %v3853 = vpop.f32.mrf.mxu0
      %v3854 = vadd.f32 %v3700, %v3853
      %v3855 = vpop.f32.mrf.mxu0
      %v3856 = vpop.f32.mrf.mxu0
      %3857 = vdwg.mxu0
      %3858 = vmatprep.subr.bf16.mxu0 0
      %3859 = vmatpush1.bf16.msra.mxu0 0
      %3860 = vmatprep.subr.bf16.mxu0 0
      %3861 = vmatpush1.bf16.msra.mxu0 0
      %3862 = vmatprep.subr.bf16.mxu0 0
      %3863 = vmatpush1.bf16.msra.mxu0 0
      %3864 = vmatprep.subr.bf16.mxu0 0
      %3865 = vmatpush1.bf16.msra.mxu0 0
      %3866 = vmatprep.subr.bf16.mxu0 0
      %3867 = vmatpush1.bf16.msra.mxu0 0
      %3868 = vmatprep.subr.bf16.mxu0 0
      %3869 = vmatpush1.bf16.msra.mxu0 0
      %3870 = vmatprep.subr.bf16.mxu0 0
      %3871 = vmatpush1.bf16.msra.mxu0 0
      %3872 = vmatprep.subr.bf16.mxu0 %v3727
      %3873 = vmatpush1.bf16.msra.mxu0 %v3724
      %3874 = vmatprep.subr.bf16.mxu0 0
      %3875 = vmatpush2.bf16.msra.mxu0 0
      %3876 = vmatprep.subr.bf16.mxu0 0
      %3877 = vmatpush2.bf16.msra.mxu0 0
      %3878 = vmatprep.subr.bf16.mxu0 0
      %3879 = vmatpush2.bf16.msra.mxu0 0
      %3880 = vmatprep.subr.bf16.mxu0 0
      %3881 = vmatpush2.bf16.msra.mxu0 0
      %3882 = vmatprep.subr.bf16.mxu0 0
      %3883 = vmatpush2.bf16.msra.mxu0 0
      %3884 = vmatprep.subr.bf16.mxu0 0
      %3885 = vmatpush2.bf16.msra.mxu0 0
      %3886 = vmatprep.subr.bf16.mxu0 0
      %3887 = vmatpush2.bf16.msra.mxu0 0
      %3888 = vmatprep.subr.bf16.mxu0 0
      %3889 = vmatpush2.bf16.msra.mxu0 0
      %3890 = vmatprep.mubr.bf16.mxu0 0
      %3891 = vmatmul.mubr.bf16.gmra.mxu0 %v3703
      %v3892 = vpop.f32.mrf.mxu0
      %v3893 = vadd.f32 %v3700, %v3892
      %v3894 = vpop.f32.mrf.mxu0
      %v3895 = vadd.f32 %v3700, %v3894
      %v3896 = vpop.f32.mrf.mxu0
      %v3897 = vpop.f32.mrf.mxu0
      %3898 = vdwg.mxu0
      %3899 = vmatprep.subr.bf16.mxu0 0
      %3900 = vmatpush1.bf16.msra.mxu0 0
      %3901 = vmatprep.subr.bf16.mxu0 0
      %3902 = vmatpush1.bf16.msra.mxu0 0
      %3903 = vmatprep.subr.bf16.mxu0 0
      %3904 = vmatpush1.bf16.msra.mxu0 0
      %3905 = vmatprep.subr.bf16.mxu0 0
      %3906 = vmatpush1.bf16.msra.mxu0 0
      %3907 = vmatprep.subr.bf16.mxu0 0
      %3908 = vmatpush1.bf16.msra.mxu0 0
      %3909 = vmatprep.subr.bf16.mxu0 0
      %3910 = vmatpush1.bf16.msra.mxu0 0
      %3911 = vmatprep.subr.bf16.mxu0 0
      %3912 = vmatpush1.bf16.msra.mxu0 0
      %3913 = vmatprep.subr.bf16.mxu0 %v3733
      %3914 = vmatpush1.bf16.msra.mxu0 %v3730
      %3915 = vmatprep.subr.bf16.mxu0 0
      %3916 = vmatpush2.bf16.msra.mxu0 0
      %3917 = vmatprep.subr.bf16.mxu0 0
      %3918 = vmatpush2.bf16.msra.mxu0 0
      %3919 = vmatprep.subr.bf16.mxu0 0
      %3920 = vmatpush2.bf16.msra.mxu0 0
      %3921 = vmatprep.subr.bf16.mxu0 0
      %3922 = vmatpush2.bf16.msra.mxu0 0
      %3923 = vmatprep.subr.bf16.mxu0 0
      %3924 = vmatpush2.bf16.msra.mxu0 0
      %3925 = vmatprep.subr.bf16.mxu0 0
      %3926 = vmatpush2.bf16.msra.mxu0 0
      %3927 = vmatprep.subr.bf16.mxu0 0
      %3928 = vmatpush2.bf16.msra.mxu0 0
      %3929 = vmatprep.subr.bf16.mxu0 0
      %3930 = vmatpush2.bf16.msra.mxu0 0
      %3931 = vmatprep.mubr.bf16.mxu0 0
      %3932 = vmatmul.mubr.bf16.gmra.mxu0 %v3703
      %v3933 = vpop.f32.mrf.mxu0
      %v3934 = vadd.f32 %v3700, %v3933
      %v3935 = vpop.f32.mrf.mxu0
      %v3936 = vadd.f32 %v3700, %v3935
      %v3937 = vpop.f32.mrf.mxu0
      %v3938 = vpop.f32.mrf.mxu0
      %3939 = vdwg.mxu0
      %v3940 = vmul.f32 %v3770, 0.5
      %v3941 = vmul.f32 %v3772, 0.5
      %v3942 = vmul.f32 %v3811, 0.5
      %v3943 = vmul.f32 %v3813, 0.5
      %v3944 = vmul.f32 %v3852, 0.5
      %v3945 = vmul.f32 %v3854, 0.5
      %v3946 = vmul.f32 %v3893, 0.5
      %v3947 = vmul.f32 %v3895, 0.5
      %v3948 = vmul.f32 %v3934, 0.5
      %v3949 = vmul.f32 %v3936, 0.5
      %v3950 = vmul.f32 %v3770, 0.70710677
      %v3951 = vmul.f32 %v3772, 0.70710677
      %v3952 = vmul.f32 %v3811, 0.70710677
      %v3953 = vmul.f32 %v3813, 0.70710677
      %v3954 = vmul.f32 %v3852, 0.70710677
      %v3955 = vmul.f32 %v3854, 0.70710677
      %v3956 = vmul.f32 %v3893, 0.70710677
      %v3957 = vmul.f32 %v3895, 0.70710677
      %v3958 = vmul.f32 %v3934, 0.70710677
      %v3959 = vmul.f32 %v3936, 0.70710677
      %v3960 = vand.u32 2147483647, %v3950
      %v3961 = vand.u32 2147483647, %v3951
      %v3962 = vand.u32 2147483647, %v3952
      %v3963 = vand.u32 2147483647, %v3953
      %v3964 = vand.u32 2147483647, %v3954
      %v3965 = vand.u32 2147483647, %v3955
      %v3966 = vand.u32 2147483647, %v3956
      %v3967 = vand.u32 2147483647, %v3957
      %v3968 = vand.u32 2147483647, %v3958
      %v3969 = vand.u32 2147483647, %v3959
      %v3970 = vmul.f32 %v3960, 0.3275911
      %v3971 = vmul.f32 %v3961, 0.3275911
      %v3972 = vmul.f32 %v3962, 0.3275911
      %v3973 = vmul.f32 %v3963, 0.3275911
      %v3974 = vmul.f32 %v3964, 0.3275911
      %v3975 = vmul.f32 %v3965, 0.3275911
      %v3976 = vmul.f32 %v3966, 0.3275911
      %v3977 = vmul.f32 %v3967, 0.3275911
      %v3978 = vmul.f32 %v3968, 0.3275911
      %v3979 = vmul.f32 %v3969, 0.3275911
      %v3980 = vadd.f32 %v3970, 1.0
      %v3981 = vadd.f32 %v3971, 1.0
      %v3982 = vadd.f32 %v3972, 1.0
      %v3983 = vadd.f32 %v3973, 1.0
      %v3984 = vadd.f32 %v3974, 1.0
      %v3985 = vadd.f32 %v3975, 1.0
      %v3986 = vadd.f32 %v3976, 1.0
      %v3987 = vadd.f32 %v3977, 1.0
      %v3988 = vadd.f32 %v3978, 1.0
      %v3989 = vadd.f32 %v3979, 1.0
      %v3990 = vrcp.pop %v3980
      %v3991 = vrcp.pop %v3981
      %v3992 = vrcp.pop %v3982
      %v3993 = vrcp.pop %v3983
      %v3994 = vrcp.pop %v3984
      %v3995 = vrcp.pop %v3985
      %v3996 = vrcp.pop %v3986
      %v3997 = vrcp.pop %v3987
      %v3998 = vrcp.pop %v3988
      %v3999 = vrcp.pop %v3989
      %v4000 = vmul.f32 %v3990, 1.0614054
      %v4001 = vmul.f32 %v3991, 1.0614054
      %v4002 = vmul.f32 %v3992, 1.0614054
      %v4003 = vmul.f32 %v3993, 1.0614054
      %v4004 = vmul.f32 %v3994, 1.0614054
      %v4005 = vmul.f32 %v3995, 1.0614054
      %v4006 = vmul.f32 %v3996, 1.0614054
      %v4007 = vmul.f32 %v3997, 1.0614054
      %v4008 = vmul.f32 %v3998, 1.0614054
      %v4009 = vmul.f32 %v3999, 1.0614054
      %v4010 = vadd.f32 %v4000, -1.4531521
      %v4011 = vadd.f32 %v4001, -1.4531521
      %v4012 = vadd.f32 %v4002, -1.4531521
      %v4013 = vadd.f32 %v4003, -1.4531521
      %v4014 = vadd.f32 %v4004, -1.4531521
      %v4015 = vadd.f32 %v4005, -1.4531521
      %v4016 = vadd.f32 %v4006, -1.4531521
      %v4017 = vadd.f32 %v4007, -1.4531521
      %v4018 = vadd.f32 %v4008, -1.4531521
      %v4019 = vadd.f32 %v4009, -1.4531521
      %v4020 = vmul.f32 %v4010, %v3990
      %v4021 = vmul.f32 %v4011, %v3991
      %v4022 = vmul.f32 %v4012, %v3992
      %v4023 = vmul.f32 %v4013, %v3993
      %v4024 = vmul.f32 %v4014, %v3994
      %v4025 = vmul.f32 %v4015, %v3995
      %v4026 = vmul.f32 %v4016, %v3996
      %v4027 = vmul.f32 %v4017, %v3997
      %v4028 = vmul.f32 %v4018, %v3998
      %v4029 = vmul.f32 %v4019, %v3999
      %v4030 = vadd.f32 %v4020, 1.4214138
      %v4031 = vadd.f32 %v4021, 1.4214138
      %v4032 = vadd.f32 %v4022, 1.4214138
      %v4033 = vadd.f32 %v4023, 1.4214138
      %v4034 = vadd.f32 %v4024, 1.4214138
      %v4035 = vadd.f32 %v4025, 1.4214138
      %v4036 = vadd.f32 %v4026, 1.4214138
      %v4037 = vadd.f32 %v4027, 1.4214138
      %v4038 = vadd.f32 %v4028, 1.4214138
      %v4039 = vadd.f32 %v4029, 1.4214138
      %v4040 = vmul.f32 %v4030, %v3990
      %v4041 = vmul.f32 %v4031, %v3991
      %v4042 = vmul.f32 %v4032, %v3992
      %v4043 = vmul.f32 %v4033, %v3993
      %v4044 = vmul.f32 %v4034, %v3994
      %v4045 = vmul.f32 %v4035, %v3995
      %v4046 = vmul.f32 %v4036, %v3996
      %v4047 = vmul.f32 %v4037, %v3997
      %v4048 = vmul.f32 %v4038, %v3998
      %v4049 = vmul.f32 %v4039, %v3999
      %v4050 = vadd.f32 %v4040, -0.28449672
      %v4051 = vadd.f32 %v4041, -0.28449672
      %v4052 = vadd.f32 %v4042, -0.28449672
      %v4053 = vadd.f32 %v4043, -0.28449672
      %v4054 = vadd.f32 %v4044, -0.28449672
      %v4055 = vadd.f32 %v4045, -0.28449672
      %v4056 = vadd.f32 %v4046, -0.28449672
      %v4057 = vadd.f32 %v4047, -0.28449672
      %v4058 = vadd.f32 %v4048, -0.28449672
      %v4059 = vadd.f32 %v4049, -0.28449672
      %v4060 = vmul.f32 %v4050, %v3990
      %v4061 = vmul.f32 %v4051, %v3991
      %v4062 = vmul.f32 %v4052, %v3992
      %v4063 = vmul.f32 %v4053, %v3993
      %v4064 = vmul.f32 %v4054, %v3994
      %v4065 = vmul.f32 %v4055, %v3995
      %v4066 = vmul.f32 %v4056, %v3996
      %v4067 = vmul.f32 %v4057, %v3997
      %v4068 = vmul.f32 %v4058, %v3998
      %v4069 = vmul.f32 %v4059, %v3999
      %v4070 = vadd.f32 %v4060, 0.2548296
      %v4071 = vadd.f32 %v4061, 0.2548296
      %v4072 = vadd.f32 %v4062, 0.2548296
      %v4073 = vadd.f32 %v4063, 0.2548296
      %v4074 = vadd.f32 %v4064, 0.2548296
      %v4075 = vadd.f32 %v4065, 0.2548296
      %v4076 = vadd.f32 %v4066, 0.2548296
      %v4077 = vadd.f32 %v4067, 0.2548296
      %v4078 = vadd.f32 %v4068, 0.2548296
      %v4079 = vadd.f32 %v4069, 0.2548296
      %v4080 = vmul.f32 %v4070, %v3990
      %v4081 = vmul.f32 %v4071, %v3991
      %v4082 = vmul.f32 %v4072, %v3992
      %v4083 = vmul.f32 %v4073, %v3993
      %v4084 = vmul.f32 %v4074, %v3994
      %v4085 = vmul.f32 %v4075, %v3995
      %v4086 = vmul.f32 %v4076, %v3996
      %v4087 = vmul.f32 %v4077, %v3997
      %v4088 = vmul.f32 %v4078, %v3998
      %v4089 = vmul.f32 %v4079, %v3999
      %v4090 = vsub.f32 0.0, %v3960
      %v4091 = vsub.f32 0.0, %v3961
      %v4092 = vsub.f32 0.0, %v3962
      %v4093 = vsub.f32 0.0, %v3963
      %v4094 = vsub.f32 0.0, %v3964
      %v4095 = vsub.f32 0.0, %v3965
      %v4096 = vsub.f32 0.0, %v3966
      %v4097 = vsub.f32 0.0, %v3967
      %v4098 = vsub.f32 0.0, %v3968
      %v4099 = vsub.f32 0.0, %v3969
      %v4100 = vmul.f32 %v4090, %v3960
      %v4101 = vmul.f32 %v4091, %v3961
      %v4102 = vmul.f32 %v4092, %v3962
      %v4103 = vmul.f32 %v4093, %v3963
      %v4104 = vmul.f32 %v4094, %v3964
      %v4105 = vmul.f32 %v4095, %v3965
      %v4106 = vmul.f32 %v4096, %v3966
      %v4107 = vmul.f32 %v4097, %v3967
      %v4108 = vmul.f32 %v4098, %v3968
      %v4109 = vmul.f32 %v4099, %v3969
      %v4110 = vmul.f32 %v4100, 1.442695
      %v4111 = vpow.pop %v4110
      %v4112 = vmul.f32 %v4101, 1.442695
      %v4113 = vpow.pop %v4112
      %v4114 = vmul.f32 %v4102, 1.442695
      %v4115 = vpow.pop %v4114
      %v4116 = vmul.f32 %v4103, 1.442695
      %v4117 = vpow.pop %v4116
      %v4118 = vmul.f32 %v4104, 1.442695
      %v4119 = vpow.pop %v4118
      %v4120 = vmul.f32 %v4105, 1.442695
      %v4121 = vpow.pop %v4120
      %v4122 = vmul.f32 %v4106, 1.442695
      %v4123 = vpow.pop %v4122
      %v4124 = vmul.f32 %v4107, 1.442695
      %v4125 = vpow.pop %v4124
      %v4126 = vmul.f32 %v4108, 1.442695
      %v4127 = vpow.pop %v4126
      %v4128 = vmul.f32 %v4109, 1.442695
      %v4129 = vpow.pop %v4128
      %v4130 = vmul.f32 %v4080, %v4111
      %v4131 = vmul.f32 %v4081, %v4113
      %v4132 = vmul.f32 %v4082, %v4115
      %v4133 = vmul.f32 %v4083, %v4117
      %v4134 = vmul.f32 %v4084, %v4119
      %v4135 = vmul.f32 %v4085, %v4121
      %v4136 = vmul.f32 %v4086, %v4123
      %v4137 = vmul.f32 %v4087, %v4125
      %v4138 = vmul.f32 %v4088, %v4127
      %v4139 = vmul.f32 %v4089, %v4129
      %v4140 = vsub.f32 1.0, %v4130
      %v4141 = vsub.f32 1.0, %v4131
      %v4142 = vsub.f32 1.0, %v4132
      %v4143 = vsub.f32 1.0, %v4133
      %v4144 = vsub.f32 1.0, %v4134
      %v4145 = vsub.f32 1.0, %v4135
      %v4146 = vsub.f32 1.0, %v4136
      %v4147 = vsub.f32 1.0, %v4137
      %v4148 = vsub.f32 1.0, %v4138
      %v4149 = vsub.f32 1.0, %v4139
      %vm4150 = vcmp.lt.f32.partialorder %v3950, 0.0
      %vm4151 = vcmp.lt.f32.partialorder %v3951, 0.0
      %vm4152 = vcmp.lt.f32.partialorder %v3952, 0.0
      %vm4153 = vcmp.lt.f32.partialorder %v3953, 0.0
      %vm4154 = vcmp.lt.f32.partialorder %v3954, 0.0
      %vm4155 = vcmp.lt.f32.partialorder %v3955, 0.0
      %vm4156 = vcmp.lt.f32.partialorder %v3956, 0.0
      %vm4157 = vcmp.lt.f32.partialorder %v3957, 0.0
      %vm4158 = vcmp.lt.f32.partialorder %v3958, 0.0
      %vm4159 = vcmp.lt.f32.partialorder %v3959, 0.0
      %v4160 = vsub.f32 0.0, %v4140
      %v4161 = vsub.f32 0.0, %v4141
      %v4162 = vsub.f32 0.0, %v4142
      %v4163 = vsub.f32 0.0, %v4143
      %v4164 = vsub.f32 0.0, %v4144
      %v4165 = vsub.f32 0.0, %v4145
      %v4166 = vsub.f32 0.0, %v4146
      %v4167 = vsub.f32 0.0, %v4147
      %v4168 = vsub.f32 0.0, %v4148
      %v4169 = vsub.f32 0.0, %v4149
      %v4170 = vsel %vm4150, %v4160, %v4140
      %v4171 = vsel %vm4151, %v4161, %v4141
      %v4172 = vsel %vm4152, %v4162, %v4142
      %v4173 = vsel %vm4153, %v4163, %v4143
      %v4174 = vsel %vm4154, %v4164, %v4144
      %v4175 = vsel %vm4155, %v4165, %v4145
      %v4176 = vsel %vm4156, %v4166, %v4146
      %v4177 = vsel %vm4157, %v4167, %v4147
      %v4178 = vsel %vm4158, %v4168, %v4148
      %v4179 = vsel %vm4159, %v4169, %v4149
      %v4180 = vadd.f32 %v4170, 1.0
      %v4181 = vadd.f32 %v4171, 1.0
      %v4182 = vadd.f32 %v4172, 1.0
      %v4183 = vadd.f32 %v4173, 1.0
      %v4184 = vadd.f32 %v4174, 1.0
      %v4185 = vadd.f32 %v4175, 1.0
      %v4186 = vadd.f32 %v4176, 1.0
      %v4187 = vadd.f32 %v4177, 1.0
      %v4188 = vadd.f32 %v4178, 1.0
      %v4189 = vadd.f32 %v4179, 1.0
      %v4190 = vmul.f32 %v3940, %v4180
      %v4191 = vmul.f32 %v3941, %v4181
      %v4192 = vmul.f32 %v3942, %v4182
      %v4193 = vmul.f32 %v3943, %v4183
      %v4194 = vmul.f32 %v3944, %v4184
      %v4195 = vmul.f32 %v3945, %v4185
      %v4196 = vmul.f32 %v3946, %v4186
      %v4197 = vmul.f32 %v3947, %v4187
      %v4198 = vmul.f32 %v3948, %v4188
      %v4199 = vmul.f32 %v3949, %v4189
      %v4210 = vrot.slane %v3687, 4
      %v4211 = vrot.slane %v3688, 4
      %v4212 = vrot.slane %v3689, 4
      %v4213 = vrot.slane %v3690, 4
      %v4214 = vrot.slane %v3691, 4
      %v4215 = vrot.slane %v3692, 4
      %v4216 = vrot.slane %v3693, 4
      %v4217 = vrot.slane %v3694, 4
      %v4218 = vrot.slane %v3695, 4
      %v4219 = vrot.slane %v3696, 4
      %4220 = vrot.lane.b32.xlu0 %v4210, 127
      %v4221 = vpop.permute.xlu0 %4220
      %4222 = vrot.lane.b32.xlu0 %v4211, 127
      %v4223 = vpop.permute.xlu0 %4222
      %4224 = vrot.lane.b32.xlu0 %v4212, 127
      %v4225 = vpop.permute.xlu0 %4224
      %4226 = vrot.lane.b32.xlu0 %v4213, 127
      %v4227 = vpop.permute.xlu0 %4226
      %4228 = vrot.lane.b32.xlu0 %v4214, 127
      %v4229 = vpop.permute.xlu0 %4228
      %4230 = vrot.lane.b32.xlu0 %v4215, 127
      %v4231 = vpop.permute.xlu0 %4230
      %4232 = vrot.lane.b32.xlu0 %v4216, 127
      %v4233 = vpop.permute.xlu0 %4232
      %4234 = vrot.lane.b32.xlu0 %v4217, 127
      %v4235 = vpop.permute.xlu0 %4234
      %4236 = vrot.lane.b32.xlu0 %v4218, 127
      %v4237 = vpop.permute.xlu0 %4236
      %4238 = vrot.lane.b32.xlu0 %v4219, 127
      %v4239 = vpop.permute.xlu0 %4238
      %v4240 = vsel %vm845, %v824, %v4221
      %v4241 = vsel %vm845, %v4221, %v4223
      %v4242 = vsel %vm845, %v4223, %v4225
      %v4243 = vsel %vm845, %v4225, %v4227
      %v4244 = vsel %vm845, %v4227, %v4229
      %v4245 = vsel %vm845, %v4229, %v4231
      %v4246 = vsel %vm845, %v4231, %v4233
      %v4247 = vsel %vm845, %v4233, %v4235
      %v4248 = vsel %vm845, %v4235, %v4237
      %v4249 = vsel %vm845, %v4237, %v4239
      %4250 = vrot.lane.b32.xlu0 %v3687, 126
      %v4251 = vpop.permute.xlu0 %4250
      %4252 = vrot.lane.b32.xlu0 %v3688, 126
      %v4253 = vpop.permute.xlu0 %4252
      %4254 = vrot.lane.b32.xlu0 %v3689, 126
      %v4255 = vpop.permute.xlu0 %4254
      %4256 = vrot.lane.b32.xlu0 %v3690, 126
      %v4257 = vpop.permute.xlu0 %4256
      %4258 = vrot.lane.b32.xlu0 %v3691, 126
      %v4259 = vpop.permute.xlu0 %4258
      %4260 = vrot.lane.b32.xlu0 %v3692, 126
      %v4261 = vpop.permute.xlu0 %4260
      %4262 = vrot.lane.b32.xlu0 %v3693, 126
      %v4263 = vpop.permute.xlu0 %4262
      %4264 = vrot.lane.b32.xlu0 %v3694, 126
      %v4265 = vpop.permute.xlu0 %4264
      %4266 = vrot.lane.b32.xlu0 %v3695, 126
      %v4267 = vpop.permute.xlu0 %4266
      %4268 = vrot.lane.b32.xlu0 %v3696, 126
      %v4269 = vpop.permute.xlu0 %4268
      %v4270 = vsel %vm878, %v857, %v4251
      %v4271 = vsel %vm878, %v4251, %v4253
      %v4272 = vsel %vm878, %v4253, %v4255
      %v4273 = vsel %vm878, %v4255, %v4257
      %v4274 = vsel %vm878, %v4257, %v4259
      %v4275 = vsel %vm878, %v4259, %v4261
      %v4276 = vsel %vm878, %v4261, %v4263
      %v4277 = vsel %vm878, %v4263, %v4265
      %v4278 = vsel %vm878, %v4265, %v4267
      %v4279 = vsel %vm878, %v4267, %v4269
      %4280 = vrot.lane.b32.xlu0 %v4210, 94
      %v4281 = vpop.permute.xlu0 %4280
      %4282 = vrot.lane.b32.xlu0 %v4211, 94
      %v4283 = vpop.permute.xlu0 %4282
      %4284 = vrot.lane.b32.xlu0 %v4212, 94
      %v4285 = vpop.permute.xlu0 %4284
      %4286 = vrot.lane.b32.xlu0 %v4213, 94
      %v4287 = vpop.permute.xlu0 %4286
      %4288 = vrot.lane.b32.xlu0 %v4214, 94
      %v4289 = vpop.permute.xlu0 %4288
      %4290 = vrot.lane.b32.xlu0 %v4215, 94
      %v4291 = vpop.permute.xlu0 %4290
      %4292 = vrot.lane.b32.xlu0 %v4216, 94
      %v4293 = vpop.permute.xlu0 %4292
      %4294 = vrot.lane.b32.xlu0 %v4217, 94
      %v4295 = vpop.permute.xlu0 %4294
      %4296 = vrot.lane.b32.xlu0 %v4218, 94
      %v4297 = vpop.permute.xlu0 %4296
      %4298 = vrot.lane.b32.xlu0 %v4219, 94
      %v4299 = vpop.permute.xlu0 %4298
      %v4300 = vsel %vm911, %v890, %v4281
      %v4301 = vsel %vm911, %v4281, %v4283
      %v4302 = vsel %vm911, %v4283, %v4285
      %v4303 = vsel %vm911, %v4285, %v4287
      %v4304 = vsel %vm911, %v4287, %v4289
      %v4305 = vsel %vm911, %v4289, %v4291
      %v4306 = vsel %vm911, %v4291, %v4293
      %v4307 = vsel %vm911, %v4293, %v4295
      %v4308 = vsel %vm911, %v4295, %v4297
      %v4309 = vsel %vm911, %v4297, %v4299
      %4310 = vrot.lane.b32.xlu0 %v3687, 93
      %v4311 = vpop.permute.xlu0 %4310
      %4312 = vrot.lane.b32.xlu0 %v3688, 93
      %v4313 = vpop.permute.xlu0 %4312
      %4314 = vrot.lane.b32.xlu0 %v3689, 93
      %v4315 = vpop.permute.xlu0 %4314
      %4316 = vrot.lane.b32.xlu0 %v3690, 93
      %v4317 = vpop.permute.xlu0 %4316
      %4318 = vrot.lane.b32.xlu0 %v3691, 93
      %v4319 = vpop.permute.xlu0 %4318
      %4320 = vrot.lane.b32.xlu0 %v3692, 93
      %v4321 = vpop.permute.xlu0 %4320
      %4322 = vrot.lane.b32.xlu0 %v3693, 93
      %v4323 = vpop.permute.xlu0 %4322
      %4324 = vrot.lane.b32.xlu0 %v3694, 93
      %v4325 = vpop.permute.xlu0 %4324
      %4326 = vrot.lane.b32.xlu0 %v3695, 93
      %v4327 = vpop.permute.xlu0 %4326
      %4328 = vrot.lane.b32.xlu0 %v3696, 93
      %v4329 = vpop.permute.xlu0 %4328
      %v4330 = vsel %vm942, %v4311, %v4313
      %v4331 = vsel %vm942, %v4313, %v4315
      %v4332 = vsel %vm942, %v4315, %v4317
      %v4333 = vsel %vm942, %v4317, %v4319
      %v4334 = vsel %vm942, %v4319, %v4321
      %v4335 = vsel %vm942, %v4321, %v4323
      %v4336 = vsel %vm942, %v4323, %v4325
      %v4337 = vsel %vm942, %v4325, %v4327
      %v4338 = vsel %vm942, %v4327, %v4329
      %4339 = vrot.lane.b32.xlu0 %v4210, 92
      %v4340 = vpop.permute.xlu0 %4339
      %4341 = vrot.lane.b32.xlu0 %v4211, 92
      %v4342 = vpop.permute.xlu0 %4341
      %4343 = vrot.lane.b32.xlu0 %v4212, 92
      %v4344 = vpop.permute.xlu0 %4343
      %4345 = vrot.lane.b32.xlu0 %v4213, 92
      %v4346 = vpop.permute.xlu0 %4345
      %4347 = vrot.lane.b32.xlu0 %v4214, 92
      %v4348 = vpop.permute.xlu0 %4347
      %4349 = vrot.lane.b32.xlu0 %v4215, 92
      %v4350 = vpop.permute.xlu0 %4349
      %4351 = vrot.lane.b32.xlu0 %v4216, 92
      %v4352 = vpop.permute.xlu0 %4351
      %4353 = vrot.lane.b32.xlu0 %v4217, 92
      %v4354 = vpop.permute.xlu0 %4353
      %4355 = vrot.lane.b32.xlu0 %v4218, 92
      %v4356 = vpop.permute.xlu0 %4355
      %4357 = vrot.lane.b32.xlu0 %v4219, 92
      %v4358 = vpop.permute.xlu0 %4357
      %v4359 = vsel %vm974, %v4340, %v4342
      %v4360 = vsel %vm974, %v4342, %v4344
      %v4361 = vsel %vm974, %v4344, %v4346
      %v4362 = vsel %vm974, %v4346, %v4348
      %v4363 = vsel %vm974, %v4348, %v4350
      %v4364 = vsel %vm974, %v4350, %v4352
      %v4365 = vsel %vm974, %v4352, %v4354
      %v4366 = vsel %vm974, %v4354, %v4356
      %v4367 = vsel %vm974, %v4356, %v4358
      %v4368 = vsel %vm974, %v4358, %v973
      %4369 = vrot.lane.b32.xlu0 %v3687, 60
      %v4370 = vpop.permute.xlu0 %4369
      %4371 = vrot.lane.b32.xlu0 %v3688, 60
      %v4372 = vpop.permute.xlu0 %4371
      %4373 = vrot.lane.b32.xlu0 %v3689, 60
      %v4374 = vpop.permute.xlu0 %4373
      %4375 = vrot.lane.b32.xlu0 %v3690, 60
      %v4376 = vpop.permute.xlu0 %4375
      %4377 = vrot.lane.b32.xlu0 %v3691, 60
      %v4378 = vpop.permute.xlu0 %4377
      %4379 = vrot.lane.b32.xlu0 %v3692, 60
      %v4380 = vpop.permute.xlu0 %4379
      %4381 = vrot.lane.b32.xlu0 %v3693, 60
      %v4382 = vpop.permute.xlu0 %4381
      %4383 = vrot.lane.b32.xlu0 %v3694, 60
      %v4384 = vpop.permute.xlu0 %4383
      %4385 = vrot.lane.b32.xlu0 %v3695, 60
      %v4386 = vpop.permute.xlu0 %4385
      %4387 = vrot.lane.b32.xlu0 %v3696, 60
      %v4388 = vpop.permute.xlu0 %4387
      %v4389 = vsel %vm1007, %v4370, %v4372
      %v4390 = vsel %vm1007, %v4372, %v4374
      %v4391 = vsel %vm1007, %v4374, %v4376
      %v4392 = vsel %vm1007, %v4376, %v4378
      %v4393 = vsel %vm1007, %v4378, %v4380
      %v4394 = vsel %vm1007, %v4380, %v4382
      %v4395 = vsel %vm1007, %v4382, %v4384
      %v4396 = vsel %vm1007, %v4384, %v4386
      %v4397 = vsel %vm1007, %v4386, %v4388
      %v4398 = vsel %vm1007, %v4388, %v1006
      %4399 = vrot.lane.b32.xlu0 %v4210, 59
      %v4400 = vpop.permute.xlu0 %4399
      %4401 = vrot.lane.b32.xlu0 %v4211, 59
      %v4402 = vpop.permute.xlu0 %4401
      %4403 = vrot.lane.b32.xlu0 %v4212, 59
      %v4404 = vpop.permute.xlu0 %4403
      %4405 = vrot.lane.b32.xlu0 %v4213, 59
      %v4406 = vpop.permute.xlu0 %4405
      %4407 = vrot.lane.b32.xlu0 %v4214, 59
      %v4408 = vpop.permute.xlu0 %4407
      %4409 = vrot.lane.b32.xlu0 %v4215, 59
      %v4410 = vpop.permute.xlu0 %4409
      %4411 = vrot.lane.b32.xlu0 %v4216, 59
      %v4412 = vpop.permute.xlu0 %4411
      %4413 = vrot.lane.b32.xlu0 %v4217, 59
      %v4414 = vpop.permute.xlu0 %4413
      %4415 = vrot.lane.b32.xlu0 %v4218, 59
      %v4416 = vpop.permute.xlu0 %4415
      %4417 = vrot.lane.b32.xlu0 %v4219, 59
      %v4418 = vpop.permute.xlu0 %4417
      %v4419 = vsel %vm1040, %v4400, %v4402
      %v4420 = vsel %vm1040, %v4402, %v4404
      %v4421 = vsel %vm1040, %v4404, %v4406
      %v4422 = vsel %vm1040, %v4406, %v4408
      %v4423 = vsel %vm1040, %v4408, %v4410
      %v4424 = vsel %vm1040, %v4410, %v4412
      %v4425 = vsel %vm1040, %v4412, %v4414
      %v4426 = vsel %vm1040, %v4414, %v4416
      %v4427 = vsel %vm1040, %v4416, %v4418
      %v4428 = vsel %vm1040, %v4418, %v1039
      %4429 = vrot.lane.b32.xlu0 %v3687, 58
      %v4430 = vpop.permute.xlu0 %4429
      %4431 = vrot.lane.b32.xlu0 %v3688, 58
      %v4432 = vpop.permute.xlu0 %4431
      %4433 = vrot.lane.b32.xlu0 %v3689, 58
      %v4434 = vpop.permute.xlu0 %4433
      %4435 = vrot.lane.b32.xlu0 %v3690, 58
      %v4436 = vpop.permute.xlu0 %4435
      %4437 = vrot.lane.b32.xlu0 %v3691, 58
      %v4438 = vpop.permute.xlu0 %4437
      %4439 = vrot.lane.b32.xlu0 %v3692, 58
      %v4440 = vpop.permute.xlu0 %4439
      %4441 = vrot.lane.b32.xlu0 %v3693, 58
      %v4442 = vpop.permute.xlu0 %4441
      %4443 = vrot.lane.b32.xlu0 %v3694, 58
      %v4444 = vpop.permute.xlu0 %4443
      %4445 = vrot.lane.b32.xlu0 %v3695, 58
      %v4446 = vpop.permute.xlu0 %4445
      %4447 = vrot.lane.b32.xlu0 %v3696, 58
      %v4448 = vpop.permute.xlu0 %4447
      %v4449 = vsel %vm1073, %v4430, %v4432
      %v4450 = vsel %vm1073, %v4432, %v4434
      %v4451 = vsel %vm1073, %v4434, %v4436
      %v4452 = vsel %vm1073, %v4436, %v4438
      %v4453 = vsel %vm1073, %v4438, %v4440
      %v4454 = vsel %vm1073, %v4440, %v4442
      %v4455 = vsel %vm1073, %v4442, %v4444
      %v4456 = vsel %vm1073, %v4444, %v4446
      %v4457 = vsel %vm1073, %v4446, %v4448
      %v4458 = vsel %vm1073, %v4448, %v1072
      %v4460 = vsel %vm305, 0, %v4240
      %v4462 = vsel %vm305, %v3687, %v4241
      %v4464 = vsel %vm305, %v3688, %v4242
      %v4466 = vsel %vm305, %v3689, %v4243
      %v4468 = vsel %vm305, %v3690, %v4244
      %v4470 = vsel %vm305, %v3691, %v4245
      %v4472 = vsel %vm305, %v3692, %v4246
      %v4474 = vsel %vm305, %v3693, %v4247
      %v4476 = vsel %vm305, %v3694, %v4248
      %v4478 = vsel %vm305, %v3695, %v4249
      %v4480 = vsel %vm305, %v3696, %v4239
      %v4483 = vsel %vm305, %v4270, %v4300
      %v4486 = vsel %vm305, %v4271, %v4301
      %v4489 = vsel %vm305, %v4272, %v4302
      %v4492 = vsel %vm305, %v4273, %v4303
      %v4495 = vsel %vm305, %v4274, %v4304
      %v4498 = vsel %vm305, %v4275, %v4305
      %v4501 = vsel %vm305, %v4276, %v4306
      %v4504 = vsel %vm305, %v4277, %v4307
      %v4507 = vsel %vm305, %v4278, %v4308
      %v4510 = vsel %vm305, %v4279, %v4309
      %v4513 = vsel %vm305, %v4269, %v4299
      %v4516 = vsel %vm305, %v4311, %v4340
      %v4519 = vsel %vm305, %v4330, %v4359
      %v4522 = vsel %vm305, %v4331, %v4360
      %v4525 = vsel %vm305, %v4332, %v4361
      %v4528 = vsel %vm305, %v4333, %v4362
      %v4531 = vsel %vm305, %v4334, %v4363
      %v4534 = vsel %vm305, %v4335, %v4364
      %v4537 = vsel %vm305, %v4336, %v4365
      %v4540 = vsel %vm305, %v4337, %v4366
      %v4543 = vsel %vm305, %v4338, %v4367
      %v4546 = vsel %vm305, %v4329, %v4368
      %v4549 = vsel %vm305, %v4370, %v4400
      %v4552 = vsel %vm305, %v4389, %v4419
      %v4555 = vsel %vm305, %v4390, %v4420
      %v4558 = vsel %vm305, %v4391, %v4421
      %v4561 = vsel %vm305, %v4392, %v4422
      %v4564 = vsel %vm305, %v4393, %v4423
      %v4567 = vsel %vm305, %v4394, %v4424
      %v4570 = vsel %vm305, %v4395, %v4425
      %v4573 = vsel %vm305, %v4396, %v4426
      %v4576 = vsel %vm305, %v4397, %v4427
      %v4579 = vsel %vm305, %v4398, %v4428
      %v4580 = vpack.c.bf16 %v261, %v261
      %4581 = vset.pattern.permute.xlu0 5
      %4582 = vperm.xlu0 %4581, %v271
      %v4583 = vpop.permute.xlu0 %4582
      %4629 = vrot.lane.b32.xlu0 %v4460, 35
      %v4630 = vpop.permute.xlu0 %4629
      %4631 = vrot.lane.b32.xlu0 %v4462, 35
      %v4632 = vpop.permute.xlu0 %4631
      %4633 = vrot.lane.b32.xlu0 %v4464, 35
      %v4634 = vpop.permute.xlu0 %4633
      %4635 = vrot.lane.b32.xlu0 %v4466, 35
      %v4636 = vpop.permute.xlu0 %4635
      %4637 = vrot.lane.b32.xlu0 %v4468, 35
      %v4638 = vpop.permute.xlu0 %4637
      %4639 = vrot.lane.b32.xlu0 %v4470, 35
      %v4640 = vpop.permute.xlu0 %4639
      %4641 = vrot.lane.b32.xlu0 %v4472, 35
      %v4642 = vpop.permute.xlu0 %4641
      %4643 = vrot.lane.b32.xlu0 %v4474, 35
      %v4644 = vpop.permute.xlu0 %4643
      %4645 = vrot.lane.b32.xlu0 %v4476, 35
      %v4646 = vpop.permute.xlu0 %4645
      %4647 = vrot.lane.b32.xlu0 %v4478, 35
      %v4648 = vpop.permute.xlu0 %4647
      %4649 = vrot.lane.b32.xlu0 %v4480, 35
      %v4650 = vpop.permute.xlu0 %4649
      %4651 = vrot.lane.b32.xlu0 %v4483, 35
      %v4652 = vpop.permute.xlu0 %4651
      %4653 = vrot.lane.b32.xlu0 %v4486, 35
      %v4654 = vpop.permute.xlu0 %4653
      %4655 = vrot.lane.b32.xlu0 %v4489, 35
      %v4656 = vpop.permute.xlu0 %4655
      %4657 = vrot.lane.b32.xlu0 %v4492, 35
      %v4658 = vpop.permute.xlu0 %4657
      %4659 = vrot.lane.b32.xlu0 %v4495, 35
      %v4660 = vpop.permute.xlu0 %4659
      %4661 = vrot.lane.b32.xlu0 %v4498, 35
      %v4662 = vpop.permute.xlu0 %4661
      %4663 = vrot.lane.b32.xlu0 %v4501, 35
      %v4664 = vpop.permute.xlu0 %4663
      %4665 = vrot.lane.b32.xlu0 %v4504, 35
      %v4666 = vpop.permute.xlu0 %4665
      %4667 = vrot.lane.b32.xlu0 %v4507, 35
      %v4668 = vpop.permute.xlu0 %4667
      %4669 = vrot.lane.b32.xlu0 %v4510, 35
      %v4670 = vpop.permute.xlu0 %4669
      %4671 = vrot.lane.b32.xlu0 %v4513, 35
      %v4672 = vpop.permute.xlu0 %4671
      %4673 = vrot.lane.b32.xlu0 %v4516, 35
      %v4674 = vpop.permute.xlu0 %4673
      %4675 = vrot.lane.b32.xlu0 %v4519, 35
      %v4676 = vpop.permute.xlu0 %4675
      %4677 = vrot.lane.b32.xlu0 %v4522, 35
      %v4678 = vpop.permute.xlu0 %4677
      %4679 = vrot.lane.b32.xlu0 %v4525, 35
      %v4680 = vpop.permute.xlu0 %4679
      %4681 = vrot.lane.b32.xlu0 %v4528, 35
      %v4682 = vpop.permute.xlu0 %4681
      %4683 = vrot.lane.b32.xlu0 %v4531, 35
      %v4684 = vpop.permute.xlu0 %4683
      %4685 = vrot.lane.b32.xlu0 %v4534, 35
      %v4686 = vpop.permute.xlu0 %4685
      %4687 = vrot.lane.b32.xlu0 %v4537, 35
      %v4688 = vpop.permute.xlu0 %4687
      %4689 = vrot.lane.b32.xlu0 %v4540, 35
      %v4690 = vpop.permute.xlu0 %4689
      %4691 = vrot.lane.b32.xlu0 %v4543, 35
      %v4692 = vpop.permute.xlu0 %4691
      %4693 = vrot.lane.b32.xlu0 %v4546, 35
      %v4694 = vpop.permute.xlu0 %4693
      %4695 = vrot.lane.b32.xlu0 %v4549, 35
      %v4696 = vpop.permute.xlu0 %4695
      %4697 = vrot.lane.b32.xlu0 %v4552, 35
      %v4698 = vpop.permute.xlu0 %4697
      %4699 = vrot.lane.b32.xlu0 %v4555, 35
      %v4700 = vpop.permute.xlu0 %4699
      %4701 = vrot.lane.b32.xlu0 %v4558, 35
      %v4702 = vpop.permute.xlu0 %4701
      %4703 = vrot.lane.b32.xlu0 %v4561, 35
      %v4704 = vpop.permute.xlu0 %4703
      %4705 = vrot.lane.b32.xlu0 %v4564, 35
      %v4706 = vpop.permute.xlu0 %4705
      %4707 = vrot.lane.b32.xlu0 %v4567, 35
      %v4708 = vpop.permute.xlu0 %4707
      %4709 = vrot.lane.b32.xlu0 %v4570, 35
      %v4710 = vpop.permute.xlu0 %4709
      %4711 = vrot.lane.b32.xlu0 %v4573, 35
      %v4712 = vpop.permute.xlu0 %4711
      %4713 = vrot.lane.b32.xlu0 %v4576, 35
      %v4714 = vpop.permute.xlu0 %4713
      %4715 = vrot.lane.b32.xlu0 %v4579, 35
      %v4716 = vpop.permute.xlu0 %4715
      %4717 = vrot.lane.b32.xlu0 %v4430, 35
      %v4718 = vpop.permute.xlu0 %4717
      %4719 = vrot.lane.b32.xlu0 %v4449, 35
      %v4720 = vpop.permute.xlu0 %4719
      %4721 = vrot.lane.b32.xlu0 %v4450, 35
      %v4722 = vpop.permute.xlu0 %4721
      %4723 = vrot.lane.b32.xlu0 %v4451, 35
      %v4724 = vpop.permute.xlu0 %4723
      %4725 = vrot.lane.b32.xlu0 %v4452, 35
      %v4726 = vpop.permute.xlu0 %4725
      %4727 = vrot.lane.b32.xlu0 %v4453, 35
      %v4728 = vpop.permute.xlu0 %4727
      %4729 = vrot.lane.b32.xlu0 %v4454, 35
      %v4730 = vpop.permute.xlu0 %4729
      %4731 = vrot.lane.b32.xlu0 %v4455, 35
      %v4732 = vpop.permute.xlu0 %4731
      %4733 = vrot.lane.b32.xlu0 %v4456, 35
      %v4734 = vpop.permute.xlu0 %4733
      %4735 = vrot.lane.b32.xlu0 %v4457, 35
      %v4736 = vpop.permute.xlu0 %4735
      %4737 = vrot.lane.b32.xlu0 %v4458, 35
      %v4738 = vpop.permute.xlu0 %4737
      %v4739 = vsel %vm1365, %v4630, %v4632
      %v4740 = vsel %vm1365, %v4632, %v4634
      %v4741 = vsel %vm1365, %v4634, %v4636
      %v4742 = vsel %vm1365, %v4636, %v4638
      %v4743 = vsel %vm1365, %v4638, %v4640
      %v4744 = vsel %vm1365, %v4640, %v4642
      %v4745 = vsel %vm1365, %v4642, %v4644
      %v4746 = vsel %vm1365, %v4644, %v4646
      %v4747 = vsel %vm1365, %v4646, %v4648
      %v4748 = vsel %vm1365, %v4648, %v4650
      %v4749 = vsel %vm1365, %v4652, %v4654
      %v4750 = vsel %vm1365, %v4654, %v4656
      %v4751 = vsel %vm1365, %v4656, %v4658
      %v4752 = vsel %vm1365, %v4658, %v4660
      %v4753 = vsel %vm1365, %v4660, %v4662
      %v4754 = vsel %vm1365, %v4662, %v4664
      %v4755 = vsel %vm1365, %v4664, %v4666
      %v4756 = vsel %vm1365, %v4666, %v4668
      %v4757 = vsel %vm1365, %v4668, %v4670
      %v4758 = vsel %vm1365, %v4670, %v4672
      %v4759 = vsel %vm1365, %v4674, %v4676
      %v4760 = vsel %vm1365, %v4676, %v4678
      %v4761 = vsel %vm1365, %v4678, %v4680
      %v4762 = vsel %vm1365, %v4680, %v4682
      %v4763 = vsel %vm1365, %v4682, %v4684
      %v4764 = vsel %vm1365, %v4684, %v4686
      %v4765 = vsel %vm1365, %v4686, %v4688
      %v4766 = vsel %vm1365, %v4688, %v4690
      %v4767 = vsel %vm1365, %v4690, %v4692
      %v4768 = vsel %vm1365, %v4692, %v4694
      %v4769 = vsel %vm1365, %v4696, %v4698
      %v4770 = vsel %vm1365, %v4698, %v4700
      %v4771 = vsel %vm1365, %v4700, %v4702
      %v4772 = vsel %vm1365, %v4702, %v4704
      %v4773 = vsel %vm1365, %v4704, %v4706
      %v4774 = vsel %vm1365, %v4706, %v4708
      %v4775 = vsel %vm1365, %v4708, %v4710
      %v4776 = vsel %vm1365, %v4710, %v4712
      %v4777 = vsel %vm1365, %v4712, %v4714
      %v4778 = vsel %vm1365, %v4714, %v4716
      %v4779 = vsel %vm1365, %v4718, %v4720
      %v4780 = vsel %vm1365, %v4720, %v4722
      %v4781 = vsel %vm1365, %v4722, %v4724
      %v4782 = vsel %vm1365, %v4724, %v4726
      %v4783 = vsel %vm1365, %v4726, %v4728
      %v4784 = vsel %vm1365, %v4728, %v4730
      %v4785 = vsel %vm1365, %v4730, %v4732
      %v4786 = vsel %vm1365, %v4732, %v4734
      %v4787 = vsel %vm1365, %v4734, %v4736
      %v4788 = vsel %vm1365, %v4736, %v4738
      %v4830 = vsel %vm1456, %v4580, 0
      %v4833 = vsel %vm305, %v4779, 0
      %v4836 = vsel %vm305, %v4780, 0
      %v4839 = vsel %vm305, %v4781, 0
      %v4842 = vsel %vm305, %v4782, 0
      %v4845 = vsel %vm305, %v4783, 0
      %v4848 = vsel %vm305, %v4784, 0
      %v4851 = vsel %vm305, %v4785, 0
      %v4854 = vsel %vm305, %v4786, 0
      %v4857 = vsel %vm305, %v4787, 0
      %v4860 = vsel %vm305, %v4788, 0
      %4862 = vmatprep.subr.bf16.mxu0 0
      %4863 = vmatpush1.bf16.msra.mxu0 0
      %4864 = vmatprep.subr.bf16.mxu0 0
      %4865 = vmatpush1.bf16.msra.mxu0 0
      %4866 = vmatprep.subr.bf16.mxu0 0
      %4867 = vmatpush1.bf16.msra.mxu0 0
      %4868 = vmatprep.subr.bf16.mxu0 %v4836
      %4869 = vmatpush1.bf16.msra.mxu0 %v4833
      %4870 = vmatprep.subr.bf16.mxu0 %v4770
      %4871 = vmatpush1.bf16.msra.mxu0 %v4769
      %4872 = vmatprep.subr.bf16.mxu0 %v4760
      %4873 = vmatpush1.bf16.msra.mxu0 %v4759
      %4874 = vmatprep.subr.bf16.mxu0 %v4750
      %4875 = vmatpush1.bf16.msra.mxu0 %v4749
      %4876 = vmatprep.subr.bf16.mxu0 %v4740
      %4877 = vmatpush1.bf16.msra.mxu0 %v4739
      %4878 = vmatprep.subr.bf16.mxu0 0
      %4879 = vmatpush2.bf16.msra.mxu0 0
      %4880 = vmatprep.subr.bf16.mxu0 0
      %4881 = vmatpush2.bf16.msra.mxu0 0
      %4882 = vmatprep.subr.bf16.mxu0 0
      %4883 = vmatpush2.bf16.msra.mxu0 0
      %4884 = vmatprep.subr.bf16.mxu0 0
      %4885 = vmatpush2.bf16.msra.mxu0 0
      %4886 = vmatprep.subr.bf16.mxu0 0
      %4887 = vmatpush2.bf16.msra.mxu0 0
      %4888 = vmatprep.subr.bf16.mxu0 0
      %4889 = vmatpush2.bf16.msra.mxu0 0
      %4890 = vmatprep.subr.bf16.mxu0 0
      %4891 = vmatpush2.bf16.msra.mxu0 0
      %4892 = vmatprep.subr.bf16.mxu0 0
      %4893 = vmatpush2.bf16.msra.mxu0 0
      %4894 = vmatprep.mubr.bf16.mxu0 0
      %4895 = vmatmul.mubr.bf16.gmra.mxu0 %v4830
      %v4896 = vpop.f32.mrf.mxu0
      %v4897 = vadd.f32 %v4583, %v4896
      %v4898 = vpop.f32.mrf.mxu0
      %v4899 = vadd.f32 %v4583, %v4898
      %v4900 = vpop.f32.mrf.mxu0
      %v4901 = vpop.f32.mrf.mxu0
      %4902 = vdwg.mxu0
      %4903 = vmatprep.subr.bf16.mxu0 0
      %4904 = vmatpush1.bf16.msra.mxu0 0
      %4905 = vmatprep.subr.bf16.mxu0 0
      %4906 = vmatpush1.bf16.msra.mxu0 0
      %4907 = vmatprep.subr.bf16.mxu0 0
      %4908 = vmatpush1.bf16.msra.mxu0 0
      %4909 = vmatprep.subr.bf16.mxu0 %v4842
      %4910 = vmatpush1.bf16.msra.mxu0 %v4839
      %4911 = vmatprep.subr.bf16.mxu0 %v4772
      %4912 = vmatpush1.bf16.msra.mxu0 %v4771
      %4913 = vmatprep.subr.bf16.mxu0 %v4762
      %4914 = vmatpush1.bf16.msra.mxu0 %v4761
      %4915 = vmatprep.subr.bf16.mxu0 %v4752
      %4916 = vmatpush1.bf16.msra.mxu0 %v4751
      %4917 = vmatprep.subr.bf16.mxu0 %v4742
      %4918 = vmatpush1.bf16.msra.mxu0 %v4741
      %4919 = vmatprep.subr.bf16.mxu0 0
      %4920 = vmatpush2.bf16.msra.mxu0 0
      %4921 = vmatprep.subr.bf16.mxu0 0
      %4922 = vmatpush2.bf16.msra.mxu0 0
      %4923 = vmatprep.subr.bf16.mxu0 0
      %4924 = vmatpush2.bf16.msra.mxu0 0
      %4925 = vmatprep.subr.bf16.mxu0 0
      %4926 = vmatpush2.bf16.msra.mxu0 0
      %4927 = vmatprep.subr.bf16.mxu0 0
      %4928 = vmatpush2.bf16.msra.mxu0 0
      %4929 = vmatprep.subr.bf16.mxu0 0
      %4930 = vmatpush2.bf16.msra.mxu0 0
      %4931 = vmatprep.subr.bf16.mxu0 0
      %4932 = vmatpush2.bf16.msra.mxu0 0
      %4933 = vmatprep.subr.bf16.mxu0 0
      %4934 = vmatpush2.bf16.msra.mxu0 0
      %4935 = vmatprep.mubr.bf16.mxu0 0
      %4936 = vmatmul.mubr.bf16.gmra.mxu0 %v4830
      %v4937 = vpop.f32.mrf.mxu0
      %v4938 = vadd.f32 %v4583, %v4937
      %v4939 = vpop.f32.mrf.mxu0
      %v4940 = vadd.f32 %v4583, %v4939
      %v4941 = vpop.f32.mrf.mxu0
      %v4942 = vpop.f32.mrf.mxu0
      %4943 = vdwg.mxu0
      %4944 = vmatprep.subr.bf16.mxu0 0
      %4945 = vmatpush1.bf16.msra.mxu0 0
      %4946 = vmatprep.subr.bf16.mxu0 0
      %4947 = vmatpush1.bf16.msra.mxu0 0
      %4948 = vmatprep.subr.bf16.mxu0 0
      %4949 = vmatpush1.bf16.msra.mxu0 0
      %4950 = vmatprep.subr.bf16.mxu0 %v4848
      %4951 = vmatpush1.bf16.msra.mxu0 %v4845
      %4952 = vmatprep.subr.bf16.mxu0 %v4774
      %4953 = vmatpush1.bf16.msra.mxu0 %v4773
      %4954 = vmatprep.subr.bf16.mxu0 %v4764
      %4955 = vmatpush1.bf16.msra.mxu0 %v4763
      %4956 = vmatprep.subr.bf16.mxu0 %v4754
      %4957 = vmatpush1.bf16.msra.mxu0 %v4753
      %4958 = vmatprep.subr.bf16.mxu0 %v4744
      %4959 = vmatpush1.bf16.msra.mxu0 %v4743
      %4960 = vmatprep.subr.bf16.mxu0 0
      %4961 = vmatpush2.bf16.msra.mxu0 0
      %4962 = vmatprep.subr.bf16.mxu0 0
      %4963 = vmatpush2.bf16.msra.mxu0 0
      %4964 = vmatprep.subr.bf16.mxu0 0
      %4965 = vmatpush2.bf16.msra.mxu0 0
      %4966 = vmatprep.subr.bf16.mxu0 0
      %4967 = vmatpush2.bf16.msra.mxu0 0
      %4968 = vmatprep.subr.bf16.mxu0 0
      %4969 = vmatpush2.bf16.msra.mxu0 0
      %4970 = vmatprep.subr.bf16.mxu0 0
      %4971 = vmatpush2.bf16.msra.mxu0 0
      %4972 = vmatprep.subr.bf16.mxu0 0
      %4973 = vmatpush2.bf16.msra.mxu0 0
      %4974 = vmatprep.subr.bf16.mxu0 0
      %4975 = vmatpush2.bf16.msra.mxu0 0
      %4976 = vmatprep.mubr.bf16.mxu0 0
      %4977 = vmatmul.mubr.bf16.gmra.mxu0 %v4830
      %v4978 = vpop.f32.mrf.mxu0
      %v4979 = vadd.f32 %v4583, %v4978
      %v4980 = vpop.f32.mrf.mxu0
      %v4981 = vadd.f32 %v4583, %v4980
      %v4982 = vpop.f32.mrf.mxu0
      %v4983 = vpop.f32.mrf.mxu0
      %4984 = vdwg.mxu0
      %4985 = vmatprep.subr.bf16.mxu0 0
      %4986 = vmatpush1.bf16.msra.mxu0 0
      %4987 = vmatprep.subr.bf16.mxu0 0
      %4988 = vmatpush1.bf16.msra.mxu0 0
      %4989 = vmatprep.subr.bf16.mxu0 0
      %4990 = vmatpush1.bf16.msra.mxu0 0
      %4991 = vmatprep.subr.bf16.mxu0 %v4854
      %4992 = vmatpush1.bf16.msra.mxu0 %v4851
      %4993 = vmatprep.subr.bf16.mxu0 %v4776
      %4994 = vmatpush1.bf16.msra.mxu0 %v4775
      %4995 = vmatprep.subr.bf16.mxu0 %v4766
      %4996 = vmatpush1.bf16.msra.mxu0 %v4765
      %4997 = vmatprep.subr.bf16.mxu0 %v4756
      %4998 = vmatpush1.bf16.msra.mxu0 %v4755
      %4999 = vmatprep.subr.bf16.mxu0 %v4746
      %5000 = vmatpush1.bf16.msra.mxu0 %v4745
      %5001 = vmatprep.subr.bf16.mxu0 0
      %5002 = vmatpush2.bf16.msra.mxu0 0
      %5003 = vmatprep.subr.bf16.mxu0 0
      %5004 = vmatpush2.bf16.msra.mxu0 0
      %5005 = vmatprep.subr.bf16.mxu0 0
      %5006 = vmatpush2.bf16.msra.mxu0 0
      %5007 = vmatprep.subr.bf16.mxu0 0
      %5008 = vmatpush2.bf16.msra.mxu0 0
      %5009 = vmatprep.subr.bf16.mxu0 0
      %5010 = vmatpush2.bf16.msra.mxu0 0
      %5011 = vmatprep.subr.bf16.mxu0 0
      %5012 = vmatpush2.bf16.msra.mxu0 0
      %5013 = vmatprep.subr.bf16.mxu0 0
      %5014 = vmatpush2.bf16.msra.mxu0 0
      %5015 = vmatprep.subr.bf16.mxu0 0
      %5016 = vmatpush2.bf16.msra.mxu0 0
      %5017 = vmatprep.mubr.bf16.mxu0 0
      %5018 = vmatmul.mubr.bf16.gmra.mxu0 %v4830
      %v5019 = vpop.f32.mrf.mxu0
      %v5020 = vadd.f32 %v4583, %v5019
      %v5021 = vpop.f32.mrf.mxu0
      %v5022 = vadd.f32 %v4583, %v5021
      %v5023 = vpop.f32.mrf.mxu0
      %v5024 = vpop.f32.mrf.mxu0
      %5025 = vdwg.mxu0
      %5026 = vmatprep.subr.bf16.mxu0 0
      %5027 = vmatpush1.bf16.msra.mxu0 0
      %5028 = vmatprep.subr.bf16.mxu0 0
      %5029 = vmatpush1.bf16.msra.mxu0 0
      %5030 = vmatprep.subr.bf16.mxu0 0
      %5031 = vmatpush1.bf16.msra.mxu0 0
      %5032 = vmatprep.subr.bf16.mxu0 %v4860
      %5033 = vmatpush1.bf16.msra.mxu0 %v4857
      %5034 = vmatprep.subr.bf16.mxu0 %v4778
      %5035 = vmatpush1.bf16.msra.mxu0 %v4777
      %5036 = vmatprep.subr.bf16.mxu0 %v4768
      %5037 = vmatpush1.bf16.msra.mxu0 %v4767
      %5038 = vmatprep.subr.bf16.mxu0 %v4758
      %5039 = vmatpush1.bf16.msra.mxu0 %v4757
      %5040 = vmatprep.subr.bf16.mxu0 %v4748
      %5041 = vmatpush1.bf16.msra.mxu0 %v4747
      %5042 = vmatprep.subr.bf16.mxu0 0
      %5043 = vmatpush2.bf16.msra.mxu0 0
      %5044 = vmatprep.subr.bf16.mxu0 0
      %5045 = vmatpush2.bf16.msra.mxu0 0
      %5046 = vmatprep.subr.bf16.mxu0 0
      %5047 = vmatpush2.bf16.msra.mxu0 0
      %5048 = vmatprep.subr.bf16.mxu0 0
      %5049 = vmatpush2.bf16.msra.mxu0 0
      %5050 = vmatprep.subr.bf16.mxu0 0
      %5051 = vmatpush2.bf16.msra.mxu0 0
      %5052 = vmatprep.subr.bf16.mxu0 0
      %5053 = vmatpush2.bf16.msra.mxu0 0
      %5054 = vmatprep.subr.bf16.mxu0 0
      %5055 = vmatpush2.bf16.msra.mxu0 0
      %5056 = vmatprep.subr.bf16.mxu0 0
      %5057 = vmatpush2.bf16.msra.mxu0 0
      %5058 = vmatprep.mubr.bf16.mxu0 0
      %5059 = vmatmul.mubr.bf16.gmra.mxu0 %v4830
      %v5060 = vpop.f32.mrf.mxu0
      %v5061 = vadd.f32 %v4583, %v5060
      %v5062 = vpop.f32.mrf.mxu0
      %v5063 = vadd.f32 %v4583, %v5062
      %v5064 = vpop.f32.mrf.mxu0
      %v5065 = vpop.f32.mrf.mxu0
      %5066 = vdwg.mxu0
      %v5067 = vadd.f32 %v4897, %v3677
      %v5068 = vadd.f32 %v4899, %v3678
      %v5069 = vadd.f32 %v4938, %v3679
      %v5070 = vadd.f32 %v4940, %v3680
      %v5071 = vadd.f32 %v4979, %v3681
      %v5072 = vadd.f32 %v4981, %v3682
      %v5073 = vadd.f32 %v5020, %v3683
      %v5074 = vadd.f32 %v5022, %v3684
      %v5075 = vadd.f32 %v5061, %v3685
      %v5076 = vadd.f32 %v5063, %v3686
      %v5077 = vmul.f32 %v5067, 0.5
      %v5078 = vmul.f32 %v5068, 0.5
      %v5079 = vmul.f32 %v5069, 0.5
      %v5080 = vmul.f32 %v5070, 0.5
      %v5081 = vmul.f32 %v5071, 0.5
      %v5082 = vmul.f32 %v5072, 0.5
      %v5083 = vmul.f32 %v5073, 0.5
      %v5084 = vmul.f32 %v5074, 0.5
      %v5085 = vmul.f32 %v5075, 0.5
      %v5086 = vmul.f32 %v5076, 0.5
      %v5087 = vmul.f32 %v5067, 0.70710677
      %v5088 = vmul.f32 %v5068, 0.70710677
      %v5089 = vmul.f32 %v5069, 0.70710677
      %v5090 = vmul.f32 %v5070, 0.70710677
      %v5091 = vmul.f32 %v5071, 0.70710677
      %v5092 = vmul.f32 %v5072, 0.70710677
      %v5093 = vmul.f32 %v5073, 0.70710677
      %v5094 = vmul.f32 %v5074, 0.70710677
      %v5095 = vmul.f32 %v5075, 0.70710677
      %v5096 = vmul.f32 %v5076, 0.70710677
      %v5097 = vand.u32 2147483647, %v5087
      %v5098 = vand.u32 2147483647, %v5088
      %v5099 = vand.u32 2147483647, %v5089
      %v5100 = vand.u32 2147483647, %v5090
      %v5101 = vand.u32 2147483647, %v5091
      %v5102 = vand.u32 2147483647, %v5092
      %v5103 = vand.u32 2147483647, %v5093
      %v5104 = vand.u32 2147483647, %v5094
      %v5105 = vand.u32 2147483647, %v5095
      %v5106 = vand.u32 2147483647, %v5096
      %v5107 = vmul.f32 %v5097, 0.3275911
      %v5108 = vmul.f32 %v5098, 0.3275911
      %v5109 = vmul.f32 %v5099, 0.3275911
      %v5110 = vmul.f32 %v5100, 0.3275911
      %v5111 = vmul.f32 %v5101, 0.3275911
      %v5112 = vmul.f32 %v5102, 0.3275911
      %v5113 = vmul.f32 %v5103, 0.3275911
      %v5114 = vmul.f32 %v5104, 0.3275911
      %v5115 = vmul.f32 %v5105, 0.3275911
      %v5116 = vmul.f32 %v5106, 0.3275911
      %v5117 = vadd.f32 %v5107, 1.0
      %v5118 = vadd.f32 %v5108, 1.0
      %v5119 = vadd.f32 %v5109, 1.0
      %v5120 = vadd.f32 %v5110, 1.0
      %v5121 = vadd.f32 %v5111, 1.0
      %v5122 = vadd.f32 %v5112, 1.0
      %v5123 = vadd.f32 %v5113, 1.0
      %v5124 = vadd.f32 %v5114, 1.0
      %v5125 = vadd.f32 %v5115, 1.0
      %v5126 = vadd.f32 %v5116, 1.0
      %v5127 = vrcp.pop %v5117
      %v5128 = vrcp.pop %v5118
      %v5129 = vrcp.pop %v5119
      %v5130 = vrcp.pop %v5120
      %v5131 = vrcp.pop %v5121
      %v5132 = vrcp.pop %v5122
      %v5133 = vrcp.pop %v5123
      %v5134 = vrcp.pop %v5124
      %v5135 = vrcp.pop %v5125
      %v5136 = vrcp.pop %v5126
      %v5137 = vmul.f32 %v5127, 1.0614054
      %v5138 = vmul.f32 %v5128, 1.0614054
      %v5139 = vmul.f32 %v5129, 1.0614054
      %v5140 = vmul.f32 %v5130, 1.0614054
      %v5141 = vmul.f32 %v5131, 1.0614054
      %v5142 = vmul.f32 %v5132, 1.0614054
      %v5143 = vmul.f32 %v5133, 1.0614054
      %v5144 = vmul.f32 %v5134, 1.0614054
      %v5145 = vmul.f32 %v5135, 1.0614054
      %v5146 = vmul.f32 %v5136, 1.0614054
      %v5147 = vadd.f32 %v5137, -1.4531521
      %v5148 = vadd.f32 %v5138, -1.4531521
      %v5149 = vadd.f32 %v5139, -1.4531521
      %v5150 = vadd.f32 %v5140, -1.4531521
      %v5151 = vadd.f32 %v5141, -1.4531521
      %v5152 = vadd.f32 %v5142, -1.4531521
      %v5153 = vadd.f32 %v5143, -1.4531521
      %v5154 = vadd.f32 %v5144, -1.4531521
      %v5155 = vadd.f32 %v5145, -1.4531521
      %v5156 = vadd.f32 %v5146, -1.4531521
      %v5157 = vmul.f32 %v5147, %v5127
      %v5158 = vmul.f32 %v5148, %v5128
      %v5159 = vmul.f32 %v5149, %v5129
      %v5160 = vmul.f32 %v5150, %v5130
      %v5161 = vmul.f32 %v5151, %v5131
      %v5162 = vmul.f32 %v5152, %v5132
      %v5163 = vmul.f32 %v5153, %v5133
      %v5164 = vmul.f32 %v5154, %v5134
      %v5165 = vmul.f32 %v5155, %v5135
      %v5166 = vmul.f32 %v5156, %v5136
      %v5167 = vadd.f32 %v5157, 1.4214138
      %v5168 = vadd.f32 %v5158, 1.4214138
      %v5169 = vadd.f32 %v5159, 1.4214138
      %v5170 = vadd.f32 %v5160, 1.4214138
      %v5171 = vadd.f32 %v5161, 1.4214138
      %v5172 = vadd.f32 %v5162, 1.4214138
      %v5173 = vadd.f32 %v5163, 1.4214138
      %v5174 = vadd.f32 %v5164, 1.4214138
      %v5175 = vadd.f32 %v5165, 1.4214138
      %v5176 = vadd.f32 %v5166, 1.4214138
      %v5177 = vmul.f32 %v5167, %v5127
      %v5178 = vmul.f32 %v5168, %v5128
      %v5179 = vmul.f32 %v5169, %v5129
      %v5180 = vmul.f32 %v5170, %v5130
      %v5181 = vmul.f32 %v5171, %v5131
      %v5182 = vmul.f32 %v5172, %v5132
      %v5183 = vmul.f32 %v5173, %v5133
      %v5184 = vmul.f32 %v5174, %v5134
      %v5185 = vmul.f32 %v5175, %v5135
      %v5186 = vmul.f32 %v5176, %v5136
      %v5187 = vadd.f32 %v5177, -0.28449672
      %v5188 = vadd.f32 %v5178, -0.28449672
      %v5189 = vadd.f32 %v5179, -0.28449672
      %v5190 = vadd.f32 %v5180, -0.28449672
      %v5191 = vadd.f32 %v5181, -0.28449672
      %v5192 = vadd.f32 %v5182, -0.28449672
      %v5193 = vadd.f32 %v5183, -0.28449672
      %v5194 = vadd.f32 %v5184, -0.28449672
      %v5195 = vadd.f32 %v5185, -0.28449672
      %v5196 = vadd.f32 %v5186, -0.28449672
      %v5197 = vmul.f32 %v5187, %v5127
      %v5198 = vmul.f32 %v5188, %v5128
      %v5199 = vmul.f32 %v5189, %v5129
      %v5200 = vmul.f32 %v5190, %v5130
      %v5201 = vmul.f32 %v5191, %v5131
      %v5202 = vmul.f32 %v5192, %v5132
      %v5203 = vmul.f32 %v5193, %v5133
      %v5204 = vmul.f32 %v5194, %v5134
      %v5205 = vmul.f32 %v5195, %v5135
      %v5206 = vmul.f32 %v5196, %v5136
      %v5207 = vadd.f32 %v5197, 0.2548296
      %v5208 = vadd.f32 %v5198, 0.2548296
      %v5209 = vadd.f32 %v5199, 0.2548296
      %v5210 = vadd.f32 %v5200, 0.2548296
      %v5211 = vadd.f32 %v5201, 0.2548296
      %v5212 = vadd.f32 %v5202, 0.2548296
      %v5213 = vadd.f32 %v5203, 0.2548296
      %v5214 = vadd.f32 %v5204, 0.2548296
      %v5215 = vadd.f32 %v5205, 0.2548296
      %v5216 = vadd.f32 %v5206, 0.2548296
      %v5217 = vmul.f32 %v5207, %v5127
      %v5218 = vmul.f32 %v5208, %v5128
      %v5219 = vmul.f32 %v5209, %v5129
      %v5220 = vmul.f32 %v5210, %v5130
      %v5221 = vmul.f32 %v5211, %v5131
      %v5222 = vmul.f32 %v5212, %v5132
      %v5223 = vmul.f32 %v5213, %v5133
      %v5224 = vmul.f32 %v5214, %v5134
      %v5225 = vmul.f32 %v5215, %v5135
      %v5226 = vmul.f32 %v5216, %v5136
      %v5227 = vsub.f32 0.0, %v5097
      %v5228 = vsub.f32 0.0, %v5098
      %v5229 = vsub.f32 0.0, %v5099
      %v5230 = vsub.f32 0.0, %v5100
      %v5231 = vsub.f32 0.0, %v5101
      %v5232 = vsub.f32 0.0, %v5102
      %v5233 = vsub.f32 0.0, %v5103
      %v5234 = vsub.f32 0.0, %v5104
      %v5235 = vsub.f32 0.0, %v5105
      %v5236 = vsub.f32 0.0, %v5106
      %v5237 = vmul.f32 %v5227, %v5097
      %v5238 = vmul.f32 %v5228, %v5098
      %v5239 = vmul.f32 %v5229, %v5099
      %v5240 = vmul.f32 %v5230, %v5100
      %v5241 = vmul.f32 %v5231, %v5101
      %v5242 = vmul.f32 %v5232, %v5102
      %v5243 = vmul.f32 %v5233, %v5103
      %v5244 = vmul.f32 %v5234, %v5104
      %v5245 = vmul.f32 %v5235, %v5105
      %v5246 = vmul.f32 %v5236, %v5106
      %v5247 = vmul.f32 %v5237, 1.442695
      %v5248 = vpow.pop %v5247
      %v5249 = vmul.f32 %v5238, 1.442695
      %v5250 = vpow.pop %v5249
      %v5251 = vmul.f32 %v5239, 1.442695
      %v5252 = vpow.pop %v5251
      %v5253 = vmul.f32 %v5240, 1.442695
      %v5254 = vpow.pop %v5253
      %v5255 = vmul.f32 %v5241, 1.442695
      %v5256 = vpow.pop %v5255
      %v5257 = vmul.f32 %v5242, 1.442695
      %v5258 = vpow.pop %v5257
      %v5259 = vmul.f32 %v5243, 1.442695
      %v5260 = vpow.pop %v5259
      %v5261 = vmul.f32 %v5244, 1.442695
      %v5262 = vpow.pop %v5261
      %v5263 = vmul.f32 %v5245, 1.442695
      %v5264 = vpow.pop %v5263
      %v5265 = vmul.f32 %v5246, 1.442695
      %v5266 = vpow.pop %v5265
      %v5267 = vmul.f32 %v5217, %v5248
      %v5268 = vmul.f32 %v5218, %v5250
      %v5269 = vmul.f32 %v5219, %v5252
      %v5270 = vmul.f32 %v5220, %v5254
      %v5271 = vmul.f32 %v5221, %v5256
      %v5272 = vmul.f32 %v5222, %v5258
      %v5273 = vmul.f32 %v5223, %v5260
      %v5274 = vmul.f32 %v5224, %v5262
      %v5275 = vmul.f32 %v5225, %v5264
      %v5276 = vmul.f32 %v5226, %v5266
      %v5277 = vsub.f32 1.0, %v5267
      %v5278 = vsub.f32 1.0, %v5268
      %v5279 = vsub.f32 1.0, %v5269
      %v5280 = vsub.f32 1.0, %v5270
      %v5281 = vsub.f32 1.0, %v5271
      %v5282 = vsub.f32 1.0, %v5272
      %v5283 = vsub.f32 1.0, %v5273
      %v5284 = vsub.f32 1.0, %v5274
      %v5285 = vsub.f32 1.0, %v5275
      %v5286 = vsub.f32 1.0, %v5276
      %vm5287 = vcmp.lt.f32.partialorder %v5087, 0.0
      %vm5288 = vcmp.lt.f32.partialorder %v5088, 0.0
      %vm5289 = vcmp.lt.f32.partialorder %v5089, 0.0
      %vm5290 = vcmp.lt.f32.partialorder %v5090, 0.0
      %vm5291 = vcmp.lt.f32.partialorder %v5091, 0.0
      %vm5292 = vcmp.lt.f32.partialorder %v5092, 0.0
      %vm5293 = vcmp.lt.f32.partialorder %v5093, 0.0
      %vm5294 = vcmp.lt.f32.partialorder %v5094, 0.0
      %vm5295 = vcmp.lt.f32.partialorder %v5095, 0.0
      %vm5296 = vcmp.lt.f32.partialorder %v5096, 0.0
      %v5297 = vsub.f32 0.0, %v5277
      %v5298 = vsub.f32 0.0, %v5278
      %v5299 = vsub.f32 0.0, %v5279
      %v5300 = vsub.f32 0.0, %v5280
      %v5301 = vsub.f32 0.0, %v5281
      %v5302 = vsub.f32 0.0, %v5282
      %v5303 = vsub.f32 0.0, %v5283
      %v5304 = vsub.f32 0.0, %v5284
      %v5305 = vsub.f32 0.0, %v5285
      %v5306 = vsub.f32 0.0, %v5286
      %v5307 = vsel %vm5287, %v5297, %v5277
      %v5308 = vsel %vm5288, %v5298, %v5278
      %v5309 = vsel %vm5289, %v5299, %v5279
      %v5310 = vsel %vm5290, %v5300, %v5280
      %v5311 = vsel %vm5291, %v5301, %v5281
      %v5312 = vsel %vm5292, %v5302, %v5282
      %v5313 = vsel %vm5293, %v5303, %v5283
      %v5314 = vsel %vm5294, %v5304, %v5284
      %v5315 = vsel %vm5295, %v5305, %v5285
      %v5316 = vsel %vm5296, %v5306, %v5286
      %v5317 = vadd.f32 %v5307, 1.0
      %v5318 = vadd.f32 %v5308, 1.0
      %v5319 = vadd.f32 %v5309, 1.0
      %v5320 = vadd.f32 %v5310, 1.0
      %v5321 = vadd.f32 %v5311, 1.0
      %v5322 = vadd.f32 %v5312, 1.0
      %v5323 = vadd.f32 %v5313, 1.0
      %v5324 = vadd.f32 %v5314, 1.0
      %v5325 = vadd.f32 %v5315, 1.0
      %v5326 = vadd.f32 %v5316, 1.0
      %v5327 = vmul.f32 %v5077, %v5317
      %v5328 = vmul.f32 %v5078, %v5318
      %v5329 = vmul.f32 %v5079, %v5319
      %v5330 = vmul.f32 %v5080, %v5320
      %v5331 = vmul.f32 %v5081, %v5321
      %v5332 = vmul.f32 %v5082, %v5322
      %v5333 = vmul.f32 %v5083, %v5323
      %v5334 = vmul.f32 %v5084, %v5324
      %v5335 = vmul.f32 %v5085, %v5325
      %v5336 = vmul.f32 %v5086, %v5326
      %v5337 = vmul.f32 %v5327, %v1970
      %v5338 = vmul.f32 %v5328, %v1974
      %v5339 = vmul.f32 %v5329, %v1978
      %v5340 = vmul.f32 %v5330, %v1982
      %v5341 = vmul.f32 %v5331, %v1986
      %v5342 = vmul.f32 %v5332, %v1990
      %v5343 = vmul.f32 %v5333, %v1994
      %v5344 = vmul.f32 %v5334, %v1998
      %v5345 = vmul.f32 %v5335, %v2002
      %v5346 = vmul.f32 %v5336, %v2006
      %v5347 = vpack.c.bf16 %v5337, %v5337
      %v5348 = vpack.c.bf16 %v5338, %v5338
      %v5349 = vpack.c.bf16 %v5339, %v5339
      %v5350 = vpack.c.bf16 %v5340, %v5340
      %v5351 = vpack.c.bf16 %v5341, %v5341
      %v5352 = vpack.c.bf16 %v5342, %v5342
      %v5353 = vpack.c.bf16 %v5343, %v5343
      %v5354 = vpack.c.bf16 %v5344, %v5344
      %v5355 = vpack.c.bf16 %v5345, %v5345
      %v5356 = vpack.c.bf16 %v5346, %v5346
      %v5367 = vrot.slane %v5347, 4
      %v5368 = vrot.slane %v5348, 4
      %v5369 = vrot.slane %v5349, 4
      %v5370 = vrot.slane %v5350, 4
      %v5371 = vrot.slane %v5351, 4
      %v5372 = vrot.slane %v5352, 4
      %v5373 = vrot.slane %v5353, 4
      %v5374 = vrot.slane %v5354, 4
      %v5375 = vrot.slane %v5355, 4
      %v5376 = vrot.slane %v5356, 4
      %5377 = vrot.lane.b32.xlu0 %v5367, 127
      %v5378 = vpop.permute.xlu0 %5377
      %5379 = vrot.lane.b32.xlu0 %v5368, 127
      %v5380 = vpop.permute.xlu0 %5379
      %5381 = vrot.lane.b32.xlu0 %v5369, 127
      %v5382 = vpop.permute.xlu0 %5381
      %5383 = vrot.lane.b32.xlu0 %v5370, 127
      %v5384 = vpop.permute.xlu0 %5383
      %5385 = vrot.lane.b32.xlu0 %v5371, 127
      %v5386 = vpop.permute.xlu0 %5385
      %5387 = vrot.lane.b32.xlu0 %v5372, 127
      %v5388 = vpop.permute.xlu0 %5387
      %5389 = vrot.lane.b32.xlu0 %v5373, 127
      %v5390 = vpop.permute.xlu0 %5389
      %5391 = vrot.lane.b32.xlu0 %v5374, 127
      %v5392 = vpop.permute.xlu0 %5391
      %5393 = vrot.lane.b32.xlu0 %v5375, 127
      %v5394 = vpop.permute.xlu0 %5393
      %5395 = vrot.lane.b32.xlu0 %v5376, 127
      %v5396 = vpop.permute.xlu0 %5395
      %v5397 = vsel %vm845, %v824, %v5378
      %v5398 = vsel %vm845, %v5378, %v5380
      %v5399 = vsel %vm845, %v5380, %v5382
      %v5400 = vsel %vm845, %v5382, %v5384
      %v5401 = vsel %vm845, %v5384, %v5386
      %v5402 = vsel %vm845, %v5386, %v5388
      %v5403 = vsel %vm845, %v5388, %v5390
      %v5404 = vsel %vm845, %v5390, %v5392
      %v5405 = vsel %vm845, %v5392, %v5394
      %v5406 = vsel %vm845, %v5394, %v5396
      %5407 = vrot.lane.b32.xlu0 %v5347, 126
      %v5408 = vpop.permute.xlu0 %5407
      %5409 = vrot.lane.b32.xlu0 %v5348, 126
      %v5410 = vpop.permute.xlu0 %5409
      %5411 = vrot.lane.b32.xlu0 %v5349, 126
      %v5412 = vpop.permute.xlu0 %5411
      %5413 = vrot.lane.b32.xlu0 %v5350, 126
      %v5414 = vpop.permute.xlu0 %5413
      %5415 = vrot.lane.b32.xlu0 %v5351, 126
      %v5416 = vpop.permute.xlu0 %5415
      %5417 = vrot.lane.b32.xlu0 %v5352, 126
      %v5418 = vpop.permute.xlu0 %5417
      %5419 = vrot.lane.b32.xlu0 %v5353, 126
      %v5420 = vpop.permute.xlu0 %5419
      %5421 = vrot.lane.b32.xlu0 %v5354, 126
      %v5422 = vpop.permute.xlu0 %5421
      %5423 = vrot.lane.b32.xlu0 %v5355, 126
      %v5424 = vpop.permute.xlu0 %5423
      %5425 = vrot.lane.b32.xlu0 %v5356, 126
      %v5426 = vpop.permute.xlu0 %5425
      %v5427 = vsel %vm878, %v857, %v5408
      %v5428 = vsel %vm878, %v5408, %v5410
      %v5429 = vsel %vm878, %v5410, %v5412
      %v5430 = vsel %vm878, %v5412, %v5414
      %v5431 = vsel %vm878, %v5414, %v5416
      %v5432 = vsel %vm878, %v5416, %v5418
      %v5433 = vsel %vm878, %v5418, %v5420
      %v5434 = vsel %vm878, %v5420, %v5422
      %v5435 = vsel %vm878, %v5422, %v5424
      %v5436 = vsel %vm878, %v5424, %v5426
      %5437 = vrot.lane.b32.xlu0 %v5367, 94
      %v5438 = vpop.permute.xlu0 %5437
      %5439 = vrot.lane.b32.xlu0 %v5368, 94
      %v5440 = vpop.permute.xlu0 %5439
      %5441 = vrot.lane.b32.xlu0 %v5369, 94
      %v5442 = vpop.permute.xlu0 %5441
      %5443 = vrot.lane.b32.xlu0 %v5370, 94
      %v5444 = vpop.permute.xlu0 %5443
      %5445 = vrot.lane.b32.xlu0 %v5371, 94
      %v5446 = vpop.permute.xlu0 %5445
      %5447 = vrot.lane.b32.xlu0 %v5372, 94
      %v5448 = vpop.permute.xlu0 %5447
      %5449 = vrot.lane.b32.xlu0 %v5373, 94
      %v5450 = vpop.permute.xlu0 %5449
      %5451 = vrot.lane.b32.xlu0 %v5374, 94
      %v5452 = vpop.permute.xlu0 %5451
      %5453 = vrot.lane.b32.xlu0 %v5375, 94
      %v5454 = vpop.permute.xlu0 %5453
      %5455 = vrot.lane.b32.xlu0 %v5376, 94
      %v5456 = vpop.permute.xlu0 %5455
      %v5457 = vsel %vm911, %v890, %v5438
      %v5458 = vsel %vm911, %v5438, %v5440
      %v5459 = vsel %vm911, %v5440, %v5442
      %v5460 = vsel %vm911, %v5442, %v5444
      %v5461 = vsel %vm911, %v5444, %v5446
      %v5462 = vsel %vm911, %v5446, %v5448
      %v5463 = vsel %vm911, %v5448, %v5450
      %v5464 = vsel %vm911, %v5450, %v5452
      %v5465 = vsel %vm911, %v5452, %v5454
      %v5466 = vsel %vm911, %v5454, %v5456
      %5467 = vrot.lane.b32.xlu0 %v5347, 93
      %v5468 = vpop.permute.xlu0 %5467
      %5469 = vrot.lane.b32.xlu0 %v5348, 93
      %v5470 = vpop.permute.xlu0 %5469
      %5471 = vrot.lane.b32.xlu0 %v5349, 93
      %v5472 = vpop.permute.xlu0 %5471
      %5473 = vrot.lane.b32.xlu0 %v5350, 93
      %v5474 = vpop.permute.xlu0 %5473
      %5475 = vrot.lane.b32.xlu0 %v5351, 93
      %v5476 = vpop.permute.xlu0 %5475
      %5477 = vrot.lane.b32.xlu0 %v5352, 93
      %v5478 = vpop.permute.xlu0 %5477
      %5479 = vrot.lane.b32.xlu0 %v5353, 93
      %v5480 = vpop.permute.xlu0 %5479
      %5481 = vrot.lane.b32.xlu0 %v5354, 93
      %v5482 = vpop.permute.xlu0 %5481
      %5483 = vrot.lane.b32.xlu0 %v5355, 93
      %v5484 = vpop.permute.xlu0 %5483
      %5485 = vrot.lane.b32.xlu0 %v5356, 93
      %v5486 = vpop.permute.xlu0 %5485
      %v5487 = vsel %vm942, %v5468, %v5470
      %v5488 = vsel %vm942, %v5470, %v5472
      %v5489 = vsel %vm942, %v5472, %v5474
      %v5490 = vsel %vm942, %v5474, %v5476
      %v5491 = vsel %vm942, %v5476, %v5478
      %v5492 = vsel %vm942, %v5478, %v5480
      %v5493 = vsel %vm942, %v5480, %v5482
      %v5494 = vsel %vm942, %v5482, %v5484
      %v5495 = vsel %vm942, %v5484, %v5486
      %5496 = vrot.lane.b32.xlu0 %v5367, 92
      %v5497 = vpop.permute.xlu0 %5496
      %5498 = vrot.lane.b32.xlu0 %v5368, 92
      %v5499 = vpop.permute.xlu0 %5498
      %5500 = vrot.lane.b32.xlu0 %v5369, 92
      %v5501 = vpop.permute.xlu0 %5500
      %5502 = vrot.lane.b32.xlu0 %v5370, 92
      %v5503 = vpop.permute.xlu0 %5502
      %5504 = vrot.lane.b32.xlu0 %v5371, 92
      %v5505 = vpop.permute.xlu0 %5504
      %5506 = vrot.lane.b32.xlu0 %v5372, 92
      %v5507 = vpop.permute.xlu0 %5506
      %5508 = vrot.lane.b32.xlu0 %v5373, 92
      %v5509 = vpop.permute.xlu0 %5508
      %5510 = vrot.lane.b32.xlu0 %v5374, 92
      %v5511 = vpop.permute.xlu0 %5510
      %5512 = vrot.lane.b32.xlu0 %v5375, 92
      %v5513 = vpop.permute.xlu0 %5512
      %5514 = vrot.lane.b32.xlu0 %v5376, 92
      %v5515 = vpop.permute.xlu0 %5514
      %v5516 = vsel %vm974, %v5497, %v5499
      %v5517 = vsel %vm974, %v5499, %v5501
      %v5518 = vsel %vm974, %v5501, %v5503
      %v5519 = vsel %vm974, %v5503, %v5505
      %v5520 = vsel %vm974, %v5505, %v5507
      %v5521 = vsel %vm974, %v5507, %v5509
      %v5522 = vsel %vm974, %v5509, %v5511
      %v5523 = vsel %vm974, %v5511, %v5513
      %v5524 = vsel %vm974, %v5513, %v5515
      %v5525 = vsel %vm974, %v5515, %v973
      %5526 = vrot.lane.b32.xlu0 %v5347, 60
      %v5527 = vpop.permute.xlu0 %5526
      %5528 = vrot.lane.b32.xlu0 %v5348, 60
      %v5529 = vpop.permute.xlu0 %5528
      %5530 = vrot.lane.b32.xlu0 %v5349, 60
      %v5531 = vpop.permute.xlu0 %5530
      %5532 = vrot.lane.b32.xlu0 %v5350, 60
      %v5533 = vpop.permute.xlu0 %5532
      %5534 = vrot.lane.b32.xlu0 %v5351, 60
      %v5535 = vpop.permute.xlu0 %5534
      %5536 = vrot.lane.b32.xlu0 %v5352, 60
      %v5537 = vpop.permute.xlu0 %5536
      %5538 = vrot.lane.b32.xlu0 %v5353, 60
      %v5539 = vpop.permute.xlu0 %5538
      %5540 = vrot.lane.b32.xlu0 %v5354, 60
      %v5541 = vpop.permute.xlu0 %5540
      %5542 = vrot.lane.b32.xlu0 %v5355, 60
      %v5543 = vpop.permute.xlu0 %5542
      %5544 = vrot.lane.b32.xlu0 %v5356, 60
      %v5545 = vpop.permute.xlu0 %5544
      %v5546 = vsel %vm1007, %v5527, %v5529
      %v5547 = vsel %vm1007, %v5529, %v5531
      %v5548 = vsel %vm1007, %v5531, %v5533
      %v5549 = vsel %vm1007, %v5533, %v5535
      %v5550 = vsel %vm1007, %v5535, %v5537
      %v5551 = vsel %vm1007, %v5537, %v5539
      %v5552 = vsel %vm1007, %v5539, %v5541
      %v5553 = vsel %vm1007, %v5541, %v5543
      %v5554 = vsel %vm1007, %v5543, %v5545
      %v5555 = vsel %vm1007, %v5545, %v1006
      %5556 = vrot.lane.b32.xlu0 %v5367, 59
      %v5557 = vpop.permute.xlu0 %5556
      %5558 = vrot.lane.b32.xlu0 %v5368, 59
      %v5559 = vpop.permute.xlu0 %5558
      %5560 = vrot.lane.b32.xlu0 %v5369, 59
      %v5561 = vpop.permute.xlu0 %5560
      %5562 = vrot.lane.b32.xlu0 %v5370, 59
      %v5563 = vpop.permute.xlu0 %5562
      %5564 = vrot.lane.b32.xlu0 %v5371, 59
      %v5565 = vpop.permute.xlu0 %5564
      %5566 = vrot.lane.b32.xlu0 %v5372, 59
      %v5567 = vpop.permute.xlu0 %5566
      %5568 = vrot.lane.b32.xlu0 %v5373, 59
      %v5569 = vpop.permute.xlu0 %5568
      %5570 = vrot.lane.b32.xlu0 %v5374, 59
      %v5571 = vpop.permute.xlu0 %5570
      %5572 = vrot.lane.b32.xlu0 %v5375, 59
      %v5573 = vpop.permute.xlu0 %5572
      %5574 = vrot.lane.b32.xlu0 %v5376, 59
      %v5575 = vpop.permute.xlu0 %5574
      %v5576 = vsel %vm1040, %v5557, %v5559
      %v5577 = vsel %vm1040, %v5559, %v5561
      %v5578 = vsel %vm1040, %v5561, %v5563
      %v5579 = vsel %vm1040, %v5563, %v5565
      %v5580 = vsel %vm1040, %v5565, %v5567
      %v5581 = vsel %vm1040, %v5567, %v5569
      %v5582 = vsel %vm1040, %v5569, %v5571
      %v5583 = vsel %vm1040, %v5571, %v5573
      %v5584 = vsel %vm1040, %v5573, %v5575
      %v5585 = vsel %vm1040, %v5575, %v1039
      %5586 = vrot.lane.b32.xlu0 %v5347, 58
      %v5587 = vpop.permute.xlu0 %5586
      %5588 = vrot.lane.b32.xlu0 %v5348, 58
      %v5589 = vpop.permute.xlu0 %5588
      %5590 = vrot.lane.b32.xlu0 %v5349, 58
      %v5591 = vpop.permute.xlu0 %5590
      %5592 = vrot.lane.b32.xlu0 %v5350, 58
      %v5593 = vpop.permute.xlu0 %5592
      %5594 = vrot.lane.b32.xlu0 %v5351, 58
      %v5595 = vpop.permute.xlu0 %5594
      %5596 = vrot.lane.b32.xlu0 %v5352, 58
      %v5597 = vpop.permute.xlu0 %5596
      %5598 = vrot.lane.b32.xlu0 %v5353, 58
      %v5599 = vpop.permute.xlu0 %5598
      %5600 = vrot.lane.b32.xlu0 %v5354, 58
      %v5601 = vpop.permute.xlu0 %5600
      %5602 = vrot.lane.b32.xlu0 %v5355, 58
      %v5603 = vpop.permute.xlu0 %5602
      %5604 = vrot.lane.b32.xlu0 %v5356, 58
      %v5605 = vpop.permute.xlu0 %5604
      %v5606 = vsel %vm1073, %v5587, %v5589
      %v5607 = vsel %vm1073, %v5589, %v5591
      %v5608 = vsel %vm1073, %v5591, %v5593
      %v5609 = vsel %vm1073, %v5593, %v5595
      %v5610 = vsel %vm1073, %v5595, %v5597
      %v5611 = vsel %vm1073, %v5597, %v5599
      %v5612 = vsel %vm1073, %v5599, %v5601
      %v5613 = vsel %vm1073, %v5601, %v5603
      %v5614 = vsel %vm1073, %v5603, %v5605
      %v5615 = vsel %vm1073, %v5605, %v1072
      %v5617 = vsel %vm305, 0, %v5397
      %v5620 = vsel %vm305, %v5347, %v5398
      %v5623 = vsel %vm305, %v5348, %v5399
      %v5626 = vsel %vm305, %v5349, %v5400
      %v5629 = vsel %vm305, %v5350, %v5401
      %v5632 = vsel %vm305, %v5351, %v5402
      %v5635 = vsel %vm305, %v5352, %v5403
      %v5638 = vsel %vm305, %v5353, %v5404
      %v5641 = vsel %vm305, %v5354, %v5405
      %v5644 = vsel %vm305, %v5355, %v5406
      %v5647 = vsel %vm305, %v5356, %v5396
      %v5650 = vsel %vm305, %v5427, %v5457
      %v5653 = vsel %vm305, %v5428, %v5458
      %v5656 = vsel %vm305, %v5429, %v5459
      %v5659 = vsel %vm305, %v5430, %v5460
      %v5662 = vsel %vm305, %v5431, %v5461
      %v5665 = vsel %vm305, %v5432, %v5462
      %v5668 = vsel %vm305, %v5433, %v5463
      %v5671 = vsel %vm305, %v5434, %v5464
      %v5674 = vsel %vm305, %v5435, %v5465
      %v5677 = vsel %vm305, %v5436, %v5466
      %v5680 = vsel %vm305, %v5426, %v5456
      %v5683 = vsel %vm305, %v5468, %v5497
      %v5686 = vsel %vm305, %v5487, %v5516
      %v5689 = vsel %vm305, %v5488, %v5517
      %v5692 = vsel %vm305, %v5489, %v5518
      %v5695 = vsel %vm305, %v5490, %v5519
      %v5698 = vsel %vm305, %v5491, %v5520
      %v5701 = vsel %vm305, %v5492, %v5521
      %v5704 = vsel %vm305, %v5493, %v5522
      %v5707 = vsel %vm305, %v5494, %v5523
      %v5710 = vsel %vm305, %v5495, %v5524
      %v5713 = vsel %vm305, %v5486, %v5525
      %v5716 = vsel %vm305, %v5527, %v5557
      %v5719 = vsel %vm305, %v5546, %v5576
      %v5722 = vsel %vm305, %v5547, %v5577
      %v5725 = vsel %vm305, %v5548, %v5578
      %v5728 = vsel %vm305, %v5549, %v5579
      %v5731 = vsel %vm305, %v5550, %v5580
      %v5734 = vsel %vm305, %v5551, %v5581
      %v5737 = vsel %vm305, %v5552, %v5582
      %v5740 = vsel %vm305, %v5553, %v5583
      %v5743 = vsel %vm305, %v5554, %v5584
      %v5746 = vsel %vm305, %v5555, %v5585
      %v5747 = vpack.c.bf16 %v262, %v262
      %5748 = vset.pattern.permute.xlu0 6
      %5749 = vperm.xlu0 %5748, %v271
      %v5750 = vpop.permute.xlu0 %5749
      %5796 = vrot.lane.b32.xlu0 %v5617, 35
      %v5797 = vpop.permute.xlu0 %5796
      %5798 = vrot.lane.b32.xlu0 %v5620, 35
      %v5799 = vpop.permute.xlu0 %5798
      %5800 = vrot.lane.b32.xlu0 %v5623, 35
      %v5801 = vpop.permute.xlu0 %5800
      %5802 = vrot.lane.b32.xlu0 %v5626, 35
      %v5803 = vpop.permute.xlu0 %5802
      %5804 = vrot.lane.b32.xlu0 %v5629, 35
      %v5805 = vpop.permute.xlu0 %5804
      %5806 = vrot.lane.b32.xlu0 %v5632, 35
      %v5807 = vpop.permute.xlu0 %5806
      %5808 = vrot.lane.b32.xlu0 %v5635, 35
      %v5809 = vpop.permute.xlu0 %5808
      %5810 = vrot.lane.b32.xlu0 %v5638, 35
      %v5811 = vpop.permute.xlu0 %5810
      %5812 = vrot.lane.b32.xlu0 %v5641, 35
      %v5813 = vpop.permute.xlu0 %5812
      %5814 = vrot.lane.b32.xlu0 %v5644, 35
      %v5815 = vpop.permute.xlu0 %5814
      %5816 = vrot.lane.b32.xlu0 %v5647, 35
      %v5817 = vpop.permute.xlu0 %5816
      %5818 = vrot.lane.b32.xlu0 %v5650, 35
      %v5819 = vpop.permute.xlu0 %5818
      %5820 = vrot.lane.b32.xlu0 %v5653, 35
      %v5821 = vpop.permute.xlu0 %5820
      %5822 = vrot.lane.b32.xlu0 %v5656, 35
      %v5823 = vpop.permute.xlu0 %5822
      %5824 = vrot.lane.b32.xlu0 %v5659, 35
      %v5825 = vpop.permute.xlu0 %5824
      %5826 = vrot.lane.b32.xlu0 %v5662, 35
      %v5827 = vpop.permute.xlu0 %5826
      %5828 = vrot.lane.b32.xlu0 %v5665, 35
      %v5829 = vpop.permute.xlu0 %5828
      %5830 = vrot.lane.b32.xlu0 %v5668, 35
      %v5831 = vpop.permute.xlu0 %5830
      %5832 = vrot.lane.b32.xlu0 %v5671, 35
      %v5833 = vpop.permute.xlu0 %5832
      %5834 = vrot.lane.b32.xlu0 %v5674, 35
      %v5835 = vpop.permute.xlu0 %5834
      %5836 = vrot.lane.b32.xlu0 %v5677, 35
      %v5837 = vpop.permute.xlu0 %5836
      %5838 = vrot.lane.b32.xlu0 %v5680, 35
      %v5839 = vpop.permute.xlu0 %5838
      %5840 = vrot.lane.b32.xlu0 %v5683, 35
      %v5841 = vpop.permute.xlu0 %5840
      %5842 = vrot.lane.b32.xlu0 %v5686, 35
      %v5843 = vpop.permute.xlu0 %5842
      %5844 = vrot.lane.b32.xlu0 %v5689, 35
      %v5845 = vpop.permute.xlu0 %5844
      %5846 = vrot.lane.b32.xlu0 %v5692, 35
      %v5847 = vpop.permute.xlu0 %5846
      %5848 = vrot.lane.b32.xlu0 %v5695, 35
      %v5849 = vpop.permute.xlu0 %5848
      %5850 = vrot.lane.b32.xlu0 %v5698, 35
      %v5851 = vpop.permute.xlu0 %5850
      %5852 = vrot.lane.b32.xlu0 %v5701, 35
      %v5853 = vpop.permute.xlu0 %5852
      %5854 = vrot.lane.b32.xlu0 %v5704, 35
      %v5855 = vpop.permute.xlu0 %5854
      %5856 = vrot.lane.b32.xlu0 %v5707, 35
      %v5857 = vpop.permute.xlu0 %5856
      %5858 = vrot.lane.b32.xlu0 %v5710, 35
      %v5859 = vpop.permute.xlu0 %5858
      %5860 = vrot.lane.b32.xlu0 %v5713, 35
      %v5861 = vpop.permute.xlu0 %5860
      %5862 = vrot.lane.b32.xlu0 %v5716, 35
      %v5863 = vpop.permute.xlu0 %5862
      %5864 = vrot.lane.b32.xlu0 %v5719, 35
      %v5865 = vpop.permute.xlu0 %5864
      %5866 = vrot.lane.b32.xlu0 %v5722, 35
      %v5867 = vpop.permute.xlu0 %5866
      %5868 = vrot.lane.b32.xlu0 %v5725, 35
      %v5869 = vpop.permute.xlu0 %5868
      %5870 = vrot.lane.b32.xlu0 %v5728, 35
      %v5871 = vpop.permute.xlu0 %5870
      %5872 = vrot.lane.b32.xlu0 %v5731, 35
      %v5873 = vpop.permute.xlu0 %5872
      %5874 = vrot.lane.b32.xlu0 %v5734, 35
      %v5875 = vpop.permute.xlu0 %5874
      %5876 = vrot.lane.b32.xlu0 %v5737, 35
      %v5877 = vpop.permute.xlu0 %5876
      %5878 = vrot.lane.b32.xlu0 %v5740, 35
      %v5879 = vpop.permute.xlu0 %5878
      %5880 = vrot.lane.b32.xlu0 %v5743, 35
      %v5881 = vpop.permute.xlu0 %5880
      %5882 = vrot.lane.b32.xlu0 %v5746, 35
      %v5883 = vpop.permute.xlu0 %5882
      %5884 = vrot.lane.b32.xlu0 %v5587, 35
      %v5885 = vpop.permute.xlu0 %5884
      %5886 = vrot.lane.b32.xlu0 %v5606, 35
      %v5887 = vpop.permute.xlu0 %5886
      %5888 = vrot.lane.b32.xlu0 %v5607, 35
      %v5889 = vpop.permute.xlu0 %5888
      %5890 = vrot.lane.b32.xlu0 %v5608, 35
      %v5891 = vpop.permute.xlu0 %5890
      %5892 = vrot.lane.b32.xlu0 %v5609, 35
      %v5893 = vpop.permute.xlu0 %5892
      %5894 = vrot.lane.b32.xlu0 %v5610, 35
      %v5895 = vpop.permute.xlu0 %5894
      %5896 = vrot.lane.b32.xlu0 %v5611, 35
      %v5897 = vpop.permute.xlu0 %5896
      %5898 = vrot.lane.b32.xlu0 %v5612, 35
      %v5899 = vpop.permute.xlu0 %5898
      %5900 = vrot.lane.b32.xlu0 %v5613, 35
      %v5901 = vpop.permute.xlu0 %5900
      %5902 = vrot.lane.b32.xlu0 %v5614, 35
      %v5903 = vpop.permute.xlu0 %5902
      %5904 = vrot.lane.b32.xlu0 %v5615, 35
      %v5905 = vpop.permute.xlu0 %5904
      %v5906 = vsel %vm1365, %v5797, %v5799
      %v5907 = vsel %vm1365, %v5799, %v5801
      %v5908 = vsel %vm1365, %v5801, %v5803
      %v5909 = vsel %vm1365, %v5803, %v5805
      %v5910 = vsel %vm1365, %v5805, %v5807
      %v5911 = vsel %vm1365, %v5807, %v5809
      %v5912 = vsel %vm1365, %v5809, %v5811
      %v5913 = vsel %vm1365, %v5811, %v5813
      %v5914 = vsel %vm1365, %v5813, %v5815
      %v5915 = vsel %vm1365, %v5815, %v5817
      %v5916 = vsel %vm1365, %v5819, %v5821
      %v5917 = vsel %vm1365, %v5821, %v5823
      %v5918 = vsel %vm1365, %v5823, %v5825
      %v5919 = vsel %vm1365, %v5825, %v5827
      %v5920 = vsel %vm1365, %v5827, %v5829
      %v5921 = vsel %vm1365, %v5829, %v5831
      %v5922 = vsel %vm1365, %v5831, %v5833
      %v5923 = vsel %vm1365, %v5833, %v5835
      %v5924 = vsel %vm1365, %v5835, %v5837
      %v5925 = vsel %vm1365, %v5837, %v5839
      %v5926 = vsel %vm1365, %v5841, %v5843
      %v5927 = vsel %vm1365, %v5843, %v5845
      %v5928 = vsel %vm1365, %v5845, %v5847
      %v5929 = vsel %vm1365, %v5847, %v5849
      %v5930 = vsel %vm1365, %v5849, %v5851
      %v5931 = vsel %vm1365, %v5851, %v5853
      %v5932 = vsel %vm1365, %v5853, %v5855
      %v5933 = vsel %vm1365, %v5855, %v5857
      %v5934 = vsel %vm1365, %v5857, %v5859
      %v5935 = vsel %vm1365, %v5859, %v5861
      %v5936 = vsel %vm1365, %v5863, %v5865
      %v5937 = vsel %vm1365, %v5865, %v5867
      %v5938 = vsel %vm1365, %v5867, %v5869
      %v5939 = vsel %vm1365, %v5869, %v5871
      %v5940 = vsel %vm1365, %v5871, %v5873
      %v5941 = vsel %vm1365, %v5873, %v5875
      %v5942 = vsel %vm1365, %v5875, %v5877
      %v5943 = vsel %vm1365, %v5877, %v5879
      %v5944 = vsel %vm1365, %v5879, %v5881
      %v5945 = vsel %vm1365, %v5881, %v5883
      %v5946 = vsel %vm1365, %v5885, %v5887
      %v5947 = vsel %vm1365, %v5887, %v5889
      %v5948 = vsel %vm1365, %v5889, %v5891
      %v5949 = vsel %vm1365, %v5891, %v5893
      %v5950 = vsel %vm1365, %v5893, %v5895
      %v5951 = vsel %vm1365, %v5895, %v5897
      %v5952 = vsel %vm1365, %v5897, %v5899
      %v5953 = vsel %vm1365, %v5899, %v5901
      %v5954 = vsel %vm1365, %v5901, %v5903
      %v5955 = vsel %vm1365, %v5903, %v5905
      %v5997 = vsel %vm1456, %v5747, 0
      %v6000 = vsel %vm305, %v5946, 0
      %v6003 = vsel %vm305, %v5947, 0
      %v6006 = vsel %vm305, %v5948, 0
      %v6009 = vsel %vm305, %v5949, 0
      %v6012 = vsel %vm305, %v5950, 0
      %v6015 = vsel %vm305, %v5951, 0
      %v6018 = vsel %vm305, %v5952, 0
      %v6021 = vsel %vm305, %v5953, 0
      %v6024 = vsel %vm305, %v5954, 0
      %v6027 = vsel %vm305, %v5955, 0
      %6029 = vmatprep.subr.bf16.mxu0 0
      %6030 = vmatpush1.bf16.msra.mxu0 0
      %6031 = vmatprep.subr.bf16.mxu0 0
      %6032 = vmatpush1.bf16.msra.mxu0 0
      %6033 = vmatprep.subr.bf16.mxu0 0
      %6034 = vmatpush1.bf16.msra.mxu0 0
      %6035 = vmatprep.subr.bf16.mxu0 %v6003
      %6036 = vmatpush1.bf16.msra.mxu0 %v6000
      %6037 = vmatprep.subr.bf16.mxu0 %v5937
      %6038 = vmatpush1.bf16.msra.mxu0 %v5936
      %6039 = vmatprep.subr.bf16.mxu0 %v5927
      %6040 = vmatpush1.bf16.msra.mxu0 %v5926
      %6041 = vmatprep.subr.bf16.mxu0 %v5917
      %6042 = vmatpush1.bf16.msra.mxu0 %v5916
      %6043 = vmatprep.subr.bf16.mxu0 %v5907
      %6044 = vmatpush1.bf16.msra.mxu0 %v5906
      %6045 = vmatprep.subr.bf16.mxu0 0
      %6046 = vmatpush2.bf16.msra.mxu0 0
      %6047 = vmatprep.subr.bf16.mxu0 0
      %6048 = vmatpush2.bf16.msra.mxu0 0
      %6049 = vmatprep.subr.bf16.mxu0 0
      %6050 = vmatpush2.bf16.msra.mxu0 0
      %6051 = vmatprep.subr.bf16.mxu0 0
      %6052 = vmatpush2.bf16.msra.mxu0 0
      %6053 = vmatprep.subr.bf16.mxu0 0
      %6054 = vmatpush2.bf16.msra.mxu0 0
      %6055 = vmatprep.subr.bf16.mxu0 0
      %6056 = vmatpush2.bf16.msra.mxu0 0
      %6057 = vmatprep.subr.bf16.mxu0 0
      %6058 = vmatpush2.bf16.msra.mxu0 0
      %6059 = vmatprep.subr.bf16.mxu0 0
      %6060 = vmatpush2.bf16.msra.mxu0 0
      %6061 = vmatprep.mubr.bf16.mxu0 0
      %6062 = vmatmul.mubr.bf16.gmra.mxu0 %v5997
      %v6063 = vpop.f32.mrf.mxu0
      %v6064 = vadd.f32 %v5750, %v6063
      %v6065 = vpop.f32.mrf.mxu0
      %v6066 = vadd.f32 %v5750, %v6065
      %v6067 = vpop.f32.mrf.mxu0
      %v6068 = vpop.f32.mrf.mxu0
      %6069 = vdwg.mxu0
      %6070 = vmatprep.subr.bf16.mxu0 0
      %6071 = vmatpush1.bf16.msra.mxu0 0
      %6072 = vmatprep.subr.bf16.mxu0 0
      %6073 = vmatpush1.bf16.msra.mxu0 0
      %6074 = vmatprep.subr.bf16.mxu0 0
      %6075 = vmatpush1.bf16.msra.mxu0 0
      %6076 = vmatprep.subr.bf16.mxu0 %v6009
      %6077 = vmatpush1.bf16.msra.mxu0 %v6006
      %6078 = vmatprep.subr.bf16.mxu0 %v5939
      %6079 = vmatpush1.bf16.msra.mxu0 %v5938
      %6080 = vmatprep.subr.bf16.mxu0 %v5929
      %6081 = vmatpush1.bf16.msra.mxu0 %v5928
      %6082 = vmatprep.subr.bf16.mxu0 %v5919
      %6083 = vmatpush1.bf16.msra.mxu0 %v5918
      %6084 = vmatprep.subr.bf16.mxu0 %v5909
      %6085 = vmatpush1.bf16.msra.mxu0 %v5908
      %6086 = vmatprep.subr.bf16.mxu0 0
      %6087 = vmatpush2.bf16.msra.mxu0 0
      %6088 = vmatprep.subr.bf16.mxu0 0
      %6089 = vmatpush2.bf16.msra.mxu0 0
      %6090 = vmatprep.subr.bf16.mxu0 0
      %6091 = vmatpush2.bf16.msra.mxu0 0
      %6092 = vmatprep.subr.bf16.mxu0 0
      %6093 = vmatpush2.bf16.msra.mxu0 0
      %6094 = vmatprep.subr.bf16.mxu0 0
      %6095 = vmatpush2.bf16.msra.mxu0 0
      %6096 = vmatprep.subr.bf16.mxu0 0
      %6097 = vmatpush2.bf16.msra.mxu0 0
      %6098 = vmatprep.subr.bf16.mxu0 0
      %6099 = vmatpush2.bf16.msra.mxu0 0
      %6100 = vmatprep.subr.bf16.mxu0 0
      %6101 = vmatpush2.bf16.msra.mxu0 0
      %6102 = vmatprep.mubr.bf16.mxu0 0
      %6103 = vmatmul.mubr.bf16.gmra.mxu0 %v5997
      %v6104 = vpop.f32.mrf.mxu0
      %v6105 = vadd.f32 %v5750, %v6104
      %v6106 = vpop.f32.mrf.mxu0
      %v6107 = vadd.f32 %v5750, %v6106
      %v6108 = vpop.f32.mrf.mxu0
      %v6109 = vpop.f32.mrf.mxu0
      %6110 = vdwg.mxu0
      %6111 = vmatprep.subr.bf16.mxu0 0
      %6112 = vmatpush1.bf16.msra.mxu0 0
      %6113 = vmatprep.subr.bf16.mxu0 0
      %6114 = vmatpush1.bf16.msra.mxu0 0
      %6115 = vmatprep.subr.bf16.mxu0 0
      %6116 = vmatpush1.bf16.msra.mxu0 0
      %6117 = vmatprep.subr.bf16.mxu0 %v6015
      %6118 = vmatpush1.bf16.msra.mxu0 %v6012
      %6119 = vmatprep.subr.bf16.mxu0 %v5941
      %6120 = vmatpush1.bf16.msra.mxu0 %v5940
      %6121 = vmatprep.subr.bf16.mxu0 %v5931
      %6122 = vmatpush1.bf16.msra.mxu0 %v5930
      %6123 = vmatprep.subr.bf16.mxu0 %v5921
      %6124 = vmatpush1.bf16.msra.mxu0 %v5920
      %6125 = vmatprep.subr.bf16.mxu0 %v5911
      %6126 = vmatpush1.bf16.msra.mxu0 %v5910
      %6127 = vmatprep.subr.bf16.mxu0 0
      %6128 = vmatpush2.bf16.msra.mxu0 0
      %6129 = vmatprep.subr.bf16.mxu0 0
      %6130 = vmatpush2.bf16.msra.mxu0 0
      %6131 = vmatprep.subr.bf16.mxu0 0
      %6132 = vmatpush2.bf16.msra.mxu0 0
      %6133 = vmatprep.subr.bf16.mxu0 0
      %6134 = vmatpush2.bf16.msra.mxu0 0
      %6135 = vmatprep.subr.bf16.mxu0 0
      %6136 = vmatpush2.bf16.msra.mxu0 0
      %6137 = vmatprep.subr.bf16.mxu0 0
      %6138 = vmatpush2.bf16.msra.mxu0 0
      %6139 = vmatprep.subr.bf16.mxu0 0
      %6140 = vmatpush2.bf16.msra.mxu0 0
      %6141 = vmatprep.subr.bf16.mxu0 0
      %6142 = vmatpush2.bf16.msra.mxu0 0
      %6143 = vmatprep.mubr.bf16.mxu0 0
      %6144 = vmatmul.mubr.bf16.gmra.mxu0 %v5997
      %v6145 = vpop.f32.mrf.mxu0
      %v6146 = vadd.f32 %v5750, %v6145
      %v6147 = vpop.f32.mrf.mxu0
      %v6148 = vadd.f32 %v5750, %v6147
      %v6149 = vpop.f32.mrf.mxu0
      %v6150 = vpop.f32.mrf.mxu0
      %6151 = vdwg.mxu0
      %6152 = vmatprep.subr.bf16.mxu0 0
      %6153 = vmatpush1.bf16.msra.mxu0 0
      %6154 = vmatprep.subr.bf16.mxu0 0
      %6155 = vmatpush1.bf16.msra.mxu0 0
      %6156 = vmatprep.subr.bf16.mxu0 0
      %6157 = vmatpush1.bf16.msra.mxu0 0
      %6158 = vmatprep.subr.bf16.mxu0 %v6021
      %6159 = vmatpush1.bf16.msra.mxu0 %v6018
      %6160 = vmatprep.subr.bf16.mxu0 %v5943
      %6161 = vmatpush1.bf16.msra.mxu0 %v5942
      %6162 = vmatprep.subr.bf16.mxu0 %v5933
      %6163 = vmatpush1.bf16.msra.mxu0 %v5932
      %6164 = vmatprep.subr.bf16.mxu0 %v5923
      %6165 = vmatpush1.bf16.msra.mxu0 %v5922
      %6166 = vmatprep.subr.bf16.mxu0 %v5913
      %6167 = vmatpush1.bf16.msra.mxu0 %v5912
      %6168 = vmatprep.subr.bf16.mxu0 0
      %6169 = vmatpush2.bf16.msra.mxu0 0
      %6170 = vmatprep.subr.bf16.mxu0 0
      %6171 = vmatpush2.bf16.msra.mxu0 0
      %6172 = vmatprep.subr.bf16.mxu0 0
      %6173 = vmatpush2.bf16.msra.mxu0 0
      %6174 = vmatprep.subr.bf16.mxu0 0
      %6175 = vmatpush2.bf16.msra.mxu0 0
      %6176 = vmatprep.subr.bf16.mxu0 0
      %6177 = vmatpush2.bf16.msra.mxu0 0
      %6178 = vmatprep.subr.bf16.mxu0 0
      %6179 = vmatpush2.bf16.msra.mxu0 0
      %6180 = vmatprep.subr.bf16.mxu0 0
      %6181 = vmatpush2.bf16.msra.mxu0 0
      %6182 = vmatprep.subr.bf16.mxu0 0
      %6183 = vmatpush2.bf16.msra.mxu0 0
      %6184 = vmatprep.mubr.bf16.mxu0 0
      %6185 = vmatmul.mubr.bf16.gmra.mxu0 %v5997
      %v6186 = vpop.f32.mrf.mxu0
      %v6187 = vadd.f32 %v5750, %v6186
      %v6188 = vpop.f32.mrf.mxu0
      %v6189 = vadd.f32 %v5750, %v6188
      %v6190 = vpop.f32.mrf.mxu0
      %v6191 = vpop.f32.mrf.mxu0
      %6192 = vdwg.mxu0
      %6193 = vmatprep.subr.bf16.mxu0 0
      %6194 = vmatpush1.bf16.msra.mxu0 0
      %6195 = vmatprep.subr.bf16.mxu0 0
      %6196 = vmatpush1.bf16.msra.mxu0 0
      %6197 = vmatprep.subr.bf16.mxu0 0
      %6198 = vmatpush1.bf16.msra.mxu0 0
      %6199 = vmatprep.subr.bf16.mxu0 %v6027
      %6200 = vmatpush1.bf16.msra.mxu0 %v6024
      %6201 = vmatprep.subr.bf16.mxu0 %v5945
      %6202 = vmatpush1.bf16.msra.mxu0 %v5944
      %6203 = vmatprep.subr.bf16.mxu0 %v5935
      %6204 = vmatpush1.bf16.msra.mxu0 %v5934
      %6205 = vmatprep.subr.bf16.mxu0 %v5925
      %6206 = vmatpush1.bf16.msra.mxu0 %v5924
      %6207 = vmatprep.subr.bf16.mxu0 %v5915
      %6208 = vmatpush1.bf16.msra.mxu0 %v5914
      %6209 = vmatprep.subr.bf16.mxu0 0
      %6210 = vmatpush2.bf16.msra.mxu0 0
      %6211 = vmatprep.subr.bf16.mxu0 0
      %6212 = vmatpush2.bf16.msra.mxu0 0
      %6213 = vmatprep.subr.bf16.mxu0 0
      %6214 = vmatpush2.bf16.msra.mxu0 0
      %6215 = vmatprep.subr.bf16.mxu0 0
      %6216 = vmatpush2.bf16.msra.mxu0 0
      %6217 = vmatprep.subr.bf16.mxu0 0
      %6218 = vmatpush2.bf16.msra.mxu0 0
      %6219 = vmatprep.subr.bf16.mxu0 0
      %6220 = vmatpush2.bf16.msra.mxu0 0
      %6221 = vmatprep.subr.bf16.mxu0 0
      %6222 = vmatpush2.bf16.msra.mxu0 0
      %6223 = vmatprep.subr.bf16.mxu0 0
      %6224 = vmatpush2.bf16.msra.mxu0 0
      %6225 = vmatprep.mubr.bf16.mxu0 0
      %6226 = vmatmul.mubr.bf16.gmra.mxu0 %v5997
      %v6227 = vpop.f32.mrf.mxu0
      %v6228 = vadd.f32 %v5750, %v6227
      %v6229 = vpop.f32.mrf.mxu0
      %v6230 = vadd.f32 %v5750, %v6229
      %v6231 = vpop.f32.mrf.mxu0
      %v6232 = vpop.f32.mrf.mxu0
      %6233 = vdwg.mxu0
      %v6234 = vmul.f32 %v6064, 0.5
      %v6235 = vmul.f32 %v6066, 0.5
      %v6236 = vmul.f32 %v6105, 0.5
      %v6237 = vmul.f32 %v6107, 0.5
      %v6238 = vmul.f32 %v6146, 0.5
      %v6239 = vmul.f32 %v6148, 0.5
      %v6240 = vmul.f32 %v6187, 0.5
      %v6241 = vmul.f32 %v6189, 0.5
      %v6242 = vmul.f32 %v6228, 0.5
      %v6243 = vmul.f32 %v6230, 0.5
      %v6244 = vmul.f32 %v6064, 0.70710677
      %v6245 = vmul.f32 %v6066, 0.70710677
      %v6246 = vmul.f32 %v6105, 0.70710677
      %v6247 = vmul.f32 %v6107, 0.70710677
      %v6248 = vmul.f32 %v6146, 0.70710677
      %v6249 = vmul.f32 %v6148, 0.70710677
      %v6250 = vmul.f32 %v6187, 0.70710677
      %v6251 = vmul.f32 %v6189, 0.70710677
      %v6252 = vmul.f32 %v6228, 0.70710677
      %v6253 = vmul.f32 %v6230, 0.70710677
      %v6254 = vand.u32 2147483647, %v6244
      %v6255 = vand.u32 2147483647, %v6245
      %v6256 = vand.u32 2147483647, %v6246
      %v6257 = vand.u32 2147483647, %v6247
      %v6258 = vand.u32 2147483647, %v6248
      %v6259 = vand.u32 2147483647, %v6249
      %v6260 = vand.u32 2147483647, %v6250
      %v6261 = vand.u32 2147483647, %v6251
      %v6262 = vand.u32 2147483647, %v6252
      %v6263 = vand.u32 2147483647, %v6253
      %v6264 = vmul.f32 %v6254, 0.3275911
      %v6265 = vmul.f32 %v6255, 0.3275911
      %v6266 = vmul.f32 %v6256, 0.3275911
      %v6267 = vmul.f32 %v6257, 0.3275911
      %v6268 = vmul.f32 %v6258, 0.3275911
      %v6269 = vmul.f32 %v6259, 0.3275911
      %v6270 = vmul.f32 %v6260, 0.3275911
      %v6271 = vmul.f32 %v6261, 0.3275911
      %v6272 = vmul.f32 %v6262, 0.3275911
      %v6273 = vmul.f32 %v6263, 0.3275911
      %v6274 = vadd.f32 %v6264, 1.0
      %v6275 = vadd.f32 %v6265, 1.0
      %v6276 = vadd.f32 %v6266, 1.0
      %v6277 = vadd.f32 %v6267, 1.0
      %v6278 = vadd.f32 %v6268, 1.0
      %v6279 = vadd.f32 %v6269, 1.0
      %v6280 = vadd.f32 %v6270, 1.0
      %v6281 = vadd.f32 %v6271, 1.0
      %v6282 = vadd.f32 %v6272, 1.0
      %v6283 = vadd.f32 %v6273, 1.0
      %v6284 = vrcp.pop %v6274
      %v6285 = vrcp.pop %v6275
      %v6286 = vrcp.pop %v6276
      %v6287 = vrcp.pop %v6277
      %v6288 = vrcp.pop %v6278
      %v6289 = vrcp.pop %v6279
      %v6290 = vrcp.pop %v6280
      %v6291 = vrcp.pop %v6281
      %v6292 = vrcp.pop %v6282
      %v6293 = vrcp.pop %v6283
      %v6294 = vmul.f32 %v6284, 1.0614054
      %v6295 = vmul.f32 %v6285, 1.0614054
      %v6296 = vmul.f32 %v6286, 1.0614054
      %v6297 = vmul.f32 %v6287, 1.0614054
      %v6298 = vmul.f32 %v6288, 1.0614054
      %v6299 = vmul.f32 %v6289, 1.0614054
      %v6300 = vmul.f32 %v6290, 1.0614054
      %v6301 = vmul.f32 %v6291, 1.0614054
      %v6302 = vmul.f32 %v6292, 1.0614054
      %v6303 = vmul.f32 %v6293, 1.0614054
      %v6304 = vadd.f32 %v6294, -1.4531521
      %v6305 = vadd.f32 %v6295, -1.4531521
      %v6306 = vadd.f32 %v6296, -1.4531521
      %v6307 = vadd.f32 %v6297, -1.4531521
      %v6308 = vadd.f32 %v6298, -1.4531521
      %v6309 = vadd.f32 %v6299, -1.4531521
      %v6310 = vadd.f32 %v6300, -1.4531521
      %v6311 = vadd.f32 %v6301, -1.4531521
      %v6312 = vadd.f32 %v6302, -1.4531521
      %v6313 = vadd.f32 %v6303, -1.4531521
      %v6314 = vmul.f32 %v6304, %v6284
      %v6315 = vmul.f32 %v6305, %v6285
      %v6316 = vmul.f32 %v6306, %v6286
      %v6317 = vmul.f32 %v6307, %v6287
      %v6318 = vmul.f32 %v6308, %v6288
      %v6319 = vmul.f32 %v6309, %v6289
      %v6320 = vmul.f32 %v6310, %v6290
      %v6321 = vmul.f32 %v6311, %v6291
      %v6322 = vmul.f32 %v6312, %v6292
      %v6323 = vmul.f32 %v6313, %v6293
      %v6324 = vadd.f32 %v6314, 1.4214138
      %v6325 = vadd.f32 %v6315, 1.4214138
      %v6326 = vadd.f32 %v6316, 1.4214138
      %v6327 = vadd.f32 %v6317, 1.4214138
      %v6328 = vadd.f32 %v6318, 1.4214138
      %v6329 = vadd.f32 %v6319, 1.4214138
      %v6330 = vadd.f32 %v6320, 1.4214138
      %v6331 = vadd.f32 %v6321, 1.4214138
      %v6332 = vadd.f32 %v6322, 1.4214138
      %v6333 = vadd.f32 %v6323, 1.4214138
      %v6334 = vmul.f32 %v6324, %v6284
      %v6335 = vmul.f32 %v6325, %v6285
      %v6336 = vmul.f32 %v6326, %v6286
      %v6337 = vmul.f32 %v6327, %v6287
      %v6338 = vmul.f32 %v6328, %v6288
      %v6339 = vmul.f32 %v6329, %v6289
      %v6340 = vmul.f32 %v6330, %v6290
      %v6341 = vmul.f32 %v6331, %v6291
      %v6342 = vmul.f32 %v6332, %v6292
      %v6343 = vmul.f32 %v6333, %v6293
      %v6344 = vadd.f32 %v6334, -0.28449672
      %v6345 = vadd.f32 %v6335, -0.28449672
      %v6346 = vadd.f32 %v6336, -0.28449672
      %v6347 = vadd.f32 %v6337, -0.28449672
      %v6348 = vadd.f32 %v6338, -0.28449672
      %v6349 = vadd.f32 %v6339, -0.28449672
      %v6350 = vadd.f32 %v6340, -0.28449672
      %v6351 = vadd.f32 %v6341, -0.28449672
      %v6352 = vadd.f32 %v6342, -0.28449672
      %v6353 = vadd.f32 %v6343, -0.28449672
      %v6354 = vmul.f32 %v6344, %v6284
      %v6355 = vmul.f32 %v6345, %v6285
      %v6356 = vmul.f32 %v6346, %v6286
      %v6357 = vmul.f32 %v6347, %v6287
      %v6358 = vmul.f32 %v6348, %v6288
      %v6359 = vmul.f32 %v6349, %v6289
      %v6360 = vmul.f32 %v6350, %v6290
      %v6361 = vmul.f32 %v6351, %v6291
      %v6362 = vmul.f32 %v6352, %v6292
      %v6363 = vmul.f32 %v6353, %v6293
      %v6364 = vadd.f32 %v6354, 0.2548296
      %v6365 = vadd.f32 %v6355, 0.2548296
      %v6366 = vadd.f32 %v6356, 0.2548296
      %v6367 = vadd.f32 %v6357, 0.2548296
      %v6368 = vadd.f32 %v6358, 0.2548296
      %v6369 = vadd.f32 %v6359, 0.2548296
      %v6370 = vadd.f32 %v6360, 0.2548296
      %v6371 = vadd.f32 %v6361, 0.2548296
      %v6372 = vadd.f32 %v6362, 0.2548296
      %v6373 = vadd.f32 %v6363, 0.2548296
      %v6374 = vmul.f32 %v6364, %v6284
      %v6375 = vmul.f32 %v6365, %v6285
      %v6376 = vmul.f32 %v6366, %v6286
      %v6377 = vmul.f32 %v6367, %v6287
      %v6378 = vmul.f32 %v6368, %v6288
      %v6379 = vmul.f32 %v6369, %v6289
      %v6380 = vmul.f32 %v6370, %v6290
      %v6381 = vmul.f32 %v6371, %v6291
      %v6382 = vmul.f32 %v6372, %v6292
      %v6383 = vmul.f32 %v6373, %v6293
      %v6384 = vsub.f32 0.0, %v6254
      %v6385 = vsub.f32 0.0, %v6255
      %v6386 = vsub.f32 0.0, %v6256
      %v6387 = vsub.f32 0.0, %v6257
      %v6388 = vsub.f32 0.0, %v6258
      %v6389 = vsub.f32 0.0, %v6259
      %v6390 = vsub.f32 0.0, %v6260
      %v6391 = vsub.f32 0.0, %v6261
      %v6392 = vsub.f32 0.0, %v6262
      %v6393 = vsub.f32 0.0, %v6263
      %v6394 = vmul.f32 %v6384, %v6254
      %v6395 = vmul.f32 %v6385, %v6255
      %v6396 = vmul.f32 %v6386, %v6256
      %v6397 = vmul.f32 %v6387, %v6257
      %v6398 = vmul.f32 %v6388, %v6258
      %v6399 = vmul.f32 %v6389, %v6259
      %v6400 = vmul.f32 %v6390, %v6260
      %v6401 = vmul.f32 %v6391, %v6261
      %v6402 = vmul.f32 %v6392, %v6262
      %v6403 = vmul.f32 %v6393, %v6263
      %v6404 = vmul.f32 %v6394, 1.442695
      %v6405 = vpow.pop %v6404
      %v6406 = vmul.f32 %v6395, 1.442695
      %v6407 = vpow.pop %v6406
      %v6408 = vmul.f32 %v6396, 1.442695
      %v6409 = vpow.pop %v6408
      %v6410 = vmul.f32 %v6397, 1.442695
      %v6411 = vpow.pop %v6410
      %v6412 = vmul.f32 %v6398, 1.442695
      %v6413 = vpow.pop %v6412
      %v6414 = vmul.f32 %v6399, 1.442695
      %v6415 = vpow.pop %v6414
      %v6416 = vmul.f32 %v6400, 1.442695
      %v6417 = vpow.pop %v6416
      %v6418 = vmul.f32 %v6401, 1.442695
      %v6419 = vpow.pop %v6418
      %v6420 = vmul.f32 %v6402, 1.442695
      %v6421 = vpow.pop %v6420
      %v6422 = vmul.f32 %v6403, 1.442695
      %v6423 = vpow.pop %v6422
      %v6424 = vmul.f32 %v6374, %v6405
      %v6425 = vmul.f32 %v6375, %v6407
      %v6426 = vmul.f32 %v6376, %v6409
      %v6427 = vmul.f32 %v6377, %v6411
      %v6428 = vmul.f32 %v6378, %v6413
      %v6429 = vmul.f32 %v6379, %v6415
      %v6430 = vmul.f32 %v6380, %v6417
      %v6431 = vmul.f32 %v6381, %v6419
      %v6432 = vmul.f32 %v6382, %v6421
      %v6433 = vmul.f32 %v6383, %v6423
      %v6434 = vsub.f32 1.0, %v6424
      %v6435 = vsub.f32 1.0, %v6425
      %v6436 = vsub.f32 1.0, %v6426
      %v6437 = vsub.f32 1.0, %v6427
      %v6438 = vsub.f32 1.0, %v6428
      %v6439 = vsub.f32 1.0, %v6429
      %v6440 = vsub.f32 1.0, %v6430
      %v6441 = vsub.f32 1.0, %v6431
      %v6442 = vsub.f32 1.0, %v6432
      %v6443 = vsub.f32 1.0, %v6433
      %vm6444 = vcmp.lt.f32.partialorder %v6244, 0.0
      %vm6445 = vcmp.lt.f32.partialorder %v6245, 0.0
      %vm6446 = vcmp.lt.f32.partialorder %v6246, 0.0
      %vm6447 = vcmp.lt.f32.partialorder %v6247, 0.0
      %vm6448 = vcmp.lt.f32.partialorder %v6248, 0.0
      %vm6449 = vcmp.lt.f32.partialorder %v6249, 0.0
      %vm6450 = vcmp.lt.f32.partialorder %v6250, 0.0
      %vm6451 = vcmp.lt.f32.partialorder %v6251, 0.0
      %vm6452 = vcmp.lt.f32.partialorder %v6252, 0.0
      %vm6453 = vcmp.lt.f32.partialorder %v6253, 0.0
      %v6454 = vsub.f32 0.0, %v6434
      %v6455 = vsub.f32 0.0, %v6435
      %v6456 = vsub.f32 0.0, %v6436
      %v6457 = vsub.f32 0.0, %v6437
      %v6458 = vsub.f32 0.0, %v6438
      %v6459 = vsub.f32 0.0, %v6439
      %v6460 = vsub.f32 0.0, %v6440
      %v6461 = vsub.f32 0.0, %v6441
      %v6462 = vsub.f32 0.0, %v6442
      %v6463 = vsub.f32 0.0, %v6443
      %v6464 = vsel %vm6444, %v6454, %v6434
      %v6465 = vsel %vm6445, %v6455, %v6435
      %v6466 = vsel %vm6446, %v6456, %v6436
      %v6467 = vsel %vm6447, %v6457, %v6437
      %v6468 = vsel %vm6448, %v6458, %v6438
      %v6469 = vsel %vm6449, %v6459, %v6439
      %v6470 = vsel %vm6450, %v6460, %v6440
      %v6471 = vsel %vm6451, %v6461, %v6441
      %v6472 = vsel %vm6452, %v6462, %v6442
      %v6473 = vsel %vm6453, %v6463, %v6443
      %v6474 = vadd.f32 %v6464, 1.0
      %v6475 = vadd.f32 %v6465, 1.0
      %v6476 = vadd.f32 %v6466, 1.0
      %v6477 = vadd.f32 %v6467, 1.0
      %v6478 = vadd.f32 %v6468, 1.0
      %v6479 = vadd.f32 %v6469, 1.0
      %v6480 = vadd.f32 %v6470, 1.0
      %v6481 = vadd.f32 %v6471, 1.0
      %v6482 = vadd.f32 %v6472, 1.0
      %v6483 = vadd.f32 %v6473, 1.0
      %v6484 = vmul.f32 %v6234, %v6474
      %v6485 = vmul.f32 %v6235, %v6475
      %v6486 = vmul.f32 %v6236, %v6476
      %v6487 = vmul.f32 %v6237, %v6477
      %v6488 = vmul.f32 %v6238, %v6478
      %v6489 = vmul.f32 %v6239, %v6479
      %v6490 = vmul.f32 %v6240, %v6480
      %v6491 = vmul.f32 %v6241, %v6481
      %v6492 = vmul.f32 %v6242, %v6482
      %v6493 = vmul.f32 %v6243, %v6483
      %v6494 = vpack.c.bf16 %v791, %v791
      %v6495 = vpack.c.bf16 %v792, %v792
      %v6496 = vpack.c.bf16 %v793, %v793
      %v6497 = vpack.c.bf16 %v794, %v794
      %v6498 = vpack.c.bf16 %v795, %v795
      %v6499 = vpack.c.bf16 %v796, %v796
      %v6500 = vpack.c.bf16 %v797, %v797
      %v6501 = vpack.c.bf16 %v798, %v798
      %v6502 = vpack.c.bf16 %v799, %v799
      %v6503 = vpack.c.bf16 %v800, %v800
      %v6504 = vpack.c.bf16 %v2530, %v2530
      %v6505 = vpack.c.bf16 %v2531, %v2531
      %v6506 = vpack.c.bf16 %v2532, %v2532
      %v6507 = vpack.c.bf16 %v2533, %v2533
      %v6508 = vpack.c.bf16 %v2534, %v2534
      %v6509 = vpack.c.bf16 %v2535, %v2535
      %v6510 = vpack.c.bf16 %v2536, %v2536
      %v6511 = vpack.c.bf16 %v2537, %v2537
      %v6512 = vpack.c.bf16 %v2538, %v2538
      %v6513 = vpack.c.bf16 %v2539, %v2539
      %v6514 = vpack.c.bf16 %v4190, %v4190
      %v6515 = vpack.c.bf16 %v4191, %v4191
      %v6516 = vpack.c.bf16 %v4192, %v4192
      %v6517 = vpack.c.bf16 %v4193, %v4193
      %v6518 = vpack.c.bf16 %v4194, %v4194
      %v6519 = vpack.c.bf16 %v4195, %v4195
      %v6520 = vpack.c.bf16 %v4196, %v4196
      %v6521 = vpack.c.bf16 %v4197, %v4197
      %v6522 = vpack.c.bf16 %v4198, %v4198
      %v6523 = vpack.c.bf16 %v4199, %v4199
      %v6524 = vpack.c.bf16 %v6484, %v6484
      %v6525 = vpack.c.bf16 %v6485, %v6485
      %v6526 = vpack.c.bf16 %v6486, %v6486
      %v6527 = vpack.c.bf16 %v6487, %v6487
      %v6528 = vpack.c.bf16 %v6488, %v6488
      %v6529 = vpack.c.bf16 %v6489, %v6489
      %v6530 = vpack.c.bf16 %v6490, %v6490
      %v6531 = vpack.c.bf16 %v6491, %v6491
      %v6532 = vpack.c.bf16 %v6492, %v6492
      %v6533 = vpack.c.bf16 %v6493, %v6493
      %v6544 = vrot.slane %v6504, 4
      %v6545 = vrot.slane %v6505, 4
      %v6546 = vrot.slane %v6506, 4
      %v6547 = vrot.slane %v6507, 4
      %v6548 = vrot.slane %v6508, 4
      %v6549 = vrot.slane %v6509, 4
      %v6550 = vrot.slane %v6510, 4
      %v6551 = vrot.slane %v6511, 4
      %v6552 = vrot.slane %v6512, 4
      %v6553 = vrot.slane %v6513, 4
      %v6564 = vrot.slane %v6524, 4
      %v6565 = vrot.slane %v6525, 4
      %v6566 = vrot.slane %v6526, 4
      %v6567 = vrot.slane %v6527, 4
      %v6568 = vrot.slane %v6528, 4
      %v6569 = vrot.slane %v6529, 4
      %v6570 = vrot.slane %v6530, 4
      %v6571 = vrot.slane %v6531, 4
      %v6572 = vrot.slane %v6532, 4
      %v6573 = vrot.slane %v6533, 4
      %v6576 = vsel %vm305, %v6494, %v6544
      %v6580 = vsel %vm305, %v6495, %v6545
      %v6584 = vsel %vm305, %v6496, %v6546
      %v6588 = vsel %vm305, %v6497, %v6547
      %v6592 = vsel %vm305, %v6498, %v6548
      %v6596 = vsel %vm305, %v6499, %v6549
      %v6600 = vsel %vm305, %v6500, %v6550
      %v6604 = vsel %vm305, %v6501, %v6551
      %v6608 = vsel %vm305, %v6502, %v6552
      %v6612 = vsel %vm305, %v6503, %v6553
      %v6616 = vsel %vm305, %v6514, %v6564
      %v6620 = vsel %vm305, %v6515, %v6565
      %v6624 = vsel %vm305, %v6516, %v6566
      %v6628 = vsel %vm305, %v6517, %v6567
      %v6632 = vsel %vm305, %v6518, %v6568
      %v6636 = vsel %vm305, %v6519, %v6569
      %v6640 = vsel %vm305, %v6520, %v6570
      %v6644 = vsel %vm305, %v6521, %v6571
      %v6648 = vsel %vm305, %v6522, %v6572
      %v6652 = vsel %vm305, %v6523, %v6573
      %v6654 = vpack.c.bf16 %v263, %v263
      %6655 = vset.pattern.permute.xlu0 7
      %6656 = vperm.xlu0 %6655, %v271
      %v6657 = vpop.permute.xlu0 %6656
      %vm6659 = vcmask 261120
      %v6661 = vsel %vm6659, %v6654, 0
      %6663 = vmatprep.subr.bf16.mxu0 0
      %6664 = vmatpush1.bf16.msra.mxu0 0
      %6665 = vmatprep.subr.bf16.mxu0 0
      %6666 = vmatpush1.bf16.msra.mxu0 0
      %6667 = vmatprep.subr.bf16.mxu0 0
      %6668 = vmatpush1.bf16.msra.mxu0 0
      %6669 = vmatprep.subr.bf16.mxu0 0
      %6670 = vmatpush1.bf16.msra.mxu0 0
      %6671 = vmatprep.subr.bf16.mxu0 0
      %6672 = vmatpush1.bf16.msra.mxu0 0
      %6673 = vmatprep.subr.bf16.mxu0 0
      %6674 = vmatpush1.bf16.msra.mxu0 0
      %6675 = vmatprep.subr.bf16.mxu0 %v6620
      %6676 = vmatpush1.bf16.msra.mxu0 %v6616
      %6677 = vmatprep.subr.bf16.mxu0 %v6580
      %6678 = vmatpush1.bf16.msra.mxu0 %v6576
      %6679 = vmatprep.subr.bf16.mxu0 0
      %6680 = vmatpush2.bf16.msra.mxu0 0
      %6681 = vmatprep.subr.bf16.mxu0 0
      %6682 = vmatpush2.bf16.msra.mxu0 0
      %6683 = vmatprep.subr.bf16.mxu0 0
      %6684 = vmatpush2.bf16.msra.mxu0 0
      %6685 = vmatprep.subr.bf16.mxu0 0
      %6686 = vmatpush2.bf16.msra.mxu0 0
      %6687 = vmatprep.subr.bf16.mxu0 0
      %6688 = vmatpush2.bf16.msra.mxu0 0
      %6689 = vmatprep.subr.bf16.mxu0 0
      %6690 = vmatpush2.bf16.msra.mxu0 0
      %6691 = vmatprep.subr.bf16.mxu0 0
      %6692 = vmatpush2.bf16.msra.mxu0 0
      %6693 = vmatprep.subr.bf16.mxu0 0
      %6694 = vmatpush2.bf16.msra.mxu0 0
      %6695 = vmatprep.mubr.bf16.mxu0 0
      %6696 = vmatmul.mubr.bf16.gmra.mxu0 %v6661
      %v6697 = vpop.f32.mrf.mxu0
      %v6698 = vadd.f32 %v6657, %v6697
      %v6699 = vpop.f32.mrf.mxu0
      %v6700 = vadd.f32 %v6657, %v6699
      %v6701 = vpop.f32.mrf.mxu0
      %v6702 = vpop.f32.mrf.mxu0
      %6703 = vdwg.mxu0
      %6704 = vmatprep.subr.bf16.mxu0 0
      %6705 = vmatpush1.bf16.msra.mxu0 0
      %6706 = vmatprep.subr.bf16.mxu0 0
      %6707 = vmatpush1.bf16.msra.mxu0 0
      %6708 = vmatprep.subr.bf16.mxu0 0
      %6709 = vmatpush1.bf16.msra.mxu0 0
      %6710 = vmatprep.subr.bf16.mxu0 0
      %6711 = vmatpush1.bf16.msra.mxu0 0
      %6712 = vmatprep.subr.bf16.mxu0 0
      %6713 = vmatpush1.bf16.msra.mxu0 0
      %6714 = vmatprep.subr.bf16.mxu0 0
      %6715 = vmatpush1.bf16.msra.mxu0 0
      %6716 = vmatprep.subr.bf16.mxu0 %v6628
      %6717 = vmatpush1.bf16.msra.mxu0 %v6624
      %6718 = vmatprep.subr.bf16.mxu0 %v6588
      %6719 = vmatpush1.bf16.msra.mxu0 %v6584
      %6720 = vmatprep.subr.bf16.mxu0 0
      %6721 = vmatpush2.bf16.msra.mxu0 0
      %6722 = vmatprep.subr.bf16.mxu0 0
      %6723 = vmatpush2.bf16.msra.mxu0 0
      %6724 = vmatprep.subr.bf16.mxu0 0
      %6725 = vmatpush2.bf16.msra.mxu0 0
      %6726 = vmatprep.subr.bf16.mxu0 0
      %6727 = vmatpush2.bf16.msra.mxu0 0
      %6728 = vmatprep.subr.bf16.mxu0 0
      %6729 = vmatpush2.bf16.msra.mxu0 0
      %6730 = vmatprep.subr.bf16.mxu0 0
      %6731 = vmatpush2.bf16.msra.mxu0 0
      %6732 = vmatprep.subr.bf16.mxu0 0
      %6733 = vmatpush2.bf16.msra.mxu0 0
      %6734 = vmatprep.subr.bf16.mxu0 0
      %6735 = vmatpush2.bf16.msra.mxu0 0
      %6736 = vmatprep.mubr.bf16.mxu0 0
      %6737 = vmatmul.mubr.bf16.gmra.mxu0 %v6661
      %v6738 = vpop.f32.mrf.mxu0
      %v6739 = vadd.f32 %v6657, %v6738
      %v6740 = vpop.f32.mrf.mxu0
      %v6741 = vadd.f32 %v6657, %v6740
      %v6742 = vpop.f32.mrf.mxu0
      %v6743 = vpop.f32.mrf.mxu0
      %6744 = vdwg.mxu0
      %6745 = vmatprep.subr.bf16.mxu0 0
      %6746 = vmatpush1.bf16.msra.mxu0 0
      %6747 = vmatprep.subr.bf16.mxu0 0
      %6748 = vmatpush1.bf16.msra.mxu0 0
      %6749 = vmatprep.subr.bf16.mxu0 0
      %6750 = vmatpush1.bf16.msra.mxu0 0
      %6751 = vmatprep.subr.bf16.mxu0 0
      %6752 = vmatpush1.bf16.msra.mxu0 0
      %6753 = vmatprep.subr.bf16.mxu0 0
      %6754 = vmatpush1.bf16.msra.mxu0 0
      %6755 = vmatprep.subr.bf16.mxu0 0
      %6756 = vmatpush1.bf16.msra.mxu0 0
      %6757 = vmatprep.subr.bf16.mxu0 %v6636
      %6758 = vmatpush1.bf16.msra.mxu0 %v6632
      %6759 = vmatprep.subr.bf16.mxu0 %v6596
      %6760 = vmatpush1.bf16.msra.mxu0 %v6592
      %6761 = vmatprep.subr.bf16.mxu0 0
      %6762 = vmatpush2.bf16.msra.mxu0 0
      %6763 = vmatprep.subr.bf16.mxu0 0
      %6764 = vmatpush2.bf16.msra.mxu0 0
      %6765 = vmatprep.subr.bf16.mxu0 0
      %6766 = vmatpush2.bf16.msra.mxu0 0
      %6767 = vmatprep.subr.bf16.mxu0 0
      %6768 = vmatpush2.bf16.msra.mxu0 0
      %6769 = vmatprep.subr.bf16.mxu0 0
      %6770 = vmatpush2.bf16.msra.mxu0 0
      %6771 = vmatprep.subr.bf16.mxu0 0
      %6772 = vmatpush2.bf16.msra.mxu0 0
      %6773 = vmatprep.subr.bf16.mxu0 0
      %6774 = vmatpush2.bf16.msra.mxu0 0
      %6775 = vmatprep.subr.bf16.mxu0 0
      %6776 = vmatpush2.bf16.msra.mxu0 0
      %6777 = vmatprep.mubr.bf16.mxu0 0
      %6778 = vmatmul.mubr.bf16.gmra.mxu0 %v6661
      %v6779 = vpop.f32.mrf.mxu0
      %v6780 = vadd.f32 %v6657, %v6779
      %v6781 = vpop.f32.mrf.mxu0
      %v6782 = vadd.f32 %v6657, %v6781
      %v6783 = vpop.f32.mrf.mxu0
      %v6784 = vpop.f32.mrf.mxu0
      %6785 = vdwg.mxu0
      %6786 = vmatprep.subr.bf16.mxu0 0
      %6787 = vmatpush1.bf16.msra.mxu0 0
      %6788 = vmatprep.subr.bf16.mxu0 0
      %6789 = vmatpush1.bf16.msra.mxu0 0
      %6790 = vmatprep.subr.bf16.mxu0 0
      %6791 = vmatpush1.bf16.msra.mxu0 0
      %6792 = vmatprep.subr.bf16.mxu0 0
      %6793 = vmatpush1.bf16.msra.mxu0 0
      %6794 = vmatprep.subr.bf16.mxu0 0
      %6795 = vmatpush1.bf16.msra.mxu0 0
      %6796 = vmatprep.subr.bf16.mxu0 0
      %6797 = vmatpush1.bf16.msra.mxu0 0
      %6798 = vmatprep.subr.bf16.mxu0 %v6644
      %6799 = vmatpush1.bf16.msra.mxu0 %v6640
      %6800 = vmatprep.subr.bf16.mxu0 %v6604
      %6801 = vmatpush1.bf16.msra.mxu0 %v6600
      %6802 = vmatprep.subr.bf16.mxu0 0
      %6803 = vmatpush2.bf16.msra.mxu0 0
      %6804 = vmatprep.subr.bf16.mxu0 0
      %6805 = vmatpush2.bf16.msra.mxu0 0
      %6806 = vmatprep.subr.bf16.mxu0 0
      %6807 = vmatpush2.bf16.msra.mxu0 0
      %6808 = vmatprep.subr.bf16.mxu0 0
      %6809 = vmatpush2.bf16.msra.mxu0 0
      %6810 = vmatprep.subr.bf16.mxu0 0
      %6811 = vmatpush2.bf16.msra.mxu0 0
      %6812 = vmatprep.subr.bf16.mxu0 0
      %6813 = vmatpush2.bf16.msra.mxu0 0
      %6814 = vmatprep.subr.bf16.mxu0 0
      %6815 = vmatpush2.bf16.msra.mxu0 0
      %6816 = vmatprep.subr.bf16.mxu0 0
      %6817 = vmatpush2.bf16.msra.mxu0 0
      %6818 = vmatprep.mubr.bf16.mxu0 0
      %6819 = vmatmul.mubr.bf16.gmra.mxu0 %v6661
      %v6820 = vpop.f32.mrf.mxu0
      %v6821 = vadd.f32 %v6657, %v6820
      %v6822 = vpop.f32.mrf.mxu0
      %v6823 = vadd.f32 %v6657, %v6822
      %v6824 = vpop.f32.mrf.mxu0
      %v6825 = vpop.f32.mrf.mxu0
      %6826 = vdwg.mxu0
      %6827 = vmatprep.subr.bf16.mxu0 0
      %6828 = vmatpush1.bf16.msra.mxu0 0
      %6829 = vmatprep.subr.bf16.mxu0 0
      %6830 = vmatpush1.bf16.msra.mxu0 0
      %6831 = vmatprep.subr.bf16.mxu0 0
      %6832 = vmatpush1.bf16.msra.mxu0 0
      %6833 = vmatprep.subr.bf16.mxu0 0
      %6834 = vmatpush1.bf16.msra.mxu0 0
      %6835 = vmatprep.subr.bf16.mxu0 0
      %6836 = vmatpush1.bf16.msra.mxu0 0
      %6837 = vmatprep.subr.bf16.mxu0 0
      %6838 = vmatpush1.bf16.msra.mxu0 0
      %6839 = vmatprep.subr.bf16.mxu0 %v6652
      %6840 = vmatpush1.bf16.msra.mxu0 %v6648
      %6841 = vmatprep.subr.bf16.mxu0 %v6612
      %6842 = vmatpush1.bf16.msra.mxu0 %v6608
      %6843 = vmatprep.subr.bf16.mxu0 0
      %6844 = vmatpush2.bf16.msra.mxu0 0
      %6845 = vmatprep.subr.bf16.mxu0 0
      %6846 = vmatpush2.bf16.msra.mxu0 0
      %6847 = vmatprep.subr.bf16.mxu0 0
      %6848 = vmatpush2.bf16.msra.mxu0 0
      %6849 = vmatprep.subr.bf16.mxu0 0
      %6850 = vmatpush2.bf16.msra.mxu0 0
      %6851 = vmatprep.subr.bf16.mxu0 0
      %6852 = vmatpush2.bf16.msra.mxu0 0
      %6853 = vmatprep.subr.bf16.mxu0 0
      %6854 = vmatpush2.bf16.msra.mxu0 0
      %6855 = vmatprep.subr.bf16.mxu0 0
      %6856 = vmatpush2.bf16.msra.mxu0 0
      %6857 = vmatprep.subr.bf16.mxu0 0
      %6858 = vmatpush2.bf16.msra.mxu0 0
      %6859 = vmatprep.mubr.bf16.mxu0 0
      %6860 = vmatmul.mubr.bf16.gmra.mxu0 %v6661
      %v6861 = vpop.f32.mrf.mxu0
      %v6862 = vadd.f32 %v6657, %v6861
      %v6863 = vpop.f32.mrf.mxu0
      %v6864 = vadd.f32 %v6657, %v6863
      %v6865 = vpop.f32.mrf.mxu0
      %v6866 = vpop.f32.mrf.mxu0
      %6867 = vdwg.mxu0
      %v6868 = vpack.c.bf16 %v6698, %v6698
      %v6869 = vpack.c.bf16 %v6700, %v6700
      %v6870 = vpack.c.bf16 %v6739, %v6739
      %v6871 = vpack.c.bf16 %v6741, %v6741
      %v6872 = vpack.c.bf16 %v6780, %v6780
      %v6873 = vpack.c.bf16 %v6782, %v6782
      %v6874 = vpack.c.bf16 %v6821, %v6821
      %v6875 = vpack.c.bf16 %v6823, %v6823
      %v6876 = vpack.c.bf16 %v6862, %v6862
      %v6877 = vpack.c.bf16 %v6864, %v6864
      %v6878 = vpack.c.bf16 %v264, %v264
      %6879 = vset.pattern.permute.xlu0 8
      %6880 = vperm.xlu0 %6879, %v271
      %v6881 = vpop.permute.xlu0 %6880
      %v6884 = vsel %vm301, %v6878, 0
      %v6887 = vsel %vm305, %v6868, 0
      %v6890 = vsel %vm305, %v6869, 0
      %v6893 = vsel %vm305, %v6870, 0
      %v6896 = vsel %vm305, %v6871, 0
      %v6899 = vsel %vm305, %v6872, 0
      %v6902 = vsel %vm305, %v6873, 0
      %v6905 = vsel %vm305, %v6874, 0
      %v6908 = vsel %vm305, %v6875, 0
      %v6911 = vsel %vm305, %v6876, 0
      %v6914 = vsel %vm305, %v6877, 0
      %6916 = vmatprep.subr.bf16.mxu0 0
      %6917 = vmatpush1.bf16.msra.mxu0 0
      %6918 = vmatprep.subr.bf16.mxu0 0
      %6919 = vmatpush1.bf16.msra.mxu0 0
      %6920 = vmatprep.subr.bf16.mxu0 0
      %6921 = vmatpush1.bf16.msra.mxu0 0
      %6922 = vmatprep.subr.bf16.mxu0 0
      %6923 = vmatpush1.bf16.msra.mxu0 0
      %6924 = vmatprep.subr.bf16.mxu0 0
      %6925 = vmatpush1.bf16.msra.mxu0 0
      %6926 = vmatprep.subr.bf16.mxu0 0
      %6927 = vmatpush1.bf16.msra.mxu0 0
      %6928 = vmatprep.subr.bf16.mxu0 0
      %6929 = vmatpush1.bf16.msra.mxu0 0
      %6930 = vmatprep.subr.bf16.mxu0 %v6890
      %6931 = vmatpush1.bf16.msra.mxu0 %v6887
      %6932 = vmatprep.subr.bf16.mxu0 0
      %6933 = vmatpush2.bf16.msra.mxu0 0
      %6934 = vmatprep.subr.bf16.mxu0 0
      %6935 = vmatpush2.bf16.msra.mxu0 0
      %6936 = vmatprep.subr.bf16.mxu0 0
      %6937 = vmatpush2.bf16.msra.mxu0 0
      %6938 = vmatprep.subr.bf16.mxu0 0
      %6939 = vmatpush2.bf16.msra.mxu0 0
      %6940 = vmatprep.subr.bf16.mxu0 0
      %6941 = vmatpush2.bf16.msra.mxu0 0
      %6942 = vmatprep.subr.bf16.mxu0 0
      %6943 = vmatpush2.bf16.msra.mxu0 0
      %6944 = vmatprep.subr.bf16.mxu0 0
      %6945 = vmatpush2.bf16.msra.mxu0 0
      %6946 = vmatprep.subr.bf16.mxu0 0
      %6947 = vmatpush2.bf16.msra.mxu0 0
      %6948 = vmatprep.mubr.bf16.mxu0 0
      %6949 = vmatmul.mubr.bf16.gmra.mxu0 %v6884
      %v6950 = vpop.f32.mrf.mxu0
      %v6951 = vadd.f32 %v6881, %v6950
      %v6952 = vpop.f32.mrf.mxu0
      %v6953 = vadd.f32 %v6881, %v6952
      %v6954 = vpop.f32.mrf.mxu0
      %v6955 = vpop.f32.mrf.mxu0
      %6956 = vdwg.mxu0
      %6957 = vmatprep.subr.bf16.mxu0 0
      %6958 = vmatpush1.bf16.msra.mxu0 0
      %6959 = vmatprep.subr.bf16.mxu0 0
      %6960 = vmatpush1.bf16.msra.mxu0 0
      %6961 = vmatprep.subr.bf16.mxu0 0
      %6962 = vmatpush1.bf16.msra.mxu0 0
      %6963 = vmatprep.subr.bf16.mxu0 0
      %6964 = vmatpush1.bf16.msra.mxu0 0
      %6965 = vmatprep.subr.bf16.mxu0 0
      %6966 = vmatpush1.bf16.msra.mxu0 0
      %6967 = vmatprep.subr.bf16.mxu0 0
      %6968 = vmatpush1.bf16.msra.mxu0 0
      %6969 = vmatprep.subr.bf16.mxu0 0
      %6970 = vmatpush1.bf16.msra.mxu0 0
      %6971 = vmatprep.subr.bf16.mxu0 %v6896
      %6972 = vmatpush1.bf16.msra.mxu0 %v6893
      %6973 = vmatprep.subr.bf16.mxu0 0
      %6974 = vmatpush2.bf16.msra.mxu0 0
      %6975 = vmatprep.subr.bf16.mxu0 0
      %6976 = vmatpush2.bf16.msra.mxu0 0
      %6977 = vmatprep.subr.bf16.mxu0 0
      %6978 = vmatpush2.bf16.msra.mxu0 0
      %6979 = vmatprep.subr.bf16.mxu0 0
      %6980 = vmatpush2.bf16.msra.mxu0 0
      %6981 = vmatprep.subr.bf16.mxu0 0
      %6982 = vmatpush2.bf16.msra.mxu0 0
      %6983 = vmatprep.subr.bf16.mxu0 0
      %6984 = vmatpush2.bf16.msra.mxu0 0
      %6985 = vmatprep.subr.bf16.mxu0 0
      %6986 = vmatpush2.bf16.msra.mxu0 0
      %6987 = vmatprep.subr.bf16.mxu0 0
      %6988 = vmatpush2.bf16.msra.mxu0 0
      %6989 = vmatprep.mubr.bf16.mxu0 0
      %6990 = vmatmul.mubr.bf16.gmra.mxu0 %v6884
      %v6991 = vpop.f32.mrf.mxu0
      %v6992 = vadd.f32 %v6881, %v6991
      %v6993 = vpop.f32.mrf.mxu0
      %v6994 = vadd.f32 %v6881, %v6993
      %v6995 = vpop.f32.mrf.mxu0
      %v6996 = vpop.f32.mrf.mxu0
      %6997 = vdwg.mxu0
      %6998 = vmatprep.subr.bf16.mxu0 0
      %6999 = vmatpush1.bf16.msra.mxu0 0
      %7000 = vmatprep.subr.bf16.mxu0 0
      %7001 = vmatpush1.bf16.msra.mxu0 0
      %7002 = vmatprep.subr.bf16.mxu0 0
      %7003 = vmatpush1.bf16.msra.mxu0 0
      %7004 = vmatprep.subr.bf16.mxu0 0
      %7005 = vmatpush1.bf16.msra.mxu0 0
      %7006 = vmatprep.subr.bf16.mxu0 0
      %7007 = vmatpush1.bf16.msra.mxu0 0
      %7008 = vmatprep.subr.bf16.mxu0 0
      %7009 = vmatpush1.bf16.msra.mxu0 0
      %7010 = vmatprep.subr.bf16.mxu0 0
      %7011 = vmatpush1.bf16.msra.mxu0 0
      %7012 = vmatprep.subr.bf16.mxu0 %v6902
      %7013 = vmatpush1.bf16.msra.mxu0 %v6899
      %7014 = vmatprep.subr.bf16.mxu0 0
      %7015 = vmatpush2.bf16.msra.mxu0 0
      %7016 = vmatprep.subr.bf16.mxu0 0
      %7017 = vmatpush2.bf16.msra.mxu0 0
      %7018 = vmatprep.subr.bf16.mxu0 0
      %7019 = vmatpush2.bf16.msra.mxu0 0
      %7020 = vmatprep.subr.bf16.mxu0 0
      %7021 = vmatpush2.bf16.msra.mxu0 0
      %7022 = vmatprep.subr.bf16.mxu0 0
      %7023 = vmatpush2.bf16.msra.mxu0 0
      %7024 = vmatprep.subr.bf16.mxu0 0
      %7025 = vmatpush2.bf16.msra.mxu0 0
      %7026 = vmatprep.subr.bf16.mxu0 0
      %7027 = vmatpush2.bf16.msra.mxu0 0
      %7028 = vmatprep.subr.bf16.mxu0 0
      %7029 = vmatpush2.bf16.msra.mxu0 0
      %7030 = vmatprep.mubr.bf16.mxu0 0
      %7031 = vmatmul.mubr.bf16.gmra.mxu0 %v6884
      %v7032 = vpop.f32.mrf.mxu0
      %v7033 = vadd.f32 %v6881, %v7032
      %v7034 = vpop.f32.mrf.mxu0
      %v7035 = vadd.f32 %v6881, %v7034
      %v7036 = vpop.f32.mrf.mxu0
      %v7037 = vpop.f32.mrf.mxu0
      %7038 = vdwg.mxu0
      %7039 = vmatprep.subr.bf16.mxu0 0
      %7040 = vmatpush1.bf16.msra.mxu0 0
      %7041 = vmatprep.subr.bf16.mxu0 0
      %7042 = vmatpush1.bf16.msra.mxu0 0
      %7043 = vmatprep.subr.bf16.mxu0 0
      %7044 = vmatpush1.bf16.msra.mxu0 0
      %7045 = vmatprep.subr.bf16.mxu0 0
      %7046 = vmatpush1.bf16.msra.mxu0 0
      %7047 = vmatprep.subr.bf16.mxu0 0
      %7048 = vmatpush1.bf16.msra.mxu0 0
      %7049 = vmatprep.subr.bf16.mxu0 0
      %7050 = vmatpush1.bf16.msra.mxu0 0
      %7051 = vmatprep.subr.bf16.mxu0 0
      %7052 = vmatpush1.bf16.msra.mxu0 0
      %7053 = vmatprep.subr.bf16.mxu0 %v6908
      %7054 = vmatpush1.bf16.msra.mxu0 %v6905
      %7055 = vmatprep.subr.bf16.mxu0 0
      %7056 = vmatpush2.bf16.msra.mxu0 0
      %7057 = vmatprep.subr.bf16.mxu0 0
      %7058 = vmatpush2.bf16.msra.mxu0 0
      %7059 = vmatprep.subr.bf16.mxu0 0
      %7060 = vmatpush2.bf16.msra.mxu0 0
      %7061 = vmatprep.subr.bf16.mxu0 0
      %7062 = vmatpush2.bf16.msra.mxu0 0
      %7063 = vmatprep.subr.bf16.mxu0 0
      %7064 = vmatpush2.bf16.msra.mxu0 0
      %7065 = vmatprep.subr.bf16.mxu0 0
      %7066 = vmatpush2.bf16.msra.mxu0 0
      %7067 = vmatprep.subr.bf16.mxu0 0
      %7068 = vmatpush2.bf16.msra.mxu0 0
      %7069 = vmatprep.subr.bf16.mxu0 0
      %7070 = vmatpush2.bf16.msra.mxu0 0
      %7071 = vmatprep.mubr.bf16.mxu0 0
      %7072 = vmatmul.mubr.bf16.gmra.mxu0 %v6884
      %v7073 = vpop.f32.mrf.mxu0
      %v7074 = vadd.f32 %v6881, %v7073
      %v7075 = vpop.f32.mrf.mxu0
      %v7076 = vadd.f32 %v6881, %v7075
      %v7077 = vpop.f32.mrf.mxu0
      %v7078 = vpop.f32.mrf.mxu0
      %7079 = vdwg.mxu0
      %7080 = vmatprep.subr.bf16.mxu0 0
      %7081 = vmatpush1.bf16.msra.mxu0 0
      %7082 = vmatprep.subr.bf16.mxu0 0
      %7083 = vmatpush1.bf16.msra.mxu0 0
      %7084 = vmatprep.subr.bf16.mxu0 0
      %7085 = vmatpush1.bf16.msra.mxu0 0
      %7086 = vmatprep.subr.bf16.mxu0 0
      %7087 = vmatpush1.bf16.msra.mxu0 0
      %7088 = vmatprep.subr.bf16.mxu0 0
      %7089 = vmatpush1.bf16.msra.mxu0 0
      %7090 = vmatprep.subr.bf16.mxu0 0
      %7091 = vmatpush1.bf16.msra.mxu0 0
      %7092 = vmatprep.subr.bf16.mxu0 0
      %7093 = vmatpush1.bf16.msra.mxu0 0
      %7094 = vmatprep.subr.bf16.mxu0 %v6914
      %7095 = vmatpush1.bf16.msra.mxu0 %v6911
      %7096 = vmatprep.subr.bf16.mxu0 0
      %7097 = vmatpush2.bf16.msra.mxu0 0
      %7098 = vmatprep.subr.bf16.mxu0 0
      %7099 = vmatpush2.bf16.msra.mxu0 0
      %7100 = vmatprep.subr.bf16.mxu0 0
      %7101 = vmatpush2.bf16.msra.mxu0 0
      %7102 = vmatprep.subr.bf16.mxu0 0
      %7103 = vmatpush2.bf16.msra.mxu0 0
      %7104 = vmatprep.subr.bf16.mxu0 0
      %7105 = vmatpush2.bf16.msra.mxu0 0
      %7106 = vmatprep.subr.bf16.mxu0 0
      %7107 = vmatpush2.bf16.msra.mxu0 0
      %7108 = vmatprep.subr.bf16.mxu0 0
      %7109 = vmatpush2.bf16.msra.mxu0 0
      %7110 = vmatprep.subr.bf16.mxu0 0
      %7111 = vmatpush2.bf16.msra.mxu0 0
      %7112 = vmatprep.mubr.bf16.mxu0 0
      %7113 = vmatmul.mubr.bf16.gmra.mxu0 %v6884
      %v7114 = vpop.f32.mrf.mxu0
      %v7115 = vadd.f32 %v6881, %v7114
      %v7116 = vpop.f32.mrf.mxu0
      %v7117 = vadd.f32 %v6881, %v7116
      %v7118 = vpop.f32.mrf.mxu0
      %v7119 = vpop.f32.mrf.mxu0
      %7120 = vdwg.mxu0
      %v7121 = vpack.c.bf16 %v6951, %v6951
      %v7122 = vpack.c.bf16 %v6953, %v6953
      %v7123 = vpack.c.bf16 %v6992, %v6992
      %v7124 = vpack.c.bf16 %v6994, %v6994
      %v7125 = vpack.c.bf16 %v7033, %v7033
      %v7126 = vpack.c.bf16 %v7035, %v7035
      %v7127 = vpack.c.bf16 %v7074, %v7074
      %v7128 = vpack.c.bf16 %v7076, %v7076
      %v7129 = vpack.c.bf16 %v7115, %v7115
      %v7130 = vpack.c.bf16 %v7117, %v7117
      %v7131 = vpack.c.bf16 %v265, %v265
      %7132 = vset.pattern.permute.xlu0 9
      %7133 = vperm.xlu0 %7132, %v271
      %v7134 = vpop.permute.xlu0 %7133
      %v7137 = vsel %vm301, %v7131, 0
      %v7140 = vsel %vm305, %v7121, 0
      %v7143 = vsel %vm305, %v7122, 0
      %v7146 = vsel %vm305, %v7123, 0
      %v7149 = vsel %vm305, %v7124, 0
      %v7152 = vsel %vm305, %v7125, 0
      %v7155 = vsel %vm305, %v7126, 0
      %v7158 = vsel %vm305, %v7127, 0
      %v7161 = vsel %vm305, %v7128, 0
      %v7164 = vsel %vm305, %v7129, 0
      %v7167 = vsel %vm305, %v7130, 0
      %7169 = vmatprep.subr.bf16.mxu0 0
      %7170 = vmatpush1.bf16.msra.mxu0 0
      %7171 = vmatprep.subr.bf16.mxu0 0
      %7172 = vmatpush1.bf16.msra.mxu0 0
      %7173 = vmatprep.subr.bf16.mxu0 0
      %7174 = vmatpush1.bf16.msra.mxu0 0
      %7175 = vmatprep.subr.bf16.mxu0 0
      %7176 = vmatpush1.bf16.msra.mxu0 0
      %7177 = vmatprep.subr.bf16.mxu0 0
      %7178 = vmatpush1.bf16.msra.mxu0 0
      %7179 = vmatprep.subr.bf16.mxu0 0
      %7180 = vmatpush1.bf16.msra.mxu0 0
      %7181 = vmatprep.subr.bf16.mxu0 0
      %7182 = vmatpush1.bf16.msra.mxu0 0
      %7183 = vmatprep.subr.bf16.mxu0 %v7143
      %7184 = vmatpush1.bf16.msra.mxu0 %v7140
      %7185 = vmatprep.subr.bf16.mxu0 0
      %7186 = vmatpush2.bf16.msra.mxu0 0
      %7187 = vmatprep.subr.bf16.mxu0 0
      %7188 = vmatpush2.bf16.msra.mxu0 0
      %7189 = vmatprep.subr.bf16.mxu0 0
      %7190 = vmatpush2.bf16.msra.mxu0 0
      %7191 = vmatprep.subr.bf16.mxu0 0
      %7192 = vmatpush2.bf16.msra.mxu0 0
      %7193 = vmatprep.subr.bf16.mxu0 0
      %7194 = vmatpush2.bf16.msra.mxu0 0
      %7195 = vmatprep.subr.bf16.mxu0 0
      %7196 = vmatpush2.bf16.msra.mxu0 0
      %7197 = vmatprep.subr.bf16.mxu0 0
      %7198 = vmatpush2.bf16.msra.mxu0 0
      %7199 = vmatprep.subr.bf16.mxu0 0
      %7200 = vmatpush2.bf16.msra.mxu0 0
      %7201 = vmatprep.mubr.bf16.mxu0 0
      %7202 = vmatmul.mubr.bf16.gmra.mxu0 %v7137
      %v7203 = vpop.f32.mrf.mxu0
      %v7204 = vadd.f32 %v7134, %v7203
      %v7205 = vpop.f32.mrf.mxu0
      %v7206 = vadd.f32 %v7134, %v7205
      %v7207 = vpop.f32.mrf.mxu0
      %v7208 = vpop.f32.mrf.mxu0
      %7209 = vdwg.mxu0
      %7210 = vmatprep.subr.bf16.mxu0 0
      %7211 = vmatpush1.bf16.msra.mxu0 0
      %7212 = vmatprep.subr.bf16.mxu0 0
      %7213 = vmatpush1.bf16.msra.mxu0 0
      %7214 = vmatprep.subr.bf16.mxu0 0
      %7215 = vmatpush1.bf16.msra.mxu0 0
      %7216 = vmatprep.subr.bf16.mxu0 0
      %7217 = vmatpush1.bf16.msra.mxu0 0
      %7218 = vmatprep.subr.bf16.mxu0 0
      %7219 = vmatpush1.bf16.msra.mxu0 0
      %7220 = vmatprep.subr.bf16.mxu0 0
      %7221 = vmatpush1.bf16.msra.mxu0 0
      %7222 = vmatprep.subr.bf16.mxu0 0
      %7223 = vmatpush1.bf16.msra.mxu0 0
      %7224 = vmatprep.subr.bf16.mxu0 %v7149
      %7225 = vmatpush1.bf16.msra.mxu0 %v7146
      %7226 = vmatprep.subr.bf16.mxu0 0
      %7227 = vmatpush2.bf16.msra.mxu0 0
      %7228 = vmatprep.subr.bf16.mxu0 0
      %7229 = vmatpush2.bf16.msra.mxu0 0
      %7230 = vmatprep.subr.bf16.mxu0 0
      %7231 = vmatpush2.bf16.msra.mxu0 0
      %7232 = vmatprep.subr.bf16.mxu0 0
      %7233 = vmatpush2.bf16.msra.mxu0 0
      %7234 = vmatprep.subr.bf16.mxu0 0
      %7235 = vmatpush2.bf16.msra.mxu0 0
      %7236 = vmatprep.subr.bf16.mxu0 0
      %7237 = vmatpush2.bf16.msra.mxu0 0
      %7238 = vmatprep.subr.bf16.mxu0 0
      %7239 = vmatpush2.bf16.msra.mxu0 0
      %7240 = vmatprep.subr.bf16.mxu0 0
      %7241 = vmatpush2.bf16.msra.mxu0 0
      %7242 = vmatprep.mubr.bf16.mxu0 0
      %7243 = vmatmul.mubr.bf16.gmra.mxu0 %v7137
      %v7244 = vpop.f32.mrf.mxu0
      %v7245 = vadd.f32 %v7134, %v7244
      %v7246 = vpop.f32.mrf.mxu0
      %v7247 = vadd.f32 %v7134, %v7246
      %v7248 = vpop.f32.mrf.mxu0
      %v7249 = vpop.f32.mrf.mxu0
      %7250 = vdwg.mxu0
      %7251 = vmatprep.subr.bf16.mxu0 0
      %7252 = vmatpush1.bf16.msra.mxu0 0
      %7253 = vmatprep.subr.bf16.mxu0 0
      %7254 = vmatpush1.bf16.msra.mxu0 0
      %7255 = vmatprep.subr.bf16.mxu0 0
      %7256 = vmatpush1.bf16.msra.mxu0 0
      %7257 = vmatprep.subr.bf16.mxu0 0
      %7258 = vmatpush1.bf16.msra.mxu0 0
      %7259 = vmatprep.subr.bf16.mxu0 0
      %7260 = vmatpush1.bf16.msra.mxu0 0
      %7261 = vmatprep.subr.bf16.mxu0 0
      %7262 = vmatpush1.bf16.msra.mxu0 0
      %7263 = vmatprep.subr.bf16.mxu0 0
      %7264 = vmatpush1.bf16.msra.mxu0 0
      %7265 = vmatprep.subr.bf16.mxu0 %v7155
      %7266 = vmatpush1.bf16.msra.mxu0 %v7152
      %7267 = vmatprep.subr.bf16.mxu0 0
      %7268 = vmatpush2.bf16.msra.mxu0 0
      %7269 = vmatprep.subr.bf16.mxu0 0
      %7270 = vmatpush2.bf16.msra.mxu0 0
      %7271 = vmatprep.subr.bf16.mxu0 0
      %7272 = vmatpush2.bf16.msra.mxu0 0
      %7273 = vmatprep.subr.bf16.mxu0 0
      %7274 = vmatpush2.bf16.msra.mxu0 0
      %7275 = vmatprep.subr.bf16.mxu0 0
      %7276 = vmatpush2.bf16.msra.mxu0 0
      %7277 = vmatprep.subr.bf16.mxu0 0
      %7278 = vmatpush2.bf16.msra.mxu0 0
      %7279 = vmatprep.subr.bf16.mxu0 0
      %7280 = vmatpush2.bf16.msra.mxu0 0
      %7281 = vmatprep.subr.bf16.mxu0 0
      %7282 = vmatpush2.bf16.msra.mxu0 0
      %7283 = vmatprep.mubr.bf16.mxu0 0
      %7284 = vmatmul.mubr.bf16.gmra.mxu0 %v7137
      %v7285 = vpop.f32.mrf.mxu0
      %v7286 = vadd.f32 %v7134, %v7285
      %v7287 = vpop.f32.mrf.mxu0
      %v7288 = vadd.f32 %v7134, %v7287
      %v7289 = vpop.f32.mrf.mxu0
      %v7290 = vpop.f32.mrf.mxu0
      %7291 = vdwg.mxu0
      %7292 = vmatprep.subr.bf16.mxu0 0
      %7293 = vmatpush1.bf16.msra.mxu0 0
      %7294 = vmatprep.subr.bf16.mxu0 0
      %7295 = vmatpush1.bf16.msra.mxu0 0
      %7296 = vmatprep.subr.bf16.mxu0 0
      %7297 = vmatpush1.bf16.msra.mxu0 0
      %7298 = vmatprep.subr.bf16.mxu0 0
      %7299 = vmatpush1.bf16.msra.mxu0 0
      %7300 = vmatprep.subr.bf16.mxu0 0
      %7301 = vmatpush1.bf16.msra.mxu0 0
      %7302 = vmatprep.subr.bf16.mxu0 0
      %7303 = vmatpush1.bf16.msra.mxu0 0
      %7304 = vmatprep.subr.bf16.mxu0 0
      %7305 = vmatpush1.bf16.msra.mxu0 0
      %7306 = vmatprep.subr.bf16.mxu0 %v7161
      %7307 = vmatpush1.bf16.msra.mxu0 %v7158
      %7308 = vmatprep.subr.bf16.mxu0 0
      %7309 = vmatpush2.bf16.msra.mxu0 0
      %7310 = vmatprep.subr.bf16.mxu0 0
      %7311 = vmatpush2.bf16.msra.mxu0 0
      %7312 = vmatprep.subr.bf16.mxu0 0
      %7313 = vmatpush2.bf16.msra.mxu0 0
      %7314 = vmatprep.subr.bf16.mxu0 0
      %7315 = vmatpush2.bf16.msra.mxu0 0
      %7316 = vmatprep.subr.bf16.mxu0 0
      %7317 = vmatpush2.bf16.msra.mxu0 0
      %7318 = vmatprep.subr.bf16.mxu0 0
      %7319 = vmatpush2.bf16.msra.mxu0 0
      %7320 = vmatprep.subr.bf16.mxu0 0
      %7321 = vmatpush2.bf16.msra.mxu0 0
      %7322 = vmatprep.subr.bf16.mxu0 0
      %7323 = vmatpush2.bf16.msra.mxu0 0
      %7324 = vmatprep.mubr.bf16.mxu0 0
      %7325 = vmatmul.mubr.bf16.gmra.mxu0 %v7137
      %v7326 = vpop.f32.mrf.mxu0
      %v7327 = vadd.f32 %v7134, %v7326
      %v7328 = vpop.f32.mrf.mxu0
      %v7329 = vadd.f32 %v7134, %v7328
      %v7330 = vpop.f32.mrf.mxu0
      %v7331 = vpop.f32.mrf.mxu0
      %7332 = vdwg.mxu0
      %7333 = vmatprep.subr.bf16.mxu0 0
      %7334 = vmatpush1.bf16.msra.mxu0 0
      %7335 = vmatprep.subr.bf16.mxu0 0
      %7336 = vmatpush1.bf16.msra.mxu0 0
      %7337 = vmatprep.subr.bf16.mxu0 0
      %7338 = vmatpush1.bf16.msra.mxu0 0
      %7339 = vmatprep.subr.bf16.mxu0 0
      %7340 = vmatpush1.bf16.msra.mxu0 0
      %7341 = vmatprep.subr.bf16.mxu0 0
      %7342 = vmatpush1.bf16.msra.mxu0 0
      %7343 = vmatprep.subr.bf16.mxu0 0
      %7344 = vmatpush1.bf16.msra.mxu0 0
      %7345 = vmatprep.subr.bf16.mxu0 0
      %7346 = vmatpush1.bf16.msra.mxu0 0
      %7347 = vmatprep.subr.bf16.mxu0 %v7167
      %7348 = vmatpush1.bf16.msra.mxu0 %v7164
      %7349 = vmatprep.subr.bf16.mxu0 0
      %7350 = vmatpush2.bf16.msra.mxu0 0
      %7351 = vmatprep.subr.bf16.mxu0 0
      %7352 = vmatpush2.bf16.msra.mxu0 0
      %7353 = vmatprep.subr.bf16.mxu0 0
      %7354 = vmatpush2.bf16.msra.mxu0 0
      %7355 = vmatprep.subr.bf16.mxu0 0
      %7356 = vmatpush2.bf16.msra.mxu0 0
      %7357 = vmatprep.subr.bf16.mxu0 0
      %7358 = vmatpush2.bf16.msra.mxu0 0
      %7359 = vmatprep.subr.bf16.mxu0 0
      %7360 = vmatpush2.bf16.msra.mxu0 0
      %7361 = vmatprep.subr.bf16.mxu0 0
      %7362 = vmatpush2.bf16.msra.mxu0 0
      %7363 = vmatprep.subr.bf16.mxu0 0
      %7364 = vmatpush2.bf16.msra.mxu0 0
      %7365 = vmatprep.mubr.bf16.mxu0 0
      %7366 = vmatmul.mubr.bf16.gmra.mxu0 %v7137
      %v7367 = vpop.f32.mrf.mxu0
      %v7368 = vadd.f32 %v7134, %v7367
      %v7369 = vpop.f32.mrf.mxu0
      %v7370 = vadd.f32 %v7134, %v7369
      %v7371 = vpop.f32.mrf.mxu0
      %v7372 = vpop.f32.mrf.mxu0
      %7373 = vdwg.mxu0
      %v7384 = vrot.slane %v7121, 4
      %v7385 = vrot.slane %v7122, 4
      %v7386 = vrot.slane %v7123, 4
      %v7387 = vrot.slane %v7124, 4
      %v7388 = vrot.slane %v7125, 4
      %v7389 = vrot.slane %v7126, 4
      %v7390 = vrot.slane %v7127, 4
      %v7391 = vrot.slane %v7128, 4
      %v7392 = vrot.slane %v7129, 4
      %v7393 = vrot.slane %v7130, 4
      %7394 = vrot.lane.b32.xlu0 %v7384, 127
      %v7395 = vpop.permute.xlu0 %7394
      %7396 = vrot.lane.b32.xlu0 %v7385, 127
      %v7397 = vpop.permute.xlu0 %7396
      %7398 = vrot.lane.b32.xlu0 %v7386, 127
      %v7399 = vpop.permute.xlu0 %7398
      %7400 = vrot.lane.b32.xlu0 %v7387, 127
      %v7401 = vpop.permute.xlu0 %7400
      %7402 = vrot.lane.b32.xlu0 %v7388, 127
      %v7403 = vpop.permute.xlu0 %7402
      %7404 = vrot.lane.b32.xlu0 %v7389, 127
      %v7405 = vpop.permute.xlu0 %7404
      %7406 = vrot.lane.b32.xlu0 %v7390, 127
      %v7407 = vpop.permute.xlu0 %7406
      %7408 = vrot.lane.b32.xlu0 %v7391, 127
      %v7409 = vpop.permute.xlu0 %7408
      %7410 = vrot.lane.b32.xlu0 %v7392, 127
      %v7411 = vpop.permute.xlu0 %7410
      %7412 = vrot.lane.b32.xlu0 %v7393, 127
      %v7413 = vpop.permute.xlu0 %7412
      %v7414 = vsel %vm845, %v7395, %v7397
      %v7415 = vsel %vm845, %v7397, %v7399
      %v7416 = vsel %vm845, %v7399, %v7401
      %v7417 = vsel %vm845, %v7401, %v7403
      %v7418 = vsel %vm845, %v7403, %v7405
      %v7419 = vsel %vm845, %v7405, %v7407
      %v7420 = vsel %vm845, %v7407, %v7409
      %v7421 = vsel %vm845, %v7409, %v7411
      %v7422 = vsel %vm845, %v7411, %v7413
      %v7423 = vsel %vm845, %v7413, %v824
      %7424 = vrot.lane.b32.xlu0 %v7121, 126
      %v7425 = vpop.permute.xlu0 %7424
      %7426 = vrot.lane.b32.xlu0 %v7122, 126
      %v7427 = vpop.permute.xlu0 %7426
      %7428 = vrot.lane.b32.xlu0 %v7123, 126
      %v7429 = vpop.permute.xlu0 %7428
      %7430 = vrot.lane.b32.xlu0 %v7124, 126
      %v7431 = vpop.permute.xlu0 %7430
      %7432 = vrot.lane.b32.xlu0 %v7125, 126
      %v7433 = vpop.permute.xlu0 %7432
      %7434 = vrot.lane.b32.xlu0 %v7126, 126
      %v7435 = vpop.permute.xlu0 %7434
      %7436 = vrot.lane.b32.xlu0 %v7127, 126
      %v7437 = vpop.permute.xlu0 %7436
      %7438 = vrot.lane.b32.xlu0 %v7128, 126
      %v7439 = vpop.permute.xlu0 %7438
      %7440 = vrot.lane.b32.xlu0 %v7129, 126
      %v7441 = vpop.permute.xlu0 %7440
      %7442 = vrot.lane.b32.xlu0 %v7130, 126
      %v7443 = vpop.permute.xlu0 %7442
      %v7444 = vsel %vm878, %v7425, %v7427
      %v7445 = vsel %vm878, %v7427, %v7429
      %v7446 = vsel %vm878, %v7429, %v7431
      %v7447 = vsel %vm878, %v7431, %v7433
      %v7448 = vsel %vm878, %v7433, %v7435
      %v7449 = vsel %vm878, %v7435, %v7437
      %v7450 = vsel %vm878, %v7437, %v7439
      %v7451 = vsel %vm878, %v7439, %v7441
      %v7452 = vsel %vm878, %v7441, %v7443
      %v7453 = vsel %vm878, %v7443, %v857
      %7454 = vrot.lane.b32.xlu0 %v7384, 94
      %v7455 = vpop.permute.xlu0 %7454
      %7456 = vrot.lane.b32.xlu0 %v7385, 94
      %v7457 = vpop.permute.xlu0 %7456
      %7458 = vrot.lane.b32.xlu0 %v7386, 94
      %v7459 = vpop.permute.xlu0 %7458
      %7460 = vrot.lane.b32.xlu0 %v7387, 94
      %v7461 = vpop.permute.xlu0 %7460
      %7462 = vrot.lane.b32.xlu0 %v7388, 94
      %v7463 = vpop.permute.xlu0 %7462
      %7464 = vrot.lane.b32.xlu0 %v7389, 94
      %v7465 = vpop.permute.xlu0 %7464
      %7466 = vrot.lane.b32.xlu0 %v7390, 94
      %v7467 = vpop.permute.xlu0 %7466
      %7468 = vrot.lane.b32.xlu0 %v7391, 94
      %v7469 = vpop.permute.xlu0 %7468
      %7470 = vrot.lane.b32.xlu0 %v7392, 94
      %v7471 = vpop.permute.xlu0 %7470
      %7472 = vrot.lane.b32.xlu0 %v7393, 94
      %v7473 = vpop.permute.xlu0 %7472
      %v7474 = vsel %vm911, %v7455, %v7457
      %v7475 = vsel %vm911, %v7457, %v7459
      %v7476 = vsel %vm911, %v7459, %v7461
      %v7477 = vsel %vm911, %v7461, %v7463
      %v7478 = vsel %vm911, %v7463, %v7465
      %v7479 = vsel %vm911, %v7465, %v7467
      %v7480 = vsel %vm911, %v7467, %v7469
      %v7481 = vsel %vm911, %v7469, %v7471
      %v7482 = vsel %vm911, %v7471, %v7473
      %v7483 = vsel %vm911, %v7473, %v890
      %7484 = vrot.lane.b32.xlu0 %v7121, 93
      %v7485 = vpop.permute.xlu0 %7484
      %7486 = vrot.lane.b32.xlu0 %v7122, 93
      %v7487 = vpop.permute.xlu0 %7486
      %7488 = vrot.lane.b32.xlu0 %v7123, 93
      %v7489 = vpop.permute.xlu0 %7488
      %7490 = vrot.lane.b32.xlu0 %v7124, 93
      %v7491 = vpop.permute.xlu0 %7490
      %7492 = vrot.lane.b32.xlu0 %v7125, 93
      %v7493 = vpop.permute.xlu0 %7492
      %7494 = vrot.lane.b32.xlu0 %v7126, 93
      %v7495 = vpop.permute.xlu0 %7494
      %7496 = vrot.lane.b32.xlu0 %v7127, 93
      %v7497 = vpop.permute.xlu0 %7496
      %7498 = vrot.lane.b32.xlu0 %v7128, 93
      %v7499 = vpop.permute.xlu0 %7498
      %7500 = vrot.lane.b32.xlu0 %v7129, 93
      %v7501 = vpop.permute.xlu0 %7500
      %7502 = vrot.lane.b32.xlu0 %v7130, 93
      %v7503 = vpop.permute.xlu0 %7502
      %7504 = vrot.lane.b32.xlu0 0, 93
      %v7505 = vpop.permute.xlu0 %7504
      %v7506 = vsel %vm942, %v7485, %v7487
      %v7507 = vsel %vm942, %v7487, %v7489
      %v7508 = vsel %vm942, %v7489, %v7491
      %v7509 = vsel %vm942, %v7491, %v7493
      %v7510 = vsel %vm942, %v7493, %v7495
      %v7511 = vsel %vm942, %v7495, %v7497
      %v7512 = vsel %vm942, %v7497, %v7499
      %v7513 = vsel %vm942, %v7499, %v7501
      %v7514 = vsel %vm942, %v7501, %v7503
      %v7515 = vsel %vm942, %v7503, %v7505
      %7516 = vrot.lane.b32.xlu0 %v7384, 92
      %v7517 = vpop.permute.xlu0 %7516
      %7518 = vrot.lane.b32.xlu0 %v7385, 92
      %v7519 = vpop.permute.xlu0 %7518
      %7520 = vrot.lane.b32.xlu0 %v7386, 92
      %v7521 = vpop.permute.xlu0 %7520
      %7522 = vrot.lane.b32.xlu0 %v7387, 92
      %v7523 = vpop.permute.xlu0 %7522
      %7524 = vrot.lane.b32.xlu0 %v7388, 92
      %v7525 = vpop.permute.xlu0 %7524
      %7526 = vrot.lane.b32.xlu0 %v7389, 92
      %v7527 = vpop.permute.xlu0 %7526
      %7528 = vrot.lane.b32.xlu0 %v7390, 92
      %v7529 = vpop.permute.xlu0 %7528
      %7530 = vrot.lane.b32.xlu0 %v7391, 92
      %v7531 = vpop.permute.xlu0 %7530
      %7532 = vrot.lane.b32.xlu0 %v7392, 92
      %v7533 = vpop.permute.xlu0 %7532
      %7534 = vrot.lane.b32.xlu0 %v7393, 92
      %v7535 = vpop.permute.xlu0 %7534
      %v7536 = vsel %vm974, %v7517, %v7519
      %v7537 = vsel %vm974, %v7519, %v7521
      %v7538 = vsel %vm974, %v7521, %v7523
      %v7539 = vsel %vm974, %v7523, %v7525
      %v7540 = vsel %vm974, %v7525, %v7527
      %v7541 = vsel %vm974, %v7527, %v7529
      %v7542 = vsel %vm974, %v7529, %v7531
      %v7543 = vsel %vm974, %v7531, %v7533
      %v7544 = vsel %vm974, %v7533, %v7535
      %v7545 = vsel %vm974, %v7535, %v973
      %7546 = vrot.lane.b32.xlu0 %v7121, 60
      %v7547 = vpop.permute.xlu0 %7546
      %7548 = vrot.lane.b32.xlu0 %v7122, 60
      %v7549 = vpop.permute.xlu0 %7548
      %7550 = vrot.lane.b32.xlu0 %v7123, 60
      %v7551 = vpop.permute.xlu0 %7550
      %7552 = vrot.lane.b32.xlu0 %v7124, 60
      %v7553 = vpop.permute.xlu0 %7552
      %7554 = vrot.lane.b32.xlu0 %v7125, 60
      %v7555 = vpop.permute.xlu0 %7554
      %7556 = vrot.lane.b32.xlu0 %v7126, 60
      %v7557 = vpop.permute.xlu0 %7556
      %7558 = vrot.lane.b32.xlu0 %v7127, 60
      %v7559 = vpop.permute.xlu0 %7558
      %7560 = vrot.lane.b32.xlu0 %v7128, 60
      %v7561 = vpop.permute.xlu0 %7560
      %7562 = vrot.lane.b32.xlu0 %v7129, 60
      %v7563 = vpop.permute.xlu0 %7562
      %7564 = vrot.lane.b32.xlu0 %v7130, 60
      %v7565 = vpop.permute.xlu0 %7564
      %v7566 = vsel %vm1007, %v7547, %v7549
      %v7567 = vsel %vm1007, %v7549, %v7551
      %v7568 = vsel %vm1007, %v7551, %v7553
      %v7569 = vsel %vm1007, %v7553, %v7555
      %v7570 = vsel %vm1007, %v7555, %v7557
      %v7571 = vsel %vm1007, %v7557, %v7559
      %v7572 = vsel %vm1007, %v7559, %v7561
      %v7573 = vsel %vm1007, %v7561, %v7563
      %v7574 = vsel %vm1007, %v7563, %v7565
      %v7575 = vsel %vm1007, %v7565, %v1006
      %7576 = vrot.lane.b32.xlu0 %v7384, 59
      %v7577 = vpop.permute.xlu0 %7576
      %7578 = vrot.lane.b32.xlu0 %v7385, 59
      %v7579 = vpop.permute.xlu0 %7578
      %7580 = vrot.lane.b32.xlu0 %v7386, 59
      %v7581 = vpop.permute.xlu0 %7580
      %7582 = vrot.lane.b32.xlu0 %v7387, 59
      %v7583 = vpop.permute.xlu0 %7582
      %7584 = vrot.lane.b32.xlu0 %v7388, 59
      %v7585 = vpop.permute.xlu0 %7584
      %7586 = vrot.lane.b32.xlu0 %v7389, 59
      %v7587 = vpop.permute.xlu0 %7586
      %7588 = vrot.lane.b32.xlu0 %v7390, 59
      %v7589 = vpop.permute.xlu0 %7588
      %7590 = vrot.lane.b32.xlu0 %v7391, 59
      %v7591 = vpop.permute.xlu0 %7590
      %7592 = vrot.lane.b32.xlu0 %v7392, 59
      %v7593 = vpop.permute.xlu0 %7592
      %7594 = vrot.lane.b32.xlu0 %v7393, 59
      %v7595 = vpop.permute.xlu0 %7594
      %v7596 = vsel %vm1040, %v7577, %v7579
      %v7597 = vsel %vm1040, %v7579, %v7581
      %v7598 = vsel %vm1040, %v7581, %v7583
      %v7599 = vsel %vm1040, %v7583, %v7585
      %v7600 = vsel %vm1040, %v7585, %v7587
      %v7601 = vsel %vm1040, %v7587, %v7589
      %v7602 = vsel %vm1040, %v7589, %v7591
      %v7603 = vsel %vm1040, %v7591, %v7593
      %v7604 = vsel %vm1040, %v7593, %v7595
      %v7605 = vsel %vm1040, %v7595, %v1039
      %7606 = vrot.lane.b32.xlu0 %v7121, 58
      %v7607 = vpop.permute.xlu0 %7606
      %7608 = vrot.lane.b32.xlu0 %v7122, 58
      %v7609 = vpop.permute.xlu0 %7608
      %7610 = vrot.lane.b32.xlu0 %v7123, 58
      %v7611 = vpop.permute.xlu0 %7610
      %7612 = vrot.lane.b32.xlu0 %v7124, 58
      %v7613 = vpop.permute.xlu0 %7612
      %7614 = vrot.lane.b32.xlu0 %v7125, 58
      %v7615 = vpop.permute.xlu0 %7614
      %7616 = vrot.lane.b32.xlu0 %v7126, 58
      %v7617 = vpop.permute.xlu0 %7616
      %7618 = vrot.lane.b32.xlu0 %v7127, 58
      %v7619 = vpop.permute.xlu0 %7618
      %7620 = vrot.lane.b32.xlu0 %v7128, 58
      %v7621 = vpop.permute.xlu0 %7620
      %7622 = vrot.lane.b32.xlu0 %v7129, 58
      %v7623 = vpop.permute.xlu0 %7622
      %7624 = vrot.lane.b32.xlu0 %v7130, 58
      %v7625 = vpop.permute.xlu0 %7624
      %v7626 = vsel %vm1073, %v7607, %v7609
      %v7627 = vsel %vm1073, %v7609, %v7611
      %v7628 = vsel %vm1073, %v7611, %v7613
      %v7629 = vsel %vm1073, %v7613, %v7615
      %v7630 = vsel %vm1073, %v7615, %v7617
      %v7631 = vsel %vm1073, %v7617, %v7619
      %v7632 = vsel %vm1073, %v7619, %v7621
      %v7633 = vsel %vm1073, %v7621, %v7623
      %v7634 = vsel %vm1073, %v7623, %v7625
      %v7635 = vsel %vm1073, %v7625, %v1072
      %v7637 = vsel %vm305, %v7121, %v7414
      %v7640 = vsel %vm305, %v7122, %v7415
      %v7643 = vsel %vm305, %v7123, %v7416
      %v7646 = vsel %vm305, %v7124, %v7417
      %v7649 = vsel %vm305, %v7125, %v7418
      %v7652 = vsel %vm305, %v7126, %v7419
      %v7655 = vsel %vm305, %v7127, %v7420
      %v7658 = vsel %vm305, %v7128, %v7421
      %v7661 = vsel %vm305, %v7129, %v7422
      %v7664 = vsel %vm305, %v7130, %v7423
      %v7668 = vsel %vm305, %v7444, %v7474
      %v7672 = vsel %vm305, %v7445, %v7475
      %v7676 = vsel %vm305, %v7446, %v7476
      %v7680 = vsel %vm305, %v7447, %v7477
      %v7684 = vsel %vm305, %v7448, %v7478
      %v7688 = vsel %vm305, %v7449, %v7479
      %v7692 = vsel %vm305, %v7450, %v7480
      %v7696 = vsel %vm305, %v7451, %v7481
      %v7700 = vsel %vm305, %v7452, %v7482
      %v7704 = vsel %vm305, %v7453, %v7483
      %v7708 = vsel %vm305, %v7506, %v7536
      %v7712 = vsel %vm305, %v7507, %v7537
      %v7716 = vsel %vm305, %v7508, %v7538
      %v7720 = vsel %vm305, %v7509, %v7539
      %v7724 = vsel %vm305, %v7510, %v7540
      %v7728 = vsel %vm305, %v7511, %v7541
      %v7732 = vsel %vm305, %v7512, %v7542
      %v7736 = vsel %vm305, %v7513, %v7543
      %v7740 = vsel %vm305, %v7514, %v7544
      %v7744 = vsel %vm305, %v7515, %v7545
      %v7748 = vsel %vm305, %v7566, %v7596
      %v7752 = vsel %vm305, %v7567, %v7597
      %v7756 = vsel %vm305, %v7568, %v7598
      %v7760 = vsel %vm305, %v7569, %v7599
      %v7764 = vsel %vm305, %v7570, %v7600
      %v7768 = vsel %vm305, %v7571, %v7601
      %v7772 = vsel %vm305, %v7572, %v7602
      %v7776 = vsel %vm305, %v7573, %v7603
      %v7780 = vsel %vm305, %v7574, %v7604
      %v7784 = vsel %vm305, %v7575, %v7605
      %v7786 = vpack.c.bf16 %v266, %v266
      %7787 = vset.pattern.permute.xlu0 10
      %7788 = vperm.xlu0 %7787, %v271
      %v7789 = vpop.permute.xlu0 %7788
      %v7792 = vsel %vm1456, %v7786, 0
      %v7795 = vsel %vm305, %v7626, 0
      %v7798 = vsel %vm305, %v7627, 0
      %v7801 = vsel %vm305, %v7628, 0
      %v7804 = vsel %vm305, %v7629, 0
      %v7807 = vsel %vm305, %v7630, 0
      %v7810 = vsel %vm305, %v7631, 0
      %v7813 = vsel %vm305, %v7632, 0
      %v7816 = vsel %vm305, %v7633, 0
      %v7819 = vsel %vm305, %v7634, 0
      %v7822 = vsel %vm305, %v7635, 0
      %7824 = vmatprep.subr.bf16.mxu0 0
      %7825 = vmatpush1.bf16.msra.mxu0 0
      %7826 = vmatprep.subr.bf16.mxu0 0
      %7827 = vmatpush1.bf16.msra.mxu0 0
      %7828 = vmatprep.subr.bf16.mxu0 0
      %7829 = vmatpush1.bf16.msra.mxu0 0
      %7830 = vmatprep.subr.bf16.mxu0 %v7798
      %7831 = vmatpush1.bf16.msra.mxu0 %v7795
      %7832 = vmatprep.subr.bf16.mxu0 %v7752
      %7833 = vmatpush1.bf16.msra.mxu0 %v7748
      %7834 = vmatprep.subr.bf16.mxu0 %v7712
      %7835 = vmatpush1.bf16.msra.mxu0 %v7708
      %7836 = vmatprep.subr.bf16.mxu0 %v7672
      %7837 = vmatpush1.bf16.msra.mxu0 %v7668
      %7838 = vmatprep.subr.bf16.mxu0 %v7640
      %7839 = vmatpush1.bf16.msra.mxu0 %v7637
      %7840 = vmatprep.subr.bf16.mxu0 0
      %7841 = vmatpush2.bf16.msra.mxu0 0
      %7842 = vmatprep.subr.bf16.mxu0 0
      %7843 = vmatpush2.bf16.msra.mxu0 0
      %7844 = vmatprep.subr.bf16.mxu0 0
      %7845 = vmatpush2.bf16.msra.mxu0 0
      %7846 = vmatprep.subr.bf16.mxu0 0
      %7847 = vmatpush2.bf16.msra.mxu0 0
      %7848 = vmatprep.subr.bf16.mxu0 0
      %7849 = vmatpush2.bf16.msra.mxu0 0
      %7850 = vmatprep.subr.bf16.mxu0 0
      %7851 = vmatpush2.bf16.msra.mxu0 0
      %7852 = vmatprep.subr.bf16.mxu0 0
      %7853 = vmatpush2.bf16.msra.mxu0 0
      %7854 = vmatprep.subr.bf16.mxu0 0
      %7855 = vmatpush2.bf16.msra.mxu0 0
      %7856 = vmatprep.mubr.bf16.mxu0 0
      %7857 = vmatmul.mubr.bf16.gmra.mxu0 %v7792
      %v7858 = vpop.f32.mrf.mxu0
      %v7859 = vadd.f32 %v7789, %v7858
      %v7860 = vpop.f32.mrf.mxu0
      %v7861 = vadd.f32 %v7789, %v7860
      %v7862 = vpop.f32.mrf.mxu0
      %v7863 = vpop.f32.mrf.mxu0
      %7864 = vdwg.mxu0
      %7865 = vmatprep.subr.bf16.mxu0 0
      %7866 = vmatpush1.bf16.msra.mxu0 0
      %7867 = vmatprep.subr.bf16.mxu0 0
      %7868 = vmatpush1.bf16.msra.mxu0 0
      %7869 = vmatprep.subr.bf16.mxu0 0
      %7870 = vmatpush1.bf16.msra.mxu0 0
      %7871 = vmatprep.subr.bf16.mxu0 %v7804
      %7872 = vmatpush1.bf16.msra.mxu0 %v7801
      %7873 = vmatprep.subr.bf16.mxu0 %v7760
      %7874 = vmatpush1.bf16.msra.mxu0 %v7756
      %7875 = vmatprep.subr.bf16.mxu0 %v7720
      %7876 = vmatpush1.bf16.msra.mxu0 %v7716
      %7877 = vmatprep.subr.bf16.mxu0 %v7680
      %7878 = vmatpush1.bf16.msra.mxu0 %v7676
      %7879 = vmatprep.subr.bf16.mxu0 %v7646
      %7880 = vmatpush1.bf16.msra.mxu0 %v7643
      %7881 = vmatprep.subr.bf16.mxu0 0
      %7882 = vmatpush2.bf16.msra.mxu0 0
      %7883 = vmatprep.subr.bf16.mxu0 0
      %7884 = vmatpush2.bf16.msra.mxu0 0
      %7885 = vmatprep.subr.bf16.mxu0 0
      %7886 = vmatpush2.bf16.msra.mxu0 0
      %7887 = vmatprep.subr.bf16.mxu0 0
      %7888 = vmatpush2.bf16.msra.mxu0 0
      %7889 = vmatprep.subr.bf16.mxu0 0
      %7890 = vmatpush2.bf16.msra.mxu0 0
      %7891 = vmatprep.subr.bf16.mxu0 0
      %7892 = vmatpush2.bf16.msra.mxu0 0
      %7893 = vmatprep.subr.bf16.mxu0 0
      %7894 = vmatpush2.bf16.msra.mxu0 0
      %7895 = vmatprep.subr.bf16.mxu0 0
      %7896 = vmatpush2.bf16.msra.mxu0 0
      %7897 = vmatprep.mubr.bf16.mxu0 0
      %7898 = vmatmul.mubr.bf16.gmra.mxu0 %v7792
      %v7899 = vpop.f32.mrf.mxu0
      %v7900 = vadd.f32 %v7789, %v7899
      %v7901 = vpop.f32.mrf.mxu0
      %v7902 = vadd.f32 %v7789, %v7901
      %v7903 = vpop.f32.mrf.mxu0
      %v7904 = vpop.f32.mrf.mxu0
      %7905 = vdwg.mxu0
      %7906 = vmatprep.subr.bf16.mxu0 0
      %7907 = vmatpush1.bf16.msra.mxu0 0
      %7908 = vmatprep.subr.bf16.mxu0 0
      %7909 = vmatpush1.bf16.msra.mxu0 0
      %7910 = vmatprep.subr.bf16.mxu0 0
      %7911 = vmatpush1.bf16.msra.mxu0 0
      %7912 = vmatprep.subr.bf16.mxu0 %v7810
      %7913 = vmatpush1.bf16.msra.mxu0 %v7807
      %7914 = vmatprep.subr.bf16.mxu0 %v7768
      %7915 = vmatpush1.bf16.msra.mxu0 %v7764
      %7916 = vmatprep.subr.bf16.mxu0 %v7728
      %7917 = vmatpush1.bf16.msra.mxu0 %v7724
      %7918 = vmatprep.subr.bf16.mxu0 %v7688
      %7919 = vmatpush1.bf16.msra.mxu0 %v7684
      %7920 = vmatprep.subr.bf16.mxu0 %v7652
      %7921 = vmatpush1.bf16.msra.mxu0 %v7649
      %7922 = vmatprep.subr.bf16.mxu0 0
      %7923 = vmatpush2.bf16.msra.mxu0 0
      %7924 = vmatprep.subr.bf16.mxu0 0
      %7925 = vmatpush2.bf16.msra.mxu0 0
      %7926 = vmatprep.subr.bf16.mxu0 0
      %7927 = vmatpush2.bf16.msra.mxu0 0
      %7928 = vmatprep.subr.bf16.mxu0 0
      %7929 = vmatpush2.bf16.msra.mxu0 0
      %7930 = vmatprep.subr.bf16.mxu0 0
      %7931 = vmatpush2.bf16.msra.mxu0 0
      %7932 = vmatprep.subr.bf16.mxu0 0
      %7933 = vmatpush2.bf16.msra.mxu0 0
      %7934 = vmatprep.subr.bf16.mxu0 0
      %7935 = vmatpush2.bf16.msra.mxu0 0
      %7936 = vmatprep.subr.bf16.mxu0 0
      %7937 = vmatpush2.bf16.msra.mxu0 0
      %7938 = vmatprep.mubr.bf16.mxu0 0
      %7939 = vmatmul.mubr.bf16.gmra.mxu0 %v7792
      %v7940 = vpop.f32.mrf.mxu0
      %v7941 = vadd.f32 %v7789, %v7940
      %v7942 = vpop.f32.mrf.mxu0
      %v7943 = vadd.f32 %v7789, %v7942
      %v7944 = vpop.f32.mrf.mxu0
      %v7945 = vpop.f32.mrf.mxu0
      %7946 = vdwg.mxu0
      %7947 = vmatprep.subr.bf16.mxu0 0
      %7948 = vmatpush1.bf16.msra.mxu0 0
      %7949 = vmatprep.subr.bf16.mxu0 0
      %7950 = vmatpush1.bf16.msra.mxu0 0
      %7951 = vmatprep.subr.bf16.mxu0 0
      %7952 = vmatpush1.bf16.msra.mxu0 0
      %7953 = vmatprep.subr.bf16.mxu0 %v7816
      %7954 = vmatpush1.bf16.msra.mxu0 %v7813
      %7955 = vmatprep.subr.bf16.mxu0 %v7776
      %7956 = vmatpush1.bf16.msra.mxu0 %v7772
      %7957 = vmatprep.subr.bf16.mxu0 %v7736
      %7958 = vmatpush1.bf16.msra.mxu0 %v7732
      %7959 = vmatprep.subr.bf16.mxu0 %v7696
      %7960 = vmatpush1.bf16.msra.mxu0 %v7692
      %7961 = vmatprep.subr.bf16.mxu0 %v7658
      %7962 = vmatpush1.bf16.msra.mxu0 %v7655
      %7963 = vmatprep.subr.bf16.mxu0 0
      %7964 = vmatpush2.bf16.msra.mxu0 0
      %7965 = vmatprep.subr.bf16.mxu0 0
      %7966 = vmatpush2.bf16.msra.mxu0 0
      %7967 = vmatprep.subr.bf16.mxu0 0
      %7968 = vmatpush2.bf16.msra.mxu0 0
      %7969 = vmatprep.subr.bf16.mxu0 0
      %7970 = vmatpush2.bf16.msra.mxu0 0
      %7971 = vmatprep.subr.bf16.mxu0 0
      %7972 = vmatpush2.bf16.msra.mxu0 0
      %7973 = vmatprep.subr.bf16.mxu0 0
      %7974 = vmatpush2.bf16.msra.mxu0 0
      %7975 = vmatprep.subr.bf16.mxu0 0
      %7976 = vmatpush2.bf16.msra.mxu0 0
      %7977 = vmatprep.subr.bf16.mxu0 0
      %7978 = vmatpush2.bf16.msra.mxu0 0
      %7979 = vmatprep.mubr.bf16.mxu0 0
      %7980 = vmatmul.mubr.bf16.gmra.mxu0 %v7792
      %v7981 = vpop.f32.mrf.mxu0
      %v7982 = vadd.f32 %v7789, %v7981
      %v7983 = vpop.f32.mrf.mxu0
      %v7984 = vadd.f32 %v7789, %v7983
      %v7985 = vpop.f32.mrf.mxu0
      %v7986 = vpop.f32.mrf.mxu0
      %7987 = vdwg.mxu0
      %7988 = vmatprep.subr.bf16.mxu0 0
      %7989 = vmatpush1.bf16.msra.mxu0 0
      %7990 = vmatprep.subr.bf16.mxu0 0
      %7991 = vmatpush1.bf16.msra.mxu0 0
      %7992 = vmatprep.subr.bf16.mxu0 0
      %7993 = vmatpush1.bf16.msra.mxu0 0
      %7994 = vmatprep.subr.bf16.mxu0 %v7822
      %7995 = vmatpush1.bf16.msra.mxu0 %v7819
      %7996 = vmatprep.subr.bf16.mxu0 %v7784
      %7997 = vmatpush1.bf16.msra.mxu0 %v7780
      %7998 = vmatprep.subr.bf16.mxu0 %v7744
      %7999 = vmatpush1.bf16.msra.mxu0 %v7740
      %8000 = vmatprep.subr.bf16.mxu0 %v7704
      %8001 = vmatpush1.bf16.msra.mxu0 %v7700
      %8002 = vmatprep.subr.bf16.mxu0 %v7664
      %8003 = vmatpush1.bf16.msra.mxu0 %v7661
      %8004 = vmatprep.subr.bf16.mxu0 0
      %8005 = vmatpush2.bf16.msra.mxu0 0
      %8006 = vmatprep.subr.bf16.mxu0 0
      %8007 = vmatpush2.bf16.msra.mxu0 0
      %8008 = vmatprep.subr.bf16.mxu0 0
      %8009 = vmatpush2.bf16.msra.mxu0 0
      %8010 = vmatprep.subr.bf16.mxu0 0
      %8011 = vmatpush2.bf16.msra.mxu0 0
      %8012 = vmatprep.subr.bf16.mxu0 0
      %8013 = vmatpush2.bf16.msra.mxu0 0
      %8014 = vmatprep.subr.bf16.mxu0 0
      %8015 = vmatpush2.bf16.msra.mxu0 0
      %8016 = vmatprep.subr.bf16.mxu0 0
      %8017 = vmatpush2.bf16.msra.mxu0 0
      %8018 = vmatprep.subr.bf16.mxu0 0
      %8019 = vmatpush2.bf16.msra.mxu0 0
      %8020 = vmatprep.mubr.bf16.mxu0 0
      %8021 = vmatmul.mubr.bf16.gmra.mxu0 %v7792
      %v8022 = vpop.f32.mrf.mxu0
      %v8023 = vadd.f32 %v7789, %v8022
      %v8024 = vpop.f32.mrf.mxu0
      %v8025 = vadd.f32 %v7789, %v8024
      %v8026 = vpop.f32.mrf.mxu0
      %v8027 = vpop.f32.mrf.mxu0
      %8028 = vdwg.mxu0
      %8040 = vrot.lane.b32.xlu0 %v7859, 126
      %v8041 = vpop.permute.xlu0 %8040
      %8042 = vrot.lane.b32.xlu0 %v7861, 126
      %v8043 = vpop.permute.xlu0 %8042
      %8044 = vrot.lane.b32.xlu0 %v7900, 126
      %v8045 = vpop.permute.xlu0 %8044
      %8046 = vrot.lane.b32.xlu0 %v7902, 126
      %v8047 = vpop.permute.xlu0 %8046
      %8048 = vrot.lane.b32.xlu0 %v7941, 126
      %v8049 = vpop.permute.xlu0 %8048
      %8050 = vrot.lane.b32.xlu0 %v7943, 126
      %v8051 = vpop.permute.xlu0 %8050
      %8052 = vrot.lane.b32.xlu0 %v7982, 126
      %v8053 = vpop.permute.xlu0 %8052
      %8054 = vrot.lane.b32.xlu0 %v7984, 126
      %v8055 = vpop.permute.xlu0 %8054
      %8056 = vrot.lane.b32.xlu0 %v8023, 126
      %v8057 = vpop.permute.xlu0 %8056
      %8058 = vrot.lane.b32.xlu0 %v8025, 126
      %v8059 = vpop.permute.xlu0 %8058
      %8060 = vrot.lane.b32.xlu0 0.0, 126
      %v8061 = vpop.permute.xlu0 %8060
      %vm8062 = vcmask 1031168
      %v8063 = vsel %vm8062, %v8041, %v8043
      %v8064 = vsel %vm8062, %v8043, %v8045
      %v8065 = vsel %vm8062, %v8045, %v8047
      %v8066 = vsel %vm8062, %v8047, %v8049
      %v8067 = vsel %vm8062, %v8049, %v8051
      %v8068 = vsel %vm8062, %v8051, %v8053
      %v8069 = vsel %vm8062, %v8053, %v8055
      %v8070 = vsel %vm8062, %v8055, %v8057
      %v8071 = vsel %vm8062, %v8057, %v8059
      %v8072 = vsel %vm8062, %v8059, %v8061
      %v8083 = vmax.f32 %v7859, %v8063
      %v8084 = vmax.f32 %v7861, %v8064
      %v8085 = vmax.f32 %v7900, %v8065
      %v8086 = vmax.f32 %v7902, %v8066
      %v8087 = vmax.f32 %v7941, %v8067
      %v8088 = vmax.f32 %v7943, %v8068
      %v8089 = vmax.f32 %v7982, %v8069
      %v8090 = vmax.f32 %v7984, %v8070
      %v8091 = vmax.f32 %v8023, %v8071
      %v8092 = vmax.f32 %v8025, %v8072
      %8093 = vrot.lane.b32.xlu0 %v7859, 124
      %v8094 = vpop.permute.xlu0 %8093
      %8095 = vrot.lane.b32.xlu0 %v7861, 124
      %v8096 = vpop.permute.xlu0 %8095
      %8097 = vrot.lane.b32.xlu0 %v7900, 124
      %v8098 = vpop.permute.xlu0 %8097
      %8099 = vrot.lane.b32.xlu0 %v7902, 124
      %v8100 = vpop.permute.xlu0 %8099
      %8101 = vrot.lane.b32.xlu0 %v7941, 124
      %v8102 = vpop.permute.xlu0 %8101
      %8103 = vrot.lane.b32.xlu0 %v7943, 124
      %v8104 = vpop.permute.xlu0 %8103
      %8105 = vrot.lane.b32.xlu0 %v7982, 124
      %v8106 = vpop.permute.xlu0 %8105
      %8107 = vrot.lane.b32.xlu0 %v7984, 124
      %v8108 = vpop.permute.xlu0 %8107
      %8109 = vrot.lane.b32.xlu0 %v8023, 124
      %v8110 = vpop.permute.xlu0 %8109
      %8111 = vrot.lane.b32.xlu0 %v8025, 124
      %v8112 = vpop.permute.xlu0 %8111
      %8113 = vrot.lane.b32.xlu0 0.0, 124
      %v8114 = vpop.permute.xlu0 %8113
      %vm8115 = vcmask 1014784
      %v8116 = vsel %vm8115, %v8094, %v8096
      %v8117 = vsel %vm8115, %v8096, %v8098
      %v8118 = vsel %vm8115, %v8098, %v8100
      %v8119 = vsel %vm8115, %v8100, %v8102
      %v8120 = vsel %vm8115, %v8102, %v8104
      %v8121 = vsel %vm8115, %v8104, %v8106
      %v8122 = vsel %vm8115, %v8106, %v8108
      %v8123 = vsel %vm8115, %v8108, %v8110
      %v8124 = vsel %vm8115, %v8110, %v8112
      %v8125 = vsel %vm8115, %v8112, %v8114
      %v8136 = vmax.f32 %v8083, %v8116
      %v8137 = vmax.f32 %v8084, %v8117
      %v8138 = vmax.f32 %v8085, %v8118
      %v8139 = vmax.f32 %v8086, %v8119
      %v8140 = vmax.f32 %v8087, %v8120
      %v8141 = vmax.f32 %v8088, %v8121
      %v8142 = vmax.f32 %v8089, %v8122
      %v8143 = vmax.f32 %v8090, %v8123
      %v8144 = vmax.f32 %v8091, %v8124
      %v8145 = vmax.f32 %v8092, %v8125
      %8146 = vrot.lane.b32.xlu0 %v7859, 122
      %v8147 = vpop.permute.xlu0 %8146
      %8148 = vrot.lane.b32.xlu0 %v7861, 122
      %v8149 = vpop.permute.xlu0 %8148
      %8150 = vrot.lane.b32.xlu0 %v7900, 122
      %v8151 = vpop.permute.xlu0 %8150
      %8152 = vrot.lane.b32.xlu0 %v7902, 122
      %v8153 = vpop.permute.xlu0 %8152
      %8154 = vrot.lane.b32.xlu0 %v7941, 122
      %v8155 = vpop.permute.xlu0 %8154
      %8156 = vrot.lane.b32.xlu0 %v7943, 122
      %v8157 = vpop.permute.xlu0 %8156
      %8158 = vrot.lane.b32.xlu0 %v7982, 122
      %v8159 = vpop.permute.xlu0 %8158
      %8160 = vrot.lane.b32.xlu0 %v7984, 122
      %v8161 = vpop.permute.xlu0 %8160
      %8162 = vrot.lane.b32.xlu0 %v8023, 122
      %v8163 = vpop.permute.xlu0 %8162
      %8164 = vrot.lane.b32.xlu0 %v8025, 122
      %v8165 = vpop.permute.xlu0 %8164
      %8166 = vrot.lane.b32.xlu0 0.0, 122
      %v8167 = vpop.permute.xlu0 %8166
      %vm8168 = vcmask 998400
      %v8169 = vsel %vm8168, %v8147, %v8149
      %v8170 = vsel %vm8168, %v8149, %v8151
      %v8171 = vsel %vm8168, %v8151, %v8153
      %v8172 = vsel %vm8168, %v8153, %v8155
      %v8173 = vsel %vm8168, %v8155, %v8157
      %v8174 = vsel %vm8168, %v8157, %v8159
      %v8175 = vsel %vm8168, %v8159, %v8161
      %v8176 = vsel %vm8168, %v8161, %v8163
      %v8177 = vsel %vm8168, %v8163, %v8165
      %v8178 = vsel %vm8168, %v8165, %v8167
      %v8189 = vmax.f32 %v8136, %v8169
      %v8190 = vmax.f32 %v8137, %v8170
      %v8191 = vmax.f32 %v8138, %v8171
      %v8192 = vmax.f32 %v8139, %v8172
      %v8193 = vmax.f32 %v8140, %v8173
      %v8194 = vmax.f32 %v8141, %v8174
      %v8195 = vmax.f32 %v8142, %v8175
      %v8196 = vmax.f32 %v8143, %v8176
      %v8197 = vmax.f32 %v8144, %v8177
      %v8198 = vmax.f32 %v8145, %v8178
      %8199 = vrot.lane.b32.xlu0 %v7859, 120
      %v8200 = vpop.permute.xlu0 %8199
      %8201 = vrot.lane.b32.xlu0 %v7861, 120
      %v8202 = vpop.permute.xlu0 %8201
      %8203 = vrot.lane.b32.xlu0 %v7900, 120
      %v8204 = vpop.permute.xlu0 %8203
      %8205 = vrot.lane.b32.xlu0 %v7902, 120
      %v8206 = vpop.permute.xlu0 %8205
      %8207 = vrot.lane.b32.xlu0 %v7941, 120
      %v8208 = vpop.permute.xlu0 %8207
      %8209 = vrot.lane.b32.xlu0 %v7943, 120
      %v8210 = vpop.permute.xlu0 %8209
      %8211 = vrot.lane.b32.xlu0 %v7982, 120
      %v8212 = vpop.permute.xlu0 %8211
      %8213 = vrot.lane.b32.xlu0 %v7984, 120
      %v8214 = vpop.permute.xlu0 %8213
      %8215 = vrot.lane.b32.xlu0 %v8023, 120
      %v8216 = vpop.permute.xlu0 %8215
      %8217 = vrot.lane.b32.xlu0 %v8025, 120
      %v8218 = vpop.permute.xlu0 %8217
      %8219 = vrot.lane.b32.xlu0 0.0, 120
      %v8220 = vpop.permute.xlu0 %8219
      %vm8221 = vcmask 982016
      %v8222 = vsel %vm8221, %v8200, %v8202
      %v8223 = vsel %vm8221, %v8202, %v8204
      %v8224 = vsel %vm8221, %v8204, %v8206
      %v8225 = vsel %vm8221, %v8206, %v8208
      %v8226 = vsel %vm8221, %v8208, %v8210
      %v8227 = vsel %vm8221, %v8210, %v8212
      %v8228 = vsel %vm8221, %v8212, %v8214
      %v8229 = vsel %vm8221, %v8214, %v8216
      %v8230 = vsel %vm8221, %v8216, %v8218
      %v8231 = vsel %vm8221, %v8218, %v8220
      %v8242 = vmax.f32 %v8189, %v8222
      %v8243 = vmax.f32 %v8190, %v8223
      %v8244 = vmax.f32 %v8191, %v8224
      %v8245 = vmax.f32 %v8192, %v8225
      %v8246 = vmax.f32 %v8193, %v8226
      %v8247 = vmax.f32 %v8194, %v8227
      %v8248 = vmax.f32 %v8195, %v8228
      %v8249 = vmax.f32 %v8196, %v8229
      %v8250 = vmax.f32 %v8197, %v8230
      %v8251 = vmax.f32 %v8198, %v8231
      %8252 = vrot.lane.b32.xlu0 %v7859, 118
      %v8253 = vpop.permute.xlu0 %8252
      %8254 = vrot.lane.b32.xlu0 %v7861, 118
      %v8255 = vpop.permute.xlu0 %8254
      %8256 = vrot.lane.b32.xlu0 %v7900, 118
      %v8257 = vpop.permute.xlu0 %8256
      %8258 = vrot.lane.b32.xlu0 %v7902, 118
      %v8259 = vpop.permute.xlu0 %8258
      %8260 = vrot.lane.b32.xlu0 %v7941, 118
      %v8261 = vpop.permute.xlu0 %8260
      %8262 = vrot.lane.b32.xlu0 %v7943, 118
      %v8263 = vpop.permute.xlu0 %8262
      %8264 = vrot.lane.b32.xlu0 %v7982, 118
      %v8265 = vpop.permute.xlu0 %8264
      %8266 = vrot.lane.b32.xlu0 %v7984, 118
      %v8267 = vpop.permute.xlu0 %8266
      %8268 = vrot.lane.b32.xlu0 %v8023, 118
      %v8269 = vpop.permute.xlu0 %8268
      %8270 = vrot.lane.b32.xlu0 %v8025, 118
      %v8271 = vpop.permute.xlu0 %8270
      %8272 = vrot.lane.b32.xlu0 0.0, 118
      %v8273 = vpop.permute.xlu0 %8272
      %vm8274 = vcmask 965632
      %v8275 = vsel %vm8274, %v8253, %v8255
      %v8276 = vsel %vm8274, %v8255, %v8257
      %v8277 = vsel %vm8274, %v8257, %v8259
      %v8278 = vsel %vm8274, %v8259, %v8261
      %v8279 = vsel %vm8274, %v8261, %v8263
      %v8280 = vsel %vm8274, %v8263, %v8265
      %v8281 = vsel %vm8274, %v8265, %v8267
      %v8282 = vsel %vm8274, %v8267, %v8269
      %v8283 = vsel %vm8274, %v8269, %v8271
      %v8284 = vsel %vm8274, %v8271, %v8273
      %v8295 = vmax.f32 %v8242, %v8275
      %v8296 = vmax.f32 %v8243, %v8276
      %v8297 = vmax.f32 %v8244, %v8277
      %v8298 = vmax.f32 %v8245, %v8278
      %v8299 = vmax.f32 %v8246, %v8279
      %v8300 = vmax.f32 %v8247, %v8280
      %v8301 = vmax.f32 %v8248, %v8281
      %v8302 = vmax.f32 %v8249, %v8282
      %v8303 = vmax.f32 %v8250, %v8283
      %v8304 = vmax.f32 %v8251, %v8284
      %8305 = vrot.lane.b32.xlu0 %v7859, 116
      %v8306 = vpop.permute.xlu0 %8305
      %8307 = vrot.lane.b32.xlu0 %v7861, 116
      %v8308 = vpop.permute.xlu0 %8307
      %8309 = vrot.lane.b32.xlu0 %v7900, 116
      %v8310 = vpop.permute.xlu0 %8309
      %8311 = vrot.lane.b32.xlu0 %v7902, 116
      %v8312 = vpop.permute.xlu0 %8311
      %8313 = vrot.lane.b32.xlu0 %v7941, 116
      %v8314 = vpop.permute.xlu0 %8313
      %8315 = vrot.lane.b32.xlu0 %v7943, 116
      %v8316 = vpop.permute.xlu0 %8315
      %8317 = vrot.lane.b32.xlu0 %v7982, 116
      %v8318 = vpop.permute.xlu0 %8317
      %8319 = vrot.lane.b32.xlu0 %v7984, 116
      %v8320 = vpop.permute.xlu0 %8319
      %8321 = vrot.lane.b32.xlu0 %v8023, 116
      %v8322 = vpop.permute.xlu0 %8321
      %8323 = vrot.lane.b32.xlu0 %v8025, 116
      %v8324 = vpop.permute.xlu0 %8323
      %8325 = vrot.lane.b32.xlu0 0.0, 116
      %v8326 = vpop.permute.xlu0 %8325
      %vm8327 = vcmask 949248
      %v8328 = vsel %vm8327, %v8306, %v8308
      %v8329 = vsel %vm8327, %v8308, %v8310
      %v8330 = vsel %vm8327, %v8310, %v8312
      %v8331 = vsel %vm8327, %v8312, %v8314
      %v8332 = vsel %vm8327, %v8314, %v8316
      %v8333 = vsel %vm8327, %v8316, %v8318
      %v8334 = vsel %vm8327, %v8318, %v8320
      %v8335 = vsel %vm8327, %v8320, %v8322
      %v8336 = vsel %vm8327, %v8322, %v8324
      %v8337 = vsel %vm8327, %v8324, %v8326
      %v8348 = vmax.f32 %v8295, %v8328
      %v8349 = vmax.f32 %v8296, %v8329
      %v8350 = vmax.f32 %v8297, %v8330
      %v8351 = vmax.f32 %v8298, %v8331
      %v8352 = vmax.f32 %v8299, %v8332
      %v8353 = vmax.f32 %v8300, %v8333
      %v8354 = vmax.f32 %v8301, %v8334
      %v8355 = vmax.f32 %v8302, %v8335
      %v8356 = vmax.f32 %v8303, %v8336
      %v8357 = vmax.f32 %v8304, %v8337
      %8368 = vrot.lane.b32.xlu0 %v8348, 60
      %v8369 = vpop.permute.xlu0 %8368
      %8370 = vrot.lane.b32.xlu0 %v8349, 60
      %v8371 = vpop.permute.xlu0 %8370
      %8372 = vrot.lane.b32.xlu0 %v8350, 60
      %v8373 = vpop.permute.xlu0 %8372
      %8374 = vrot.lane.b32.xlu0 %v8351, 60
      %v8375 = vpop.permute.xlu0 %8374
      %8376 = vrot.lane.b32.xlu0 %v8352, 60
      %v8377 = vpop.permute.xlu0 %8376
      %8378 = vrot.lane.b32.xlu0 %v8353, 60
      %v8379 = vpop.permute.xlu0 %8378
      %8380 = vrot.lane.b32.xlu0 %v8354, 60
      %v8381 = vpop.permute.xlu0 %8380
      %8382 = vrot.lane.b32.xlu0 %v8355, 60
      %v8383 = vpop.permute.xlu0 %8382
      %8384 = vrot.lane.b32.xlu0 %v8356, 60
      %v8385 = vpop.permute.xlu0 %8384
      %8386 = vrot.lane.b32.xlu0 %v8357, 60
      %v8387 = vpop.permute.xlu0 %8386
      %8388 = vrot.lane.b32.xlu0 0.0, 60
      %v8389 = vpop.permute.xlu0 %8388
      %vm8390 = vcmask 490496
      %v8391 = vsel %vm8390, %v8369, %v8371
      %v8392 = vsel %vm8390, %v8371, %v8373
      %v8393 = vsel %vm8390, %v8373, %v8375
      %v8394 = vsel %vm8390, %v8375, %v8377
      %v8395 = vsel %vm8390, %v8377, %v8379
      %v8396 = vsel %vm8390, %v8379, %v8381
      %v8397 = vsel %vm8390, %v8381, %v8383
      %v8398 = vsel %vm8390, %v8383, %v8385
      %v8399 = vsel %vm8390, %v8385, %v8387
      %v8400 = vsel %vm8390, %v8387, %v8389
      %v8411 = vmax.f32 %v8348, %v8391
      %v8412 = vmax.f32 %v8349, %v8392
      %v8413 = vmax.f32 %v8350, %v8393
      %v8414 = vmax.f32 %v8351, %v8394
      %v8415 = vmax.f32 %v8352, %v8395
      %v8416 = vmax.f32 %v8353, %v8396
      %v8417 = vmax.f32 %v8354, %v8397
      %v8418 = vmax.f32 %v8355, %v8398
      %v8419 = vmax.f32 %v8356, %v8399
      %v8420 = vmax.f32 %v8357, %v8400
      %8421 = vrot.lane.b32.xlu0 %v8349, 120
      %v8422 = vpop.permute.xlu0 %8421
      %8423 = vrot.lane.b32.xlu0 %v8350, 120
      %v8424 = vpop.permute.xlu0 %8423
      %8425 = vrot.lane.b32.xlu0 %v8351, 120
      %v8426 = vpop.permute.xlu0 %8425
      %8427 = vrot.lane.b32.xlu0 %v8352, 120
      %v8428 = vpop.permute.xlu0 %8427
      %8429 = vrot.lane.b32.xlu0 %v8353, 120
      %v8430 = vpop.permute.xlu0 %8429
      %8431 = vrot.lane.b32.xlu0 %v8354, 120
      %v8432 = vpop.permute.xlu0 %8431
      %8433 = vrot.lane.b32.xlu0 %v8355, 120
      %v8434 = vpop.permute.xlu0 %8433
      %8435 = vrot.lane.b32.xlu0 %v8356, 120
      %v8436 = vpop.permute.xlu0 %8435
      %8437 = vrot.lane.b32.xlu0 %v8357, 120
      %v8438 = vpop.permute.xlu0 %8437
      %v8439 = vsel %vm8221, %v8422, %v8424
      %v8440 = vsel %vm8221, %v8424, %v8426
      %v8441 = vsel %vm8221, %v8426, %v8428
      %v8442 = vsel %vm8221, %v8428, %v8430
      %v8443 = vsel %vm8221, %v8430, %v8432
      %v8444 = vsel %vm8221, %v8432, %v8434
      %v8445 = vsel %vm8221, %v8434, %v8436
      %v8446 = vsel %vm8221, %v8436, %v8438
      %v8447 = vsel %vm8221, %v8438, %v8220
      %v8458 = vmax.f32 %v8411, %v8439
      %v8459 = vmax.f32 %v8412, %v8440
      %v8460 = vmax.f32 %v8413, %v8441
      %v8461 = vmax.f32 %v8414, %v8442
      %v8462 = vmax.f32 %v8415, %v8443
      %v8463 = vmax.f32 %v8416, %v8444
      %v8464 = vmax.f32 %v8417, %v8445
      %v8465 = vmax.f32 %v8418, %v8446
      %v8466 = vmax.f32 %v8419, %v8447
      %v8467 = vmax.f32 %v8420, %v8220
      %8468 = vrot.lane.b32.xlu0 %v8349, 52
      %v8469 = vpop.permute.xlu0 %8468
      %8470 = vrot.lane.b32.xlu0 %v8350, 52
      %v8471 = vpop.permute.xlu0 %8470
      %8472 = vrot.lane.b32.xlu0 %v8351, 52
      %v8473 = vpop.permute.xlu0 %8472
      %8474 = vrot.lane.b32.xlu0 %v8352, 52
      %v8475 = vpop.permute.xlu0 %8474
      %8476 = vrot.lane.b32.xlu0 %v8353, 52
      %v8477 = vpop.permute.xlu0 %8476
      %8478 = vrot.lane.b32.xlu0 %v8354, 52
      %v8479 = vpop.permute.xlu0 %8478
      %8480 = vrot.lane.b32.xlu0 %v8355, 52
      %v8481 = vpop.permute.xlu0 %8480
      %8482 = vrot.lane.b32.xlu0 %v8356, 52
      %v8483 = vpop.permute.xlu0 %8482
      %8484 = vrot.lane.b32.xlu0 %v8357, 52
      %v8485 = vpop.permute.xlu0 %8484
      %8486 = vrot.lane.b32.xlu0 0.0, 52
      %v8487 = vpop.permute.xlu0 %8486
      %vm8488 = vcmask 424960
      %v8489 = vsel %vm8488, %v8469, %v8471
      %v8490 = vsel %vm8488, %v8471, %v8473
      %v8491 = vsel %vm8488, %v8473, %v8475
      %v8492 = vsel %vm8488, %v8475, %v8477
      %v8493 = vsel %vm8488, %v8477, %v8479
      %v8494 = vsel %vm8488, %v8479, %v8481
      %v8495 = vsel %vm8488, %v8481, %v8483
      %v8496 = vsel %vm8488, %v8483, %v8485
      %v8497 = vsel %vm8488, %v8485, %v8487
      %v8508 = vmax.f32 %v8458, %v8489
      %v8509 = vmax.f32 %v8459, %v8490
      %v8510 = vmax.f32 %v8460, %v8491
      %v8511 = vmax.f32 %v8461, %v8492
      %v8512 = vmax.f32 %v8462, %v8493
      %v8513 = vmax.f32 %v8463, %v8494
      %v8514 = vmax.f32 %v8464, %v8495
      %v8515 = vmax.f32 %v8465, %v8496
      %v8516 = vmax.f32 %v8466, %v8497
      %v8517 = vmax.f32 %v8467, %v8487
      %8518 = vrot.lane.b32.xlu0 %v8350, 112
      %v8519 = vpop.permute.xlu0 %8518
      %8520 = vrot.lane.b32.xlu0 %v8351, 112
      %v8521 = vpop.permute.xlu0 %8520
      %8522 = vrot.lane.b32.xlu0 %v8352, 112
      %v8523 = vpop.permute.xlu0 %8522
      %8524 = vrot.lane.b32.xlu0 %v8353, 112
      %v8525 = vpop.permute.xlu0 %8524
      %8526 = vrot.lane.b32.xlu0 %v8354, 112
      %v8527 = vpop.permute.xlu0 %8526
      %8528 = vrot.lane.b32.xlu0 %v8355, 112
      %v8529 = vpop.permute.xlu0 %8528
      %8530 = vrot.lane.b32.xlu0 %v8356, 112
      %v8531 = vpop.permute.xlu0 %8530
      %8532 = vrot.lane.b32.xlu0 %v8357, 112
      %v8533 = vpop.permute.xlu0 %8532
      %8534 = vrot.lane.b32.xlu0 0.0, 112
      %v8535 = vpop.permute.xlu0 %8534
      %vm8536 = vcmask 916480
      %v8537 = vsel %vm8536, %v8519, %v8521
      %v8538 = vsel %vm8536, %v8521, %v8523
      %v8539 = vsel %vm8536, %v8523, %v8525
      %v8540 = vsel %vm8536, %v8525, %v8527
      %v8541 = vsel %vm8536, %v8527, %v8529
      %v8542 = vsel %vm8536, %v8529, %v8531
      %v8543 = vsel %vm8536, %v8531, %v8533
      %v8544 = vsel %vm8536, %v8533, %v8535
      %v8554 = vmax.f32 %v8508, %v8537
      %v8555 = vmax.f32 %v8509, %v8538
      %v8556 = vmax.f32 %v8510, %v8539
      %v8557 = vmax.f32 %v8511, %v8540
      %v8558 = vmax.f32 %v8512, %v8541
      %v8559 = vmax.f32 %v8513, %v8542
      %v8560 = vmax.f32 %v8514, %v8543
      %v8561 = vmax.f32 %v8515, %v8544
      %v8562 = vmax.f32 %v8516, %v8535
      %v8563 = vmax.f32 %v8517, %v8535
      %8564 = vrot.lane.b32.xlu0 %v8350, 44
      %v8565 = vpop.permute.xlu0 %8564
      %8566 = vrot.lane.b32.xlu0 %v8351, 44
      %v8567 = vpop.permute.xlu0 %8566
      %8568 = vrot.lane.b32.xlu0 %v8352, 44
      %v8569 = vpop.permute.xlu0 %8568
      %8570 = vrot.lane.b32.xlu0 %v8353, 44
      %v8571 = vpop.permute.xlu0 %8570
      %8572 = vrot.lane.b32.xlu0 %v8354, 44
      %v8573 = vpop.permute.xlu0 %8572
      %8574 = vrot.lane.b32.xlu0 %v8355, 44
      %v8575 = vpop.permute.xlu0 %8574
      %8576 = vrot.lane.b32.xlu0 %v8356, 44
      %v8577 = vpop.permute.xlu0 %8576
      %8578 = vrot.lane.b32.xlu0 %v8357, 44
      %v8579 = vpop.permute.xlu0 %8578
      %8580 = vrot.lane.b32.xlu0 0.0, 44
      %v8581 = vpop.permute.xlu0 %8580
      %vm8582 = vcmask 359424
      %v8583 = vsel %vm8582, %v8565, %v8567
      %v8584 = vsel %vm8582, %v8567, %v8569
      %v8585 = vsel %vm8582, %v8569, %v8571
      %v8586 = vsel %vm8582, %v8571, %v8573
      %v8587 = vsel %vm8582, %v8573, %v8575
      %v8588 = vsel %vm8582, %v8575, %v8577
      %v8589 = vsel %vm8582, %v8577, %v8579
      %v8590 = vsel %vm8582, %v8579, %v8581
      %v8600 = vmax.f32 %v8554, %v8583
      %v8601 = vmax.f32 %v8555, %v8584
      %v8602 = vmax.f32 %v8556, %v8585
      %v8603 = vmax.f32 %v8557, %v8586
      %v8604 = vmax.f32 %v8558, %v8587
      %v8605 = vmax.f32 %v8559, %v8588
      %v8606 = vmax.f32 %v8560, %v8589
      %v8607 = vmax.f32 %v8561, %v8590
      %v8608 = vmax.f32 %v8562, %v8581
      %v8609 = vmax.f32 %v8563, %v8581
      %8610 = vrot.lane.b32.xlu0 %v8351, 104
      %v8611 = vpop.permute.xlu0 %8610
      %8612 = vrot.lane.b32.xlu0 %v8352, 104
      %v8613 = vpop.permute.xlu0 %8612
      %8614 = vrot.lane.b32.xlu0 %v8353, 104
      %v8615 = vpop.permute.xlu0 %8614
      %8616 = vrot.lane.b32.xlu0 %v8354, 104
      %v8617 = vpop.permute.xlu0 %8616
      %8618 = vrot.lane.b32.xlu0 %v8355, 104
      %v8619 = vpop.permute.xlu0 %8618
      %8620 = vrot.lane.b32.xlu0 %v8356, 104
      %v8621 = vpop.permute.xlu0 %8620
      %8622 = vrot.lane.b32.xlu0 %v8357, 104
      %v8623 = vpop.permute.xlu0 %8622
      %8624 = vrot.lane.b32.xlu0 0.0, 104
      %v8625 = vpop.permute.xlu0 %8624
      %vm8626 = vcmask 850944
      %v8627 = vsel %vm8626, %v8611, %v8613
      %v8628 = vsel %vm8626, %v8613, %v8615
      %v8629 = vsel %vm8626, %v8615, %v8617
      %v8630 = vsel %vm8626, %v8617, %v8619
      %v8631 = vsel %vm8626, %v8619, %v8621
      %v8632 = vsel %vm8626, %v8621, %v8623
      %v8633 = vsel %vm8626, %v8623, %v8625
      %v8642 = vmax.f32 %v8600, %v8627
      %v8643 = vmax.f32 %v8601, %v8628
      %v8644 = vmax.f32 %v8602, %v8629
      %v8645 = vmax.f32 %v8603, %v8630
      %v8646 = vmax.f32 %v8604, %v8631
      %v8647 = vmax.f32 %v8605, %v8632
      %v8648 = vmax.f32 %v8606, %v8633
      %v8649 = vmax.f32 %v8607, %v8625
      %v8650 = vmax.f32 %v8608, %v8625
      %v8651 = vmax.f32 %v8609, %v8625
      %v8652 = vpack.c.bf16 %v8642, %v8642
      %v8653 = vpack.c.bf16 %v8643, %v8643
      %v8654 = vpack.c.bf16 %v8644, %v8644
      %v8655 = vpack.c.bf16 %v8645, %v8645
      %v8656 = vpack.c.bf16 %v8646, %v8646
      %v8657 = vpack.c.bf16 %v8647, %v8647
      %v8658 = vpack.c.bf16 %v8648, %v8648
      %v8659 = vpack.c.bf16 %v8649, %v8649
      %v8660 = vpack.c.bf16 %v8650, %v8650
      %v8661 = vpack.c.bf16 %v8651, %v8651
      %v8662 = vld [vmem:[%s3] sm:$0xf]
      %v8663 = vld [vmem:[%s3 + $0x4] sm:$0xf]
      %v8664 = vld [vmem:[%s3 + $0x8] sm:$0xf]
      %v8665 = vld [vmem:[%s3 + $0xc] sm:$0xf]
      %v8666 = vld [vmem:[%s3 + $0x10] sm:$0xf]
      %v8667 = vld [vmem:[%s3 + $0x14] sm:$0xf]
      %v8668 = vld [vmem:[%s3 + $0x18] sm:$0xf]
      %v8669 = vld [vmem:[%s3 + $0x1c] sm:$0xf]
      %v8670 = vld [vmem:[%s3 + $0x20] sm:$0xf]
      %v8671 = vld [vmem:[%s3 + $0x24] sm:$0xf]
      %v8672 = vld [vmem:[%s3 + $0x28] sm:$0xf]
      %v8673 = vld [vmem:[%s3 + $0x2c] sm:$0xf]
      %v8674 = vld [vmem:[%s3 + $0x30] sm:$0xf]
      %v8675 = vld [vmem:[%s3 + $0x34] sm:$0xf]
      %v8676 = vld [vmem:[%s3 + $0x38] sm:$0xf]
      %v8677 = vld [vmem:[%s3 + $0x3c] sm:$0xf]
      %v8678 = vld [vmem:[%s3 + $0x40] sm:$0xf]
      %v8679 = vld [vmem:[%s3 + $0x44] sm:$0xf]
      %v8680 = vld [vmem:[%s3 + $0x48] sm:$0xf]
      %v8681 = vld [vmem:[%s3 + $0x4c] sm:$0xf]
      %v8682 = vld [vmem:[%s3 + $0x50] sm:$0xf]
      %v8683 = vld [vmem:[%s3 + $0x54] sm:$0xf]
      %v8684 = vld [vmem:[%s3 + $0x58] sm:$0xf]
      %v8685 = vld [vmem:[%s3 + $0x5c] sm:$0xf]
      %v8686 = vld [vmem:[%s3 + $0x60] sm:$0xf]
      %v8687 = vld [vmem:[%s3 + $0x64] sm:$0xf]
      %v8688 = vld [vmem:[%s3 + $0x68] sm:$0xf]
      %v8689 = vld [vmem:[%s3 + $0x6c] sm:$0xf]
      %v8690 = vld [vmem:[%s3 + $0x70] sm:$0xf]
      %v8691 = vld [vmem:[%s3 + $0x74] sm:$0xf]
      %v8692 = vld [vmem:[%s3 + $0x78] sm:$0xf]
      %v8693 = vld [vmem:[%s3 + $0x7c] sm:$0xf]
      %v8694 = vld [vmem:[%s3 + $0x80] sm:$0xf]
      %v8695 = vld [vmem:[%s3 + $0x84] sm:$0xf]
      %v8696 = vld [vmem:[%s3 + $0x88] sm:$0xf]
      %v8697 = vld [vmem:[%s3 + $0x8c] sm:$0xf]
      %v8698 = vld [vmem:[%s3 + $0x90] sm:$0xf]
      %v8699 = vld [vmem:[%s3 + $0x94] sm:$0xf]
      %v8700 = vld [vmem:[%s3 + $0x98] sm:$0xf]
      %v8701 = vld [vmem:[%s3 + $0x9c] sm:$0xf]
      %v8702 = vld [vmem:[%s3 + $0xa0] sm:$0xf]
      %v8703 = vld [vmem:[%s3 + $0xa4] sm:$0xf]
      %v8704 = vld [vmem:[%s3 + $0xa8] sm:$0xf]
      %v8705 = vld [vmem:[%s3 + $0xac] sm:$0xf]
      %v8706 = vld [vmem:[%s3 + $0xb0] sm:$0xf]
      %v8707 = vld [vmem:[%s3 + $0xb4] sm:$0xf]
      %v8708 = vld [vmem:[%s3 + $0xb8] sm:$0xf]
      %v8709 = vld [vmem:[%s3 + $0xbc] sm:$0xf]
      %v8710 = vld [vmem:[%s3 + $0xc0] sm:$0xf]
      %v8711 = vld [vmem:[%s3 + $0xc4] sm:$0xf]
      %v8712 = vld [vmem:[%s3 + $0xc8] sm:$0xf]
      %v8713 = vld [vmem:[%s3 + $0xcc] sm:$0xf]
      %v8714 = vld [vmem:[%s3 + $0xd0] sm:$0xf]
      %v8715 = vld [vmem:[%s3 + $0xd4] sm:$0xf]
      %v8716 = vld [vmem:[%s3 + $0xd8] sm:$0xf]
      %v8717 = vld [vmem:[%s3 + $0xdc] sm:$0xf]
      %v8718 = vld [vmem:[%s3 + $0xe0] sm:$0xf]
      %v8719 = vld [vmem:[%s3 + $0xe4] sm:$0xf]
      %v8720 = vld [vmem:[%s3 + $0xe8] sm:$0xf]
      %v8721 = vld [vmem:[%s3 + $0xec] sm:$0xf]
      %v8722 = vld [vmem:[%s3 + $0xf0] sm:$0xf]
      %v8723 = vld [vmem:[%s3 + $0xf4] sm:$0xf]
      %v8724 = vld [vmem:[%s3 + $0xf8] sm:$0xf]
      %v8725 = vld [vmem:[%s3 + $0xfc] sm:$0xf]
      %v8726 = vld [vmem:[%s3 + $0x100] sm:$0xf]
      %v8727 = vld [vmem:[%s3 + $0x104] sm:$0xf]
      %v8728 = vld [vmem:[%s3 + $0x108] sm:$0xf]
      %v8729 = vld [vmem:[%s3 + $0x10c] sm:$0xf]
      %v8730 = vld [vmem:[%s3 + $0x110] sm:$0xf]
      %v8731 = vld [vmem:[%s3 + $0x114] sm:$0xf]
      %v8732 = vld [vmem:[%s3 + $0x118] sm:$0xf]
      %v8733 = vld [vmem:[%s3 + $0x11c] sm:$0xf]
      %v8734 = vld [vmem:[%s3 + $0x120] sm:$0xf]
      %v8735 = vld [vmem:[%s3 + $0x124] sm:$0xf]
      %v8736 = vld [vmem:[%s3 + $0x128] sm:$0xf]
      %v8737 = vld [vmem:[%s3 + $0x12c] sm:$0xf]
      %v8738 = vld [vmem:[%s3 + $0x130] sm:$0xf]
      %v8739 = vld [vmem:[%s3 + $0x134] sm:$0xf]
      %v8740 = vld [vmem:[%s3 + $0x138] sm:$0xf]
      %v8741 = vld [vmem:[%s3 + $0x13c] sm:$0xf]
      %v8742 = vld [vmem:[%s3 + $0x140] sm:$0xf]
      %v8743 = vld [vmem:[%s3 + $0x144] sm:$0xf]
      %v8744 = vld [vmem:[%s3 + $0x148] sm:$0xf]
      %v8745 = vld [vmem:[%s3 + $0x14c] sm:$0xf]
      %v8746 = vld [vmem:[%s3 + $0x150] sm:$0xf]
      %v8747 = vld [vmem:[%s3 + $0x154] sm:$0xf]
      %v8748 = vld [vmem:[%s3 + $0x158] sm:$0xf]
      %v8749 = vld [vmem:[%s3 + $0x15c] sm:$0xf]
      %v8750 = vld [vmem:[%s3 + $0x160] sm:$0xf]
      %v8751 = vld [vmem:[%s3 + $0x164] sm:$0xf]
      %v8752 = vld [vmem:[%s3 + $0x168] sm:$0xf]
      %v8753 = vld [vmem:[%s3 + $0x16c] sm:$0xf]
      %v8754 = vld [vmem:[%s3 + $0x170] sm:$0xf]
      %v8755 = vld [vmem:[%s3 + $0x174] sm:$0xf]
      %v8756 = vld [vmem:[%s3 + $0x178] sm:$0xf]
      %v8757 = vld [vmem:[%s3 + $0x17c] sm:$0xf]
      %v8758 = vld [vmem:[%s3 + $0x180] sm:$0xf]
      %v8759 = vld [vmem:[%s3 + $0x184] sm:$0xf]
      %v8760 = vld [vmem:[%s3 + $0x188] sm:$0xf]
      %v8761 = vld [vmem:[%s3 + $0x18c] sm:$0xf]
      %v8762 = vld [vmem:[%s3 + $0x190] sm:$0xf]
      %v8763 = vld [vmem:[%s3 + $0x194] sm:$0xf]
      %v8764 = vld [vmem:[%s3 + $0x198] sm:$0xf]
      %v8765 = vld [vmem:[%s3 + $0x19c] sm:$0xf]
      %v8766 = vld [vmem:[%s3 + $0x1a0] sm:$0xf]
      %v8767 = vld [vmem:[%s3 + $0x1a4] sm:$0xf]
      %v8768 = vld [vmem:[%s3 + $0x1a8] sm:$0xf]
      %v8769 = vld [vmem:[%s3 + $0x1ac] sm:$0xf]
      %v8770 = vld [vmem:[%s3 + $0x1b0] sm:$0xf]
      %v8771 = vld [vmem:[%s3 + $0x1b4] sm:$0xf]
      %v8772 = vld [vmem:[%s3 + $0x1b8] sm:$0xf]
      %v8773 = vld [vmem:[%s3 + $0x1bc] sm:$0xf]
      %v8774 = vld [vmem:[%s3 + $0x1c0] sm:$0xf]
      %v8775 = vld [vmem:[%s3 + $0x1c4] sm:$0xf]
      %v8776 = vld [vmem:[%s3 + $0x1c8] sm:$0xf]
      %v8777 = vld [vmem:[%s3 + $0x1cc] sm:$0xf]
      %v8778 = vld [vmem:[%s3 + $0x1d0] sm:$0xf]
      %v8779 = vld [vmem:[%s3 + $0x1d4] sm:$0xf]
      %v8780 = vld [vmem:[%s3 + $0x1d8] sm:$0xf]
      %v8781 = vld [vmem:[%s3 + $0x1dc] sm:$0xf]
      %v8782 = vld [vmem:[%s3 + $0x1e0] sm:$0xf]
      %v8783 = vld [vmem:[%s3 + $0x1e4] sm:$0xf]
      %v8784 = vld [vmem:[%s3 + $0x1e8] sm:$0xf]
      %v8785 = vld [vmem:[%s3 + $0x1ec] sm:$0xf]
      %v8786 = vld [vmem:[%s3 + $0x1f0] sm:$0xf]
      %v8787 = vld [vmem:[%s3 + $0x1f4] sm:$0xf]
      %v8788 = vld [vmem:[%s3 + $0x1f8] sm:$0xf]
      %v8789 = vld [vmem:[%s3 + $0x1fc] sm:$0xf]
      %v8790 = vld [vmem:[%s3 + $0x200] sm:$0xf]
      %v8791 = vld [vmem:[%s3 + $0x204] sm:$0xf]
      %v8792 = vld [vmem:[%s3 + $0x208] sm:$0xf]
      %v8793 = vld [vmem:[%s3 + $0x20c] sm:$0xf]
      %v8794 = vld [vmem:[%s3 + $0x210] sm:$0xf]
      %v8795 = vld [vmem:[%s3 + $0x214] sm:$0xf]
      %v8796 = vld [vmem:[%s3 + $0x218] sm:$0xf]
      %v8797 = vld [vmem:[%s3 + $0x21c] sm:$0xf]
      %v8798 = vld [vmem:[%s3 + $0x220] sm:$0xf]
      %v8799 = vld [vmem:[%s3 + $0x224] sm:$0xf]
      %v8800 = vld [vmem:[%s3 + $0x228] sm:$0xf]
      %v8801 = vld [vmem:[%s3 + $0x22c] sm:$0xf]
      %v8802 = vld [vmem:[%s3 + $0x230] sm:$0xf]
      %v8803 = vld [vmem:[%s3 + $0x234] sm:$0xf]
      %v8804 = vld [vmem:[%s3 + $0x238] sm:$0xf]
      %v8805 = vld [vmem:[%s3 + $0x23c] sm:$0xf]
      %v8806 = vld [vmem:[%s3 + $0x240] sm:$0xf]
      %v8807 = vld [vmem:[%s3 + $0x244] sm:$0xf]
      %v8808 = vld [vmem:[%s3 + $0x248] sm:$0xf]
      %v8809 = vld [vmem:[%s3 + $0x24c] sm:$0xf]
      %v8810 = vld [vmem:[%s3 + $0x250] sm:$0xf]
      %v8811 = vld [vmem:[%s3 + $0x254] sm:$0xf]
      %v8812 = vld [vmem:[%s3 + $0x258] sm:$0xf]
      %v8813 = vld [vmem:[%s3 + $0x25c] sm:$0xf]
      %v8814 = vld [vmem:[%s3 + $0x260] sm:$0xf]
      %v8815 = vld [vmem:[%s3 + $0x264] sm:$0xf]
      %v8816 = vld [vmem:[%s3 + $0x268] sm:$0xf]
      %v8817 = vld [vmem:[%s3 + $0x26c] sm:$0xf]
      %v8818 = vld [vmem:[%s3 + $0x270] sm:$0xf]
      %v8819 = vld [vmem:[%s3 + $0x274] sm:$0xf]
      %v8820 = vld [vmem:[%s3 + $0x278] sm:$0xf]
      %v8821 = vld [vmem:[%s3 + $0x27c] sm:$0xf]
      %v8982 = vunpack.c.l.b16 %v8662
      %v8983 = vunpack.c.l.b16 %v8663
      %v8984 = vunpack.c.l.b16 %v8664
      %v8985 = vunpack.c.l.b16 %v8665
      %v8986 = vunpack.c.l.b16 %v8666
      %v8987 = vunpack.c.l.b16 %v8667
      %v8988 = vunpack.c.l.b16 %v8668
      %v8989 = vunpack.c.l.b16 %v8669
      %v8990 = vunpack.c.l.b16 %v8670
      %v8991 = vunpack.c.l.b16 %v8671
      %v8992 = vunpack.c.l.b16 %v8672
      %v8993 = vunpack.c.l.b16 %v8673
      %v8994 = vunpack.c.l.b16 %v8674
      %v8995 = vunpack.c.l.b16 %v8675
      %v8996 = vunpack.c.l.b16 %v8676
      %v8997 = vunpack.c.l.b16 %v8677
      %v8998 = vunpack.c.l.b16 %v8678
      %v8999 = vunpack.c.l.b16 %v8679
      %v9000 = vunpack.c.l.b16 %v8680
      %v9001 = vunpack.c.l.b16 %v8681
      %v9002 = vunpack.c.l.b16 %v8682
      %v9003 = vunpack.c.l.b16 %v8683
      %v9004 = vunpack.c.l.b16 %v8684
      %v9005 = vunpack.c.l.b16 %v8685
      %v9006 = vunpack.c.l.b16 %v8686
      %v9007 = vunpack.c.l.b16 %v8687
      %v9008 = vunpack.c.l.b16 %v8688
      %v9009 = vunpack.c.l.b16 %v8689
      %v9010 = vunpack.c.l.b16 %v8690
      %v9011 = vunpack.c.l.b16 %v8691
      %v9012 = vunpack.c.l.b16 %v8692
      %v9013 = vunpack.c.l.b16 %v8693
      %v9014 = vunpack.c.l.b16 %v8694
      %v9015 = vunpack.c.l.b16 %v8695
      %v9016 = vunpack.c.l.b16 %v8696
      %v9017 = vunpack.c.l.b16 %v8697
      %v9018 = vunpack.c.l.b16 %v8698
      %v9019 = vunpack.c.l.b16 %v8699
      %v9020 = vunpack.c.l.b16 %v8700
      %v9021 = vunpack.c.l.b16 %v8701
      %v9022 = vunpack.c.l.b16 %v8702
      %v9023 = vunpack.c.l.b16 %v8703
      %v9024 = vunpack.c.l.b16 %v8704
      %v9025 = vunpack.c.l.b16 %v8705
      %v9026 = vunpack.c.l.b16 %v8706
      %v9027 = vunpack.c.l.b16 %v8707
      %v9028 = vunpack.c.l.b16 %v8708
      %v9029 = vunpack.c.l.b16 %v8709
      %v9030 = vunpack.c.l.b16 %v8710
      %v9031 = vunpack.c.l.b16 %v8711
      %v9032 = vunpack.c.l.b16 %v8712
      %v9033 = vunpack.c.l.b16 %v8713
      %v9034 = vunpack.c.l.b16 %v8714
      %v9035 = vunpack.c.l.b16 %v8715
      %v9036 = vunpack.c.l.b16 %v8716
      %v9037 = vunpack.c.l.b16 %v8717
      %v9038 = vunpack.c.l.b16 %v8718
      %v9039 = vunpack.c.l.b16 %v8719
      %v9040 = vunpack.c.l.b16 %v8720
      %v9041 = vunpack.c.l.b16 %v8721
      %v9042 = vunpack.c.l.b16 %v8722
      %v9043 = vunpack.c.l.b16 %v8723
      %v9044 = vunpack.c.l.b16 %v8724
      %v9045 = vunpack.c.l.b16 %v8725
      %v9046 = vunpack.c.l.b16 %v8726
      %v9047 = vunpack.c.l.b16 %v8727
      %v9048 = vunpack.c.l.b16 %v8728
      %v9049 = vunpack.c.l.b16 %v8729
      %v9050 = vunpack.c.l.b16 %v8730
      %v9051 = vunpack.c.l.b16 %v8731
      %v9052 = vunpack.c.l.b16 %v8732
      %v9053 = vunpack.c.l.b16 %v8733
      %v9054 = vunpack.c.l.b16 %v8734
      %v9055 = vunpack.c.l.b16 %v8735
      %v9056 = vunpack.c.l.b16 %v8736
      %v9057 = vunpack.c.l.b16 %v8737
      %v9058 = vunpack.c.l.b16 %v8738
      %v9059 = vunpack.c.l.b16 %v8739
      %v9060 = vunpack.c.l.b16 %v8740
      %v9061 = vunpack.c.l.b16 %v8741
      %v9062 = vunpack.c.l.b16 %v8742
      %v9063 = vunpack.c.l.b16 %v8743
      %v9064 = vunpack.c.l.b16 %v8744
      %v9065 = vunpack.c.l.b16 %v8745
      %v9066 = vunpack.c.l.b16 %v8746
      %v9067 = vunpack.c.l.b16 %v8747
      %v9068 = vunpack.c.l.b16 %v8748
      %v9069 = vunpack.c.l.b16 %v8749
      %v9070 = vunpack.c.l.b16 %v8750
      %v9071 = vunpack.c.l.b16 %v8751
      %v9072 = vunpack.c.l.b16 %v8752
      %v9073 = vunpack.c.l.b16 %v8753
      %v9074 = vunpack.c.l.b16 %v8754
      %v9075 = vunpack.c.l.b16 %v8755
      %v9076 = vunpack.c.l.b16 %v8756
      %v9077 = vunpack.c.l.b16 %v8757
      %v9078 = vunpack.c.l.b16 %v8758
      %v9079 = vunpack.c.l.b16 %v8759
      %v9080 = vunpack.c.l.b16 %v8760
      %v9081 = vunpack.c.l.b16 %v8761
      %v9082 = vunpack.c.l.b16 %v8762
      %v9083 = vunpack.c.l.b16 %v8763
      %v9084 = vunpack.c.l.b16 %v8764
      %v9085 = vunpack.c.l.b16 %v8765
      %v9086 = vunpack.c.l.b16 %v8766
      %v9087 = vunpack.c.l.b16 %v8767
      %v9088 = vunpack.c.l.b16 %v8768
      %v9089 = vunpack.c.l.b16 %v8769
      %v9090 = vunpack.c.l.b16 %v8770
      %v9091 = vunpack.c.l.b16 %v8771
      %v9092 = vunpack.c.l.b16 %v8772
      %v9093 = vunpack.c.l.b16 %v8773
      %v9094 = vunpack.c.l.b16 %v8774
      %v9095 = vunpack.c.l.b16 %v8775
      %v9096 = vunpack.c.l.b16 %v8776
      %v9097 = vunpack.c.l.b16 %v8777
      %v9098 = vunpack.c.l.b16 %v8778
      %v9099 = vunpack.c.l.b16 %v8779
      %v9100 = vunpack.c.l.b16 %v8780
      %v9101 = vunpack.c.l.b16 %v8781
      %v9102 = vunpack.c.l.b16 %v8782
      %v9103 = vunpack.c.l.b16 %v8783
      %v9104 = vunpack.c.l.b16 %v8784
      %v9105 = vunpack.c.l.b16 %v8785
      %v9106 = vunpack.c.l.b16 %v8786
      %v9107 = vunpack.c.l.b16 %v8787
      %v9108 = vunpack.c.l.b16 %v8788
      %v9109 = vunpack.c.l.b16 %v8789
      %v9110 = vunpack.c.l.b16 %v8790
      %v9111 = vunpack.c.l.b16 %v8791
      %v9112 = vunpack.c.l.b16 %v8792
      %v9113 = vunpack.c.l.b16 %v8793
      %v9114 = vunpack.c.l.b16 %v8794
      %v9115 = vunpack.c.l.b16 %v8795
      %v9116 = vunpack.c.l.b16 %v8796
      %v9117 = vunpack.c.l.b16 %v8797
      %v9118 = vunpack.c.l.b16 %v8798
      %v9119 = vunpack.c.l.b16 %v8799
      %v9120 = vunpack.c.l.b16 %v8800
      %v9121 = vunpack.c.l.b16 %v8801
      %v9122 = vunpack.c.l.b16 %v8802
      %v9123 = vunpack.c.l.b16 %v8803
      %v9124 = vunpack.c.l.b16 %v8804
      %v9125 = vunpack.c.l.b16 %v8805
      %v9126 = vunpack.c.l.b16 %v8806
      %v9127 = vunpack.c.l.b16 %v8807
      %v9128 = vunpack.c.l.b16 %v8808
      %v9129 = vunpack.c.l.b16 %v8809
      %v9130 = vunpack.c.l.b16 %v8810
      %v9131 = vunpack.c.l.b16 %v8811
      %v9132 = vunpack.c.l.b16 %v8812
      %v9133 = vunpack.c.l.b16 %v8813
      %v9134 = vunpack.c.l.b16 %v8814
      %v9135 = vunpack.c.l.b16 %v8815
      %v9136 = vunpack.c.l.b16 %v8816
      %v9137 = vunpack.c.l.b16 %v8817
      %v9138 = vunpack.c.l.b16 %v8818
      %v9139 = vunpack.c.l.b16 %v8819
      %v9140 = vunpack.c.l.b16 %v8820
      %v9141 = vunpack.c.l.b16 %v8821
      %v9142 = vpack.c.b16 %v8983, %v8982
      %v9143 = vpack.c.b16 %v8985, %v8984
      %v9144 = vpack.c.b16 %v8987, %v8986
      %v9145 = vpack.c.b16 %v8989, %v8988
      %v9146 = vpack.c.b16 %v8991, %v8990
      %v9147 = vpack.c.b16 %v8993, %v8992
      %v9148 = vpack.c.b16 %v8995, %v8994
      %v9149 = vpack.c.b16 %v8997, %v8996
      %v9150 = vpack.c.b16 %v8999, %v8998
      %v9151 = vpack.c.b16 %v9001, %v9000
      %v9152 = vpack.c.b16 %v9003, %v9002
      %v9153 = vpack.c.b16 %v9005, %v9004
      %v9154 = vpack.c.b16 %v9007, %v9006
      %v9155 = vpack.c.b16 %v9009, %v9008
      %v9156 = vpack.c.b16 %v9011, %v9010
      %v9157 = vpack.c.b16 %v9013, %v9012
      %v9158 = vpack.c.b16 %v9015, %v9014
      %v9159 = vpack.c.b16 %v9017, %v9016
      %v9160 = vpack.c.b16 %v9019, %v9018
      %v9161 = vpack.c.b16 %v9021, %v9020
      %v9162 = vpack.c.b16 %v9023, %v9022
      %v9163 = vpack.c.b16 %v9025, %v9024
      %v9164 = vpack.c.b16 %v9027, %v9026
      %v9165 = vpack.c.b16 %v9029, %v9028
      %v9166 = vpack.c.b16 %v9031, %v9030
      %v9167 = vpack.c.b16 %v9033, %v9032
      %v9168 = vpack.c.b16 %v9035, %v9034
      %v9169 = vpack.c.b16 %v9037, %v9036
      %v9170 = vpack.c.b16 %v9039, %v9038
      %v9171 = vpack.c.b16 %v9041, %v9040
      %v9172 = vpack.c.b16 %v9043, %v9042
      %v9173 = vpack.c.b16 %v9045, %v9044
      %v9174 = vpack.c.b16 %v9047, %v9046
      %v9175 = vpack.c.b16 %v9049, %v9048
      %v9176 = vpack.c.b16 %v9051, %v9050
      %v9177 = vpack.c.b16 %v9053, %v9052
      %v9178 = vpack.c.b16 %v9055, %v9054
      %v9179 = vpack.c.b16 %v9057, %v9056
      %v9180 = vpack.c.b16 %v9059, %v9058
      %v9181 = vpack.c.b16 %v9061, %v9060
      %v9182 = vpack.c.b16 %v9063, %v9062
      %v9183 = vpack.c.b16 %v9065, %v9064
      %v9184 = vpack.c.b16 %v9067, %v9066
      %v9185 = vpack.c.b16 %v9069, %v9068
      %v9186 = vpack.c.b16 %v9071, %v9070
      %v9187 = vpack.c.b16 %v9073, %v9072
      %v9188 = vpack.c.b16 %v9075, %v9074
      %v9189 = vpack.c.b16 %v9077, %v9076
      %v9190 = vpack.c.b16 %v9079, %v9078
      %v9191 = vpack.c.b16 %v9081, %v9080
      %v9192 = vpack.c.b16 %v9083, %v9082
      %v9193 = vpack.c.b16 %v9085, %v9084
      %v9194 = vpack.c.b16 %v9087, %v9086
      %v9195 = vpack.c.b16 %v9089, %v9088
      %v9196 = vpack.c.b16 %v9091, %v9090
      %v9197 = vpack.c.b16 %v9093, %v9092
      %v9198 = vpack.c.b16 %v9095, %v9094
      %v9199 = vpack.c.b16 %v9097, %v9096
      %v9200 = vpack.c.b16 %v9099, %v9098
      %v9201 = vpack.c.b16 %v9101, %v9100
      %v9202 = vpack.c.b16 %v9103, %v9102
      %v9203 = vpack.c.b16 %v9105, %v9104
      %v9204 = vpack.c.b16 %v9107, %v9106
      %v9205 = vpack.c.b16 %v9109, %v9108
      %v9206 = vpack.c.b16 %v9111, %v9110
      %v9207 = vpack.c.b16 %v9113, %v9112
      %v9208 = vpack.c.b16 %v9115, %v9114
      %v9209 = vpack.c.b16 %v9117, %v9116
      %v9210 = vpack.c.b16 %v9119, %v9118
      %v9211 = vpack.c.b16 %v9121, %v9120
      %v9212 = vpack.c.b16 %v9123, %v9122
      %v9213 = vpack.c.b16 %v9125, %v9124
      %v9214 = vpack.c.b16 %v9127, %v9126
      %v9215 = vpack.c.b16 %v9129, %v9128
      %v9216 = vpack.c.b16 %v9131, %v9130
      %v9217 = vpack.c.b16 %v9133, %v9132
      %v9218 = vpack.c.b16 %v9135, %v9134
      %v9219 = vpack.c.b16 %v9137, %v9136
      %v9220 = vpack.c.b16 %v9139, %v9138
      %v9221 = vpack.c.b16 %v9141, %v9140
      %9302 = vmatprep.subr.bf16.mxu0 0
      %9303 = vmatpush1.bf16.msra.mxu0 %v9149
      %9304 = vmatprep.subr.bf16.mxu0 0
      %9305 = vmatpush1.bf16.msra.mxu0 %v9148
      %9306 = vmatprep.subr.bf16.mxu0 0
      %9307 = vmatpush1.bf16.msra.mxu0 %v9147
      %9308 = vmatprep.subr.bf16.mxu0 0
      %9309 = vmatpush1.bf16.msra.mxu0 %v9146
      %9310 = vmatprep.subr.bf16.mxu0 0
      %9311 = vmatpush1.bf16.msra.mxu0 %v9145
      %9312 = vmatprep.subr.bf16.mxu0 0
      %9313 = vmatpush1.bf16.msra.mxu0 %v9144
      %9314 = vmatprep.subr.bf16.mxu0 0
      %9315 = vmatpush1.bf16.msra.mxu0 %v9143
      %9316 = vmatprep.subr.bf16.mxu0 0
      %9317 = vmatpush1.bf16.msra.mxu0 %v9142
      %9318 = vmatprep.subr.bf16.mxu0 0
      %9319 = vmatpush2.bf16.msra.mxu0 %v9157
      %9320 = vmatprep.subr.bf16.mxu0 0
      %9321 = vmatpush2.bf16.msra.mxu0 %v9156
      %9322 = vmatprep.subr.bf16.mxu0 0
      %9323 = vmatpush2.bf16.msra.mxu0 %v9155
      %9324 = vmatprep.subr.bf16.mxu0 0
      %9325 = vmatpush2.bf16.msra.mxu0 %v9154
      %9326 = vmatprep.subr.bf16.mxu0 0
      %9327 = vmatpush2.bf16.msra.mxu0 %v9153
      %9328 = vmatprep.subr.bf16.mxu0 0
      %9329 = vmatpush2.bf16.msra.mxu0 %v9152
      %9330 = vmatprep.subr.bf16.mxu0 0
      %9331 = vmatpush2.bf16.msra.mxu0 %v9151
      %9332 = vmatprep.subr.bf16.mxu0 0
      %9333 = vmatpush2.bf16.msra.mxu0 %v9150
      %9334 = vmatprep.mubr.bf16.mxu0 %v8653
      %9335 = vmatmul.mubr.bf16.gmra.mxu0 %v8652
      %v9336 = vpop.f32.mrf.mxu0
      %v9337 = vadd.f32 0.0, %v9336
      %v9338 = vpop.f32.mrf.mxu0
      %v9339 = vpop.f32.mrf.mxu0
      %v9340 = vpop.f32.mrf.mxu0
      %9341 = vdwg.mxu0
      %9342 = vmatprep.subr.bf16.mxu0 0
      %9343 = vmatpush1.bf16.msra.mxu0 %v9165
      %9344 = vmatprep.subr.bf16.mxu0 0
      %9345 = vmatpush1.bf16.msra.mxu0 %v9164
      %9346 = vmatprep.subr.bf16.mxu0 0
      %9347 = vmatpush1.bf16.msra.mxu0 %v9163
      %9348 = vmatprep.subr.bf16.mxu0 0
      %9349 = vmatpush1.bf16.msra.mxu0 %v9162
      %9350 = vmatprep.subr.bf16.mxu0 0
      %9351 = vmatpush1.bf16.msra.mxu0 %v9161
      %9352 = vmatprep.subr.bf16.mxu0 0
      %9353 = vmatpush1.bf16.msra.mxu0 %v9160
      %9354 = vmatprep.subr.bf16.mxu0 0
      %9355 = vmatpush1.bf16.msra.mxu0 %v9159
      %9356 = vmatprep.subr.bf16.mxu0 0
      %9357 = vmatpush1.bf16.msra.mxu0 %v9158
      %9358 = vmatprep.subr.bf16.mxu0 0
      %9359 = vmatpush2.bf16.msra.mxu0 %v9173
      %9360 = vmatprep.subr.bf16.mxu0 0
      %9361 = vmatpush2.bf16.msra.mxu0 %v9172
      %9362 = vmatprep.subr.bf16.mxu0 0
      %9363 = vmatpush2.bf16.msra.mxu0 %v9171
      %9364 = vmatprep.subr.bf16.mxu0 0
      %9365 = vmatpush2.bf16.msra.mxu0 %v9170
      %9366 = vmatprep.subr.bf16.mxu0 0
      %9367 = vmatpush2.bf16.msra.mxu0 %v9169
      %9368 = vmatprep.subr.bf16.mxu0 0
      %9369 = vmatpush2.bf16.msra.mxu0 %v9168
      %9370 = vmatprep.subr.bf16.mxu0 0
      %9371 = vmatpush2.bf16.msra.mxu0 %v9167
      %9372 = vmatprep.subr.bf16.mxu0 0
      %9373 = vmatpush2.bf16.msra.mxu0 %v9166
      %9374 = vmatprep.mubr.bf16.mxu0 %v8655
      %9375 = vmatmul.mubr.bf16.gmra.mxu0 %v8654
      %v9376 = vpop.f32.mrf.mxu0
      %v9377 = vadd.f32 %v9337, %v9376
      %v9378 = vpop.f32.mrf.mxu0
      %v9379 = vpop.f32.mrf.mxu0
      %v9380 = vpop.f32.mrf.mxu0
      %9381 = vdwg.mxu0
      %9382 = vmatprep.subr.bf16.mxu0 0
      %9383 = vmatpush1.bf16.msra.mxu0 %v9181
      %9384 = vmatprep.subr.bf16.mxu0 0
      %9385 = vmatpush1.bf16.msra.mxu0 %v9180
      %9386 = vmatprep.subr.bf16.mxu0 0
      %9387 = vmatpush1.bf16.msra.mxu0 %v9179
      %9388 = vmatprep.subr.bf16.mxu0 0
      %9389 = vmatpush1.bf16.msra.mxu0 %v9178
      %9390 = vmatprep.subr.bf16.mxu0 0
      %9391 = vmatpush1.bf16.msra.mxu0 %v9177
      %9392 = vmatprep.subr.bf16.mxu0 0
      %9393 = vmatpush1.bf16.msra.mxu0 %v9176
      %9394 = vmatprep.subr.bf16.mxu0 0
      %9395 = vmatpush1.bf16.msra.mxu0 %v9175
      %9396 = vmatprep.subr.bf16.mxu0 0
      %9397 = vmatpush1.bf16.msra.mxu0 %v9174
      %9398 = vmatprep.subr.bf16.mxu0 0
      %9399 = vmatpush2.bf16.msra.mxu0 %v9189
      %9400 = vmatprep.subr.bf16.mxu0 0
      %9401 = vmatpush2.bf16.msra.mxu0 %v9188
      %9402 = vmatprep.subr.bf16.mxu0 0
      %9403 = vmatpush2.bf16.msra.mxu0 %v9187
      %9404 = vmatprep.subr.bf16.mxu0 0
      %9405 = vmatpush2.bf16.msra.mxu0 %v9186
      %9406 = vmatprep.subr.bf16.mxu0 0
      %9407 = vmatpush2.bf16.msra.mxu0 %v9185
      %9408 = vmatprep.subr.bf16.mxu0 0
      %9409 = vmatpush2.bf16.msra.mxu0 %v9184
      %9410 = vmatprep.subr.bf16.mxu0 0
      %9411 = vmatpush2.bf16.msra.mxu0 %v9183
      %9412 = vmatprep.subr.bf16.mxu0 0
      %9413 = vmatpush2.bf16.msra.mxu0 %v9182
      %9414 = vmatprep.mubr.bf16.mxu0 %v8657
      %9415 = vmatmul.mubr.bf16.gmra.mxu0 %v8656
      %v9416 = vpop.f32.mrf.mxu0
      %v9417 = vadd.f32 %v9377, %v9416
      %v9418 = vpop.f32.mrf.mxu0
      %v9419 = vpop.f32.mrf.mxu0
      %v9420 = vpop.f32.mrf.mxu0
      %9421 = vdwg.mxu0
      %9422 = vmatprep.subr.bf16.mxu0 0
      %9423 = vmatpush1.bf16.msra.mxu0 %v9197
      %9424 = vmatprep.subr.bf16.mxu0 0
      %9425 = vmatpush1.bf16.msra.mxu0 %v9196
      %9426 = vmatprep.subr.bf16.mxu0 0
      %9427 = vmatpush1.bf16.msra.mxu0 %v9195
      %9428 = vmatprep.subr.bf16.mxu0 0
      %9429 = vmatpush1.bf16.msra.mxu0 %v9194
      %9430 = vmatprep.subr.bf16.mxu0 0
      %9431 = vmatpush1.bf16.msra.mxu0 %v9193
      %9432 = vmatprep.subr.bf16.mxu0 0
      %9433 = vmatpush1.bf16.msra.mxu0 %v9192
      %9434 = vmatprep.subr.bf16.mxu0 0
      %9435 = vmatpush1.bf16.msra.mxu0 %v9191
      %9436 = vmatprep.subr.bf16.mxu0 0
      %9437 = vmatpush1.bf16.msra.mxu0 %v9190
      %9438 = vmatprep.subr.bf16.mxu0 0
      %9439 = vmatpush2.bf16.msra.mxu0 %v9205
      %9440 = vmatprep.subr.bf16.mxu0 0
      %9441 = vmatpush2.bf16.msra.mxu0 %v9204
      %9442 = vmatprep.subr.bf16.mxu0 0
      %9443 = vmatpush2.bf16.msra.mxu0 %v9203
      %9444 = vmatprep.subr.bf16.mxu0 0
      %9445 = vmatpush2.bf16.msra.mxu0 %v9202
      %9446 = vmatprep.subr.bf16.mxu0 0
      %9447 = vmatpush2.bf16.msra.mxu0 %v9201
      %9448 = vmatprep.subr.bf16.mxu0 0
      %9449 = vmatpush2.bf16.msra.mxu0 %v9200
      %9450 = vmatprep.subr.bf16.mxu0 0
      %9451 = vmatpush2.bf16.msra.mxu0 %v9199
      %9452 = vmatprep.subr.bf16.mxu0 0
      %9453 = vmatpush2.bf16.msra.mxu0 %v9198
      %9454 = vmatprep.mubr.bf16.mxu0 %v8659
      %9455 = vmatmul.mubr.bf16.gmra.mxu0 %v8658
      %v9456 = vpop.f32.mrf.mxu0
      %v9457 = vadd.f32 %v9417, %v9456
      %v9458 = vpop.f32.mrf.mxu0
      %v9459 = vpop.f32.mrf.mxu0
      %v9460 = vpop.f32.mrf.mxu0
      %9461 = vdwg.mxu0
      %9462 = vmatprep.subr.bf16.mxu0 0
      %9463 = vmatpush1.bf16.msra.mxu0 %v9213
      %9464 = vmatprep.subr.bf16.mxu0 0
      %9465 = vmatpush1.bf16.msra.mxu0 %v9212
      %9466 = vmatprep.subr.bf16.mxu0 0
      %9467 = vmatpush1.bf16.msra.mxu0 %v9211
      %9468 = vmatprep.subr.bf16.mxu0 0
      %9469 = vmatpush1.bf16.msra.mxu0 %v9210
      %9470 = vmatprep.subr.bf16.mxu0 0
      %9471 = vmatpush1.bf16.msra.mxu0 %v9209
      %9472 = vmatprep.subr.bf16.mxu0 0
      %9473 = vmatpush1.bf16.msra.mxu0 %v9208
      %9474 = vmatprep.subr.bf16.mxu0 0
      %9475 = vmatpush1.bf16.msra.mxu0 %v9207
      %9476 = vmatprep.subr.bf16.mxu0 0
      %9477 = vmatpush1.bf16.msra.mxu0 %v9206
      %9478 = vmatprep.subr.bf16.mxu0 0
      %9479 = vmatpush2.bf16.msra.mxu0 %v9221
      %9480 = vmatprep.subr.bf16.mxu0 0
      %9481 = vmatpush2.bf16.msra.mxu0 %v9220
      %9482 = vmatprep.subr.bf16.mxu0 0
      %9483 = vmatpush2.bf16.msra.mxu0 %v9219
      %9484 = vmatprep.subr.bf16.mxu0 0
      %9485 = vmatpush2.bf16.msra.mxu0 %v9218
      %9486 = vmatprep.subr.bf16.mxu0 0
      %9487 = vmatpush2.bf16.msra.mxu0 %v9217
      %9488 = vmatprep.subr.bf16.mxu0 0
      %9489 = vmatpush2.bf16.msra.mxu0 %v9216
      %9490 = vmatprep.subr.bf16.mxu0 0
      %9491 = vmatpush2.bf16.msra.mxu0 %v9215
      %9492 = vmatprep.subr.bf16.mxu0 0
      %9493 = vmatpush2.bf16.msra.mxu0 %v9214
      %9494 = vmatprep.mubr.bf16.mxu0 %v8661
      %9495 = vmatmul.mubr.bf16.gmra.mxu0 %v8660
      %v9496 = vpop.f32.mrf.mxu0
      %v9497 = vadd.f32 %v9457, %v9496
      %v9498 = vpop.f32.mrf.mxu0
      %v9499 = vpop.f32.mrf.mxu0
      %v9500 = vpop.f32.mrf.mxu0
      %9501 = vdwg.mxu0
      %v9502 = vpack.c.bf16 %v9497, %v9497
      %v9504 = vrot.slane %v9502, 4
      %9505 = vrot.lane.b32.xlu0 %v9504, 127
      %v9506 = vpop.permute.xlu0 %9505
      %v9507 = vsel %vm845, %v824, %v9506
      %9508 = vrot.lane.b32.xlu0 %v9502, 126
      %v9509 = vpop.permute.xlu0 %9508
      %v9510 = vsel %vm878, %v857, %v9509
      %9511 = vrot.lane.b32.xlu0 %v812, 123
      %v9512 = vpop.permute.xlu0 %9511
      %9513 = vrot.lane.b32.xlu0 %v9504, 123
      %v9514 = vpop.permute.xlu0 %9513
      %vm9515 = vcmask 1006592
      %v9516 = vsel %vm9515, %v9512, %v9514
      %9517 = vrot.lane.b32.xlu0 %v9502, 122
      %v9518 = vpop.permute.xlu0 %9517
      %9519 = vrot.lane.b32.xlu0 %v9504, 121
      %v9520 = vpop.permute.xlu0 %9519
      %9521 = vrot.lane.b32.xlu0 %v812, 121
      %v9522 = vpop.permute.xlu0 %9521
      %vm9523 = vcmask 990208
      %v9524 = vsel %vm9523, %v9520, %v9522
      %9525 = vrot.lane.b32.xlu0 %v9502, 118
      %v9526 = vpop.permute.xlu0 %9525
      %9527 = vrot.lane.b32.xlu0 0, 118
      %v9528 = vpop.permute.xlu0 %9527
      %vm9529 = vcmask 965632
      %v9530 = vsel %vm9529, %v9526, %v9528
      %9531 = vrot.lane.b32.xlu0 %v9504, 117
      %v9532 = vpop.permute.xlu0 %9531
      %9533 = vrot.lane.b32.xlu0 %v812, 117
      %v9534 = vpop.permute.xlu0 %9533
      %vm9535 = vcmask 957440
      %v9536 = vsel %vm9535, %v9532, %v9534
      %9537 = vrot.lane.b32.xlu0 %v9502, 116
      %v9538 = vpop.permute.xlu0 %9537
      %9539 = vrot.lane.b32.xlu0 0, 116
      %v9540 = vpop.permute.xlu0 %9539
      %vm9541 = vcmask 949248
      %v9542 = vsel %vm9541, %v9538, %v9540
      %v9544 = vsel %vm305, 0, %v9507
      %v9547 = vsel %vm305, %v9502, %v9506
      %v9550 = vsel %vm305, %v9510, %v9516
      %v9553 = vsel %vm305, %v9509, %v9514
      %v9556 = vsel %vm305, %v9518, %v9520
      %v9558 = vsel %vm305, %v9518, %v9524
      %v9561 = vsel %vm305, %v9526, %v9532
      %v9564 = vsel %vm305, %v9530, %v9536
      %v9565 = vpack.c.bf16 %v267, %v267
      %9566 = vset.pattern.permute.xlu0 11
      %9567 = vperm.xlu0 %9566, %v271
      %v9568 = vpop.permute.xlu0 %9567
      %9578 = vrot.lane.b32.xlu0 %v9544, 6
      %v9579 = vpop.permute.xlu0 %9578
      %9580 = vrot.lane.b32.xlu0 %v9547, 6
      %v9581 = vpop.permute.xlu0 %9580
      %9582 = vrot.lane.b32.xlu0 %v9550, 6
      %v9583 = vpop.permute.xlu0 %9582
      %9584 = vrot.lane.b32.xlu0 %v9553, 6
      %v9585 = vpop.permute.xlu0 %9584
      %9586 = vrot.lane.b32.xlu0 %v9556, 6
      %v9587 = vpop.permute.xlu0 %9586
      %9588 = vrot.lane.b32.xlu0 %v9558, 6
      %v9589 = vpop.permute.xlu0 %9588
      %9590 = vrot.lane.b32.xlu0 %v9561, 6
      %v9591 = vpop.permute.xlu0 %9590
      %9592 = vrot.lane.b32.xlu0 %v9564, 6
      %v9593 = vpop.permute.xlu0 %9592
      %9594 = vrot.lane.b32.xlu0 %v9538, 6
      %v9595 = vpop.permute.xlu0 %9594
      %9596 = vrot.lane.b32.xlu0 %v9542, 6
      %v9597 = vpop.permute.xlu0 %9596
      %vm9598 = vcmask 48128
      %v9599 = vsel %vm9598, %v9579, %v9581
      %v9600 = vsel %vm9598, %v9583, %v9585
      %v9601 = vsel %vm9598, %v9587, %v9589
      %v9602 = vsel %vm9598, %v9591, %v9593
      %v9603 = vsel %vm9598, %v9595, %v9597
      %v9609 = vsel %vm1456, %v9565, 0
      %v9612 = vsel %vm305, %v9603, 0
      %9614 = vmatprep.subr.bf16.mxu0 0
      %9615 = vmatpush1.bf16.msra.mxu0 0
      %9616 = vmatprep.subr.bf16.mxu0 0
      %9617 = vmatpush1.bf16.msra.mxu0 0
      %9618 = vmatprep.subr.bf16.mxu0 0
      %9619 = vmatpush1.bf16.msra.mxu0 0
      %9620 = vmatprep.subr.bf16.mxu0 0
      %9621 = vmatpush1.bf16.msra.mxu0 %v9612
      %9622 = vmatprep.subr.bf16.mxu0 0
      %9623 = vmatpush1.bf16.msra.mxu0 %v9602
      %9624 = vmatprep.subr.bf16.mxu0 0
      %9625 = vmatpush1.bf16.msra.mxu0 %v9601
      %9626 = vmatprep.subr.bf16.mxu0 0
      %9627 = vmatpush1.bf16.msra.mxu0 %v9600
      %9628 = vmatprep.subr.bf16.mxu0 0
      %9629 = vmatpush1.bf16.msra.mxu0 %v9599
      %9630 = vmatprep.subr.bf16.mxu0 0
      %9631 = vmatpush2.bf16.msra.mxu0 0
      %9632 = vmatprep.subr.bf16.mxu0 0
      %9633 = vmatpush2.bf16.msra.mxu0 0
      %9634 = vmatprep.subr.bf16.mxu0 0
      %9635 = vmatpush2.bf16.msra.mxu0 0
      %9636 = vmatprep.subr.bf16.mxu0 0
      %9637 = vmatpush2.bf16.msra.mxu0 0
      %9638 = vmatprep.subr.bf16.mxu0 0
      %9639 = vmatpush2.bf16.msra.mxu0 0
      %9640 = vmatprep.subr.bf16.mxu0 0
      %9641 = vmatpush2.bf16.msra.mxu0 0
      %9642 = vmatprep.subr.bf16.mxu0 0
      %9643 = vmatpush2.bf16.msra.mxu0 0
      %9644 = vmatprep.subr.bf16.mxu0 0
      %9645 = vmatpush2.bf16.msra.mxu0 0
      %9646 = vmatprep.mubr.bf16.mxu0 0
      %9647 = vmatmul.mubr.bf16.gmra.mxu0 %v9609
      %v9648 = vpop.f32.mrf.mxu0
      %v9649 = vadd.f32 %v9568, %v9648
      %v9650 = vpop.f32.mrf.mxu0
      %v9651 = vpop.f32.mrf.mxu0
      %v9652 = vpop.f32.mrf.mxu0
      %9653 = vdwg.mxu0
      %v9654 = vmul.f32 %v9649, 0.5
      %v9655 = vmul.f32 %v9649, 0.70710677
      %v9656 = vand.u32 2147483647, %v9655
      %v9657 = vmul.f32 %v9656, 0.3275911
      %v9658 = vadd.f32 %v9657, 1.0
      %v9659 = vrcp.pop %v9658
      %v9660 = vmul.f32 %v9659, 1.0614054
      %v9661 = vadd.f32 %v9660, -1.4531521
      %v9662 = vmul.f32 %v9661, %v9659
      %v9663 = vadd.f32 %v9662, 1.4214138
      %v9664 = vmul.f32 %v9663, %v9659
      %v9665 = vadd.f32 %v9664, -0.28449672
      %v9666 = vmul.f32 %v9665, %v9659
      %v9667 = vadd.f32 %v9666, 0.2548296
      %v9668 = vmul.f32 %v9667, %v9659
      %v9669 = vsub.f32 0.0, %v9656
      %v9670 = vmul.f32 %v9669, %v9656
      %v9671 = vmul.f32 %v9670, 1.442695
      %v9672 = vpow.pop %v9671
      %v9673 = vmul.f32 %v9668, %v9672
      %v9674 = vsub.f32 1.0, %v9673
      %vm9675 = vcmp.lt.f32.partialorder %v9655, 0.0
      %v9676 = vsub.f32 0.0, %v9674
      %v9677 = vsel %vm9675, %v9676, %v9674
      %v9678 = vadd.f32 %v9677, 1.0
      %v9679 = vmul.f32 %v9654, %v9678
      %v9681 = vlaneseq
      %v9682 = vshrl.u32 %v9681, 7
      %v9683 = vsub.s32 0, %v9682
      %v9684 = vrot.slane %v284, %v9683
      %v9686 = vmul.f32 %v9679, %v9684
      %v9687 = vpack.c.bf16 %v9686, %v9686
      %v9689 = vrot.slane %v9687, 4
      %9690 = vrot.lane.b32.xlu0 %v9689, 127
      %v9691 = vpop.permute.xlu0 %9690
      %v9692 = vsel %vm845, %v824, %v9691
      %9693 = vrot.lane.b32.xlu0 %v9687, 126
      %v9694 = vpop.permute.xlu0 %9693
      %v9695 = vsel %vm878, %v857, %v9694
      %9696 = vrot.lane.b32.xlu0 %v9689, 123
      %v9697 = vpop.permute.xlu0 %9696
      %v9698 = vsel %vm9515, %v9512, %v9697
      %9699 = vrot.lane.b32.xlu0 %v9687, 122
      %v9700 = vpop.permute.xlu0 %9699
      %9701 = vrot.lane.b32.xlu0 %v9689, 121
      %v9702 = vpop.permute.xlu0 %9701
      %v9703 = vsel %vm9523, %v9702, %v9522
      %9704 = vrot.lane.b32.xlu0 %v9687, 118
      %v9705 = vpop.permute.xlu0 %9704
      %v9706 = vsel %vm9529, %v9705, %v9528
      %9707 = vrot.lane.b32.xlu0 %v9689, 117
      %v9708 = vpop.permute.xlu0 %9707
      %v9709 = vsel %vm9535, %v9708, %v9534
      %9710 = vrot.lane.b32.xlu0 %v9687, 116
      %v9711 = vpop.permute.xlu0 %9710
      %v9712 = vsel %vm9541, %v9711, %v9540
      %v9714 = vsel %vm305, 0, %v9692
      %v9717 = vsel %vm305, %v9687, %v9691
      %v9720 = vsel %vm305, %v9695, %v9698
      %v9723 = vsel %vm305, %v9694, %v9697
      %v9726 = vsel %vm305, %v9700, %v9702
      %v9728 = vsel %vm305, %v9700, %v9703
      %v9731 = vsel %vm305, %v9705, %v9708
      %v9734 = vsel %vm305, %v9706, %v9709
      %v9735 = vpack.c.bf16 %v268, %v268
      %9736 = vset.pattern.permute.xlu0 12
      %9737 = vperm.xlu0 %9736, %v271
      %v9738 = vpop.permute.xlu0 %9737
      %9748 = vrot.lane.b32.xlu0 %v9714, 6
      %v9749 = vpop.permute.xlu0 %9748
      %9750 = vrot.lane.b32.xlu0 %v9717, 6
      %v9751 = vpop.permute.xlu0 %9750
      %9752 = vrot.lane.b32.xlu0 %v9720, 6
      %v9753 = vpop.permute.xlu0 %9752
      %9754 = vrot.lane.b32.xlu0 %v9723, 6
      %v9755 = vpop.permute.xlu0 %9754
      %9756 = vrot.lane.b32.xlu0 %v9726, 6
      %v9757 = vpop.permute.xlu0 %9756
      %9758 = vrot.lane.b32.xlu0 %v9728, 6
      %v9759 = vpop.permute.xlu0 %9758
      %9760 = vrot.lane.b32.xlu0 %v9731, 6
      %v9761 = vpop.permute.xlu0 %9760
      %9762 = vrot.lane.b32.xlu0 %v9734, 6
      %v9763 = vpop.permute.xlu0 %9762
      %9764 = vrot.lane.b32.xlu0 %v9711, 6
      %v9765 = vpop.permute.xlu0 %9764
      %9766 = vrot.lane.b32.xlu0 %v9712, 6
      %v9767 = vpop.permute.xlu0 %9766
      %v9768 = vsel %vm9598, %v9749, %v9751
      %v9769 = vsel %vm9598, %v9753, %v9755
      %v9770 = vsel %vm9598, %v9757, %v9759
      %v9771 = vsel %vm9598, %v9761, %v9763
      %v9772 = vsel %vm9598, %v9765, %v9767
      %v9778 = vsel %vm1456, %v9735, 0
      %v9781 = vsel %vm305, %v9772, 0
      %9783 = vmatprep.subr.bf16.mxu0 0
      %9784 = vmatpush1.bf16.msra.mxu0 0
      %9785 = vmatprep.subr.bf16.mxu0 0
      %9786 = vmatpush1.bf16.msra.mxu0 0
      %9787 = vmatprep.subr.bf16.mxu0 0
      %9788 = vmatpush1.bf16.msra.mxu0 0
      %9789 = vmatprep.subr.bf16.mxu0 0
      %9790 = vmatpush1.bf16.msra.mxu0 %v9781
      %9791 = vmatprep.subr.bf16.mxu0 0
      %9792 = vmatpush1.bf16.msra.mxu0 %v9771
      %9793 = vmatprep.subr.bf16.mxu0 0
      %9794 = vmatpush1.bf16.msra.mxu0 %v9770
      %9795 = vmatprep.subr.bf16.mxu0 0
      %9796 = vmatpush1.bf16.msra.mxu0 %v9769
      %9797 = vmatprep.subr.bf16.mxu0 0
      %9798 = vmatpush1.bf16.msra.mxu0 %v9768
      %9799 = vmatprep.subr.bf16.mxu0 0
      %9800 = vmatpush2.bf16.msra.mxu0 0
      %9801 = vmatprep.subr.bf16.mxu0 0
      %9802 = vmatpush2.bf16.msra.mxu0 0
      %9803 = vmatprep.subr.bf16.mxu0 0
      %9804 = vmatpush2.bf16.msra.mxu0 0
      %9805 = vmatprep.subr.bf16.mxu0 0
      %9806 = vmatpush2.bf16.msra.mxu0 0
      %9807 = vmatprep.subr.bf16.mxu0 0
      %9808 = vmatpush2.bf16.msra.mxu0 0
      %9809 = vmatprep.subr.bf16.mxu0 0
      %9810 = vmatpush2.bf16.msra.mxu0 0
      %9811 = vmatprep.subr.bf16.mxu0 0
      %9812 = vmatpush2.bf16.msra.mxu0 0
      %9813 = vmatprep.subr.bf16.mxu0 0
      %9814 = vmatpush2.bf16.msra.mxu0 0
      %9815 = vmatprep.mubr.bf16.mxu0 0
      %9816 = vmatmul.mubr.bf16.gmra.mxu0 %v9778
      %v9817 = vpop.f32.mrf.mxu0
      %v9818 = vadd.f32 %v9738, %v9817
      %v9819 = vpop.f32.mrf.mxu0
      %v9820 = vpop.f32.mrf.mxu0
      %v9821 = vpop.f32.mrf.mxu0
      %9822 = vdwg.mxu0
      %v9823 = vmul.f32 %v9818, 0.5
      %v9824 = vmul.f32 %v9818, 0.70710677
      %v9825 = vand.u32 2147483647, %v9824
      %v9826 = vmul.f32 %v9825, 0.3275911
      %v9827 = vadd.f32 %v9826, 1.0
      %v9828 = vrcp.pop %v9827
      %v9829 = vmul.f32 %v9828, 1.0614054
      %v9830 = vadd.f32 %v9829, -1.4531521
      %v9831 = vmul.f32 %v9830, %v9828
      %v9832 = vadd.f32 %v9831, 1.4214138
      %v9833 = vmul.f32 %v9832, %v9828
      %v9834 = vadd.f32 %v9833, -0.28449672
      %v9835 = vmul.f32 %v9834, %v9828
      %v9836 = vadd.f32 %v9835, 0.2548296
      %v9837 = vmul.f32 %v9836, %v9828
      %v9838 = vsub.f32 0.0, %v9825
      %v9839 = vmul.f32 %v9838, %v9825
      %v9840 = vmul.f32 %v9839, 1.442695
      %v9841 = vpow.pop %v9840
      %v9842 = vmul.f32 %v9837, %v9841
      %v9843 = vsub.f32 1.0, %v9842
      %vm9844 = vcmp.lt.f32.partialorder %v9824, 0.0
      %v9845 = vsub.f32 0.0, %v9843
      %v9846 = vsel %vm9844, %v9845, %v9843
      %v9847 = vadd.f32 %v9846, 1.0
      %v9848 = vmul.f32 %v9823, %v9847
      %v9849 = vmul.f32 %v9848, %v9684
      %v9850 = vpack.c.bf16 %v9849, %v9849
      %v9852 = vrot.slane %v9850, 4
      %9853 = vrot.lane.b32.xlu0 %v9852, 127
      %v9854 = vpop.permute.xlu0 %9853
      %v9855 = vsel %vm845, %v824, %v9854
      %9856 = vrot.lane.b32.xlu0 %v9850, 126
      %v9857 = vpop.permute.xlu0 %9856
      %v9858 = vsel %vm878, %v857, %v9857
      %9859 = vrot.lane.b32.xlu0 %v9852, 123
      %v9860 = vpop.permute.xlu0 %9859
      %v9861 = vsel %vm9515, %v9512, %v9860
      %9862 = vrot.lane.b32.xlu0 %v9850, 122
      %v9863 = vpop.permute.xlu0 %9862
      %9864 = vrot.lane.b32.xlu0 %v9852, 121
      %v9865 = vpop.permute.xlu0 %9864
      %v9866 = vsel %vm9523, %v9865, %v9522
      %9867 = vrot.lane.b32.xlu0 %v9850, 118
      %v9868 = vpop.permute.xlu0 %9867
      %v9869 = vsel %vm9529, %v9868, %v9528
      %9870 = vrot.lane.b32.xlu0 %v9852, 117
      %v9871 = vpop.permute.xlu0 %9870
      %v9872 = vsel %vm9535, %v9871, %v9534
      %9873 = vrot.lane.b32.xlu0 %v9850, 116
      %v9874 = vpop.permute.xlu0 %9873
      %v9875 = vsel %vm9541, %v9874, %v9540
      %v9877 = vsel %vm305, 0, %v9855
      %v9880 = vsel %vm305, %v9850, %v9854
      %v9883 = vsel %vm305, %v9858, %v9861
      %v9886 = vsel %vm305, %v9857, %v9860
      %v9889 = vsel %vm305, %v9863, %v9865
      %v9891 = vsel %vm305, %v9863, %v9866
      %v9894 = vsel %vm305, %v9868, %v9871
      %v9897 = vsel %vm305, %v9869, %v9872
      %v9898 = vpack.c.bf16 %v269, %v269
      %9899 = vset.pattern.permute.xlu0 13
      %9900 = vperm.xlu0 %9899, %v271
      %v9901 = vpop.permute.xlu0 %9900
      %9911 = vrot.lane.b32.xlu0 %v9877, 6
      %v9912 = vpop.permute.xlu0 %9911
      %9913 = vrot.lane.b32.xlu0 %v9880, 6
      %v9914 = vpop.permute.xlu0 %9913
      %9915 = vrot.lane.b32.xlu0 %v9883, 6
      %v9916 = vpop.permute.xlu0 %9915
      %9917 = vrot.lane.b32.xlu0 %v9886, 6
      %v9918 = vpop.permute.xlu0 %9917
      %9919 = vrot.lane.b32.xlu0 %v9889, 6
      %v9920 = vpop.permute.xlu0 %9919
      %9921 = vrot.lane.b32.xlu0 %v9891, 6
      %v9922 = vpop.permute.xlu0 %9921
      %9923 = vrot.lane.b32.xlu0 %v9894, 6
      %v9924 = vpop.permute.xlu0 %9923
      %9925 = vrot.lane.b32.xlu0 %v9897, 6
      %v9926 = vpop.permute.xlu0 %9925
      %9927 = vrot.lane.b32.xlu0 %v9874, 6
      %v9928 = vpop.permute.xlu0 %9927
      %9929 = vrot.lane.b32.xlu0 %v9875, 6
      %v9930 = vpop.permute.xlu0 %9929
      %v9931 = vsel %vm9598, %v9912, %v9914
      %v9932 = vsel %vm9598, %v9916, %v9918
      %v9933 = vsel %vm9598, %v9920, %v9922
      %v9934 = vsel %vm9598, %v9924, %v9926
      %v9935 = vsel %vm9598, %v9928, %v9930
      %v9941 = vsel %vm1456, %v9898, 0
      %v9944 = vsel %vm305, %v9935, 0
      %9946 = vmatprep.subr.bf16.mxu0 0
      %9947 = vmatpush1.bf16.msra.mxu0 0
      %9948 = vmatprep.subr.bf16.mxu0 0
      %9949 = vmatpush1.bf16.msra.mxu0 0
      %9950 = vmatprep.subr.bf16.mxu0 0
      %9951 = vmatpush1.bf16.msra.mxu0 0
      %9952 = vmatprep.subr.bf16.mxu0 0
      %9953 = vmatpush1.bf16.msra.mxu0 %v9944
      %9954 = vmatprep.subr.bf16.mxu0 0
      %9955 = vmatpush1.bf16.msra.mxu0 %v9934
      %9956 = vmatprep.subr.bf16.mxu0 0
      %9957 = vmatpush1.bf16.msra.mxu0 %v9933
      %9958 = vmatprep.subr.bf16.mxu0 0
      %9959 = vmatpush1.bf16.msra.mxu0 %v9932
      %9960 = vmatprep.subr.bf16.mxu0 0
      %9961 = vmatpush1.bf16.msra.mxu0 %v9931
      %9962 = vmatprep.subr.bf16.mxu0 0
      %9963 = vmatpush2.bf16.msra.mxu0 0
      %9964 = vmatprep.subr.bf16.mxu0 0
      %9965 = vmatpush2.bf16.msra.mxu0 0
      %9966 = vmatprep.subr.bf16.mxu0 0
      %9967 = vmatpush2.bf16.msra.mxu0 0
      %9968 = vmatprep.subr.bf16.mxu0 0
      %9969 = vmatpush2.bf16.msra.mxu0 0
      %9970 = vmatprep.subr.bf16.mxu0 0
      %9971 = vmatpush2.bf16.msra.mxu0 0
      %9972 = vmatprep.subr.bf16.mxu0 0
      %9973 = vmatpush2.bf16.msra.mxu0 0
      %9974 = vmatprep.subr.bf16.mxu0 0
      %9975 = vmatpush2.bf16.msra.mxu0 0
      %9976 = vmatprep.subr.bf16.mxu0 0
      %9977 = vmatpush2.bf16.msra.mxu0 0
      %9978 = vmatprep.mubr.bf16.mxu0 0
      %9979 = vmatmul.mubr.bf16.gmra.mxu0 %v9941
      %v9980 = vpop.f32.mrf.mxu0
      %v9981 = vadd.f32 %v9901, %v9980
      %v9982 = vpop.f32.mrf.mxu0
      %v9983 = vpop.f32.mrf.mxu0
      %v9984 = vpop.f32.mrf.mxu0
      %9985 = vdwg.mxu0
      %v9986 = vpack.c.bf16 %v9981, %v9981
      %v9987 = vld [vmem:[%s4] sm:$0xff]
      %v9988 = vld [vmem:[%s4 + $0x8] sm:$0xff]
      %v9989 = vld [vmem:[%s4 + $0x10] sm:$0xff]
      %v9990 = vld [vmem:[%s4 + $0x18] sm:$0xff]
      %v9991 = vld [vmem:[%s4 + $0x20] sm:$0xff]
      %v9992 = vld [vmem:[%s4 + $0x28] sm:$0xff]
      %v9993 = vld [vmem:[%s4 + $0x30] sm:$0xff]
      %v9994 = vld [vmem:[%s4 + $0x38] sm:$0xff]
      %v9995 = vld [vmem:[%s4 + $0x40] sm:$0xff]
      %v9996 = vld [vmem:[%s4 + $0x48] sm:$0xff]
      %v9997 = vld [vmem:[%s4 + $0x50] sm:$0xff]
      %v9998 = vld [vmem:[%s4 + $0x58] sm:$0xff]
      %v9999 = vld [vmem:[%s4 + $0x60] sm:$0xff]
      %v10000 = vld [vmem:[%s4 + $0x68] sm:$0xff]
      %v10001 = vld [vmem:[%s4 + $0x70] sm:$0xff]
      %v10002 = vld [vmem:[%s4 + $0x78] sm:$0xff]
      %v10003 = vld [vmem:[%s4 + $0x80] sm:$0xff]
      %v10004 = vld [vmem:[%s4 + $0x88] sm:$0xff]
      %v10005 = vld [vmem:[%s4 + $0x90] sm:$0xff]
      %v10006 = vld [vmem:[%s4 + $0x98] sm:$0xff]
      %v10007 = vld [vmem:[%s4 + $0xa0] sm:$0xff]
      %v10008 = vld [vmem:[%s4 + $0xa8] sm:$0xff]
      %v10009 = vld [vmem:[%s4 + $0xb0] sm:$0xff]
      %v10010 = vld [vmem:[%s4 + $0xb8] sm:$0xff]
      %v10011 = vld [vmem:[%s4 + $0xc0] sm:$0xff]
      %v10012 = vld [vmem:[%s4 + $0xc8] sm:$0xff]
      %v10013 = vld [vmem:[%s4 + $0xd0] sm:$0xff]
      %v10014 = vld [vmem:[%s4 + $0xd8] sm:$0xff]
      %v10015 = vld [vmem:[%s4 + $0xe0] sm:$0xff]
      %v10016 = vld [vmem:[%s4 + $0xe8] sm:$0xff]
      %v10017 = vld [vmem:[%s4 + $0xf0] sm:$0xff]
      %v10018 = vld [vmem:[%s4 + $0xf8] sm:$0xff]
      %v10019 = vld [vmem:[%s4 + $0x100] sm:$0xff]
      %v10020 = vld [vmem:[%s4 + $0x108] sm:$0xff]
      %v10021 = vld [vmem:[%s4 + $0x110] sm:$0xff]
      %v10022 = vld [vmem:[%s4 + $0x118] sm:$0xff]
      %v10023 = vld [vmem:[%s4 + $0x120] sm:$0xff]
      %v10024 = vld [vmem:[%s4 + $0x128] sm:$0xff]
      %v10025 = vld [vmem:[%s4 + $0x130] sm:$0xff]
      %v10026 = vld [vmem:[%s4 + $0x138] sm:$0xff]
      %v10027 = vld [vmem:[%s4 + $0x140] sm:$0xff]
      %v10028 = vld [vmem:[%s4 + $0x148] sm:$0xff]
      %v10029 = vld [vmem:[%s4 + $0x150] sm:$0xff]
      %v10030 = vld [vmem:[%s4 + $0x158] sm:$0xff]
      %v10031 = vld [vmem:[%s4 + $0x160] sm:$0xff]
      %v10032 = vld [vmem:[%s4 + $0x168] sm:$0xff]
      %v10033 = vld [vmem:[%s4 + $0x170] sm:$0xff]
      %v10034 = vld [vmem:[%s4 + $0x178] sm:$0xff]
      %v10035 = vld [vmem:[%s4 + $0x180] sm:$0xff]
      %v10036 = vld [vmem:[%s4 + $0x188] sm:$0xff]
      %v10037 = vld [vmem:[%s4 + $0x190] sm:$0xff]
      %v10038 = vld [vmem:[%s4 + $0x198] sm:$0xff]
      %v10039 = vld [vmem:[%s4 + $0x1a0] sm:$0xff]
      %v10040 = vld [vmem:[%s4 + $0x1a8] sm:$0xff]
      %v10041 = vld [vmem:[%s4 + $0x1b0] sm:$0xff]
      %v10042 = vld [vmem:[%s4 + $0x1b8] sm:$0xff]
      %v10043 = vld [vmem:[%s4 + $0x1c0] sm:$0xff]
      %v10044 = vld [vmem:[%s4 + $0x1c8] sm:$0xff]
      %v10045 = vld [vmem:[%s4 + $0x1d0] sm:$0xff]
      %v10046 = vld [vmem:[%s4 + $0x1d8] sm:$0xff]
      %v10047 = vld [vmem:[%s4 + $0x1e0] sm:$0xff]
      %v10048 = vld [vmem:[%s4 + $0x1e8] sm:$0xff]
      %v10049 = vld [vmem:[%s4 + $0x1f0] sm:$0xff]
      %v10050 = vld [vmem:[%s4 + $0x1f8] sm:$0xff]
      %v10051 = vld [vmem:[%s4 + $0x200] sm:$0xff]
      %v10052 = vld [vmem:[%s4 + $0x208] sm:$0xff]
      %v10053 = vld [vmem:[%s4 + $0x210] sm:$0xff]
      %v10054 = vld [vmem:[%s4 + $0x218] sm:$0xff]
      %v10055 = vld [vmem:[%s4 + $0x220] sm:$0xff]
      %v10056 = vld [vmem:[%s4 + $0x228] sm:$0xff]
      %v10057 = vld [vmem:[%s4 + $0x230] sm:$0xff]
      %v10058 = vld [vmem:[%s4 + $0x238] sm:$0xff]
      %v10059 = vld [vmem:[%s4 + $0x240] sm:$0xff]
      %v10060 = vld [vmem:[%s4 + $0x248] sm:$0xff]
      %v10061 = vld [vmem:[%s4 + $0x250] sm:$0xff]
      %v10062 = vld [vmem:[%s4 + $0x258] sm:$0xff]
      %v10063 = vld [vmem:[%s4 + $0x260] sm:$0xff]
      %v10064 = vld [vmem:[%s4 + $0x268] sm:$0xff]
      %v10065 = vld [vmem:[%s4 + $0x270] sm:$0xff]
      %v10066 = vld [vmem:[%s4 + $0x278] sm:$0xff]
      %v10147 = vunpack.c.l.b16 %v9987
      %v10148 = vunpack.c.h.b16 %v9987
      %v10149 = vunpack.c.l.b16 %v9988
      %v10150 = vunpack.c.h.b16 %v9988
      %v10151 = vunpack.c.l.b16 %v9989
      %v10152 = vunpack.c.h.b16 %v9989
      %v10153 = vunpack.c.l.b16 %v9990
      %v10154 = vunpack.c.h.b16 %v9990
      %v10155 = vunpack.c.l.b16 %v9991
      %v10156 = vunpack.c.h.b16 %v9991
      %v10157 = vunpack.c.l.b16 %v9992
      %v10158 = vunpack.c.h.b16 %v9992
      %v10159 = vunpack.c.l.b16 %v9993
      %v10160 = vunpack.c.h.b16 %v9993
      %v10161 = vunpack.c.l.b16 %v9994
      %v10162 = vunpack.c.h.b16 %v9994
      %v10163 = vunpack.c.l.b16 %v9995
      %v10164 = vunpack.c.h.b16 %v9995
      %v10165 = vunpack.c.l.b16 %v9996
      %v10166 = vunpack.c.h.b16 %v9996
      %v10167 = vunpack.c.l.b16 %v9997
      %v10168 = vunpack.c.h.b16 %v9997
      %v10169 = vunpack.c.l.b16 %v9998
      %v10170 = vunpack.c.h.b16 %v9998
      %v10171 = vunpack.c.l.b16 %v9999
      %v10172 = vunpack.c.h.b16 %v9999
      %v10173 = vunpack.c.l.b16 %v10000
      %v10174 = vunpack.c.h.b16 %v10000
      %v10175 = vunpack.c.l.b16 %v10001
      %v10176 = vunpack.c.h.b16 %v10001
      %v10177 = vunpack.c.l.b16 %v10002
      %v10178 = vunpack.c.h.b16 %v10002
      %v10179 = vunpack.c.l.b16 %v10003
      %v10180 = vunpack.c.h.b16 %v10003
      %v10181 = vunpack.c.l.b16 %v10004
      %v10182 = vunpack.c.h.b16 %v10004
      %v10183 = vunpack.c.l.b16 %v10005
      %v10184 = vunpack.c.h.b16 %v10005
      %v10185 = vunpack.c.l.b16 %v10006
      %v10186 = vunpack.c.h.b16 %v10006
      %v10187 = vunpack.c.l.b16 %v10007
      %v10188 = vunpack.c.h.b16 %v10007
      %v10189 = vunpack.c.l.b16 %v10008
      %v10190 = vunpack.c.h.b16 %v10008
      %v10191 = vunpack.c.l.b16 %v10009
      %v10192 = vunpack.c.h.b16 %v10009
      %v10193 = vunpack.c.l.b16 %v10010
      %v10194 = vunpack.c.h.b16 %v10010
      %v10195 = vunpack.c.l.b16 %v10011
      %v10196 = vunpack.c.h.b16 %v10011
      %v10197 = vunpack.c.l.b16 %v10012
      %v10198 = vunpack.c.h.b16 %v10012
      %v10199 = vunpack.c.l.b16 %v10013
      %v10200 = vunpack.c.h.b16 %v10013
      %v10201 = vunpack.c.l.b16 %v10014
      %v10202 = vunpack.c.h.b16 %v10014
      %v10203 = vunpack.c.l.b16 %v10015
      %v10204 = vunpack.c.h.b16 %v10015
      %v10205 = vunpack.c.l.b16 %v10016
      %v10206 = vunpack.c.h.b16 %v10016
      %v10207 = vunpack.c.l.b16 %v10017
      %v10208 = vunpack.c.h.b16 %v10017
      %v10209 = vunpack.c.l.b16 %v10018
      %v10210 = vunpack.c.h.b16 %v10018
      %v10211 = vunpack.c.l.b16 %v10019
      %v10212 = vunpack.c.h.b16 %v10019
      %v10213 = vunpack.c.l.b16 %v10020
      %v10214 = vunpack.c.h.b16 %v10020
      %v10215 = vunpack.c.l.b16 %v10021
      %v10216 = vunpack.c.h.b16 %v10021
      %v10217 = vunpack.c.l.b16 %v10022
      %v10218 = vunpack.c.h.b16 %v10022
      %v10219 = vunpack.c.l.b16 %v10023
      %v10220 = vunpack.c.h.b16 %v10023
      %v10221 = vunpack.c.l.b16 %v10024
      %v10222 = vunpack.c.h.b16 %v10024
      %v10223 = vunpack.c.l.b16 %v10025
      %v10224 = vunpack.c.h.b16 %v10025
      %v10225 = vunpack.c.l.b16 %v10026
      %v10226 = vunpack.c.h.b16 %v10026
      %v10227 = vunpack.c.l.b16 %v10027
      %v10228 = vunpack.c.h.b16 %v10027
      %v10229 = vunpack.c.l.b16 %v10028
      %v10230 = vunpack.c.h.b16 %v10028
      %v10231 = vunpack.c.l.b16 %v10029
      %v10232 = vunpack.c.h.b16 %v10029
      %v10233 = vunpack.c.l.b16 %v10030
      %v10234 = vunpack.c.h.b16 %v10030
      %v10235 = vunpack.c.l.b16 %v10031
      %v10236 = vunpack.c.h.b16 %v10031
      %v10237 = vunpack.c.l.b16 %v10032
      %v10238 = vunpack.c.h.b16 %v10032
      %v10239 = vunpack.c.l.b16 %v10033
      %v10240 = vunpack.c.h.b16 %v10033
      %v10241 = vunpack.c.l.b16 %v10034
      %v10242 = vunpack.c.h.b16 %v10034
      %v10243 = vunpack.c.l.b16 %v10035
      %v10244 = vunpack.c.h.b16 %v10035
      %v10245 = vunpack.c.l.b16 %v10036
      %v10246 = vunpack.c.h.b16 %v10036
      %v10247 = vunpack.c.l.b16 %v10037
      %v10248 = vunpack.c.h.b16 %v10037
      %v10249 = vunpack.c.l.b16 %v10038
      %v10250 = vunpack.c.h.b16 %v10038
      %v10251 = vunpack.c.l.b16 %v10039
      %v10252 = vunpack.c.h.b16 %v10039
      %v10253 = vunpack.c.l.b16 %v10040
      %v10254 = vunpack.c.h.b16 %v10040
      %v10255 = vunpack.c.l.b16 %v10041
      %v10256 = vunpack.c.h.b16 %v10041
      %v10257 = vunpack.c.l.b16 %v10042
      %v10258 = vunpack.c.h.b16 %v10042
      %v10259 = vunpack.c.l.b16 %v10043
      %v10260 = vunpack.c.h.b16 %v10043
      %v10261 = vunpack.c.l.b16 %v10044
      %v10262 = vunpack.c.h.b16 %v10044
      %v10263 = vunpack.c.l.b16 %v10045
      %v10264 = vunpack.c.h.b16 %v10045
      %v10265 = vunpack.c.l.b16 %v10046
      %v10266 = vunpack.c.h.b16 %v10046
      %v10267 = vunpack.c.l.b16 %v10047
      %v10268 = vunpack.c.h.b16 %v10047
      %v10269 = vunpack.c.l.b16 %v10048
      %v10270 = vunpack.c.h.b16 %v10048
      %v10271 = vunpack.c.l.b16 %v10049
      %v10272 = vunpack.c.h.b16 %v10049
      %v10273 = vunpack.c.l.b16 %v10050
      %v10274 = vunpack.c.h.b16 %v10050
      %v10275 = vunpack.c.l.b16 %v10051
      %v10276 = vunpack.c.h.b16 %v10051
      %v10277 = vunpack.c.l.b16 %v10052
      %v10278 = vunpack.c.h.b16 %v10052
      %v10279 = vunpack.c.l.b16 %v10053
      %v10280 = vunpack.c.h.b16 %v10053
      %v10281 = vunpack.c.l.b16 %v10054
      %v10282 = vunpack.c.h.b16 %v10054
      %v10283 = vunpack.c.l.b16 %v10055
      %v10284 = vunpack.c.h.b16 %v10055
      %v10285 = vunpack.c.l.b16 %v10056
      %v10286 = vunpack.c.h.b16 %v10056
      %v10287 = vunpack.c.l.b16 %v10057
      %v10288 = vunpack.c.h.b16 %v10057
      %v10289 = vunpack.c.l.b16 %v10058
      %v10290 = vunpack.c.h.b16 %v10058
      %v10291 = vunpack.c.l.b16 %v10059
      %v10292 = vunpack.c.h.b16 %v10059
      %v10293 = vunpack.c.l.b16 %v10060
      %v10294 = vunpack.c.h.b16 %v10060
      %v10295 = vunpack.c.l.b16 %v10061
      %v10296 = vunpack.c.h.b16 %v10061
      %v10297 = vunpack.c.l.b16 %v10062
      %v10298 = vunpack.c.h.b16 %v10062
      %v10299 = vunpack.c.l.b16 %v10063
      %v10300 = vunpack.c.h.b16 %v10063
      %v10301 = vunpack.c.l.b16 %v10064
      %v10302 = vunpack.c.h.b16 %v10064
      %v10303 = vunpack.c.l.b16 %v10065
      %v10304 = vunpack.c.h.b16 %v10065
      %v10305 = vunpack.c.l.b16 %v10066
      %v10306 = vunpack.c.h.b16 %v10066
      %v10307 = vpack.c.b16 %v10157, %v10147
      %v10308 = vpack.c.b16 %v10158, %v10148
      %v10309 = vpack.c.b16 %v10159, %v10149
      %v10310 = vpack.c.b16 %v10160, %v10150
      %v10311 = vpack.c.b16 %v10161, %v10151
      %v10312 = vpack.c.b16 %v10162, %v10152
      %v10313 = vpack.c.b16 %v10163, %v10153
      %v10314 = vpack.c.b16 %v10164, %v10154
      %v10315 = vpack.c.b16 %v10165, %v10155
      %v10316 = vpack.c.b16 %v10166, %v10156
      %v10317 = vpack.c.b16 %v10177, %v10167
      %v10318 = vpack.c.b16 %v10178, %v10168
      %v10319 = vpack.c.b16 %v10179, %v10169
      %v10320 = vpack.c.b16 %v10180, %v10170
      %v10321 = vpack.c.b16 %v10181, %v10171
      %v10322 = vpack.c.b16 %v10182, %v10172
      %v10323 = vpack.c.b16 %v10183, %v10173
      %v10324 = vpack.c.b16 %v10184, %v10174
      %v10325 = vpack.c.b16 %v10185, %v10175
      %v10326 = vpack.c.b16 %v10186, %v10176
      %v10327 = vpack.c.b16 %v10197, %v10187
      %v10328 = vpack.c.b16 %v10198, %v10188
      %v10329 = vpack.c.b16 %v10199, %v10189
      %v10330 = vpack.c.b16 %v10200, %v10190
      %v10331 = vpack.c.b16 %v10201, %v10191
      %v10332 = vpack.c.b16 %v10202, %v10192
      %v10333 = vpack.c.b16 %v10203, %v10193
      %v10334 = vpack.c.b16 %v10204, %v10194
      %v10335 = vpack.c.b16 %v10205, %v10195
      %v10336 = vpack.c.b16 %v10206, %v10196
      %v10337 = vpack.c.b16 %v10217, %v10207
      %v10338 = vpack.c.b16 %v10218, %v10208
      %v10339 = vpack.c.b16 %v10219, %v10209
      %v10340 = vpack.c.b16 %v10220, %v10210
      %v10341 = vpack.c.b16 %v10221, %v10211
      %v10342 = vpack.c.b16 %v10222, %v10212
      %v10343 = vpack.c.b16 %v10223, %v10213
      %v10344 = vpack.c.b16 %v10224, %v10214
      %v10345 = vpack.c.b16 %v10225, %v10215
      %v10346 = vpack.c.b16 %v10226, %v10216
      %v10347 = vpack.c.b16 %v10237, %v10227
      %v10348 = vpack.c.b16 %v10238, %v10228
      %v10349 = vpack.c.b16 %v10239, %v10229
      %v10350 = vpack.c.b16 %v10240, %v10230
      %v10351 = vpack.c.b16 %v10241, %v10231
      %v10352 = vpack.c.b16 %v10242, %v10232
      %v10353 = vpack.c.b16 %v10243, %v10233
      %v10354 = vpack.c.b16 %v10244, %v10234
      %v10355 = vpack.c.b16 %v10245, %v10235
      %v10356 = vpack.c.b16 %v10246, %v10236
      %v10357 = vpack.c.b16 %v10257, %v10247
      %v10358 = vpack.c.b16 %v10258, %v10248
      %v10359 = vpack.c.b16 %v10259, %v10249
      %v10360 = vpack.c.b16 %v10260, %v10250
      %v10361 = vpack.c.b16 %v10261, %v10251
      %v10362 = vpack.c.b16 %v10262, %v10252
      %v10363 = vpack.c.b16 %v10263, %v10253
      %v10364 = vpack.c.b16 %v10264, %v10254
      %v10365 = vpack.c.b16 %v10265, %v10255
      %v10366 = vpack.c.b16 %v10266, %v10256
      %v10367 = vpack.c.b16 %v10277, %v10267
      %v10368 = vpack.c.b16 %v10278, %v10268
      %v10369 = vpack.c.b16 %v10279, %v10269
      %v10370 = vpack.c.b16 %v10280, %v10270
      %v10371 = vpack.c.b16 %v10281, %v10271
      %v10372 = vpack.c.b16 %v10282, %v10272
      %v10373 = vpack.c.b16 %v10283, %v10273
      %v10374 = vpack.c.b16 %v10284, %v10274
      %v10375 = vpack.c.b16 %v10285, %v10275
      %v10376 = vpack.c.b16 %v10286, %v10276
      %v10377 = vpack.c.b16 %v10297, %v10287
      %v10378 = vpack.c.b16 %v10298, %v10288
      %v10379 = vpack.c.b16 %v10299, %v10289
      %v10380 = vpack.c.b16 %v10300, %v10290
      %v10381 = vpack.c.b16 %v10301, %v10291
      %v10382 = vpack.c.b16 %v10302, %v10292
      %v10383 = vpack.c.b16 %v10303, %v10293
      %v10384 = vpack.c.b16 %v10304, %v10294
      %v10385 = vpack.c.b16 %v10305, %v10295
      %v10386 = vpack.c.b16 %v10306, %v10296
      %10467 = vmatprep.subr.bf16.mxu0 %v10378
      %10468 = vmatpush1.bf16.msra.mxu0 %v10377
      %10469 = vmatprep.subr.bf16.mxu0 %v10368
      %10470 = vmatpush1.bf16.msra.mxu0 %v10367
      %10471 = vmatprep.subr.bf16.mxu0 %v10358
      %10472 = vmatpush1.bf16.msra.mxu0 %v10357
      %10473 = vmatprep.subr.bf16.mxu0 %v10348
      %10474 = vmatpush1.bf16.msra.mxu0 %v10347
      %10475 = vmatprep.subr.bf16.mxu0 %v10338
      %10476 = vmatpush1.bf16.msra.mxu0 %v10337
      %10477 = vmatprep.subr.bf16.mxu0 %v10328
      %10478 = vmatpush1.bf16.msra.mxu0 %v10327
      %10479 = vmatprep.subr.bf16.mxu0 %v10318
      %10480 = vmatpush1.bf16.msra.mxu0 %v10317
      %10481 = vmatprep.subr.bf16.mxu0 %v10308
      %10482 = vmatpush1.bf16.msra.mxu0 %v10307
      %10483 = vmatprep.subr.bf16.mxu0 0
      %10484 = vmatpush2.bf16.msra.mxu0 0
      %10485 = vmatprep.subr.bf16.mxu0 0
      %10486 = vmatpush2.bf16.msra.mxu0 0
      %10487 = vmatprep.subr.bf16.mxu0 0
      %10488 = vmatpush2.bf16.msra.mxu0 0
      %10489 = vmatprep.subr.bf16.mxu0 0
      %10490 = vmatpush2.bf16.msra.mxu0 0
      %10491 = vmatprep.subr.bf16.mxu0 0
      %10492 = vmatpush2.bf16.msra.mxu0 0
      %10493 = vmatprep.subr.bf16.mxu0 0
      %10494 = vmatpush2.bf16.msra.mxu0 0
      %10495 = vmatprep.subr.bf16.mxu0 0
      %10496 = vmatpush2.bf16.msra.mxu0 0
      %10497 = vmatprep.subr.bf16.mxu0 0
      %10498 = vmatpush2.bf16.msra.mxu0 0
      %10499 = vmatprep.mubr.bf16.mxu0 0
      %10500 = vmatmul.mubr.bf16.gmra.mxu0 %v9986
      %v10501 = vpop.f32.mrf.mxu0
      %v10502 = vadd.f32 %v7204, %v10501
      %v10503 = vpop.f32.mrf.mxu0
      %v10504 = vadd.f32 %v7206, %v10503
      %v10505 = vpop.f32.mrf.mxu0
      %v10506 = vpop.f32.mrf.mxu0
      %10507 = vdwg.mxu0
      %10508 = vmatprep.subr.bf16.mxu0 %v10380
      %10509 = vmatpush1.bf16.msra.mxu0 %v10379
      %10510 = vmatprep.subr.bf16.mxu0 %v10370
      %10511 = vmatpush1.bf16.msra.mxu0 %v10369
      %10512 = vmatprep.subr.bf16.mxu0 %v10360
      %10513 = vmatpush1.bf16.msra.mxu0 %v10359
      %10514 = vmatprep.subr.bf16.mxu0 %v10350
      %10515 = vmatpush1.bf16.msra.mxu0 %v10349
      %10516 = vmatprep.subr.bf16.mxu0 %v10340
      %10517 = vmatpush1.bf16.msra.mxu0 %v10339
      %10518 = vmatprep.subr.bf16.mxu0 %v10330
      %10519 = vmatpush1.bf16.msra.mxu0 %v10329
      %10520 = vmatprep.subr.bf16.mxu0 %v10320
      %10521 = vmatpush1.bf16.msra.mxu0 %v10319
      %10522 = vmatprep.subr.bf16.mxu0 %v10310
      %10523 = vmatpush1.bf16.msra.mxu0 %v10309
      %10524 = vmatprep.subr.bf16.mxu0 0
      %10525 = vmatpush2.bf16.msra.mxu0 0
      %10526 = vmatprep.subr.bf16.mxu0 0
      %10527 = vmatpush2.bf16.msra.mxu0 0
      %10528 = vmatprep.subr.bf16.mxu0 0
      %10529 = vmatpush2.bf16.msra.mxu0 0
      %10530 = vmatprep.subr.bf16.mxu0 0
      %10531 = vmatpush2.bf16.msra.mxu0 0
      %10532 = vmatprep.subr.bf16.mxu0 0
      %10533 = vmatpush2.bf16.msra.mxu0 0
      %10534 = vmatprep.subr.bf16.mxu0 0
      %10535 = vmatpush2.bf16.msra.mxu0 0
      %10536 = vmatprep.subr.bf16.mxu0 0
      %10537 = vmatpush2.bf16.msra.mxu0 0
      %10538 = vmatprep.subr.bf16.mxu0 0
      %10539 = vmatpush2.bf16.msra.mxu0 0
      %10540 = vmatprep.mubr.bf16.mxu0 0
      %10541 = vmatmul.mubr.bf16.gmra.mxu0 %v9986
      %v10542 = vpop.f32.mrf.mxu0
      %v10543 = vadd.f32 %v7245, %v10542
      %v10544 = vpop.f32.mrf.mxu0
      %v10545 = vadd.f32 %v7247, %v10544
      %v10546 = vpop.f32.mrf.mxu0
      %v10547 = vpop.f32.mrf.mxu0
      %10548 = vdwg.mxu0
      %10549 = vmatprep.subr.bf16.mxu0 %v10382
      %10550 = vmatpush1.bf16.msra.mxu0 %v10381
      %10551 = vmatprep.subr.bf16.mxu0 %v10372
      %10552 = vmatpush1.bf16.msra.mxu0 %v10371
      %10553 = vmatprep.subr.bf16.mxu0 %v10362
      %10554 = vmatpush1.bf16.msra.mxu0 %v10361
      %10555 = vmatprep.subr.bf16.mxu0 %v10352
      %10556 = vmatpush1.bf16.msra.mxu0 %v10351
      %10557 = vmatprep.subr.bf16.mxu0 %v10342
      %10558 = vmatpush1.bf16.msra.mxu0 %v10341
      %10559 = vmatprep.subr.bf16.mxu0 %v10332
      %10560 = vmatpush1.bf16.msra.mxu0 %v10331
      %10561 = vmatprep.subr.bf16.mxu0 %v10322
      %10562 = vmatpush1.bf16.msra.mxu0 %v10321
      %10563 = vmatprep.subr.bf16.mxu0 %v10312
      %10564 = vmatpush1.bf16.msra.mxu0 %v10311
      %10565 = vmatprep.subr.bf16.mxu0 0
      %10566 = vmatpush2.bf16.msra.mxu0 0
      %10567 = vmatprep.subr.bf16.mxu0 0
      %10568 = vmatpush2.bf16.msra.mxu0 0
      %10569 = vmatprep.subr.bf16.mxu0 0
      %10570 = vmatpush2.bf16.msra.mxu0 0
      %10571 = vmatprep.subr.bf16.mxu0 0
      %10572 = vmatpush2.bf16.msra.mxu0 0
      %10573 = vmatprep.subr.bf16.mxu0 0
      %10574 = vmatpush2.bf16.msra.mxu0 0
      %10575 = vmatprep.subr.bf16.mxu0 0
      %10576 = vmatpush2.bf16.msra.mxu0 0
      %10577 = vmatprep.subr.bf16.mxu0 0
      %10578 = vmatpush2.bf16.msra.mxu0 0
      %10579 = vmatprep.subr.bf16.mxu0 0
      %10580 = vmatpush2.bf16.msra.mxu0 0
      %10581 = vmatprep.mubr.bf16.mxu0 0
      %10582 = vmatmul.mubr.bf16.gmra.mxu0 %v9986
      %v10583 = vpop.f32.mrf.mxu0
      %v10584 = vadd.f32 %v7286, %v10583
      %v10585 = vpop.f32.mrf.mxu0
      %v10586 = vadd.f32 %v7288, %v10585
      %v10587 = vpop.f32.mrf.mxu0
      %v10588 = vpop.f32.mrf.mxu0
      %10589 = vdwg.mxu0
      %10590 = vmatprep.subr.bf16.mxu0 %v10384
      %10591 = vmatpush1.bf16.msra.mxu0 %v10383
      %10592 = vmatprep.subr.bf16.mxu0 %v10374
      %10593 = vmatpush1.bf16.msra.mxu0 %v10373
      %10594 = vmatprep.subr.bf16.mxu0 %v10364
      %10595 = vmatpush1.bf16.msra.mxu0 %v10363
      %10596 = vmatprep.subr.bf16.mxu0 %v10354
      %10597 = vmatpush1.bf16.msra.mxu0 %v10353
      %10598 = vmatprep.subr.bf16.mxu0 %v10344
      %10599 = vmatpush1.bf16.msra.mxu0 %v10343
      %10600 = vmatprep.subr.bf16.mxu0 %v10334
      %10601 = vmatpush1.bf16.msra.mxu0 %v10333
      %10602 = vmatprep.subr.bf16.mxu0 %v10324
      %10603 = vmatpush1.bf16.msra.mxu0 %v10323
      %10604 = vmatprep.subr.bf16.mxu0 %v10314
      %10605 = vmatpush1.bf16.msra.mxu0 %v10313
      %10606 = vmatprep.subr.bf16.mxu0 0
      %10607 = vmatpush2.bf16.msra.mxu0 0
      %10608 = vmatprep.subr.bf16.mxu0 0
      %10609 = vmatpush2.bf16.msra.mxu0 0
      %10610 = vmatprep.subr.bf16.mxu0 0
      %10611 = vmatpush2.bf16.msra.mxu0 0
      %10612 = vmatprep.subr.bf16.mxu0 0
      %10613 = vmatpush2.bf16.msra.mxu0 0
      %10614 = vmatprep.subr.bf16.mxu0 0
      %10615 = vmatpush2.bf16.msra.mxu0 0
      %10616 = vmatprep.subr.bf16.mxu0 0
      %10617 = vmatpush2.bf16.msra.mxu0 0
      %10618 = vmatprep.subr.bf16.mxu0 0
      %10619 = vmatpush2.bf16.msra.mxu0 0
      %10620 = vmatprep.subr.bf16.mxu0 0
      %10621 = vmatpush2.bf16.msra.mxu0 0
      %10622 = vmatprep.mubr.bf16.mxu0 0
      %10623 = vmatmul.mubr.bf16.gmra.mxu0 %v9986
      %v10624 = vpop.f32.mrf.mxu0
      %v10625 = vadd.f32 %v7327, %v10624
      %v10626 = vpop.f32.mrf.mxu0
      %v10627 = vadd.f32 %v7329, %v10626
      %v10628 = vpop.f32.mrf.mxu0
      %v10629 = vpop.f32.mrf.mxu0
      %10630 = vdwg.mxu0
      %10631 = vmatprep.subr.bf16.mxu0 %v10386
      %10632 = vmatpush1.bf16.msra.mxu0 %v10385
      %10633 = vmatprep.subr.bf16.mxu0 %v10376
      %10634 = vmatpush1.bf16.msra.mxu0 %v10375
      %10635 = vmatprep.subr.bf16.mxu0 %v10366
      %10636 = vmatpush1.bf16.msra.mxu0 %v10365
      %10637 = vmatprep.subr.bf16.mxu0 %v10356
      %10638 = vmatpush1.bf16.msra.mxu0 %v10355
      %10639 = vmatprep.subr.bf16.mxu0 %v10346
      %10640 = vmatpush1.bf16.msra.mxu0 %v10345
      %10641 = vmatprep.subr.bf16.mxu0 %v10336
      %10642 = vmatpush1.bf16.msra.mxu0 %v10335
      %10643 = vmatprep.subr.bf16.mxu0 %v10326
      %10644 = vmatpush1.bf16.msra.mxu0 %v10325
      %10645 = vmatprep.subr.bf16.mxu0 %v10316
      %10646 = vmatpush1.bf16.msra.mxu0 %v10315
      %10647 = vmatprep.subr.bf16.mxu0 0
      %10648 = vmatpush2.bf16.msra.mxu0 0
      %10649 = vmatprep.subr.bf16.mxu0 0
      %10650 = vmatpush2.bf16.msra.mxu0 0
      %10651 = vmatprep.subr.bf16.mxu0 0
      %10652 = vmatpush2.bf16.msra.mxu0 0
      %10653 = vmatprep.subr.bf16.mxu0 0
      %10654 = vmatpush2.bf16.msra.mxu0 0
      %10655 = vmatprep.subr.bf16.mxu0 0
      %10656 = vmatpush2.bf16.msra.mxu0 0
      %10657 = vmatprep.subr.bf16.mxu0 0
      %10658 = vmatpush2.bf16.msra.mxu0 0
      %10659 = vmatprep.subr.bf16.mxu0 0
      %10660 = vmatpush2.bf16.msra.mxu0 0
      %10661 = vmatprep.subr.bf16.mxu0 0
      %10662 = vmatpush2.bf16.msra.mxu0 0
      %10663 = vmatprep.mubr.bf16.mxu0 0
      %10664 = vmatmul.mubr.bf16.gmra.mxu0 %v9986
      %v10665 = vpop.f32.mrf.mxu0
      %v10666 = vadd.f32 %v7368, %v10665
      %v10667 = vpop.f32.mrf.mxu0
      %v10668 = vadd.f32 %v7370, %v10667
      %v10669 = vpop.f32.mrf.mxu0
      %v10670 = vpop.f32.mrf.mxu0
      %10671 = vdwg.mxu0
      %v10672 = vpack.c.bf16 %v10502, %v10502
      %v10673 = vpack.c.bf16 %v10504, %v10504
      %v10674 = vpack.c.bf16 %v10543, %v10543
      %v10675 = vpack.c.bf16 %v10545, %v10545
      %v10676 = vpack.c.bf16 %v10584, %v10584
      %v10677 = vpack.c.bf16 %v10586, %v10586
      %v10678 = vpack.c.bf16 %v10625, %v10625
      %v10679 = vpack.c.bf16 %v10627, %v10627
      %v10680 = vpack.c.bf16 %v10666, %v10666
      %v10681 = vpack.c.bf16 %v10668, %v10668
      %v10682 = vpack.c.bf16 %v270, %v270
      %10683 = vset.pattern.permute.xlu0 14
      %10684 = vperm.xlu0 %10683, %v271
      %v10685 = vpop.permute.xlu0 %10684
      %v10688 = vsel %vm301, %v10682, 0
      %v10691 = vsel %vm305, %v10672, 0
      %v10694 = vsel %vm305, %v10673, 0
      %v10697 = vsel %vm305, %v10674, 0
      %v10700 = vsel %vm305, %v10675, 0
      %v10703 = vsel %vm305, %v10676, 0
      %v10706 = vsel %vm305, %v10677, 0
      %v10709 = vsel %vm305, %v10678, 0
      %v10712 = vsel %vm305, %v10679, 0
      %v10715 = vsel %vm305, %v10680, 0
      %v10718 = vsel %vm305, %v10681, 0
      %10720 = vmatprep.subr.bf16.mxu0 0
      %10721 = vmatpush1.bf16.msra.mxu0 0
      %10722 = vmatprep.subr.bf16.mxu0 0
      %10723 = vmatpush1.bf16.msra.mxu0 0
      %10724 = vmatprep.subr.bf16.mxu0 0
      %10725 = vmatpush1.bf16.msra.mxu0 0
      %10726 = vmatprep.subr.bf16.mxu0 0
      %10727 = vmatpush1.bf16.msra.mxu0 0
      %10728 = vmatprep.subr.bf16.mxu0 0
      %10729 = vmatpush1.bf16.msra.mxu0 0
      %10730 = vmatprep.subr.bf16.mxu0 0
      %10731 = vmatpush1.bf16.msra.mxu0 0
      %10732 = vmatprep.subr.bf16.mxu0 0
      %10733 = vmatpush1.bf16.msra.mxu0 0
      %10734 = vmatprep.subr.bf16.mxu0 %v10694
      %10735 = vmatpush1.bf16.msra.mxu0 %v10691
      %10736 = vmatprep.subr.bf16.mxu0 0
      %10737 = vmatpush2.bf16.msra.mxu0 0
      %10738 = vmatprep.subr.bf16.mxu0 0
      %10739 = vmatpush2.bf16.msra.mxu0 0
      %10740 = vmatprep.subr.bf16.mxu0 0
      %10741 = vmatpush2.bf16.msra.mxu0 0
      %10742 = vmatprep.subr.bf16.mxu0 0
      %10743 = vmatpush2.bf16.msra.mxu0 0
      %10744 = vmatprep.subr.bf16.mxu0 0
      %10745 = vmatpush2.bf16.msra.mxu0 0
      %10746 = vmatprep.subr.bf16.mxu0 0
      %10747 = vmatpush2.bf16.msra.mxu0 0
      %10748 = vmatprep.subr.bf16.mxu0 0
      %10749 = vmatpush2.bf16.msra.mxu0 0
      %10750 = vmatprep.subr.bf16.mxu0 0
      %10751 = vmatpush2.bf16.msra.mxu0 0
      %10752 = vmatprep.mubr.bf16.mxu0 0
      %10753 = vmatmul.mubr.bf16.gmra.mxu0 %v10688
      %v10754 = vpop.f32.mrf.mxu0
      %v10755 = vadd.f32 %v10685, %v10754
      %v10756 = vpop.f32.mrf.mxu0
      %v10757 = vadd.f32 %v10685, %v10756
      %v10758 = vpop.f32.mrf.mxu0
      %v10759 = vpop.f32.mrf.mxu0
      %10760 = vdwg.mxu0
      %10761 = vmatprep.subr.bf16.mxu0 0
      %10762 = vmatpush1.bf16.msra.mxu0 0
      %10763 = vmatprep.subr.bf16.mxu0 0
      %10764 = vmatpush1.bf16.msra.mxu0 0
      %10765 = vmatprep.subr.bf16.mxu0 0
      %10766 = vmatpush1.bf16.msra.mxu0 0
      %10767 = vmatprep.subr.bf16.mxu0 0
      %10768 = vmatpush1.bf16.msra.mxu0 0
      %10769 = vmatprep.subr.bf16.mxu0 0
      %10770 = vmatpush1.bf16.msra.mxu0 0
      %10771 = vmatprep.subr.bf16.mxu0 0
      %10772 = vmatpush1.bf16.msra.mxu0 0
      %10773 = vmatprep.subr.bf16.mxu0 0
      %10774 = vmatpush1.bf16.msra.mxu0 0
      %10775 = vmatprep.subr.bf16.mxu0 %v10700
      %10776 = vmatpush1.bf16.msra.mxu0 %v10697
      %10777 = vmatprep.subr.bf16.mxu0 0
      %10778 = vmatpush2.bf16.msra.mxu0 0
      %10779 = vmatprep.subr.bf16.mxu0 0
      %10780 = vmatpush2.bf16.msra.mxu0 0
      %10781 = vmatprep.subr.bf16.mxu0 0
      %10782 = vmatpush2.bf16.msra.mxu0 0
      %10783 = vmatprep.subr.bf16.mxu0 0
      %10784 = vmatpush2.bf16.msra.mxu0 0
      %10785 = vmatprep.subr.bf16.mxu0 0
      %10786 = vmatpush2.bf16.msra.mxu0 0
      %10787 = vmatprep.subr.bf16.mxu0 0
      %10788 = vmatpush2.bf16.msra.mxu0 0
      %10789 = vmatprep.subr.bf16.mxu0 0
      %10790 = vmatpush2.bf16.msra.mxu0 0
      %10791 = vmatprep.subr.bf16.mxu0 0
      %10792 = vmatpush2.bf16.msra.mxu0 0
      %10793 = vmatprep.mubr.bf16.mxu0 0
      %10794 = vmatmul.mubr.bf16.gmra.mxu0 %v10688
      %v10795 = vpop.f32.mrf.mxu0
      %v10796 = vadd.f32 %v10685, %v10795
      %v10797 = vpop.f32.mrf.mxu0
      %v10798 = vadd.f32 %v10685, %v10797
      %v10799 = vpop.f32.mrf.mxu0
      %v10800 = vpop.f32.mrf.mxu0
      %10801 = vdwg.mxu0
      %10802 = vmatprep.subr.bf16.mxu0 0
      %10803 = vmatpush1.bf16.msra.mxu0 0
      %10804 = vmatprep.subr.bf16.mxu0 0
      %10805 = vmatpush1.bf16.msra.mxu0 0
      %10806 = vmatprep.subr.bf16.mxu0 0
      %10807 = vmatpush1.bf16.msra.mxu0 0
      %10808 = vmatprep.subr.bf16.mxu0 0
      %10809 = vmatpush1.bf16.msra.mxu0 0
      %10810 = vmatprep.subr.bf16.mxu0 0
      %10811 = vmatpush1.bf16.msra.mxu0 0
      %10812 = vmatprep.subr.bf16.mxu0 0
      %10813 = vmatpush1.bf16.msra.mxu0 0
      %10814 = vmatprep.subr.bf16.mxu0 0
      %10815 = vmatpush1.bf16.msra.mxu0 0
      %10816 = vmatprep.subr.bf16.mxu0 %v10706
      %10817 = vmatpush1.bf16.msra.mxu0 %v10703
      %10818 = vmatprep.subr.bf16.mxu0 0
      %10819 = vmatpush2.bf16.msra.mxu0 0
      %10820 = vmatprep.subr.bf16.mxu0 0
      %10821 = vmatpush2.bf16.msra.mxu0 0
      %10822 = vmatprep.subr.bf16.mxu0 0
      %10823 = vmatpush2.bf16.msra.mxu0 0
      %10824 = vmatprep.subr.bf16.mxu0 0
      %10825 = vmatpush2.bf16.msra.mxu0 0
      %10826 = vmatprep.subr.bf16.mxu0 0
      %10827 = vmatpush2.bf16.msra.mxu0 0
      %10828 = vmatprep.subr.bf16.mxu0 0
      %10829 = vmatpush2.bf16.msra.mxu0 0
      %10830 = vmatprep.subr.bf16.mxu0 0
      %10831 = vmatpush2.bf16.msra.mxu0 0
      %10832 = vmatprep.subr.bf16.mxu0 0
      %10833 = vmatpush2.bf16.msra.mxu0 0
      %10834 = vmatprep.mubr.bf16.mxu0 0
      %10835 = vmatmul.mubr.bf16.gmra.mxu0 %v10688
      %v10836 = vpop.f32.mrf.mxu0
      %v10837 = vadd.f32 %v10685, %v10836
      %v10838 = vpop.f32.mrf.mxu0
      %v10839 = vadd.f32 %v10685, %v10838
      %v10840 = vpop.f32.mrf.mxu0
      %v10841 = vpop.f32.mrf.mxu0
      %10842 = vdwg.mxu0
      %10843 = vmatprep.subr.bf16.mxu0 0
      %10844 = vmatpush1.bf16.msra.mxu0 0
      %10845 = vmatprep.subr.bf16.mxu0 0
      %10846 = vmatpush1.bf16.msra.mxu0 0
      %10847 = vmatprep.subr.bf16.mxu0 0
      %10848 = vmatpush1.bf16.msra.mxu0 0
      %10849 = vmatprep.subr.bf16.mxu0 0
      %10850 = vmatpush1.bf16.msra.mxu0 0
      %10851 = vmatprep.subr.bf16.mxu0 0
      %10852 = vmatpush1.bf16.msra.mxu0 0
      %10853 = vmatprep.subr.bf16.mxu0 0
      %10854 = vmatpush1.bf16.msra.mxu0 0
      %10855 = vmatprep.subr.bf16.mxu0 0
      %10856 = vmatpush1.bf16.msra.mxu0 0
      %10857 = vmatprep.subr.bf16.mxu0 %v10712
      %10858 = vmatpush1.bf16.msra.mxu0 %v10709
      %10859 = vmatprep.subr.bf16.mxu0 0
      %10860 = vmatpush2.bf16.msra.mxu0 0
      %10861 = vmatprep.subr.bf16.mxu0 0
      %10862 = vmatpush2.bf16.msra.mxu0 0
      %10863 = vmatprep.subr.bf16.mxu0 0
      %10864 = vmatpush2.bf16.msra.mxu0 0
      %10865 = vmatprep.subr.bf16.mxu0 0
      %10866 = vmatpush2.bf16.msra.mxu0 0
      %10867 = vmatprep.subr.bf16.mxu0 0
      %10868 = vmatpush2.bf16.msra.mxu0 0
      %10869 = vmatprep.subr.bf16.mxu0 0
      %10870 = vmatpush2.bf16.msra.mxu0 0
      %10871 = vmatprep.subr.bf16.mxu0 0
      %10872 = vmatpush2.bf16.msra.mxu0 0
      %10873 = vmatprep.subr.bf16.mxu0 0
      %10874 = vmatpush2.bf16.msra.mxu0 0
      %10875 = vmatprep.mubr.bf16.mxu0 0
      %10876 = vmatmul.mubr.bf16.gmra.mxu0 %v10688
      %v10877 = vpop.f32.mrf.mxu0
      %v10878 = vadd.f32 %v10685, %v10877
      %v10879 = vpop.f32.mrf.mxu0
      %v10880 = vadd.f32 %v10685, %v10879
      %v10881 = vpop.f32.mrf.mxu0
      %v10882 = vpop.f32.mrf.mxu0
      %10883 = vdwg.mxu0
      %10884 = vmatprep.subr.bf16.mxu0 0
      %10885 = vmatpush1.bf16.msra.mxu0 0
      %10886 = vmatprep.subr.bf16.mxu0 0
      %10887 = vmatpush1.bf16.msra.mxu0 0
      %10888 = vmatprep.subr.bf16.mxu0 0
      %10889 = vmatpush1.bf16.msra.mxu0 0
      %10890 = vmatprep.subr.bf16.mxu0 0
      %10891 = vmatpush1.bf16.msra.mxu0 0
      %10892 = vmatprep.subr.bf16.mxu0 0
      %10893 = vmatpush1.bf16.msra.mxu0 0
      %10894 = vmatprep.subr.bf16.mxu0 0
      %10895 = vmatpush1.bf16.msra.mxu0 0
      %10896 = vmatprep.subr.bf16.mxu0 0
      %10897 = vmatpush1.bf16.msra.mxu0 0
      %10898 = vmatprep.subr.bf16.mxu0 %v10718
      %10899 = vmatpush1.bf16.msra.mxu0 %v10715
      %10900 = vmatprep.subr.bf16.mxu0 0
      %10901 = vmatpush2.bf16.msra.mxu0 0
      %10902 = vmatprep.subr.bf16.mxu0 0
      %10903 = vmatpush2.bf16.msra.mxu0 0
      %10904 = vmatprep.subr.bf16.mxu0 0
      %10905 = vmatpush2.bf16.msra.mxu0 0
      %10906 = vmatprep.subr.bf16.mxu0 0
      %10907 = vmatpush2.bf16.msra.mxu0 0
      %10908 = vmatprep.subr.bf16.mxu0 0
      %10909 = vmatpush2.bf16.msra.mxu0 0
      %10910 = vmatprep.subr.bf16.mxu0 0
      %10911 = vmatpush2.bf16.msra.mxu0 0
      %10912 = vmatprep.subr.bf16.mxu0 0
      %10913 = vmatpush2.bf16.msra.mxu0 0
      %10914 = vmatprep.subr.bf16.mxu0 0
      %10915 = vmatpush2.bf16.msra.mxu0 0
      %10916 = vmatprep.mubr.bf16.mxu0 0
      %10917 = vmatmul.mubr.bf16.gmra.mxu0 %v10688
      %v10918 = vpop.f32.mrf.mxu0
      %v10919 = vadd.f32 %v10685, %v10918
      %v10920 = vpop.f32.mrf.mxu0
      %v10921 = vadd.f32 %v10685, %v10920
      %v10922 = vpop.f32.mrf.mxu0
      %v10923 = vpop.f32.mrf.mxu0
      %10924 = vdwg.mxu0
      %v10925 = vsub.f32 0.0, %v10755
      %v10926 = vsub.f32 0.0, %v10757
      %v10927 = vsub.f32 0.0, %v10796
      %v10928 = vsub.f32 0.0, %v10798
      %v10929 = vsub.f32 0.0, %v10837
      %v10930 = vsub.f32 0.0, %v10839
      %v10931 = vsub.f32 0.0, %v10878
      %v10932 = vsub.f32 0.0, %v10880
      %v10933 = vsub.f32 0.0, %v10919
      %v10934 = vsub.f32 0.0, %v10921
      %v10935 = vmul.f32 %v10925, 1.442695
      %v10936 = vpow.pop %v10935
      %v10937 = vmul.f32 %v10926, 1.442695
      %v10938 = vpow.pop %v10937
      %v10939 = vmul.f32 %v10927, 1.442695
      %v10940 = vpow.pop %v10939
      %v10941 = vmul.f32 %v10928, 1.442695
      %v10942 = vpow.pop %v10941
      %v10943 = vmul.f32 %v10929, 1.442695
      %v10944 = vpow.pop %v10943
      %v10945 = vmul.f32 %v10930, 1.442695
      %v10946 = vpow.pop %v10945
      %v10947 = vmul.f32 %v10931, 1.442695
      %v10948 = vpow.pop %v10947
      %v10949 = vmul.f32 %v10932, 1.442695
      %v10950 = vpow.pop %v10949
      %v10951 = vmul.f32 %v10933, 1.442695
      %v10952 = vpow.pop %v10951
      %v10953 = vmul.f32 %v10934, 1.442695
      %v10954 = vpow.pop %v10953
      %v10955 = vadd.f32 %v10936, 1.0
      %v10956 = vadd.f32 %v10938, 1.0
      %v10957 = vadd.f32 %v10940, 1.0
      %v10958 = vadd.f32 %v10942, 1.0
      %v10959 = vadd.f32 %v10944, 1.0
      %v10960 = vadd.f32 %v10946, 1.0
      %v10961 = vadd.f32 %v10948, 1.0
      %v10962 = vadd.f32 %v10950, 1.0
      %v10963 = vadd.f32 %v10952, 1.0
      %v10964 = vadd.f32 %v10954, 1.0
      %v10965 = vrcp.pop %v10955
      %v10966 = vrcp.pop %v10956
      %v10967 = vrcp.pop %v10957
      %v10968 = vrcp.pop %v10958
      %v10969 = vrcp.pop %v10959
      %v10970 = vrcp.pop %v10960
      %v10971 = vrcp.pop %v10961
      %v10972 = vrcp.pop %v10962
      %v10973 = vrcp.pop %v10963
      %v10974 = vrcp.pop %v10964
      %v10975 = vmul.f32 %v6698, %v10965
      %v10976 = vmul.f32 %v6700, %v10966
      %v10977 = vmul.f32 %v6739, %v10967
      %v10978 = vmul.f32 %v6741, %v10968
      %v10979 = vmul.f32 %v6780, %v10969
      %v10980 = vmul.f32 %v6782, %v10970
      %v10981 = vmul.f32 %v6821, %v10971
      %v10982 = vmul.f32 %v6823, %v10972
      %v10983 = vmul.f32 %v6862, %v10973
      %v10984 = vmul.f32 %v6864, %v10974
      %10985 = vst [vmem:[%s253] sm:$0xff] %v10975
      %10986 = vst [vmem:[%s253 + $0x8] sm:$0xff] %v10976
      %10987 = vst [vmem:[%s253 + $0x10] sm:$0xff] %v10977
      %10988 = vst [vmem:[%s253 + $0x18] sm:$0xff] %v10978
      %10989 = vst [vmem:[%s253 + $0x20] sm:$0xff] %v10979
      %10990 = vst [vmem:[%s253 + $0x28] sm:$0xff] %v10980
      %10991 = vst [vmem:[%s253 + $0x30] sm:$0xff] %v10981
      %10992 = vst [vmem:[%s253 + $0x38] sm:$0xff] %v10982
      %10993 = vst [vmem:[%s253 + $0x40] sm:$0xff] %v10983
      %10994 = vst [vmem:[%s253 + $0x48] sm:$0xff] %v10984
      %s10995 = smul.u32 10, %s17
      %p10996 = scmp.lt.s32.totalorder %s10995, 19
      %s10997 = scalar_select %p10996, %s10995, 19
      %s10998 = smul.addr %s10997, 8
      %s10999 = scalar_lea.vmem %s6, %s10998
      // Predicated region
      $region45: #{rfdb_forward.1} parent=43 // pred_check
        %p11000 = pneg %p166
      $region46: #{rfdb_forward.1} parent=43 // pred_check_branch
        %11002 = sbr.rel (%p11000) target = $region48
      $region47: #{rfdb_forward.1} parent=43 // pred_region
        %s11003 = smul.u32 10, %s17
      $region48: #{rfdb_forward.1} parent=43 // pred_fallthru
        _
    $region44: #{rfdb_forward.1} parent=5 // pred_fallthru
      _
    %p11004 = scmp.le.s32.totalorder 2, %s12
    // Predicated region
    $region49: #{rfdb_forward.1} parent=5 // pred_check
      %p11005 = pneg %p11004
    $region50: #{rfdb_forward.1} parent=5 // pred_check_branch
      %11007 = sbr.rel (%p11005) target = $region52
    $region51: #{rfdb_forward.1} parent=5 // pred_region
      %s11008 = ssub.s32 %s12, 2
      // Predicated region
      $region53: #{rfdb_forward.1} parent=51 // pred_check
        %p11009 = pneg %p172
      $region54: #{rfdb_forward.1} parent=51 // pred_check_branch
        %11011 = sbr.rel (%p11009) target = $region56
      $region55: #{rfdb_forward.1} parent=51 // pred_region
        %s11012 = smul.u32 10, %s18
        %p11013 = scmp.lt.s32.totalorder %s11012, 19
        %s11014 = scalar_select %p11013, %s11012, 19
        %s11015 = smul.addr %s11014, 8
        %s11016 = scalar_lea.vmem %s6, %s11015
      $region56: #{rfdb_forward.1} parent=51 // pred_fallthru
        _
    $region52: #{rfdb_forward.1} parent=5 // pred_fallthru
      _
  $region6: #{rfdb_forward.1} parent=0 // loop_footer
    %s16 = sadd.s32 1, %s12
  $region7: #{rfdb_forward.1} parent=0 // loop_footer_branch
    %11 = sbr.rel target = $region3
  $region8: #{rfdb_forward.1} parent=0 // loop_exit
    _

</llo_original>
